<compile_context>
chip_gen: v5e
topology: v5e:2x2
jax: 0.10.0
libtpu: 0.0.40
codegen_flags: <defaults>
</compile_context>

<pallas_src>
import functools

import jax
import jax.numpy as jnp
from jax.experimental import pallas as pl
from jax.experimental.pallas import tpu as pltpu

K_NN = 20        # K in the PyTorch module
SLOPE = 0.2      # LeakyReLU negative slope
BN_EPS = 1e-5

EDGE_TR_TARGET = 1024    # point-rows per edge-conv tile
LINEAR_TM_TARGET = 512   # rows per fused-linear tile
PDIST_TN_TARGET = 256    # query rows per pdist tile
POOL_TN_TARGET = 512     # points per max-pool tile


def _pick_rows(m, target):
    """Largest divisor of m that is <= target and a multiple of 8 (or m itself)."""
    for d in range(min(target, m), 0, -1):
        if m % d == 0 and (d % 8 == 0 or d == m):
            return d
    return m


# ----------------------------- Pallas kernels -----------------------------

def _linear_kernel(x_ref, w_ref, s_ref, b_ref, o_ref, *, slope):
    # matmul (bf16 operands, f32 acc) + folded BN affine + LeakyReLU (slope=1 => id)
    y = jnp.dot(x_ref[...].astype(jnp.bfloat16), w_ref[...],
                preferred_element_type=jnp.float32)
    y = y * s_ref[...] + b_ref[...]
    o_ref[...] = jnp.where(y >= 0, y, slope * y)


def _edge_conv_kernel(g_ref, c_ref, wa_ref, wd_ref, s_ref, b_ref, o_ref,
                      cacc_ref, macc_ref, *, slope):
    # One neighbor slice j of an edge conv with fused k-max:
    #   y_j = leakyrelu((g_j @ W_a + c @ (W_b - W_a)) * scale + shift)
    #   out = max_j y_j
    j = pl.program_id(1)

    @pl.when(j == 0)
    def _():
        cacc_ref[...] = jnp.dot(c_ref[...], wd_ref[...],
                                preferred_element_type=jnp.float32)

    y = jnp.dot(g_ref[0], wa_ref[...], preferred_element_type=jnp.float32)
    y = (y + cacc_ref[...]) * s_ref[...] + b_ref[...]
    y = jnp.where(y >= 0, y, slope * y)

    @pl.when(j == 0)
    def _():
        macc_ref[...] = y

    @pl.when(j > 0)
    def _():
        macc_ref[...] = jnp.maximum(macc_ref[...], y)

    @pl.when(j == pl.num_programs(1) - 1)
    def _():
        o_ref[...] = macc_ref[...]


def _tnet_edge_kernel(g_ref, c_ref, w1a_ref, w1d_ref, s1_ref, b1_ref,
                      w2_ref, s2_ref, b2_ref, o_ref,
                      cacc_ref, macc_ref, *, slope):
    # transform_net conv2d1 + conv2d2 + k-max fused, per neighbor slice j.
    j = pl.program_id(1)

    @pl.when(j == 0)
    def _():
        cacc_ref[...] = jnp.dot(c_ref[...], w1d_ref[...],
                                preferred_element_type=jnp.float32)

    h = jnp.dot(g_ref[0], w1a_ref[...], preferred_element_type=jnp.float32)
    h = (h + cacc_ref[...]) * s1_ref[...] + b1_ref[...]
    h = jnp.where(h >= 0, h, slope * h)

    y = jnp.dot(h.astype(jnp.bfloat16), w2_ref[...],
                preferred_element_type=jnp.float32)
    y = y * s2_ref[...] + b2_ref[...]
    y = jnp.where(y >= 0, y, slope * y)

    @pl.when(j == 0)
    def _():
        macc_ref[...] = y

    @pl.when(j > 0)
    def _():
        macc_ref[...] = jnp.maximum(macc_ref[...], y)

    @pl.when(j == pl.num_programs(1) - 1)
    def _():
        o_ref[...] = macc_ref[...]


def _pdist_kernel(xr_ref, xa_ref, o_ref):
    # channels-last negative squared pairwise distance for a row tile:
    #   o[i, j] = 2 * <x_i, x_j> - |x_i|^2 - |x_j|^2   (kept in f32 for kNN ties)
    xr = xr_ref[0]                                          # (tn, C)
    xa = xa_ref[0]                                          # (N, C)
    g = jnp.dot(xr, xa.T, preferred_element_type=jnp.float32)   # (tn, N)
    xx_r = jnp.sum(xr * xr, axis=1, keepdims=True)          # (tn, 1)
    xx_a = jnp.sum(xa * xa, axis=1, keepdims=True)          # (N, 1)
    o_ref[0] = 2.0 * g - xx_r - xx_a.T


def _max_rows_kernel(x_ref, o_ref, acc_ref):
    # tiled max over the N (points) axis with a running-max scratch
    m = jnp.max(x_ref[0], axis=0, keepdims=True)            # (1, C)
    j = pl.program_id(1)

    @pl.when(j == 0)
    def _():
        acc_ref[...] = m

    @pl.when(j > 0)
    def _():
        acc_ref[...] = jnp.maximum(acc_ref[...], m)

    @pl.when(j == pl.num_programs(1) - 1)
    def _():
        o_ref[0] = acc_ref[...]


# ----------------------------- Pallas wrappers -----------------------------

def fused_linear(x, layer, slope=SLOPE):
    """x: [M, Cin] f32 -> [M, Cout] f32 (matmul + BN affine + LeakyReLU)."""
    m, cin = x.shape
    cout = layer['w'].shape[1]
    tm = _pick_rows(m, LINEAR_TM_TARGET)
    w = layer['w'].astype(jnp.bfloat16)
    return pl.pallas_call(
        functools.partial(_linear_kernel, slope=slope),
        out_shape=jax.ShapeDtypeStruct((m, cout), jnp.float32),
        grid=(m // tm,),
        in_specs=[
            pl.BlockSpec((tm, cin), lambda i: (i, 0)),
            pl.BlockSpec((cin, cout), lambda i: (0, 0)),
            pl.BlockSpec((1, cout), lambda i: (0, 0)),
            pl.BlockSpec((1, cout), lambda i: (0, 0)),
        ],
        out_specs=pl.BlockSpec((tm, cout), lambda i: (i, 0)),
        compiler_params=pltpu.CompilerParams(
            dimension_semantics=("parallel",)),
    )(x, w, layer['s'].reshape(1, cout), layer['b'].reshape(1, cout))


def pairwise_neg_sqdist(x_bnc):
    """x: [B, N, C] f32 -> [B, N, N] negative squared distances (for kNN)."""
    b, n, c = x_bnc.shape
    tn = _pick_rows(n, PDIST_TN_TARGET)
    return pl.pallas_call(
        _pdist_kernel,
        out_shape=jax.ShapeDtypeStruct((b, n, n), jnp.float32),
        grid=(b, n // tn),
        in_specs=[
            pl.BlockSpec((1, tn, c), lambda bb, i: (bb, i, 0)),
            pl.BlockSpec((1, n, c), lambda bb, i: (bb, 0, 0)),
        ],
        out_specs=pl.BlockSpec((1, tn, n), lambda bb, i: (bb, i, 0)),
        compiler_params=pltpu.CompilerParams(
            dimension_semantics=("parallel", "parallel")),
    )(x_bnc, x_bnc)


def max_over_points(x_bnc):
    """x: [B, N, C] -> [B, C] (max over the points axis, tiled)."""
    b, n, c = x_bnc.shape
    tn = _pick_rows(n, POOL_TN_TARGET)
    out = pl.pallas_call(
        _max_rows_kernel,
        out_shape=jax.ShapeDtypeStruct((b, 1, c), x_bnc.dtype),
        grid=(b, n // tn),
        in_specs=[pl.BlockSpec((1, tn, c), lambda bb, j: (bb, j, 0))],
        out_specs=pl.BlockSpec((1, 1, c), lambda bb, j: (bb, 0, 0)),
        scratch_shapes=[pltpu.VMEM((1, c), x_bnc.dtype)],
        compiler_params=pltpu.CompilerParams(
            dimension_semantics=("parallel", "arbitrary")),
    )(x_bnc)
    return out.reshape(b, c)


def get_graph_feature_parts(x_bnc, k):
    """x: [B, N, C] f32 -> (gathered [k, B*N, C] bf16, center [B*N, C] bf16)."""
    b, n, c = x_bnc.shape
    neg_dist = pairwise_neg_sqdist(x_bnc)                   # [B, N, N]  (Pallas)
    # TODO(synk): top_k + gather stay in XLA; torch.topk tie-breaking may differ
    # for coincident points. A Pallas DMA-gather / fused top-k would also avoid
    # materializing the [k, B*N, C] tensor.
    _, idx = jax.lax.top_k(neg_dist, k)                     # [B, N, k]
    base = (jnp.arange(b, dtype=idx.dtype) * n)[:, None, None]
    fidx = (idx + base).reshape(b * n, k)                   # [B*N, k]
    x_flat = x_bnc.reshape(b * n, c).astype(jnp.bfloat16)
    gathered = jnp.take(x_flat, fidx.T, axis=0)             # [k, B*N, C]
    return gathered, x_flat


def edge_conv(x_bnc, layer, k=K_NN):
    """One DGCNN edge conv: graph feature + 1x1 conv + BN + LeakyReLU + max over k."""
    b, n, c = x_bnc.shape
    r = b * n
    cout = layer['w'].shape[1]
    gathered, center = get_graph_feature_parts(x_bnc, k)
    # concat([g - c, c]) @ W  ==  g @ W_a + c @ (W_b - W_a)
    wa = layer['w'][:c].astype(jnp.bfloat16)
    wd = (layer['w'][c:] - layer['w'][:c]).astype(jnp.bfloat16)
    tr = _pick_rows(r, EDGE_TR_TARGET)
    out = pl.pallas_call(
        functools.partial(_edge_conv_kernel, slope=SLOPE),
        out_shape=jax.ShapeDtypeStruct((r, cout), jnp.float32),
        grid=(r // tr, k),
        in_specs=[
            pl.BlockSpec((1, tr, c), lambda i, j: (j, i, 0)),
            pl.BlockSpec((tr, c), lambda i, j: (i, 0)),
            pl.BlockSpec((c, cout), lambda i, j: (0, 0)),
            pl.BlockSpec((c, cout), lambda i, j: (0, 0)),
            pl.BlockSpec((1, cout), lambda i, j: (0, 0)),
            pl.BlockSpec((1, cout), lambda i, j: (0, 0)),
        ],
        out_specs=pl.BlockSpec((tr, cout), lambda i, j: (i, 0)),
        scratch_shapes=[pltpu.VMEM((tr, cout), jnp.float32),
                        pltpu.VMEM((tr, cout), jnp.float32)],
        compiler_params=pltpu.CompilerParams(
            dimension_semantics=("parallel", "arbitrary")),
    )(gathered, center, wa, wd,
      layer['s'].reshape(1, cout), layer['b'].reshape(1, cout))
    return out.reshape(b, n, cout)


def _xla_fc(x, layer, slope):
    # tiny B-row FC layers: plain XLA per perf review (kernel launch >> compute)
    y = (x @ layer['w']) * layer['s'] + layer['b']
    return jnp.where(y >= 0, y, slope * y)


def transform_net_fwd(x_bnc, p, k=K_NN):
    """Input transform net: [B, N, 3] points -> [B, 3, 3] transform matrices."""
    b, n, c = x_bnc.shape
    r = b * n
    gathered, center = get_graph_feature_parts(x_bnc, k)
    w1 = p['c1']['w']                                        # (6, 64)
    w1a = w1[:c].astype(jnp.bfloat16)
    w1d = (w1[c:] - w1[:c]).astype(jnp.bfloat16)
    w2 = p['c2']['w'].astype(jnp.bfloat16)                   # (64, 128)
    tr = _pick_rows(r, EDGE_TR_TARGET)
    h = pl.pallas_call(
        functools.partial(_tnet_edge_kernel, slope=SLOPE),
        out_shape=jax.ShapeDtypeStruct((r, 128), jnp.float32),
        grid=(r // tr, k),
        in_specs=[
            pl.BlockSpec((1, tr, c), lambda i, j: (j, i, 0)),
            pl.BlockSpec((tr, c), lambda i, j: (i, 0)),
            pl.BlockSpec((c, 64), lambda i, j: (0, 0)),
            pl.BlockSpec((c, 64), lambda i, j: (0, 0)),
            pl.BlockSpec((1, 64), lambda i, j: (0, 0)),
            pl.BlockSpec((1, 64), lambda i, j: (0, 0)),
            pl.BlockSpec((64, 128), lambda i, j: (0, 0)),
            pl.BlockSpec((1, 128), lambda i, j: (0, 0)),
            pl.BlockSpec((1, 128), lambda i, j: (0, 0)),
        ],
        out_specs=pl.BlockSpec((tr, 128), lambda i, j: (i, 0)),
        scratch_shapes=[pltpu.VMEM((tr, 64), jnp.float32),
                        pltpu.VMEM((tr, 128), jnp.float32)],
        compiler_params=pltpu.CompilerParams(
            dimension_semantics=("parallel", "arbitrary")),
    )(gathered, center, w1a, w1d,
      p['c1']['s'].reshape(1, 64), p['c1']['b'].reshape(1, 64),
      w2, p['c2']['s'].reshape(1, 128), p['c2']['b'].reshape(1, 128))

    h3 = fused_linear(h, p['c3'])                            # [B*N, 1024]
    pooled = max_over_points(h3.reshape(b, n, 1024))         # [B, 1024]
    x = _xla_fc(pooled, p['fc1'], SLOPE)                     # [B, 512]
    x = _xla_fc(x, p['fc2'], SLOPE)                          # [B, 256]
    x = _xla_fc(x, p['fc3'], 1.0)                            # [B, 9]
    return x.reshape(b, 3, 3) + jnp.eye(3, dtype=jnp.float32)[None]


# ----------------------------- model forward -----------------------------

def dgcnn_forward(pts, params):
    """pts: [B, N, 3]  (same as the PyTorch module's input)."""
    b, n, _ = pts.shape

    t_mat = transform_net_fwd(pts, params['tnet'])           # [B, 3, 3]
    # torch.matmul(T, x_{B,3,N})  ==  (channels-last) x_{B,N,3} . T^T  -- tiny, XLA
    x = jnp.einsum('bij,bnj->bni', t_mat, pts)               # [B, N, 3]

    x1 = edge_conv(x, params['conv1'])                       # [B, N, 64]
    x2 = edge_conv(x1, params['conv2'])                      # [B, N, 64]
    x3 = edge_conv(x2, params['conv3'])                      # [B, N, 128]
    x4 = edge_conv(x3, params['conv4'])                      # [B, N, 256]

    xcat = jnp.concatenate([x1, x2, x3, x4], axis=-1)        # [B, N, 512]
    x5 = fused_linear(xcat.reshape(b * n, 512), params['conv5'])   # [B*N, 1024]
    feats = max_over_points(x5.reshape(b, n, 1024))          # [B, 1024]

    # classifier (Dropout == identity in inference mode)
    h = _xla_fc(feats, params['mlp1'], SLOPE)                # [B, 512]
    h = _xla_fc(h, params['mlp2'], SLOPE)                    # [B, 256]
    logits = _xla_fc(h, params['mlp3'], 1.0)                 # [B, num_class]
    return logits


# ----------------------------- parameter init -----------------------------

def init_params(key, num_class=10):
    keys = iter(jax.random.split(key, 128))

    def nxt():
        return next(keys)

    def layer(cin, cout, *, bias, bn=True):
        w = 0.05 * jax.random.normal(nxt(), (cin, cout), jnp.float32)
        b_lin = (0.05 * jax.random.normal(nxt(), (cout,), jnp.float32)
                 if bias else jnp.zeros((cout,), jnp.float32))
        if bn:
            gamma = 1.0 + 0.1 * jax.random.normal(nxt(), (cout,), jnp.float32)
            beta = 0.1 * jax.random.normal(nxt(), (cout,), jnp.float32)
            rm = 0.1 * jax.random.normal(nxt(), (cout,), jnp.float32)
            rv = jax.random.uniform(nxt(), (cout,), jnp.float32, 0.5, 1.5)
            scale = gamma / jnp.sqrt(rv + BN_EPS)
            shift = (b_lin - rm) * scale + beta
        else:
            scale = jnp.ones((cout,), jnp.float32)
            shift = b_lin
        return {'w': w, 's': scale, 'b': shift}

    tnet = {
        'c1': layer(6, 64, bias=False),
        'c2': layer(64, 128, bias=False),
        'c3': layer(128, 1024, bias=False),
        'fc1': layer(1024, 512, bias=False),
        'fc2': layer(512, 256, bias=True),
        'fc3': layer(256, 9, bias=True, bn=False),
    }
    return {
        'tnet': tnet,
        'conv1': layer(6, 64, bias=False),
        'conv2': layer(128, 64, bias=False),
        'conv3': layer(128, 128, bias=False),
        'conv4': layer(256, 256, bias=False),
        'conv5': layer(512, 1024, bias=False),
        'mlp1': layer(1024, 512, bias=True),
        'mlp2': layer(512, 256, bias=True),
        'mlp3': layer(256, num_class, bias=True, bn=False),
    }


# ----------------------------- main -----------------------------

if __name__ == "__main__":
    key = jax.random.PRNGKey(0)
    pkey, xkey = jax.random.split(key)

    B, N = 2, 32                      # N must be >= K_NN (=20)
    pts = jax.random.normal(xkey, (B, N, 3), jnp.float32)   # x: [B, N, 3]
    params = init_params(pkey, num_class=10)

    fwd = jax.jit(dgcnn_forward)
    logits = fwd(pts, params)
    jax.block_until_ready(logits)

    assert logits.shape == (B, 10), logits.shape
    assert bool(jnp.all(jnp.isfinite(logits)))
    print("KERNEL_OK")
</pallas_src>

<mosaic_0001>
module attributes {stable_mosaic.version = 11 : i64} {
  func.func @_pdist_kernel(%arg0: i32, %arg1: i32, %arg2: memref<1x32x3xf32, #tpu.memory_space<vmem>>, %arg3: memref<1x32x3xf32, #tpu.memory_space<vmem>>, %arg4: memref<1x32x32xf32, #tpu.memory_space<vmem>>) attributes {dimension_semantics = [#tpu.dimension_semantics<parallel>, #tpu.dimension_semantics<parallel>], iteration_bounds = array<i64: 2, 1>, scalar_prefetch = 0 : i64, scratch_operands = 0 : i64, tpu.core_type = #tpu.core_type<tc>, window_params = [{transform_indices = @transform_0, window_bounds = array<i64: 1, 32, 3>}, {transform_indices = @transform_1, window_bounds = array<i64: 1, 32, 3>}, {transform_indices = @transform_2, window_bounds = array<i64: 1, 32, 32>}]} {
    %c0 = arith.constant 0 : index
    %c0_0 = arith.constant 0 : index
    %c0_1 = arith.constant 0 : index
    %0 = vector.load %arg2[%c0, %c0_0, %c0_1] : memref<1x32x3xf32, #tpu.memory_space<vmem>>, vector<1x32x3xf32>
    %1 = vector.shape_cast %0 : vector<1x32x3xf32> to vector<32x3xf32>
    %c0_2 = arith.constant 0 : index
    %c0_3 = arith.constant 0 : index
    %c0_4 = arith.constant 0 : index
    %2 = vector.load %arg3[%c0_2, %c0_3, %c0_4] : memref<1x32x3xf32, #tpu.memory_space<vmem>>, vector<1x32x3xf32>
    %3 = vector.shape_cast %2 : vector<1x32x3xf32> to vector<32x3xf32>
    %4 = tpu.transpose %3, [1, 0] : vector<32x3xf32> -> vector<3x32xf32>
    %cst = arith.constant dense<0.000000e+00> : vector<32x32xf32>
    %5 = tpu.matmul %1, %4, %cst {dimension_numbers = #tpu.dot_dimension_numbers<[1], [0], [0], [1], [0, 0, 1, 1], [], []>} : vector<32x3xf32>, vector<3x32xf32>, vector<32x32xf32> -> vector<32x32xf32>
    %6 = arith.mulf %1, %1 : vector<32x3xf32>
    %cst_5 = arith.constant dense<0.000000e+00> : vector<32xf32>
    %7 = vector.multi_reduction <add>, %6, %cst_5 [1] : vector<32x3xf32> to vector<32xf32>
    %8 = vector.shape_cast %7 : vector<32xf32> to vector<32x1xf32>
    %9 = arith.mulf %3, %3 : vector<32x3xf32>
    %cst_6 = arith.constant dense<0.000000e+00> : vector<32xf32>
    %10 = vector.multi_reduction <add>, %9, %cst_6 [1] : vector<32x3xf32> to vector<32xf32>
    %11 = vector.shape_cast %10 : vector<32xf32> to vector<32x1xf32>
    %cst_7 = arith.constant 2.000000e+00 : f32
    %12 = vector.broadcast %cst_7 : f32 to vector<32x32xf32>
    %13 = arith.mulf %12, %5 : vector<32x32xf32>
    %14 = vector.broadcast %8 : vector<32x1xf32> to vector<32x32xf32>
    %15 = arith.subf %13, %14 : vector<32x32xf32>
    %16 = tpu.transpose %11, [1, 0] : vector<32x1xf32> -> vector<1x32xf32>
    %17 = vector.broadcast %16 : vector<1x32xf32> to vector<32x32xf32>
    %18 = arith.subf %15, %17 : vector<32x32xf32>
    %c0_8 = arith.constant 0 : index
    %c0_9 = arith.constant 0 : index
    %c0_10 = arith.constant 0 : index
    %19 = vector.load %arg4[%c0_8, %c0_9, %c0_10] : memref<1x32x32xf32, #tpu.memory_space<vmem>>, vector<1x32x32xf32>
    %20 = vector.shape_cast %19 : vector<1x32x32xf32> to vector<32x32xf32>
    %21 = vector.shape_cast %18 : vector<32x32xf32> to vector<1x32x32xf32>
    tpu.vector_store %arg4[%c0_8, %c0_9, %c0_10], %21 {strides = array<i32>} : memref<1x32x32xf32, #tpu.memory_space<vmem>>, vector<1x32x32xf32>,
    return
  }
  func.func @transform_0(%arg0: i32, %arg1: i32) -> (i32, i32, i32) {
    %c0_i32 = arith.constant 0 : i32
    %c0_i32_0 = arith.constant 0 : i32
    return %arg0, %arg1, %c0_i32 : i32, i32, i32
  }
  func.func @transform_1(%arg0: i32, %arg1: i32) -> (i32, i32, i32) {
    %c0_i32 = arith.constant 0 : i32
    %c0_i32_0 = arith.constant 0 : i32
    %c0_i32_1 = arith.constant 0 : i32
    return %arg0, %c0_i32, %c0_i32_0 : i32, i32, i32
  }
  func.func @transform_2(%arg0: i32, %arg1: i32) -> (i32, i32, i32) {
    %c0_i32 = arith.constant 0 : i32
    %c0_i32_0 = arith.constant 0 : i32
    return %arg0, %arg1, %c0_i32 : i32, i32, i32
  }
}

module attributes {stable_mosaic.version = 11 : i64} {
  func.func @_tnet_edge_kernel(%arg0: i32, %arg1: i32, %arg2: memref<1x64x3xbf16, #tpu.memory_space<vmem>>, %arg3: memref<64x3xbf16, #tpu.memory_space<vmem>>, %arg4: memref<3x64xbf16, #tpu.memory_space<vmem>>, %arg5: memref<3x64xbf16, #tpu.memory_space<vmem>>, %arg6: memref<1x64xf32, #tpu.memory_space<vmem>>, %arg7: memref<1x64xf32, #tpu.memory_space<vmem>>, %arg8: memref<64x128xbf16, #tpu.memory_space<vmem>>, %arg9: memref<1x128xf32, #tpu.memory_space<vmem>>, %arg10: memref<1x128xf32, #tpu.memory_space<vmem>>, %arg11: memref<64x128xf32, #tpu.memory_space<vmem>>, %arg12: memref<64x64xf32, #tpu.memory_space<vmem>>, %arg13: memref<64x128xf32, #tpu.memory_space<vmem>>) attributes {dimension_semantics = [#tpu.dimension_semantics<parallel>, #tpu.dimension_semantics<arbitrary>], iteration_bounds = array<i64: 1, 20>, scalar_prefetch = 0 : i64, scratch_operands = 2 : i64, tpu.core_type = #tpu.core_type<tc>, window_params = [{transform_indices = @transform_0, window_bounds = array<i64: 1, 64, 3>}, {transform_indices = @transform_1, window_bounds = array<i64: 64, 3>}, {pipeline_mode = #tpu.pipeline_mode<synchronous>, transform_indices = @transform_2, window_bounds = array<i64: 3, 64>}, {pipeline_mode = #tpu.pipeline_mode<synchronous>, transform_indices = @transform_3, window_bounds = array<i64: 3, 64>}, {pipeline_mode = #tpu.pipeline_mode<synchronous>, transform_indices = @transform_4, window_bounds = array<i64: 1, 64>}, {pipeline_mode = #tpu.pipeline_mode<synchronous>, transform_indices = @transform_5, window_bounds = array<i64: 1, 64>}, {pipeline_mode = #tpu.pipeline_mode<synchronous>, transform_indices = @transform_6, window_bounds = array<i64: 64, 128>}, {pipeline_mode = #tpu.pipeline_mode<synchronous>, transform_indices = @transform_7, window_bounds = array<i64: 1, 128>}, {pipeline_mode = #tpu.pipeline_mode<synchronous>, transform_indices = @transform_8, window_bounds = array<i64: 1, 128>}, {transform_indices = @transform_9, window_bounds = array<i64: 64, 128>}]} {
    %c0_i32 = arith.constant 0 : i32
    %0 = arith.cmpi eq, %arg1, %c0_i32 : i32
    %1 = arith.extui %0 : i1 to i32
    %c0_i32_0 = arith.constant 0 : i32
    %2 = arith.cmpi ne, %1, %c0_i32_0 : i32
    scf.if %2 {
      %c0_27 = arith.constant 0 : index
      %c0_28 = arith.constant 0 : index
      %43 = vector.load %arg3[%c0_27, %c0_28] : memref<64x3xbf16, #tpu.memory_space<vmem>>, vector<64x3xbf16>
      %c0_29 = arith.constant 0 : index
      %c0_30 = arith.constant 0 : index
      %44 = vector.load %arg5[%c0_29, %c0_30] : memref<3x64xbf16, #tpu.memory_space<vmem>>, vector<3x64xbf16>
      %cst_31 = arith.constant dense<0.000000e+00> : vector<64x64xf32>
      %45 = tpu.matmul %43, %44, %cst_31 {dimension_numbers = #tpu.dot_dimension_numbers<[1], [0], [0], [1], [0, 0, 1, 1], [], []>} : vector<64x3xbf16>, vector<3x64xbf16>, vector<64x64xf32> -> vector<64x64xf32>
      %c0_32 = arith.constant 0 : index
      %c0_33 = arith.constant 0 : index
      %46 = vector.load %arg12[%c0_32, %c0_33] : memref<64x64xf32, #tpu.memory_space<vmem>>, vector<64x64xf32>
      tpu.vector_store %arg12[%c0_32, %c0_33], %45 {strides = array<i32>} : memref<64x64xf32, #tpu.memory_space<vmem>>, vector<64x64xf32>,
    } else {
    }
    %c0 = arith.constant 0 : index
    %c0_1 = arith.constant 0 : index
    %c0_2 = arith.constant 0 : index
    %3 = vector.load %arg2[%c0, %c0_1, %c0_2] : memref<1x64x3xbf16, #tpu.memory_space<vmem>>, vector<1x64x3xbf16>
    %4 = vector.shape_cast %3 : vector<1x64x3xbf16> to vector<64x3xbf16>
    %c0_3 = arith.constant 0 : index
    %c0_4 = arith.constant 0 : index
    %5 = vector.load %arg4[%c0_3, %c0_4] : memref<3x64xbf16, #tpu.memory_space<vmem>>, vector<3x64xbf16>
    %cst = arith.constant dense<0.000000e+00> : vector<64x64xf32>
    %6 = tpu.matmul %4, %5, %cst {dimension_numbers = #tpu.dot_dimension_numbers<[1], [0], [0], [1], [0, 0, 1, 1], [], []>} : vector<64x3xbf16>, vector<3x64xbf16>, vector<64x64xf32> -> vector<64x64xf32>
    %c0_5 = arith.constant 0 : index
    %c0_6 = arith.constant 0 : index
    %7 = vector.load %arg12[%c0_5, %c0_6] : memref<64x64xf32, #tpu.memory_space<vmem>>, vector<64x64xf32>
    %8 = arith.addf %6, %7 : vector<64x64xf32>
    %c0_7 = arith.constant 0 : index
    %c0_8 = arith.constant 0 : index
    %9 = vector.load %arg6[%c0_7, %c0_8] : memref<1x64xf32, #tpu.memory_space<vmem>>, vector<1x64xf32>
    %10 = vector.broadcast %9 : vector<1x64xf32> to vector<64x64xf32>
    %11 = arith.mulf %8, %10 : vector<64x64xf32>
    %c0_9 = arith.constant 0 : index
    %c0_10 = arith.constant 0 : index
    %12 = vector.load %arg7[%c0_9, %c0_10] : memref<1x64xf32, #tpu.memory_space<vmem>>, vector<1x64xf32>
    %13 = vector.broadcast %12 : vector<1x64xf32> to vector<64x64xf32>
    %14 = arith.addf %11, %13 : vector<64x64xf32>
    %cst_11 = arith.constant 0.000000e+00 : f32
    %15 = vector.broadcast %cst_11 : f32 to vector<64x64xf32>
    %16 = arith.cmpf oge, %14, %15 : vector<64x64xf32>
    %cst_12 = arith.constant 2.000000e-01 : f32
    %17 = vector.broadcast %cst_12 : f32 to vector<64x64xf32>
    %18 = arith.mulf %17, %14 : vector<64x64xf32>
    %19 = arith.select %16, %14, %18 : vector<64x64xi1>, vector<64x64xf32>
    %20 = arith.truncf %19 : vector<64x64xf32> to vector<64x64xbf16>
    %c0_13 = arith.constant 0 : index
    %c0_14 = arith.constant 0 : index
    %21 = vector.load %arg8[%c0_13, %c0_14] : memref<64x128xbf16, #tpu.memory_space<vmem>>, vector<64x128xbf16>
    %cst_15 = arith.constant dense<0.000000e+00> : vector<64x128xf32>
    %22 = tpu.matmul %20, %21, %cst_15 {dimension_numbers = #tpu.dot_dimension_numbers<[1], [0], [0], [1], [0, 0, 1, 1], [], []>} : vector<64x64xbf16>, vector<64x128xbf16>, vector<64x128xf32> -> vector<64x128xf32>
    %c0_16 = arith.constant 0 : index
    %c0_17 = arith.constant 0 : index
    %23 = vector.load %arg9[%c0_16, %c0_17] : memref<1x128xf32, #tpu.memory_space<vmem>>, vector<1x128xf32>
    %24 = vector.broadcast %23 : vector<1x128xf32> to vector<64x128xf32>
    %25 = arith.mulf %22, %24 : vector<64x128xf32>
    %c0_18 = arith.constant 0 : index
    %c0_19 = arith.constant 0 : index
    %26 = vector.load %arg10[%c0_18, %c0_19] : memref<1x128xf32, #tpu.memory_space<vmem>>, vector<1x128xf32>
    %27 = vector.broadcast %26 : vector<1x128xf32> to vector<64x128xf32>
    %28 = arith.addf %25, %27 : vector<64x128xf32>
    %cst_20 = arith.constant 0.000000e+00 : f32
    %29 = vector.broadcast %cst_20 : f32 to vector<64x128xf32>
    %30 = arith.cmpf oge, %28, %29 : vector<64x128xf32>
    %cst_21 = arith.constant 2.000000e-01 : f32
    %31 = vector.broadcast %cst_21 : f32 to vector<64x128xf32>
    %32 = arith.mulf %31, %28 : vector<64x128xf32>
    %33 = arith.select %30, %28, %32 : vector<64x128xi1>, vector<64x128xf32>
    %c0_i32_22 = arith.constant 0 : i32
    %34 = arith.cmpi eq, %arg1, %c0_i32_22 : i32
    %35 = arith.extui %34 : i1 to i32
    %c0_i32_23 = arith.constant 0 : i32
    %36 = arith.cmpi ne, %35, %c0_i32_23 : i32
    scf.if %36 {
      %c0_27 = arith.constant 0 : index
      %c0_28 = arith.constant 0 : index
      %43 = vector.load %arg13[%c0_27, %c0_28] : memref<64x128xf32, #tpu.memory_space<vmem>>, vector<64x128xf32>
      tpu.vector_store %arg13[%c0_27, %c0_28], %33 {strides = array<i32>} : memref<64x128xf32, #tpu.memory_space<vmem>>, vector<64x128xf32>,
    } else {
    }
    %c0_i32_24 = arith.constant 0 : i32
    %37 = arith.cmpi sgt, %arg1, %c0_i32_24 : i32
    %38 = arith.extui %37 : i1 to i32
    %c0_i32_25 = arith.constant 0 : i32
    %39 = arith.cmpi ne, %38, %c0_i32_25 : i32
    scf.if %39 {
      %c0_27 = arith.constant 0 : index
      %c0_28 = arith.constant 0 : index
      %43 = vector.load %arg13[%c0_27, %c0_28] : memref<64x128xf32, #tpu.memory_space<vmem>>, vector<64x128xf32>
      %44 = arith.maximumf %43, %33 : vector<64x128xf32>
      %c0_29 = arith.constant 0 : index
      %c0_30 = arith.constant 0 : index
      %45 = vector.load %arg13[%c0_29, %c0_30] : memref<64x128xf32, #tpu.memory_space<vmem>>, vector<64x128xf32>
      tpu.vector_store %arg13[%c0_29, %c0_30], %44 {strides = array<i32>} : memref<64x128xf32, #tpu.memory_space<vmem>>, vector<64x128xf32>,
    } else {
    }
    %c19_i32 = arith.constant 19 : i32
    %40 = arith.cmpi eq, %arg1, %c19_i32 : i32
    %41 = arith.extui %40 : i1 to i32
    %c0_i32_26 = arith.constant 0 : i32
    %42 = arith.cmpi ne, %41, %c0_i32_26 : i32
    scf.if %42 {
      %c0_27 = arith.constant 0 : index
      %c0_28 = arith.constant 0 : index
      %43 = vector.load %arg13[%c0_27, %c0_28] : memref<64x128xf32, #tpu.memory_space<vmem>>, vector<64x128xf32>
      %c0_29 = arith.constant 0 : index
      %c0_30 = arith.constant 0 : index
      %44 = vector.load %arg11[%c0_29, %c0_30] : memref<64x128xf32, #tpu.memory_space<vmem>>, vector<64x128xf32>
      tpu.vector_store %arg11[%c0_29, %c0_30], %43 {strides = array<i32>} : memref<64x128xf32, #tpu.memory_space<vmem>>, vector<64x128xf32>,
    } else {
    }
    return
  }
  func.func @transform_0(%arg0: i32, %arg1: i32) -> (i32, i32, i32) {
    %c0_i32 = arith.constant 0 : i32
    %c0_i32_0 = arith.constant 0 : i32
    return %arg1, %arg0, %c0_i32 : i32, i32, i32
  }
  func.func @transform_1(%arg0: i32, %arg1: i32) -> (i32, i32) {
    %c0_i32 = arith.constant 0 : i32
    %c0_i32_0 = arith.constant 0 : i32
    return %arg0, %c0_i32 : i32, i32
  }
  func.func @transform_2(%arg0: i32, %arg1: i32) -> (i32, i32) {
    %c0_i32 = arith.constant 0 : i32
    %c0_i32_0 = arith.constant 0 : i32
    %c0_i32_1 = arith.constant 0 : i32
    return %c0_i32, %c0_i32_0 : i32, i32
  }
  func.func @transform_3(%arg0: i32, %arg1: i32) -> (i32, i32) {
    %c0_i32 = arith.constant 0 : i32
    %c0_i32_0 = arith.constant 0 : i32
    %c0_i32_1 = arith.constant 0 : i32
    return %c0_i32, %c0_i32_0 : i32, i32
  }
  func.func @transform_4(%arg0: i32, %arg1: i32) -> (i32, i32) {
    %c0_i32 = arith.constant 0 : i32
    %c0_i32_0 = arith.constant 0 : i32
    %c0_i32_1 = arith.constant 0 : i32
    return %c0_i32, %c0_i32_0 : i32, i32
  }
  func.func @transform_5(%arg0: i32, %arg1: i32) -> (i32, i32) {
    %c0_i32 = arith.constant 0 : i32
    %c0_i32_0 = arith.constant 0 : i32
    %c0_i32_1 = arith.constant 0 : i32
    return %c0_i32, %c0_i32_0 : i32, i32
  }
  func.func @transform_6(%arg0: i32, %arg1: i32) -> (i32, i32) {
    %c0_i32 = arith.constant 0 : i32
    %c0_i32_0 = arith.constant 0 : i32
    %c0_i32_1 = arith.constant 0 : i32
    return %c0_i32, %c0_i32_0 : i32, i32
  }
  func.func @transform_7(%arg0: i32, %arg1: i32) -> (i32, i32) {
    %c0_i32 = arith.constant 0 : i32
    %c0_i32_0 = arith.constant 0 : i32
    %c0_i32_1 = arith.constant 0 : i32
    return %c0_i32, %c0_i32_0 : i32, i32
  }
  func.func @transform_8(%arg0: i32, %arg1: i32) -> (i32, i32) {
    %c0_i32 = arith.constant 0 : i32
    %c0_i32_0 = arith.constant 0 : i32
    %c0_i32_1 = arith.constant 0 : i32
    return %c0_i32, %c0_i32_0 : i32, i32
  }
  func.func @transform_9(%arg0: i32, %arg1: i32) -> (i32, i32) {
    %c0_i32 = arith.constant 0 : i32
    %c0_i32_0 = arith.constant 0 : i32
    return %arg0, %c0_i32 : i32, i32
  }
}

module attributes {stable_mosaic.version = 11 : i64} {
  func.func @_max_rows_kernel(%arg0: i32, %arg1: i32, %arg2: memref<1x32x1024xf32, #tpu.memory_space<vmem>>, %arg3: memref<1x1x1024xf32, #tpu.memory_space<vmem>>, %arg4: memref<1x1024xf32, #tpu.memory_space<vmem>>) attributes {dimension_semantics = [#tpu.dimension_semantics<parallel>, #tpu.dimension_semantics<arbitrary>], iteration_bounds = array<i64: 2, 1>, scalar_prefetch = 0 : i64, scratch_operands = 1 : i64, tpu.core_type = #tpu.core_type<tc>, window_params = [{transform_indices = @transform_0, window_bounds = array<i64: 1, 32, 1024>}, {transform_indices = @transform_1, window_bounds = array<i64: 1, 1, 1024>}]} {
    %c0 = arith.constant 0 : index
    %c0_0 = arith.constant 0 : index
    %c0_1 = arith.constant 0 : index
    %0 = vector.load %arg2[%c0, %c0_0, %c0_1] : memref<1x32x1024xf32, #tpu.memory_space<vmem>>, vector<1x32x1024xf32>
    %1 = vector.shape_cast %0 : vector<1x32x1024xf32> to vector<32x1024xf32>
    %cst = arith.constant dense<0xFF800000> : vector<1024xf32>
    %2 = vector.multi_reduction <maximumf>, %1, %cst [0] : vector<32x1024xf32> to vector<1024xf32>
    %3 = vector.shape_cast %2 : vector<1024xf32> to vector<1x1024xf32>
    %c0_i32 = arith.constant 0 : i32
    %4 = arith.cmpi eq, %arg1, %c0_i32 : i32
    %5 = arith.extui %4 : i1 to i32
    %c0_i32_2 = arith.constant 0 : i32
    %6 = arith.cmpi ne, %5, %c0_i32_2 : i32
    scf.if %6 {
      %c0_7 = arith.constant 0 : index
      %c0_8 = arith.constant 0 : index
      %13 = vector.load %arg4[%c0_7, %c0_8] : memref<1x1024xf32, #tpu.memory_space<vmem>>, vector<1x1024xf32>
      tpu.vector_store %arg4[%c0_7, %c0_8], %3 {strides = array<i32>} : memref<1x1024xf32, #tpu.memory_space<vmem>>, vector<1x1024xf32>,
    } else {
    }
    %c0_i32_3 = arith.constant 0 : i32
    %7 = arith.cmpi sgt, %arg1, %c0_i32_3 : i32
    %8 = arith.extui %7 : i1 to i32
    %c0_i32_4 = arith.constant 0 : i32
    %9 = arith.cmpi ne, %8, %c0_i32_4 : i32
    scf.if %9 {
      %c0_7 = arith.constant 0 : index
      %c0_8 = arith.constant 0 : index
      %13 = vector.load %arg4[%c0_7, %c0_8] : memref<1x1024xf32, #tpu.memory_space<vmem>>, vector<1x1024xf32>
      %14 = arith.maximumf %13, %3 : vector<1x1024xf32>
      %c0_9 = arith.constant 0 : index
      %c0_10 = arith.constant 0 : index
      %15 = vector.load %arg4[%c0_9, %c0_10] : memref<1x1024xf32, #tpu.memory_space<vmem>>, vector<1x1024xf32>
      tpu.vector_store %arg4[%c0_9, %c0_10], %14 {strides = array<i32>} : memref<1x1024xf32, #tpu.memory_space<vmem>>, vector<1x1024xf32>,
    } else {
    }
    %c0_i32_5 = arith.constant 0 : i32
    %10 = arith.cmpi eq, %arg1, %c0_i32_5 : i32
    %11 = arith.extui %10 : i1 to i32
    %c0_i32_6 = arith.constant 0 : i32
    %12 = arith.cmpi ne, %11, %c0_i32_6 : i32
    scf.if %12 {
      %c0_7 = arith.constant 0 : index
      %c0_8 = arith.constant 0 : index
      %13 = vector.load %arg4[%c0_7, %c0_8] : memref<1x1024xf32, #tpu.memory_space<vmem>>, vector<1x1024xf32>
      %c0_9 = arith.constant 0 : index
      %c0_10 = arith.constant 0 : index
      %c0_11 = arith.constant 0 : index
      %14 = vector.load %arg3[%c0_9, %c0_10, %c0_11] : memref<1x1x1024xf32, #tpu.memory_space<vmem>>, vector<1x1x1024xf32>
      %15 = vector.shape_cast %14 : vector<1x1x1024xf32> to vector<1x1024xf32>
      %16 = vector.shape_cast %13 : vector<1x1024xf32> to vector<1x1x1024xf32>
      tpu.vector_store %arg3[%c0_9, %c0_10, %c0_11], %16 {strides = array<i32>} : memref<1x1x1024xf32, #tpu.memory_space<vmem>>, vector<1x1x1024xf32>,
    } else {
    }
    return
  }
  func.func @transform_0(%arg0: i32, %arg1: i32) -> (i32, i32, i32) {
    %c0_i32 = arith.constant 0 : i32
    %c0_i32_0 = arith.constant 0 : i32
    return %arg0, %arg1, %c0_i32 : i32, i32, i32
  }
  func.func @transform_1(%arg0: i32, %arg1: i32) -> (i32, i32, i32) {
    %c0_i32 = arith.constant 0 : i32
    %c0_i32_0 = arith.constant 0 : i32
    %c0_i32_1 = arith.constant 0 : i32
    return %arg0, %c0_i32, %c0_i32_0 : i32, i32, i32
  }
}

module attributes {stable_mosaic.version = 11 : i64} {
  func.func @_linear_kernel(%arg0: i32, %arg1: memref<64x128xf32, #tpu.memory_space<vmem>>, %arg2: memref<128x1024xbf16, #tpu.memory_space<vmem>>, %arg3: memref<1x1024xf32, #tpu.memory_space<vmem>>, %arg4: memref<1x1024xf32, #tpu.memory_space<vmem>>, %arg5: memref<64x1024xf32, #tpu.memory_space<vmem>>) attributes {dimension_semantics = [#tpu.dimension_semantics<parallel>], iteration_bounds = array<i64: 1>, scalar_prefetch = 0 : i64, scratch_operands = 0 : i64, tpu.core_type = #tpu.core_type<tc>, window_params = [{transform_indices = @transform_0, window_bounds = array<i64: 64, 128>}, {pipeline_mode = #tpu.pipeline_mode<synchronous>, transform_indices = @transform_1, window_bounds = array<i64: 128, 1024>}, {pipeline_mode = #tpu.pipeline_mode<synchronous>, transform_indices = @transform_2, window_bounds = array<i64: 1, 1024>}, {pipeline_mode = #tpu.pipeline_mode<synchronous>, transform_indices = @transform_3, window_bounds = array<i64: 1, 1024>}, {transform_indices = @transform_4, window_bounds = array<i64: 64, 1024>}]} {
    %c0 = arith.constant 0 : index
    %c0_0 = arith.constant 0 : index
    %0 = vector.load %arg1[%c0, %c0_0] : memref<64x128xf32, #tpu.memory_space<vmem>>, vector<64x128xf32>
    %1 = arith.truncf %0 : vector<64x128xf32> to vector<64x128xbf16>
    %c0_1 = arith.constant 0 : index
    %c0_2 = arith.constant 0 : index
    %2 = vector.load %arg2[%c0_1, %c0_2] : memref<128x1024xbf16, #tpu.memory_space<vmem>>, vector<128x1024xbf16>
    %cst = arith.constant dense<0.000000e+00> : vector<64x1024xf32>
    %3 = tpu.matmul %1, %2, %cst {dimension_numbers = #tpu.dot_dimension_numbers<[1], [0], [0], [1], [0, 0, 1, 1], [], []>} : vector<64x128xbf16>, vector<128x1024xbf16>, vector<64x1024xf32> -> vector<64x1024xf32>
    %c0_3 = arith.constant 0 : index
    %c0_4 = arith.constant 0 : index
    %4 = vector.load %arg3[%c0_3, %c0_4] : memref<1x1024xf32, #tpu.memory_space<vmem>>, vector<1x1024xf32>
    %5 = vector.broadcast %4 : vector<1x1024xf32> to vector<64x1024xf32>
    %6 = arith.mulf %3, %5 : vector<64x1024xf32>
    %c0_5 = arith.constant 0 : index
    %c0_6 = arith.constant 0 : index
    %7 = vector.load %arg4[%c0_5, %c0_6] : memref<1x1024xf32, #tpu.memory_space<vmem>>, vector<1x1024xf32>
    %8 = vector.broadcast %7 : vector<1x1024xf32> to vector<64x1024xf32>
    %9 = arith.addf %6, %8 : vector<64x1024xf32>
    %cst_7 = arith.constant 0.000000e+00 : f32
    %10 = vector.broadcast %cst_7 : f32 to vector<64x1024xf32>
    %11 = arith.cmpf oge, %9, %10 : vector<64x1024xf32>
    %cst_8 = arith.constant 2.000000e-01 : f32
    %12 = vector.broadcast %cst_8 : f32 to vector<64x1024xf32>
    %13 = arith.mulf %12, %9 : vector<64x1024xf32>
    %14 = arith.select %11, %9, %13 : vector<64x1024xi1>, vector<64x1024xf32>
    %c0_9 = arith.constant 0 : index
    %c0_10 = arith.constant 0 : index
    %15 = vector.load %arg5[%c0_9, %c0_10] : memref<64x1024xf32, #tpu.memory_space<vmem>>, vector<64x1024xf32>
    tpu.vector_store %arg5[%c0_9, %c0_10], %14 {strides = array<i32>} : memref<64x1024xf32, #tpu.memory_space<vmem>>, vector<64x1024xf32>,
    return
  }
  func.func @transform_0(%arg0: i32) -> (i32, i32) {
    %c0_i32 = arith.constant 0 : i32
    %c0_i32_0 = arith.constant 0 : i32
    return %arg0, %c0_i32 : i32, i32
  }
  func.func @transform_1(%arg0: i32) -> (i32, i32) {
    %c0_i32 = arith.constant 0 : i32
    %c0_i32_0 = arith.constant 0 : i32
    %c0_i32_1 = arith.constant 0 : i32
    return %c0_i32, %c0_i32_0 : i32, i32
  }
  func.func @transform_2(%arg0: i32) -> (i32, i32) {
    %c0_i32 = arith.constant 0 : i32
    %c0_i32_0 = arith.constant 0 : i32
    %c0_i32_1 = arith.constant 0 : i32
    return %c0_i32, %c0_i32_0 : i32, i32
  }
  func.func @transform_3(%arg0: i32) -> (i32, i32) {
    %c0_i32 = arith.constant 0 : i32
    %c0_i32_0 = arith.constant 0 : i32
    %c0_i32_1 = arith.constant 0 : i32
    return %c0_i32, %c0_i32_0 : i32, i32
  }
  func.func @transform_4(%arg0: i32) -> (i32, i32) {
    %c0_i32 = arith.constant 0 : i32
    %c0_i32_0 = arith.constant 0 : i32
    return %arg0, %c0_i32 : i32, i32
  }
}

module attributes {stable_mosaic.version = 11 : i64} {
  func.func @_pdist_kernel(%arg0: i32, %arg1: i32, %arg2: memref<1x32x64xf32, #tpu.memory_space<vmem>>, %arg3: memref<1x32x64xf32, #tpu.memory_space<vmem>>, %arg4: memref<1x32x32xf32, #tpu.memory_space<vmem>>) attributes {dimension_semantics = [#tpu.dimension_semantics<parallel>, #tpu.dimension_semantics<parallel>], iteration_bounds = array<i64: 2, 1>, scalar_prefetch = 0 : i64, scratch_operands = 0 : i64, tpu.core_type = #tpu.core_type<tc>, window_params = [{transform_indices = @transform_0, window_bounds = array<i64: 1, 32, 64>}, {transform_indices = @transform_1, window_bounds = array<i64: 1, 32, 64>}, {transform_indices = @transform_2, window_bounds = array<i64: 1, 32, 32>}]} {
    %c0 = arith.constant 0 : index
    %c0_0 = arith.constant 0 : index
    %c0_1 = arith.constant 0 : index
    %0 = vector.load %arg2[%c0, %c0_0, %c0_1] : memref<1x32x64xf32, #tpu.memory_space<vmem>>, vector<1x32x64xf32>
    %1 = vector.shape_cast %0 : vector<1x32x64xf32> to vector<32x64xf32>
    %c0_2 = arith.constant 0 : index
    %c0_3 = arith.constant 0 : index
    %c0_4 = arith.constant 0 : index
    %2 = vector.load %arg3[%c0_2, %c0_3, %c0_4] : memref<1x32x64xf32, #tpu.memory_space<vmem>>, vector<1x32x64xf32>
    %3 = vector.shape_cast %2 : vector<1x32x64xf32> to vector<32x64xf32>
    %4 = tpu.transpose %3, [1, 0] : vector<32x64xf32> -> vector<64x32xf32>
    %cst = arith.constant dense<0.000000e+00> : vector<32x32xf32>
    %5 = tpu.matmul %1, %4, %cst {dimension_numbers = #tpu.dot_dimension_numbers<[1], [0], [0], [1], [0, 0, 1, 1], [], []>} : vector<32x64xf32>, vector<64x32xf32>, vector<32x32xf32> -> vector<32x32xf32>
    %6 = arith.mulf %1, %1 : vector<32x64xf32>
    %cst_5 = arith.constant dense<0.000000e+00> : vector<32xf32>
    %7 = vector.multi_reduction <add>, %6, %cst_5 [1] : vector<32x64xf32> to vector<32xf32>
    %8 = vector.shape_cast %7 : vector<32xf32> to vector<32x1xf32>
    %9 = arith.mulf %3, %3 : vector<32x64xf32>
    %cst_6 = arith.constant dense<0.000000e+00> : vector<32xf32>
    %10 = vector.multi_reduction <add>, %9, %cst_6 [1] : vector<32x64xf32> to vector<32xf32>
    %11 = vector.shape_cast %10 : vector<32xf32> to vector<32x1xf32>
    %cst_7 = arith.constant 2.000000e+00 : f32
    %12 = vector.broadcast %cst_7 : f32 to vector<32x32xf32>
    %13 = arith.mulf %12, %5 : vector<32x32xf32>
    %14 = vector.broadcast %8 : vector<32x1xf32> to vector<32x32xf32>
    %15 = arith.subf %13, %14 : vector<32x32xf32>
    %16 = tpu.transpose %11, [1, 0] : vector<32x1xf32> -> vector<1x32xf32>
    %17 = vector.broadcast %16 : vector<1x32xf32> to vector<32x32xf32>
    %18 = arith.subf %15, %17 : vector<32x32xf32>
    %c0_8 = arith.constant 0 : index
    %c0_9 = arith.constant 0 : index
    %c0_10 = arith.constant 0 : index
    %19 = vector.load %arg4[%c0_8, %c0_9, %c0_10] : memref<1x32x32xf32, #tpu.memory_space<vmem>>, vector<1x32x32xf32>
    %20 = vector.shape_cast %19 : vector<1x32x32xf32> to vector<32x32xf32>
    %21 = vector.shape_cast %18 : vector<32x32xf32> to vector<1x32x32xf32>
    tpu.vector_store %arg4[%c0_8, %c0_9, %c0_10], %21 {strides = array<i32>} : memref<1x32x32xf32, #tpu.memory_space<vmem>>, vector<1x32x32xf32>,
    return
  }
  func.func @transform_0(%arg0: i32, %arg1: i32) -> (i32, i32, i32) {
    %c0_i32 = arith.constant 0 : i32
    %c0_i32_0 = arith.constant 0 : i32
    return %arg0, %arg1, %c0_i32 : i32, i32, i32
  }
  func.func @transform_1(%arg0: i32, %arg1: i32) -> (i32, i32, i32) {
    %c0_i32 = arith.constant 0 : i32
    %c0_i32_0 = arith.constant 0 : i32
    %c0_i32_1 = arith.constant 0 : i32
    return %arg0, %c0_i32, %c0_i32_0 : i32, i32, i32
  }
  func.func @transform_2(%arg0: i32, %arg1: i32) -> (i32, i32, i32) {
    %c0_i32 = arith.constant 0 : i32
    %c0_i32_0 = arith.constant 0 : i32
    return %arg0, %arg1, %c0_i32 : i32, i32, i32
  }
}

module attributes {stable_mosaic.version = 11 : i64} {
  func.func @_edge_conv_kernel(%arg0: i32, %arg1: i32, %arg2: memref<1x64x3xbf16, #tpu.memory_space<vmem>>, %arg3: memref<64x3xbf16, #tpu.memory_space<vmem>>, %arg4: memref<3x64xbf16, #tpu.memory_space<vmem>>, %arg5: memref<3x64xbf16, #tpu.memory_space<vmem>>, %arg6: memref<1x64xf32, #tpu.memory_space<vmem>>, %arg7: memref<1x64xf32, #tpu.memory_space<vmem>>, %arg8: memref<64x64xf32, #tpu.memory_space<vmem>>, %arg9: memref<64x64xf32, #tpu.memory_space<vmem>>, %arg10: memref<64x64xf32, #tpu.memory_space<vmem>>) attributes {dimension_semantics = [#tpu.dimension_semantics<parallel>, #tpu.dimension_semantics<arbitrary>], iteration_bounds = array<i64: 1, 20>, scalar_prefetch = 0 : i64, scratch_operands = 2 : i64, tpu.core_type = #tpu.core_type<tc>, window_params = [{transform_indices = @transform_0, window_bounds = array<i64: 1, 64, 3>}, {transform_indices = @transform_1, window_bounds = array<i64: 64, 3>}, {pipeline_mode = #tpu.pipeline_mode<synchronous>, transform_indices = @transform_2, window_bounds = array<i64: 3, 64>}, {pipeline_mode = #tpu.pipeline_mode<synchronous>, transform_indices = @transform_3, window_bounds = array<i64: 3, 64>}, {pipeline_mode = #tpu.pipeline_mode<synchronous>, transform_indices = @transform_4, window_bounds = array<i64: 1, 64>}, {pipeline_mode = #tpu.pipeline_mode<synchronous>, transform_indices = @transform_5, window_bounds = array<i64: 1, 64>}, {transform_indices = @transform_6, window_bounds = array<i64: 64, 64>}]} {
    %c0_i32 = arith.constant 0 : i32
    %0 = arith.cmpi eq, %arg1, %c0_i32 : i32
    %1 = arith.extui %0 : i1 to i32
    %c0_i32_0 = arith.constant 0 : i32
    %2 = arith.cmpi ne, %1, %c0_i32_0 : i32
    scf.if %2 {
      %c0_18 = arith.constant 0 : index
      %c0_19 = arith.constant 0 : index
      %29 = vector.load %arg3[%c0_18, %c0_19] : memref<64x3xbf16, #tpu.memory_space<vmem>>, vector<64x3xbf16>
      %c0_20 = arith.constant 0 : index
      %c0_21 = arith.constant 0 : index
      %30 = vector.load %arg5[%c0_20, %c0_21] : memref<3x64xbf16, #tpu.memory_space<vmem>>, vector<3x64xbf16>
      %cst_22 = arith.constant dense<0.000000e+00> : vector<64x64xf32>
      %31 = tpu.matmul %29, %30, %cst_22 {dimension_numbers = #tpu.dot_dimension_numbers<[1], [0], [0], [1], [0, 0, 1, 1], [], []>} : vector<64x3xbf16>, vector<3x64xbf16>, vector<64x64xf32> -> vector<64x64xf32>
      %c0_23 = arith.constant 0 : index
      %c0_24 = arith.constant 0 : index
      %32 = vector.load %arg9[%c0_23, %c0_24] : memref<64x64xf32, #tpu.memory_space<vmem>>, vector<64x64xf32>
      tpu.vector_store %arg9[%c0_23, %c0_24], %31 {strides = array<i32>} : memref<64x64xf32, #tpu.memory_space<vmem>>, vector<64x64xf32>,
    } else {
    }
    %c0 = arith.constant 0 : index
    %c0_1 = arith.constant 0 : index
    %c0_2 = arith.constant 0 : index
    %3 = vector.load %arg2[%c0, %c0_1, %c0_2] : memref<1x64x3xbf16, #tpu.memory_space<vmem>>, vector<1x64x3xbf16>
    %4 = vector.shape_cast %3 : vector<1x64x3xbf16> to vector<64x3xbf16>
    %c0_3 = arith.constant 0 : index
    %c0_4 = arith.constant 0 : index
    %5 = vector.load %arg4[%c0_3, %c0_4] : memref<3x64xbf16, #tpu.memory_space<vmem>>, vector<3x64xbf16>
    %cst = arith.constant dense<0.000000e+00> : vector<64x64xf32>
    %6 = tpu.matmul %4, %5, %cst {dimension_numbers = #tpu.dot_dimension_numbers<[1], [0], [0], [1], [0, 0, 1, 1], [], []>} : vector<64x3xbf16>, vector<3x64xbf16>, vector<64x64xf32> -> vector<64x64xf32>
    %c0_5 = arith.constant 0 : index
    %c0_6 = arith.constant 0 : index
    %7 = vector.load %arg9[%c0_5, %c0_6] : memref<64x64xf32, #tpu.memory_space<vmem>>, vector<64x64xf32>
    %8 = arith.addf %6, %7 : vector<64x64xf32>
    %c0_7 = arith.constant 0 : index
    %c0_8 = arith.constant 0 : index
    %9 = vector.load %arg6[%c0_7, %c0_8] : memref<1x64xf32, #tpu.memory_space<vmem>>, vector<1x64xf32>
    %10 = vector.broadcast %9 : vector<1x64xf32> to vector<64x64xf32>
    %11 = arith.mulf %8, %10 : vector<64x64xf32>
    %c0_9 = arith.constant 0 : index
    %c0_10 = arith.constant 0 : index
    %12 = vector.load %arg7[%c0_9, %c0_10] : memref<1x64xf32, #tpu.memory_space<vmem>>, vector<1x64xf32>
    %13 = vector.broadcast %12 : vector<1x64xf32> to vector<64x64xf32>
    %14 = arith.addf %11, %13 : vector<64x64xf32>
    %cst_11 = arith.constant 0.000000e+00 : f32
    %15 = vector.broadcast %cst_11 : f32 to vector<64x64xf32>
    %16 = arith.cmpf oge, %14, %15 : vector<64x64xf32>
    %cst_12 = arith.constant 2.000000e-01 : f32
    %17 = vector.broadcast %cst_12 : f32 to vector<64x64xf32>
    %18 = arith.mulf %17, %14 : vector<64x64xf32>
    %19 = arith.select %16, %14, %18 : vector<64x64xi1>, vector<64x64xf32>
    %c0_i32_13 = arith.constant 0 : i32
    %20 = arith.cmpi eq, %arg1, %c0_i32_13 : i32
    %21 = arith.extui %20 : i1 to i32
    %c0_i32_14 = arith.constant 0 : i32
    %22 = arith.cmpi ne, %21, %c0_i32_14 : i32
    scf.if %22 {
      %c0_18 = arith.constant 0 : index
      %c0_19 = arith.constant 0 : index
      %29 = vector.load %arg10[%c0_18, %c0_19] : memref<64x64xf32, #tpu.memory_space<vmem>>, vector<64x64xf32>
      tpu.vector_store %arg10[%c0_18, %c0_19], %19 {strides = array<i32>} : memref<64x64xf32, #tpu.memory_space<vmem>>, vector<64x64xf32>,
    } else {
    }
    %c0_i32_15 = arith.constant 0 : i32
    %23 = arith.cmpi sgt, %arg1, %c0_i32_15 : i32
    %24 = arith.extui %23 : i1 to i32
    %c0_i32_16 = arith.constant 0 : i32
    %25 = arith.cmpi ne, %24, %c0_i32_16 : i32
    scf.if %25 {
      %c0_18 = arith.constant 0 : index
      %c0_19 = arith.constant 0 : index
      %29 = vector.load %arg10[%c0_18, %c0_19] : memref<64x64xf32, #tpu.memory_space<vmem>>, vector<64x64xf32>
      %30 = arith.maximumf %29, %19 : vector<64x64xf32>
      %c0_20 = arith.constant 0 : index
      %c0_21 = arith.constant 0 : index
      %31 = vector.load %arg10[%c0_20, %c0_21] : memref<64x64xf32, #tpu.memory_space<vmem>>, vector<64x64xf32>
      tpu.vector_store %arg10[%c0_20, %c0_21], %30 {strides = array<i32>} : memref<64x64xf32, #tpu.memory_space<vmem>>, vector<64x64xf32>,
    } else {
    }
    %c19_i32 = arith.constant 19 : i32
    %26 = arith.cmpi eq, %arg1, %c19_i32 : i32
    %27 = arith.extui %26 : i1 to i32
    %c0_i32_17 = arith.constant 0 : i32
    %28 = arith.cmpi ne, %27, %c0_i32_17 : i32
    scf.if %28 {
      %c0_18 = arith.constant 0 : index
      %c0_19 = arith.constant 0 : index
      %29 = vector.load %arg10[%c0_18, %c0_19] : memref<64x64xf32, #tpu.memory_space<vmem>>, vector<64x64xf32>
      %c0_20 = arith.constant 0 : index
      %c0_21 = arith.constant 0 : index
      %30 = vector.load %arg8[%c0_20, %c0_21] : memref<64x64xf32, #tpu.memory_space<vmem>>, vector<64x64xf32>
      tpu.vector_store %arg8[%c0_20, %c0_21], %29 {strides = array<i32>} : memref<64x64xf32, #tpu.memory_space<vmem>>, vector<64x64xf32>,
    } else {
    }
    return
  }
  func.func @transform_0(%arg0: i32, %arg1: i32) -> (i32, i32, i32) {
    %c0_i32 = arith.constant 0 : i32
    %c0_i32_0 = arith.constant 0 : i32
    return %arg1, %arg0, %c0_i32 : i32, i32, i32
  }
  func.func @transform_1(%arg0: i32, %arg1: i32) -> (i32, i32) {
    %c0_i32 = arith.constant 0 : i32
    %c0_i32_0 = arith.constant 0 : i32
    return %arg0, %c0_i32 : i32, i32
  }
  func.func @transform_2(%arg0: i32, %arg1: i32) -> (i32, i32) {
    %c0_i32 = arith.constant 0 : i32
    %c0_i32_0 = arith.constant 0 : i32
    %c0_i32_1 = arith.constant 0 : i32
    return %c0_i32, %c0_i32_0 : i32, i32
  }
  func.func @transform_3(%arg0: i32, %arg1: i32) -> (i32, i32) {
    %c0_i32 = arith.constant 0 : i32
    %c0_i32_0 = arith.constant 0 : i32
    %c0_i32_1 = arith.constant 0 : i32
    return %c0_i32, %c0_i32_0 : i32, i32
  }
  func.func @transform_4(%arg0: i32, %arg1: i32) -> (i32, i32) {
    %c0_i32 = arith.constant 0 : i32
    %c0_i32_0 = arith.constant 0 : i32
    %c0_i32_1 = arith.constant 0 : i32
    return %c0_i32, %c0_i32_0 : i32, i32
  }
  func.func @transform_5(%arg0: i32, %arg1: i32) -> (i32, i32) {
    %c0_i32 = arith.constant 0 : i32
    %c0_i32_0 = arith.constant 0 : i32
    %c0_i32_1 = arith.constant 0 : i32
    return %c0_i32, %c0_i32_0 : i32, i32
  }
  func.func @transform_6(%arg0: i32, %arg1: i32) -> (i32, i32) {
    %c0_i32 = arith.constant 0 : i32
    %c0_i32_0 = arith.constant 0 : i32
    return %arg0, %c0_i32 : i32, i32
  }
}

module attributes {stable_mosaic.version = 11 : i64} {
  func.func @_edge_conv_kernel(%arg0: i32, %arg1: i32, %arg2: memref<1x64x64xbf16, #tpu.memory_space<vmem>>, %arg3: memref<64x64xbf16, #tpu.memory_space<vmem>>, %arg4: memref<64x64xbf16, #tpu.memory_space<vmem>>, %arg5: memref<64x64xbf16, #tpu.memory_space<vmem>>, %arg6: memref<1x64xf32, #tpu.memory_space<vmem>>, %arg7: memref<1x64xf32, #tpu.memory_space<vmem>>, %arg8: memref<64x64xf32, #tpu.memory_space<vmem>>, %arg9: memref<64x64xf32, #tpu.memory_space<vmem>>, %arg10: memref<64x64xf32, #tpu.memory_space<vmem>>) attributes {dimension_semantics = [#tpu.dimension_semantics<parallel>, #tpu.dimension_semantics<arbitrary>], iteration_bounds = array<i64: 1, 20>, scalar_prefetch = 0 : i64, scratch_operands = 2 : i64, tpu.core_type = #tpu.core_type<tc>, window_params = [{transform_indices = @transform_0, window_bounds = array<i64: 1, 64, 64>}, {transform_indices = @transform_1, window_bounds = array<i64: 64, 64>}, {pipeline_mode = #tpu.pipeline_mode<synchronous>, transform_indices = @transform_2, window_bounds = array<i64: 64, 64>}, {pipeline_mode = #tpu.pipeline_mode<synchronous>, transform_indices = @transform_3, window_bounds = array<i64: 64, 64>}, {pipeline_mode = #tpu.pipeline_mode<synchronous>, transform_indices = @transform_4, window_bounds = array<i64: 1, 64>}, {pipeline_mode = #tpu.pipeline_mode<synchronous>, transform_indices = @transform_5, window_bounds = array<i64: 1, 64>}, {transform_indices = @transform_6, window_bounds = array<i64: 64, 64>}]} {
    %c0_i32 = arith.constant 0 : i32
    %0 = arith.cmpi eq, %arg1, %c0_i32 : i32
    %1 = arith.extui %0 : i1 to i32
    %c0_i32_0 = arith.constant 0 : i32
    %2 = arith.cmpi ne, %1, %c0_i32_0 : i32
    scf.if %2 {
      %c0_18 = arith.constant 0 : index
      %c0_19 = arith.constant 0 : index
      %29 = vector.load %arg3[%c0_18, %c0_19] : memref<64x64xbf16, #tpu.memory_space<vmem>>, vector<64x64xbf16>
      %c0_20 = arith.constant 0 : index
      %c0_21 = arith.constant 0 : index
      %30 = vector.load %arg5[%c0_20, %c0_21] : memref<64x64xbf16, #tpu.memory_space<vmem>>, vector<64x64xbf16>
      %cst_22 = arith.constant dense<0.000000e+00> : vector<64x64xf32>
      %31 = tpu.matmul %29, %30, %cst_22 {dimension_numbers = #tpu.dot_dimension_numbers<[1], [0], [0], [1], [0, 0, 1, 1], [], []>} : vector<64x64xbf16>, vector<64x64xbf16>, vector<64x64xf32> -> vector<64x64xf32>
      %c0_23 = arith.constant 0 : index
      %c0_24 = arith.constant 0 : index
      %32 = vector.load %arg9[%c0_23, %c0_24] : memref<64x64xf32, #tpu.memory_space<vmem>>, vector<64x64xf32>
      tpu.vector_store %arg9[%c0_23, %c0_24], %31 {strides = array<i32>} : memref<64x64xf32, #tpu.memory_space<vmem>>, vector<64x64xf32>,
    } else {
    }
    %c0 = arith.constant 0 : index
    %c0_1 = arith.constant 0 : index
    %c0_2 = arith.constant 0 : index
    %3 = vector.load %arg2[%c0, %c0_1, %c0_2] : memref<1x64x64xbf16, #tpu.memory_space<vmem>>, vector<1x64x64xbf16>
    %4 = vector.shape_cast %3 : vector<1x64x64xbf16> to vector<64x64xbf16>
    %c0_3 = arith.constant 0 : index
    %c0_4 = arith.constant 0 : index
    %5 = vector.load %arg4[%c0_3, %c0_4] : memref<64x64xbf16, #tpu.memory_space<vmem>>, vector<64x64xbf16>
    %cst = arith.constant dense<0.000000e+00> : vector<64x64xf32>
    %6 = tpu.matmul %4, %5, %cst {dimension_numbers = #tpu.dot_dimension_numbers<[1], [0], [0], [1], [0, 0, 1, 1], [], []>} : vector<64x64xbf16>, vector<64x64xbf16>, vector<64x64xf32> -> vector<64x64xf32>
    %c0_5 = arith.constant 0 : index
    %c0_6 = arith.constant 0 : index
    %7 = vector.load %arg9[%c0_5, %c0_6] : memref<64x64xf32, #tpu.memory_space<vmem>>, vector<64x64xf32>
    %8 = arith.addf %6, %7 : vector<64x64xf32>
    %c0_7 = arith.constant 0 : index
    %c0_8 = arith.constant 0 : index
    %9 = vector.load %arg6[%c0_7, %c0_8] : memref<1x64xf32, #tpu.memory_space<vmem>>, vector<1x64xf32>
    %10 = vector.broadcast %9 : vector<1x64xf32> to vector<64x64xf32>
    %11 = arith.mulf %8, %10 : vector<64x64xf32>
    %c0_9 = arith.constant 0 : index
    %c0_10 = arith.constant 0 : index
    %12 = vector.load %arg7[%c0_9, %c0_10] : memref<1x64xf32, #tpu.memory_space<vmem>>, vector<1x64xf32>
    %13 = vector.broadcast %12 : vector<1x64xf32> to vector<64x64xf32>
    %14 = arith.addf %11, %13 : vector<64x64xf32>
    %cst_11 = arith.constant 0.000000e+00 : f32
    %15 = vector.broadcast %cst_11 : f32 to vector<64x64xf32>
    %16 = arith.cmpf oge, %14, %15 : vector<64x64xf32>
    %cst_12 = arith.constant 2.000000e-01 : f32
    %17 = vector.broadcast %cst_12 : f32 to vector<64x64xf32>
    %18 = arith.mulf %17, %14 : vector<64x64xf32>
    %19 = arith.select %16, %14, %18 : vector<64x64xi1>, vector<64x64xf32>
    %c0_i32_13 = arith.constant 0 : i32
    %20 = arith.cmpi eq, %arg1, %c0_i32_13 : i32
    %21 = arith.extui %20 : i1 to i32
    %c0_i32_14 = arith.constant 0 : i32
    %22 = arith.cmpi ne, %21, %c0_i32_14 : i32
    scf.if %22 {
      %c0_18 = arith.constant 0 : index
      %c0_19 = arith.constant 0 : index
      %29 = vector.load %arg10[%c0_18, %c0_19] : memref<64x64xf32, #tpu.memory_space<vmem>>, vector<64x64xf32>
      tpu.vector_store %arg10[%c0_18, %c0_19], %19 {strides = array<i32>} : memref<64x64xf32, #tpu.memory_space<vmem>>, vector<64x64xf32>,
    } else {
    }
    %c0_i32_15 = arith.constant 0 : i32
    %23 = arith.cmpi sgt, %arg1, %c0_i32_15 : i32
    %24 = arith.extui %23 : i1 to i32
    %c0_i32_16 = arith.constant 0 : i32
    %25 = arith.cmpi ne, %24, %c0_i32_16 : i32
    scf.if %25 {
      %c0_18 = arith.constant 0 : index
      %c0_19 = arith.constant 0 : index
      %29 = vector.load %arg10[%c0_18, %c0_19] : memref<64x64xf32, #tpu.memory_space<vmem>>, vector<64x64xf32>
      %30 = arith.maximumf %29, %19 : vector<64x64xf32>
      %c0_20 = arith.constant 0 : index
      %c0_21 = arith.constant 0 : index
      %31 = vector.load %arg10[%c0_20, %c0_21] : memref<64x64xf32, #tpu.memory_space<vmem>>, vector<64x64xf32>
      tpu.vector_store %arg10[%c0_20, %c0_21], %30 {strides = array<i32>} : memref<64x64xf32, #tpu.memory_space<vmem>>, vector<64x64xf32>,
    } else {
    }
    %c19_i32 = arith.constant 19 : i32
    %26 = arith.cmpi eq, %arg1, %c19_i32 : i32
    %27 = arith.extui %26 : i1 to i32
    %c0_i32_17 = arith.constant 0 : i32
    %28 = arith.cmpi ne, %27, %c0_i32_17 : i32
    scf.if %28 {
      %c0_18 = arith.constant 0 : index
      %c0_19 = arith.constant 0 : index
      %29 = vector.load %arg10[%c0_18, %c0_19] : memref<64x64xf32, #tpu.memory_space<vmem>>, vector<64x64xf32>
      %c0_20 = arith.constant 0 : index
      %c0_21 = arith.constant 0 : index
      %30 = vector.load %arg8[%c0_20, %c0_21] : memref<64x64xf32, #tpu.memory_space<vmem>>, vector<64x64xf32>
      tpu.vector_store %arg8[%c0_20, %c0_21], %29 {strides = array<i32>} : memref<64x64xf32, #tpu.memory_space<vmem>>, vector<64x64xf32>,
    } else {
    }
    return
  }
  func.func @transform_0(%arg0: i32, %arg1: i32) -> (i32, i32, i32) {
    %c0_i32 = arith.constant 0 : i32
    %c0_i32_0 = arith.constant 0 : i32
    return %arg1, %arg0, %c0_i32 : i32, i32, i32
  }
  func.func @transform_1(%arg0: i32, %arg1: i32) -> (i32, i32) {
    %c0_i32 = arith.constant 0 : i32
    %c0_i32_0 = arith.constant 0 : i32
    return %arg0, %c0_i32 : i32, i32
  }
  func.func @transform_2(%arg0: i32, %arg1: i32) -> (i32, i32) {
    %c0_i32 = arith.constant 0 : i32
    %c0_i32_0 = arith.constant 0 : i32
    %c0_i32_1 = arith.constant 0 : i32
    return %c0_i32, %c0_i32_0 : i32, i32
  }
  func.func @transform_3(%arg0: i32, %arg1: i32) -> (i32, i32) {
    %c0_i32 = arith.constant 0 : i32
    %c0_i32_0 = arith.constant 0 : i32
    %c0_i32_1 = arith.constant 0 : i32
    return %c0_i32, %c0_i32_0 : i32, i32
  }
  func.func @transform_4(%arg0: i32, %arg1: i32) -> (i32, i32) {
    %c0_i32 = arith.constant 0 : i32
    %c0_i32_0 = arith.constant 0 : i32
    %c0_i32_1 = arith.constant 0 : i32
    return %c0_i32, %c0_i32_0 : i32, i32
  }
  func.func @transform_5(%arg0: i32, %arg1: i32) -> (i32, i32) {
    %c0_i32 = arith.constant 0 : i32
    %c0_i32_0 = arith.constant 0 : i32
    %c0_i32_1 = arith.constant 0 : i32
    return %c0_i32, %c0_i32_0 : i32, i32
  }
  func.func @transform_6(%arg0: i32, %arg1: i32) -> (i32, i32) {
    %c0_i32 = arith.constant 0 : i32
    %c0_i32_0 = arith.constant 0 : i32
    return %arg0, %c0_i32 : i32, i32
  }
}

module attributes {stable_mosaic.version = 11 : i64} {
  func.func @_edge_conv_kernel(%arg0: i32, %arg1: i32, %arg2: memref<1x64x64xbf16, #tpu.memory_space<vmem>>, %arg3: memref<64x64xbf16, #tpu.memory_space<vmem>>, %arg4: memref<64x128xbf16, #tpu.memory_space<vmem>>, %arg5: memref<64x128xbf16, #tpu.memory_space<vmem>>, %arg6: memref<1x128xf32, #tpu.memory_space<vmem>>, %arg7: memref<1x128xf32, #tpu.memory_space<vmem>>, %arg8: memref<64x128xf32, #tpu.memory_space<vmem>>, %arg9: memref<64x128xf32, #tpu.memory_space<vmem>>, %arg10: memref<64x128xf32, #tpu.memory_space<vmem>>) attributes {dimension_semantics = [#tpu.dimension_semantics<parallel>, #tpu.dimension_semantics<arbitrary>], iteration_bounds = array<i64: 1, 20>, scalar_prefetch = 0 : i64, scratch_operands = 2 : i64, tpu.core_type = #tpu.core_type<tc>, window_params = [{transform_indices = @transform_0, window_bounds = array<i64: 1, 64, 64>}, {transform_indices = @transform_1, window_bounds = array<i64: 64, 64>}, {pipeline_mode = #tpu.pipeline_mode<synchronous>, transform_indices = @transform_2, window_bounds = array<i64: 64, 128>}, {pipeline_mode = #tpu.pipeline_mode<synchronous>, transform_indices = @transform_3, window_bounds = array<i64: 64, 128>}, {pipeline_mode = #tpu.pipeline_mode<synchronous>, transform_indices = @transform_4, window_bounds = array<i64: 1, 128>}, {pipeline_mode = #tpu.pipeline_mode<synchronous>, transform_indices = @transform_5, window_bounds = array<i64: 1, 128>}, {transform_indices = @transform_6, window_bounds = array<i64: 64, 128>}]} {
    %c0_i32 = arith.constant 0 : i32
    %0 = arith.cmpi eq, %arg1, %c0_i32 : i32
    %1 = arith.extui %0 : i1 to i32
    %c0_i32_0 = arith.constant 0 : i32
    %2 = arith.cmpi ne, %1, %c0_i32_0 : i32
    scf.if %2 {
      %c0_18 = arith.constant 0 : index
      %c0_19 = arith.constant 0 : index
      %29 = vector.load %arg3[%c0_18, %c0_19] : memref<64x64xbf16, #tpu.memory_space<vmem>>, vector<64x64xbf16>
      %c0_20 = arith.constant 0 : index
      %c0_21 = arith.constant 0 : index
      %30 = vector.load %arg5[%c0_20, %c0_21] : memref<64x128xbf16, #tpu.memory_space<vmem>>, vector<64x128xbf16>
      %cst_22 = arith.constant dense<0.000000e+00> : vector<64x128xf32>
      %31 = tpu.matmul %29, %30, %cst_22 {dimension_numbers = #tpu.dot_dimension_numbers<[1], [0], [0], [1], [0, 0, 1, 1], [], []>} : vector<64x64xbf16>, vector<64x128xbf16>, vector<64x128xf32> -> vector<64x128xf32>
      %c0_23 = arith.constant 0 : index
      %c0_24 = arith.constant 0 : index
      %32 = vector.load %arg9[%c0_23, %c0_24] : memref<64x128xf32, #tpu.memory_space<vmem>>, vector<64x128xf32>
      tpu.vector_store %arg9[%c0_23, %c0_24], %31 {strides = array<i32>} : memref<64x128xf32, #tpu.memory_space<vmem>>, vector<64x128xf32>,
    } else {
    }
    %c0 = arith.constant 0 : index
    %c0_1 = arith.constant 0 : index
    %c0_2 = arith.constant 0 : index
    %3 = vector.load %arg2[%c0, %c0_1, %c0_2] : memref<1x64x64xbf16, #tpu.memory_space<vmem>>, vector<1x64x64xbf16>
    %4 = vector.shape_cast %3 : vector<1x64x64xbf16> to vector<64x64xbf16>
    %c0_3 = arith.constant 0 : index
    %c0_4 = arith.constant 0 : index
    %5 = vector.load %arg4[%c0_3, %c0_4] : memref<64x128xbf16, #tpu.memory_space<vmem>>, vector<64x128xbf16>
    %cst = arith.constant dense<0.000000e+00> : vector<64x128xf32>
    %6 = tpu.matmul %4, %5, %cst {dimension_numbers = #tpu.dot_dimension_numbers<[1], [0], [0], [1], [0, 0, 1, 1], [], []>} : vector<64x64xbf16>, vector<64x128xbf16>, vector<64x128xf32> -> vector<64x128xf32>
    %c0_5 = arith.constant 0 : index
    %c0_6 = arith.constant 0 : index
    %7 = vector.load %arg9[%c0_5, %c0_6] : memref<64x128xf32, #tpu.memory_space<vmem>>, vector<64x128xf32>
    %8 = arith.addf %6, %7 : vector<64x128xf32>
    %c0_7 = arith.constant 0 : index
    %c0_8 = arith.constant 0 : index
    %9 = vector.load %arg6[%c0_7, %c0_8] : memref<1x128xf32, #tpu.memory_space<vmem>>, vector<1x128xf32>
    %10 = vector.broadcast %9 : vector<1x128xf32> to vector<64x128xf32>
    %11 = arith.mulf %8, %10 : vector<64x128xf32>
    %c0_9 = arith.constant 0 : index
    %c0_10 = arith.constant 0 : index
    %12 = vector.load %arg7[%c0_9, %c0_10] : memref<1x128xf32, #tpu.memory_space<vmem>>, vector<1x128xf32>
    %13 = vector.broadcast %12 : vector<1x128xf32> to vector<64x128xf32>
    %14 = arith.addf %11, %13 : vector<64x128xf32>
    %cst_11 = arith.constant 0.000000e+00 : f32
    %15 = vector.broadcast %cst_11 : f32 to vector<64x128xf32>
    %16 = arith.cmpf oge, %14, %15 : vector<64x128xf32>
    %cst_12 = arith.constant 2.000000e-01 : f32
    %17 = vector.broadcast %cst_12 : f32 to vector<64x128xf32>
    %18 = arith.mulf %17, %14 : vector<64x128xf32>
    %19 = arith.select %16, %14, %18 : vector<64x128xi1>, vector<64x128xf32>
    %c0_i32_13 = arith.constant 0 : i32
    %20 = arith.cmpi eq, %arg1, %c0_i32_13 : i32
    %21 = arith.extui %20 : i1 to i32
    %c0_i32_14 = arith.constant 0 : i32
    %22 = arith.cmpi ne, %21, %c0_i32_14 : i32
    scf.if %22 {
      %c0_18 = arith.constant 0 : index
      %c0_19 = arith.constant 0 : index
      %29 = vector.load %arg10[%c0_18, %c0_19] : memref<64x128xf32, #tpu.memory_space<vmem>>, vector<64x128xf32>
      tpu.vector_store %arg10[%c0_18, %c0_19], %19 {strides = array<i32>} : memref<64x128xf32, #tpu.memory_space<vmem>>, vector<64x128xf32>,
    } else {
    }
    %c0_i32_15 = arith.constant 0 : i32
    %23 = arith.cmpi sgt, %arg1, %c0_i32_15 : i32
    %24 = arith.extui %23 : i1 to i32
    %c0_i32_16 = arith.constant 0 : i32
    %25 = arith.cmpi ne, %24, %c0_i32_16 : i32
    scf.if %25 {
      %c0_18 = arith.constant 0 : index
      %c0_19 = arith.constant 0 : index
      %29 = vector.load %arg10[%c0_18, %c0_19] : memref<64x128xf32, #tpu.memory_space<vmem>>, vector<64x128xf32>
      %30 = arith.maximumf %29, %19 : vector<64x128xf32>
      %c0_20 = arith.constant 0 : index
      %c0_21 = arith.constant 0 : index
      %31 = vector.load %arg10[%c0_20, %c0_21] : memref<64x128xf32, #tpu.memory_space<vmem>>, vector<64x128xf32>
      tpu.vector_store %arg10[%c0_20, %c0_21], %30 {strides = array<i32>} : memref<64x128xf32, #tpu.memory_space<vmem>>, vector<64x128xf32>,
    } else {
    }
    %c19_i32 = arith.constant 19 : i32
    %26 = arith.cmpi eq, %arg1, %c19_i32 : i32
    %27 = arith.extui %26 : i1 to i32
    %c0_i32_17 = arith.constant 0 : i32
    %28 = arith.cmpi ne, %27, %c0_i32_17 : i32
    scf.if %28 {
      %c0_18 = arith.constant 0 : index
      %c0_19 = arith.constant 0 : index
      %29 = vector.load %arg10[%c0_18, %c0_19] : memref<64x128xf32, #tpu.memory_space<vmem>>, vector<64x128xf32>
      %c0_20 = arith.constant 0 : index
      %c0_21 = arith.constant 0 : index
      %30 = vector.load %arg8[%c0_20, %c0_21] : memref<64x128xf32, #tpu.memory_space<vmem>>, vector<64x128xf32>
      tpu.vector_store %arg8[%c0_20, %c0_21], %29 {strides = array<i32>} : memref<64x128xf32, #tpu.memory_space<vmem>>, vector<64x128xf32>,
    } else {
    }
    return
  }
  func.func @transform_0(%arg0: i32, %arg1: i32) -> (i32, i32, i32) {
    %c0_i32 = arith.constant 0 : i32
    %c0_i32_0 = arith.constant 0 : i32
    return %arg1, %arg0, %c0_i32 : i32, i32, i32
  }
  func.func @transform_1(%arg0: i32, %arg1: i32) -> (i32, i32) {
    %c0_i32 = arith.constant 0 : i32
    %c0_i32_0 = arith.constant 0 : i32
    return %arg0, %c0_i32 : i32, i32
  }
  func.func @transform_2(%arg0: i32, %arg1: i32) -> (i32, i32) {
    %c0_i32 = arith.constant 0 : i32
    %c0_i32_0 = arith.constant 0 : i32
    %c0_i32_1 = arith.constant 0 : i32
    return %c0_i32, %c0_i32_0 : i32, i32
  }
  func.func @transform_3(%arg0: i32, %arg1: i32) -> (i32, i32) {
    %c0_i32 = arith.constant 0 : i32
    %c0_i32_0 = arith.constant 0 : i32
    %c0_i32_1 = arith.constant 0 : i32
    return %c0_i32, %c0_i32_0 : i32, i32
  }
  func.func @transform_4(%arg0: i32, %arg1: i32) -> (i32, i32) {
    %c0_i32 = arith.constant 0 : i32
    %c0_i32_0 = arith.constant 0 : i32
    %c0_i32_1 = arith.constant 0 : i32
    return %c0_i32, %c0_i32_0 : i32, i32
  }
  func.func @transform_5(%arg0: i32, %arg1: i32) -> (i32, i32) {
    %c0_i32 = arith.constant 0 : i32
    %c0_i32_0 = arith.constant 0 : i32
    %c0_i32_1 = arith.constant 0 : i32
    return %c0_i32, %c0_i32_0 : i32, i32
  }
  func.func @transform_6(%arg0: i32, %arg1: i32) -> (i32, i32) {
    %c0_i32 = arith.constant 0 : i32
    %c0_i32_0 = arith.constant 0 : i32
    return %arg0, %c0_i32 : i32, i32
  }
}

module attributes {stable_mosaic.version = 11 : i64} {
  func.func @_pdist_kernel(%arg0: i32, %arg1: i32, %arg2: memref<1x32x128xf32, #tpu.memory_space<vmem>>, %arg3: memref<1x32x128xf32, #tpu.memory_space<vmem>>, %arg4: memref<1x32x32xf32, #tpu.memory_space<vmem>>) attributes {dimension_semantics = [#tpu.dimension_semantics<parallel>, #tpu.dimension_semantics<parallel>], iteration_bounds = array<i64: 2, 1>, scalar_prefetch = 0 : i64, scratch_operands = 0 : i64, tpu.core_type = #tpu.core_type<tc>, window_params = [{transform_indices = @transform_0, window_bounds = array<i64: 1, 32, 128>}, {transform_indices = @transform_1, window_bounds = array<i64: 1, 32, 128>}, {transform_indices = @transform_2, window_bounds = array<i64: 1, 32, 32>}]} {
    %c0 = arith.constant 0 : index
    %c0_0 = arith.constant 0 : index
    %c0_1 = arith.constant 0 : index
    %0 = vector.load %arg2[%c0, %c0_0, %c0_1] : memref<1x32x128xf32, #tpu.memory_space<vmem>>, vector<1x32x128xf32>
    %1 = vector.shape_cast %0 : vector<1x32x128xf32> to vector<32x128xf32>
    %c0_2 = arith.constant 0 : index
    %c0_3 = arith.constant 0 : index
    %c0_4 = arith.constant 0 : index
    %2 = vector.load %arg3[%c0_2, %c0_3, %c0_4] : memref<1x32x128xf32, #tpu.memory_space<vmem>>, vector<1x32x128xf32>
    %3 = vector.shape_cast %2 : vector<1x32x128xf32> to vector<32x128xf32>
    %4 = tpu.transpose %3, [1, 0] : vector<32x128xf32> -> vector<128x32xf32>
    %cst = arith.constant dense<0.000000e+00> : vector<32x32xf32>
    %5 = tpu.matmul %1, %4, %cst {dimension_numbers = #tpu.dot_dimension_numbers<[1], [0], [0], [1], [0, 0, 1, 1], [], []>} : vector<32x128xf32>, vector<128x32xf32>, vector<32x32xf32> -> vector<32x32xf32>
    %6 = arith.mulf %1, %1 : vector<32x128xf32>
    %cst_5 = arith.constant dense<0.000000e+00> : vector<32xf32>
    %7 = vector.multi_reduction <add>, %6, %cst_5 [1] : vector<32x128xf32> to vector<32xf32>
    %8 = vector.shape_cast %7 : vector<32xf32> to vector<32x1xf32>
    %9 = arith.mulf %3, %3 : vector<32x128xf32>
    %cst_6 = arith.constant dense<0.000000e+00> : vector<32xf32>
    %10 = vector.multi_reduction <add>, %9, %cst_6 [1] : vector<32x128xf32> to vector<32xf32>
    %11 = vector.shape_cast %10 : vector<32xf32> to vector<32x1xf32>
    %cst_7 = arith.constant 2.000000e+00 : f32
    %12 = vector.broadcast %cst_7 : f32 to vector<32x32xf32>
    %13 = arith.mulf %12, %5 : vector<32x32xf32>
    %14 = vector.broadcast %8 : vector<32x1xf32> to vector<32x32xf32>
    %15 = arith.subf %13, %14 : vector<32x32xf32>
    %16 = tpu.transpose %11, [1, 0] : vector<32x1xf32> -> vector<1x32xf32>
    %17 = vector.broadcast %16 : vector<1x32xf32> to vector<32x32xf32>
    %18 = arith.subf %15, %17 : vector<32x32xf32>
    %c0_8 = arith.constant 0 : index
    %c0_9 = arith.constant 0 : index
    %c0_10 = arith.constant 0 : index
    %19 = vector.load %arg4[%c0_8, %c0_9, %c0_10] : memref<1x32x32xf32, #tpu.memory_space<vmem>>, vector<1x32x32xf32>
    %20 = vector.shape_cast %19 : vector<1x32x32xf32> to vector<32x32xf32>
    %21 = vector.shape_cast %18 : vector<32x32xf32> to vector<1x32x32xf32>
    tpu.vector_store %arg4[%c0_8, %c0_9, %c0_10], %21 {strides = array<i32>} : memref<1x32x32xf32, #tpu.memory_space<vmem>>, vector<1x32x32xf32>,
    return
  }
  func.func @transform_0(%arg0: i32, %arg1: i32) -> (i32, i32, i32) {
    %c0_i32 = arith.constant 0 : i32
    %c0_i32_0 = arith.constant 0 : i32
    return %arg0, %arg1, %c0_i32 : i32, i32, i32
  }
  func.func @transform_1(%arg0: i32, %arg1: i32) -> (i32, i32, i32) {
    %c0_i32 = arith.constant 0 : i32
    %c0_i32_0 = arith.constant 0 : i32
    %c0_i32_1 = arith.constant 0 : i32
    return %arg0, %c0_i32, %c0_i32_0 : i32, i32, i32
  }
  func.func @transform_2(%arg0: i32, %arg1: i32) -> (i32, i32, i32) {
    %c0_i32 = arith.constant 0 : i32
    %c0_i32_0 = arith.constant 0 : i32
    return %arg0, %arg1, %c0_i32 : i32, i32, i32
  }
}

module attributes {stable_mosaic.version = 11 : i64} {
  func.func @_edge_conv_kernel(%arg0: i32, %arg1: i32, %arg2: memref<1x64x128xbf16, #tpu.memory_space<vmem>>, %arg3: memref<64x128xbf16, #tpu.memory_space<vmem>>, %arg4: memref<128x256xbf16, #tpu.memory_space<vmem>>, %arg5: memref<128x256xbf16, #tpu.memory_space<vmem>>, %arg6: memref<1x256xf32, #tpu.memory_space<vmem>>, %arg7: memref<1x256xf32, #tpu.memory_space<vmem>>, %arg8: memref<64x256xf32, #tpu.memory_space<vmem>>, %arg9: memref<64x256xf32, #tpu.memory_space<vmem>>, %arg10: memref<64x256xf32, #tpu.memory_space<vmem>>) attributes {dimension_semantics = [#tpu.dimension_semantics<parallel>, #tpu.dimension_semantics<arbitrary>], iteration_bounds = array<i64: 1, 20>, scalar_prefetch = 0 : i64, scratch_operands = 2 : i64, tpu.core_type = #tpu.core_type<tc>, window_params = [{transform_indices = @transform_0, window_bounds = array<i64: 1, 64, 128>}, {transform_indices = @transform_1, window_bounds = array<i64: 64, 128>}, {pipeline_mode = #tpu.pipeline_mode<synchronous>, transform_indices = @transform_2, window_bounds = array<i64: 128, 256>}, {pipeline_mode = #tpu.pipeline_mode<synchronous>, transform_indices = @transform_3, window_bounds = array<i64: 128, 256>}, {pipeline_mode = #tpu.pipeline_mode<synchronous>, transform_indices = @transform_4, window_bounds = array<i64: 1, 256>}, {pipeline_mode = #tpu.pipeline_mode<synchronous>, transform_indices = @transform_5, window_bounds = array<i64: 1, 256>}, {transform_indices = @transform_6, window_bounds = array<i64: 64, 256>}]} {
    %c0_i32 = arith.constant 0 : i32
    %0 = arith.cmpi eq, %arg1, %c0_i32 : i32
    %1 = arith.extui %0 : i1 to i32
    %c0_i32_0 = arith.constant 0 : i32
    %2 = arith.cmpi ne, %1, %c0_i32_0 : i32
    scf.if %2 {
      %c0_18 = arith.constant 0 : index
      %c0_19 = arith.constant 0 : index
      %29 = vector.load %arg3[%c0_18, %c0_19] : memref<64x128xbf16, #tpu.memory_space<vmem>>, vector<64x128xbf16>
      %c0_20 = arith.constant 0 : index
      %c0_21 = arith.constant 0 : index
      %30 = vector.load %arg5[%c0_20, %c0_21] : memref<128x256xbf16, #tpu.memory_space<vmem>>, vector<128x256xbf16>
      %cst_22 = arith.constant dense<0.000000e+00> : vector<64x256xf32>
      %31 = tpu.matmul %29, %30, %cst_22 {dimension_numbers = #tpu.dot_dimension_numbers<[1], [0], [0], [1], [0, 0, 1, 1], [], []>} : vector<64x128xbf16>, vector<128x256xbf16>, vector<64x256xf32> -> vector<64x256xf32>
      %c0_23 = arith.constant 0 : index
      %c0_24 = arith.constant 0 : index
      %32 = vector.load %arg9[%c0_23, %c0_24] : memref<64x256xf32, #tpu.memory_space<vmem>>, vector<64x256xf32>
      tpu.vector_store %arg9[%c0_23, %c0_24], %31 {strides = array<i32>} : memref<64x256xf32, #tpu.memory_space<vmem>>, vector<64x256xf32>,
    } else {
    }
    %c0 = arith.constant 0 : index
    %c0_1 = arith.constant 0 : index
    %c0_2 = arith.constant 0 : index
    %3 = vector.load %arg2[%c0, %c0_1, %c0_2] : memref<1x64x128xbf16, #tpu.memory_space<vmem>>, vector<1x64x128xbf16>
    %4 = vector.shape_cast %3 : vector<1x64x128xbf16> to vector<64x128xbf16>
    %c0_3 = arith.constant 0 : index
    %c0_4 = arith.constant 0 : index
    %5 = vector.load %arg4[%c0_3, %c0_4] : memref<128x256xbf16, #tpu.memory_space<vmem>>, vector<128x256xbf16>
    %cst = arith.constant dense<0.000000e+00> : vector<64x256xf32>
    %6 = tpu.matmul %4, %5, %cst {dimension_numbers = #tpu.dot_dimension_numbers<[1], [0], [0], [1], [0, 0, 1, 1], [], []>} : vector<64x128xbf16>, vector<128x256xbf16>, vector<64x256xf32> -> vector<64x256xf32>
    %c0_5 = arith.constant 0 : index
    %c0_6 = arith.constant 0 : index
    %7 = vector.load %arg9[%c0_5, %c0_6] : memref<64x256xf32, #tpu.memory_space<vmem>>, vector<64x256xf32>
    %8 = arith.addf %6, %7 : vector<64x256xf32>
    %c0_7 = arith.constant 0 : index
    %c0_8 = arith.constant 0 : index
    %9 = vector.load %arg6[%c0_7, %c0_8] : memref<1x256xf32, #tpu.memory_space<vmem>>, vector<1x256xf32>
    %10 = vector.broadcast %9 : vector<1x256xf32> to vector<64x256xf32>
    %11 = arith.mulf %8, %10 : vector<64x256xf32>
    %c0_9 = arith.constant 0 : index
    %c0_10 = arith.constant 0 : index
    %12 = vector.load %arg7[%c0_9, %c0_10] : memref<1x256xf32, #tpu.memory_space<vmem>>, vector<1x256xf32>
    %13 = vector.broadcast %12 : vector<1x256xf32> to vector<64x256xf32>
    %14 = arith.addf %11, %13 : vector<64x256xf32>
    %cst_11 = arith.constant 0.000000e+00 : f32
    %15 = vector.broadcast %cst_11 : f32 to vector<64x256xf32>
    %16 = arith.cmpf oge, %14, %15 : vector<64x256xf32>
    %cst_12 = arith.constant 2.000000e-01 : f32
    %17 = vector.broadcast %cst_12 : f32 to vector<64x256xf32>
    %18 = arith.mulf %17, %14 : vector<64x256xf32>
    %19 = arith.select %16, %14, %18 : vector<64x256xi1>, vector<64x256xf32>
    %c0_i32_13 = arith.constant 0 : i32
    %20 = arith.cmpi eq, %arg1, %c0_i32_13 : i32
    %21 = arith.extui %20 : i1 to i32
    %c0_i32_14 = arith.constant 0 : i32
    %22 = arith.cmpi ne, %21, %c0_i32_14 : i32
    scf.if %22 {
      %c0_18 = arith.constant 0 : index
      %c0_19 = arith.constant 0 : index
      %29 = vector.load %arg10[%c0_18, %c0_19] : memref<64x256xf32, #tpu.memory_space<vmem>>, vector<64x256xf32>
      tpu.vector_store %arg10[%c0_18, %c0_19], %19 {strides = array<i32>} : memref<64x256xf32, #tpu.memory_space<vmem>>, vector<64x256xf32>,
    } else {
    }
    %c0_i32_15 = arith.constant 0 : i32
    %23 = arith.cmpi sgt, %arg1, %c0_i32_15 : i32
    %24 = arith.extui %23 : i1 to i32
    %c0_i32_16 = arith.constant 0 : i32
    %25 = arith.cmpi ne, %24, %c0_i32_16 : i32
    scf.if %25 {
      %c0_18 = arith.constant 0 : index
      %c0_19 = arith.constant 0 : index
      %29 = vector.load %arg10[%c0_18, %c0_19] : memref<64x256xf32, #tpu.memory_space<vmem>>, vector<64x256xf32>
      %30 = arith.maximumf %29, %19 : vector<64x256xf32>
      %c0_20 = arith.constant 0 : index
      %c0_21 = arith.constant 0 : index
      %31 = vector.load %arg10[%c0_20, %c0_21] : memref<64x256xf32, #tpu.memory_space<vmem>>, vector<64x256xf32>
      tpu.vector_store %arg10[%c0_20, %c0_21], %30 {strides = array<i32>} : memref<64x256xf32, #tpu.memory_space<vmem>>, vector<64x256xf32>,
    } else {
    }
    %c19_i32 = arith.constant 19 : i32
    %26 = arith.cmpi eq, %arg1, %c19_i32 : i32
    %27 = arith.extui %26 : i1 to i32
    %c0_i32_17 = arith.constant 0 : i32
    %28 = arith.cmpi ne, %27, %c0_i32_17 : i32
    scf.if %28 {
      %c0_18 = arith.constant 0 : index
      %c0_19 = arith.constant 0 : index
      %29 = vector.load %arg10[%c0_18, %c0_19] : memref<64x256xf32, #tpu.memory_space<vmem>>, vector<64x256xf32>
      %c0_20 = arith.constant 0 : index
      %c0_21 = arith.constant 0 : index
      %30 = vector.load %arg8[%c0_20, %c0_21] : memref<64x256xf32, #tpu.memory_space<vmem>>, vector<64x256xf32>
      tpu.vector_store %arg8[%c0_20, %c0_21], %29 {strides = array<i32>} : memref<64x256xf32, #tpu.memory_space<vmem>>, vector<64x256xf32>,
    } else {
    }
    return
  }
  func.func @transform_0(%arg0: i32, %arg1: i32) -> (i32, i32, i32) {
    %c0_i32 = arith.constant 0 : i32
    %c0_i32_0 = arith.constant 0 : i32
    return %arg1, %arg0, %c0_i32 : i32, i32, i32
  }
  func.func @transform_1(%arg0: i32, %arg1: i32) -> (i32, i32) {
    %c0_i32 = arith.constant 0 : i32
    %c0_i32_0 = arith.constant 0 : i32
    return %arg0, %c0_i32 : i32, i32
  }
  func.func @transform_2(%arg0: i32, %arg1: i32) -> (i32, i32) {
    %c0_i32 = arith.constant 0 : i32
    %c0_i32_0 = arith.constant 0 : i32
    %c0_i32_1 = arith.constant 0 : i32
    return %c0_i32, %c0_i32_0 : i32, i32
  }
  func.func @transform_3(%arg0: i32, %arg1: i32) -> (i32, i32) {
    %c0_i32 = arith.constant 0 : i32
    %c0_i32_0 = arith.constant 0 : i32
    %c0_i32_1 = arith.constant 0 : i32
    return %c0_i32, %c0_i32_0 : i32, i32
  }
  func.func @transform_4(%arg0: i32, %arg1: i32) -> (i32, i32) {
    %c0_i32 = arith.constant 0 : i32
    %c0_i32_0 = arith.constant 0 : i32
    %c0_i32_1 = arith.constant 0 : i32
    return %c0_i32, %c0_i32_0 : i32, i32
  }
  func.func @transform_5(%arg0: i32, %arg1: i32) -> (i32, i32) {
    %c0_i32 = arith.constant 0 : i32
    %c0_i32_0 = arith.constant 0 : i32
    %c0_i32_1 = arith.constant 0 : i32
    return %c0_i32, %c0_i32_0 : i32, i32
  }
  func.func @transform_6(%arg0: i32, %arg1: i32) -> (i32, i32) {
    %c0_i32 = arith.constant 0 : i32
    %c0_i32_0 = arith.constant 0 : i32
    return %arg0, %c0_i32 : i32, i32
  }
}

module attributes {stable_mosaic.version = 11 : i64} {
  func.func @_linear_kernel(%arg0: i32, %arg1: memref<64x512xf32, #tpu.memory_space<vmem>>, %arg2: memref<512x1024xbf16, #tpu.memory_space<vmem>>, %arg3: memref<1x1024xf32, #tpu.memory_space<vmem>>, %arg4: memref<1x1024xf32, #tpu.memory_space<vmem>>, %arg5: memref<64x1024xf32, #tpu.memory_space<vmem>>) attributes {dimension_semantics = [#tpu.dimension_semantics<parallel>], iteration_bounds = array<i64: 1>, scalar_prefetch = 0 : i64, scratch_operands = 0 : i64, tpu.core_type = #tpu.core_type<tc>, window_params = [{transform_indices = @transform_0, window_bounds = array<i64: 64, 512>}, {pipeline_mode = #tpu.pipeline_mode<synchronous>, transform_indices = @transform_1, window_bounds = array<i64: 512, 1024>}, {pipeline_mode = #tpu.pipeline_mode<synchronous>, transform_indices = @transform_2, window_bounds = array<i64: 1, 1024>}, {pipeline_mode = #tpu.pipeline_mode<synchronous>, transform_indices = @transform_3, window_bounds = array<i64: 1, 1024>}, {transform_indices = @transform_4, window_bounds = array<i64: 64, 1024>}]} {
    %c0 = arith.constant 0 : index
    %c0_0 = arith.constant 0 : index
    %0 = vector.load %arg1[%c0, %c0_0] : memref<64x512xf32, #tpu.memory_space<vmem>>, vector<64x512xf32>
    %1 = arith.truncf %0 : vector<64x512xf32> to vector<64x512xbf16>
    %c0_1 = arith.constant 0 : index
    %c0_2 = arith.constant 0 : index
    %2 = vector.load %arg2[%c0_1, %c0_2] : memref<512x1024xbf16, #tpu.memory_space<vmem>>, vector<512x1024xbf16>
    %cst = arith.constant dense<0.000000e+00> : vector<64x1024xf32>
    %3 = tpu.matmul %1, %2, %cst {dimension_numbers = #tpu.dot_dimension_numbers<[1], [0], [0], [1], [0, 0, 1, 1], [], []>} : vector<64x512xbf16>, vector<512x1024xbf16>, vector<64x1024xf32> -> vector<64x1024xf32>
    %c0_3 = arith.constant 0 : index
    %c0_4 = arith.constant 0 : index
    %4 = vector.load %arg3[%c0_3, %c0_4] : memref<1x1024xf32, #tpu.memory_space<vmem>>, vector<1x1024xf32>
    %5 = vector.broadcast %4 : vector<1x1024xf32> to vector<64x1024xf32>
    %6 = arith.mulf %3, %5 : vector<64x1024xf32>
    %c0_5 = arith.constant 0 : index
    %c0_6 = arith.constant 0 : index
    %7 = vector.load %arg4[%c0_5, %c0_6] : memref<1x1024xf32, #tpu.memory_space<vmem>>, vector<1x1024xf32>
    %8 = vector.broadcast %7 : vector<1x1024xf32> to vector<64x1024xf32>
    %9 = arith.addf %6, %8 : vector<64x1024xf32>
    %cst_7 = arith.constant 0.000000e+00 : f32
    %10 = vector.broadcast %cst_7 : f32 to vector<64x1024xf32>
    %11 = arith.cmpf oge, %9, %10 : vector<64x1024xf32>
    %cst_8 = arith.constant 2.000000e-01 : f32
    %12 = vector.broadcast %cst_8 : f32 to vector<64x1024xf32>
    %13 = arith.mulf %12, %9 : vector<64x1024xf32>
    %14 = arith.select %11, %9, %13 : vector<64x1024xi1>, vector<64x1024xf32>
    %c0_9 = arith.constant 0 : index
    %c0_10 = arith.constant 0 : index
    %15 = vector.load %arg5[%c0_9, %c0_10] : memref<64x1024xf32, #tpu.memory_space<vmem>>, vector<64x1024xf32>
    tpu.vector_store %arg5[%c0_9, %c0_10], %14 {strides = array<i32>} : memref<64x1024xf32, #tpu.memory_space<vmem>>, vector<64x1024xf32>,
    return
  }
  func.func @transform_0(%arg0: i32) -> (i32, i32) {
    %c0_i32 = arith.constant 0 : i32
    %c0_i32_0 = arith.constant 0 : i32
    return %arg0, %c0_i32 : i32, i32
  }
  func.func @transform_1(%arg0: i32) -> (i32, i32) {
    %c0_i32 = arith.constant 0 : i32
    %c0_i32_0 = arith.constant 0 : i32
    %c0_i32_1 = arith.constant 0 : i32
    return %c0_i32, %c0_i32_0 : i32, i32
  }
  func.func @transform_2(%arg0: i32) -> (i32, i32) {
    %c0_i32 = arith.constant 0 : i32
    %c0_i32_0 = arith.constant 0 : i32
    %c0_i32_1 = arith.constant 0 : i32
    return %c0_i32, %c0_i32_0 : i32, i32
  }
  func.func @transform_3(%arg0: i32) -> (i32, i32) {
    %c0_i32 = arith.constant 0 : i32
    %c0_i32_0 = arith.constant 0 : i32
    %c0_i32_1 = arith.constant 0 : i32
    return %c0_i32, %c0_i32_0 : i32, i32
  }
  func.func @transform_4(%arg0: i32) -> (i32, i32) {
    %c0_i32 = arith.constant 0 : i32
    %c0_i32_0 = arith.constant 0 : i32
    return %arg0, %c0_i32 : i32, i32
  }
}

</mosaic_0001>

<llo_original>
// kernel: dgcnn_forward.14
$region0: #{dgcnn_forward.14}
  #allocation0 [shape = 'u32[]', space=smem, size = 0x4, offset = 0x4, fixed_abs, tag = 'smem constant byte address 0x4 - core index']
  #allocation1 [shape = 'u32[72,128]{1,0:T(1,128)}', space=vmem, size = 0x9000, scoped, tag = 'internal scratch']
  %s0 = inlined_call_operand.vmem [shape: f32[2,32,3], index: 0, kind: input, shape index: {}, may-alias: {0,1}]
  %s1 = inlined_call_operand.vmem [shape: f32[2,32,3], index: 1, kind: input, shape index: {}, may-alias: {0,1}]
  %s2 = inlined_call_operand.vmem [shape: f32[2,32,32], index: 2, kind: output, shape index: {}]
  %s3 = sld [smem:[#allocation0]]
  $region41: #{dgcnn_forward.14} parent=0
    _
  %s5 = ssub.s32 1, %s3
  %s6 = scalar_select 0, %s5, %s3
  loop: start=0, step=1, limit=4
  $region2: #{dgcnn_forward.14} parent=0 // loop_pre_header
    _
  $region3: #{dgcnn_forward.14} parent=0 // loop_header
    %s8 = sphi 0, %s12
    %p9 = scmp.ge.s32.totalorder %s8, 4
    %s15 = sphi 0, %s27
    %s16 = sphi 0, %s23
    %s17 = sphi 0, %s15
    %s18 = sphi 0, %s16
    %s19 = sphi 0, %s17
    %s20 = sphi 0, %s18
    %s32 = sphi 0, %s34
    %s35 = sphi 0, %s32
    %s36 = sphi 0, %s35
    %s52 = sphi 0, %s36
    %s58 = sphi 0, %s60
    %s61 = sphi 0, %s58
    %s62 = sphi 0, %s61
    %s78 = sphi 0, %s62
    %s86 = sphi 0, %s88
    %s89 = sphi 0, %s86
    %s90 = sphi 0, %s89
    %s106 = sphi 0, %s90
  $region4: #{dgcnn_forward.14} parent=0 // loop_header_branch
    %11 = sbr.rel (%p9) target = $region8
  $region5: #{dgcnn_forward.14} parent=0 // loop_body
    %s13 = ssub.s32 %s8, 1
    %s14 = ssub.s32 %s8, 2
    %s21 = sadd.s32 1, %s16
    %p22 = scmp.ge.s32.totalorder %s21, 1
    %s23 = scalar_select %p22, 0, %s21
    %s24 = sadd.s32 1, %s15
    %s25 = scalar_select %p22, %s24, %s15
    %p26 = scmp.ge.s32.totalorder %s25, 2
    %s27 = scalar_select %p26, 0, %s25
    %s28 = ssub.s32 %s15, %s27
    %s29 = ssub.s32 %s16, %s23
    %s30 = sor.u32 %s28, %s29
    %p31 = scmp.eq.s32.totalorder %s30, 0
    %s33 = sadd.s32 %s32, 1
    %s34 = scalar_select %p31, %s32, %s33
    %p37 = pneg %p31
    %p38 = scmp.eq.s32.totalorder %s8, 1
    %p39 = por %p37, %p38
    %p40 = scmp.ne.s32.totalorder %s32, %s35
    %p41 = scmp.eq.s32.totalorder %s8, 0
    %p42 = por %p40, %p41
    %p43 = scmp.ne.s32.totalorder %s32, %s35
    %p44 = scmp.eq.s32.totalorder %s13, 1
    %p45 = por %p43, %p44
    %p46 = scmp.ne.s32.totalorder %s35, %s36
    %p47 = scmp.eq.s32.totalorder %s13, 0
    %p48 = por %p46, %p47
    %p49 = scmp.ne.s32.totalorder %s35, %s36
    %p50 = scmp.eq.s32.totalorder %s14, 1
    %p51 = por %p49, %p50
    %p53 = scmp.ne.s32.totalorder %s36, %s52
    %p54 = scmp.eq.s32.totalorder %s14, 0
    %p55 = por %p53, %p54
    %s56 = ssub.s32 %s15, %s27
    %p57 = scmp.eq.s32.totalorder %s56, 0
    %s59 = sadd.s32 %s58, 1
    %s60 = scalar_select %p57, %s58, %s59
    %p63 = pneg %p57
    %p64 = scmp.eq.s32.totalorder %s8, 1
    %p65 = por %p63, %p64
    %p66 = scmp.ne.s32.totalorder %s58, %s61
    %p67 = scmp.eq.s32.totalorder %s8, 0
    %p68 = por %p66, %p67
    %p69 = scmp.ne.s32.totalorder %s58, %s61
    %p70 = scmp.eq.s32.totalorder %s13, 1
    %p71 = por %p69, %p70
    %p72 = scmp.ne.s32.totalorder %s61, %s62
    %p73 = scmp.eq.s32.totalorder %s13, 0
    %p74 = por %p72, %p73
    %p75 = scmp.ne.s32.totalorder %s61, %s62
    %p76 = scmp.eq.s32.totalorder %s14, 1
    %p77 = por %p75, %p76
    %p79 = scmp.ne.s32.totalorder %s62, %s78
    %p80 = scmp.eq.s32.totalorder %s14, 0
    %p81 = por %p79, %p80
    %s82 = ssub.s32 %s15, %s27
    %s83 = ssub.s32 %s16, %s23
    %s84 = sor.u32 %s82, %s83
    %p85 = scmp.eq.s32.totalorder %s84, 0
    %s87 = sadd.s32 %s86, 1
    %s88 = scalar_select %p85, %s86, %s87
    %p91 = pneg %p85
    %p92 = scmp.eq.s32.totalorder %s8, 1
    %p93 = por %p91, %p92
    %p94 = scmp.ne.s32.totalorder %s86, %s89
    %p95 = scmp.eq.s32.totalorder %s8, 0
    %p96 = por %p94, %p95
    %p97 = scmp.ne.s32.totalorder %s86, %s89
    %p98 = scmp.eq.s32.totalorder %s13, 1
    %p99 = por %p97, %p98
    %p100 = scmp.ne.s32.totalorder %s89, %s90
    %p101 = scmp.eq.s32.totalorder %s13, 0
    %p102 = por %p100, %p101
    %p103 = scmp.ne.s32.totalorder %s89, %s90
    %p104 = scmp.eq.s32.totalorder %s14, 1
    %p105 = por %p103, %p104
    %p107 = scmp.ne.s32.totalorder %s90, %s106
    %p108 = scmp.eq.s32.totalorder %s14, 0
    %p109 = por %p107, %p108
    %p110 = scmp.le.s32.totalorder 1, %s8
    %p111 = scmp.lt.s32.totalorder %s8, 3
    %p112 = pnand %p110, %p111
    %p113 = pneg %p112
    // Predicated region
    $region9: #{dgcnn_forward.14} parent=5 // pred_check
      _
    $region10: #{dgcnn_forward.14} parent=5 // pred_check_branch
      %115 = sbr.rel (%p112) target = $region12
    $region11: #{dgcnn_forward.14} parent=5 // pred_region
      %s116 = ssub.s32 %s8, 1
    $region12: #{dgcnn_forward.14} parent=5 // pred_fallthru
      _
    %p117 = scmp.lt.s32.totalorder %s8, 2
    // Predicated region
    $region13: #{dgcnn_forward.14} parent=5 // pred_check
      %p118 = pneg %p117
    $region14: #{dgcnn_forward.14} parent=5 // pred_check_branch
      %120 = sbr.rel (%p118) target = $region16
    $region15: #{dgcnn_forward.14} parent=5 // pred_region
      // Predicated region
      $region17: #{dgcnn_forward.14} parent=15 // pred_check
        %p121 = pneg %p42
      $region18: #{dgcnn_forward.14} parent=15 // pred_check_branch
        %123 = sbr.rel (%p121) target = $region20
      $region19: #{dgcnn_forward.14} parent=15 // pred_region
        %s124 = smul.u32 4, %s16
        %p125 = scmp.lt.s32.totalorder %s15, 1
        %s126 = scalar_select %p125, %s15, 1
        %p127 = scmp.lt.s32.totalorder %s124, 3
        %s128 = scalar_select %p127, %s124, 3
        %s129 = smul.addr %s126, 4
        %s130 = sadd.s32 %s128, %s129
        %s131 = smul.addr %s130, 8
        %s132 = scalar_lea.vmem %s0, %s131
        %s133 = smul.u32 4, %s16
      $region20: #{dgcnn_forward.14} parent=15 // pred_fallthru
        _
      // Predicated region
      $region21: #{dgcnn_forward.14} parent=15 // pred_check
        %p134 = pneg %p68
      $region22: #{dgcnn_forward.14} parent=15 // pred_check_branch
        %136 = sbr.rel (%p134) target = $region24
      $region23: #{dgcnn_forward.14} parent=15 // pred_region
        %p137 = scmp.lt.s32.totalorder %s15, 1
        %s138 = scalar_select %p137, %s15, 1
        %s139 = smul.addr %s138, 4
        %s140 = smul.addr %s139, 8
        %s141 = scalar_lea.vmem %s1, %s140
      $region24: #{dgcnn_forward.14} parent=15 // pred_fallthru
        _
    $region16: #{dgcnn_forward.14} parent=5 // pred_fallthru
      _
    %p142 = scmp.le.s32.totalorder 1, %s8
    %p143 = scmp.lt.s32.totalorder %s8, 3
    %p144 = pnand %p142, %p143
    %p145 = pneg %p144
    // Predicated region
    $region25: #{dgcnn_forward.14} parent=5 // pred_check
      _
    $region26: #{dgcnn_forward.14} parent=5 // pred_check_branch
      %147 = sbr.rel (%p144) target = $region28
    $region27: #{dgcnn_forward.14} parent=5 // pred_region
      %s148 = ssub.s32 %s8, 1
      %s149 = smul.u32 4, %s18
      %p150 = scmp.lt.s32.totalorder %s17, 1
      %s151 = scalar_select %p150, %s17, 1
      %p152 = scmp.lt.s32.totalorder %s149, 3
      %s153 = scalar_select %p152, %s149, 3
      %s154 = smul.addr %s151, 4
      %s155 = sadd.s32 %s153, %s154
      %s156 = smul.addr %s155, 8
      %s157 = scalar_lea.vmem %s0, %s156
      %p158 = pneg %p48
      %p159 = pneg %p45
      %p160 = scmp.lt.s32.totalorder %s17, 1
      %s161 = scalar_select %p160, %s17, 1
      %s162 = smul.addr %s161, 4
      %s163 = smul.addr %s162, 8
      %s164 = scalar_lea.vmem %s1, %s163
      %p165 = pneg %p74
      %p166 = pneg %p71
      %p167 = pneg %p102
      %p168 = pneg %p99
      %s169 = smul.u32 4, %s18
      %p170 = scmp.lt.s32.totalorder %s17, 1
      %s171 = scalar_select %p170, %s17, 1
      %p172 = scmp.lt.s32.totalorder %s169, 3
      %s173 = scalar_select %p172, %s169, 3
      %s174 = smul.addr %s171, 4
      %s175 = sadd.s32 %s173, %s174
      %s176 = smul.addr %s175, 8
      %s177 = scalar_lea.vmem %s2, %s176
      %s178 = smul.u32 4, %s18
      %p179 = scmp.lt.s32.totalorder %s17, 1
      %s180 = scalar_select %p179, %s17, 1
      %p181 = scmp.lt.s32.totalorder %s178, 3
      %s182 = scalar_select %p181, %s178, 3
      %s183 = smul.addr %s180, 4
      %s184 = sadd.s32 %s182, %s183
      %s185 = smul.addr %s184, 8
      %s186 = scalar_lea.vmem %s0, %s185
      %s187 = smul.u32 4, %s18
      %p188 = scmp.lt.s32.totalorder %s17, 1
      %s189 = scalar_select %p188, %s17, 1
      %s190 = smul.addr %s189, 4
      %s191 = smul.addr %s190, 8
      %s192 = scalar_lea.vmem %s1, %s191
      %s193 = smul.u32 4, %s18
      %p194 = scmp.lt.s32.totalorder %s17, 1
      %s195 = scalar_select %p194, %s17, 1
      %p196 = scmp.lt.s32.totalorder %s193, 3
      %s197 = scalar_select %p196, %s193, 3
      %s198 = smul.addr %s195, 4
      %s199 = sadd.s32 %s197, %s198
      %s200 = smul.addr %s199, 8
      %s201 = scalar_lea.vmem %s2, %s200
      %s202 = smul.u32 4, %s18
      %v203 = vld [vmem:[%s186] sm:$0xff]
      %v204 = vld [vmem:[%s186 + $0x8] sm:$0xff]
      %v205 = vld [vmem:[%s186 + $0x10] sm:$0xff]
      %v206 = vld [vmem:[%s186 + $0x18] sm:$0xff]
      %v207 = vld [vmem:[%s192] sm:$0xff]
      %v208 = vld [vmem:[%s192 + $0x8] sm:$0xff]
      %v209 = vld [vmem:[%s192 + $0x10] sm:$0xff]
      %v210 = vld [vmem:[%s192 + $0x18] sm:$0xff]
      %vm211 = vcmask 23552
      %v213 = vsel %vm211, %v203, 0
      %v216 = vsel %vm211, %v204, 0
      %v219 = vsel %vm211, %v205, 0
      %v222 = vsel %vm211, %v206, 0
      %v225 = vsel %vm211, %v207, 0
      %v228 = vsel %vm211, %v208, 0
      %v231 = vsel %vm211, %v209, 0
      %v234 = vsel %vm211, %v210, 0
      %236 = vmatpush.xpose.msra.mxu0 0.0
      %237 = vmatpush.xpose.msra.mxu0 0.0
      %238 = vmatpush.xpose.msra.mxu0 0.0
      %239 = vmatpush.xpose.msra.mxu0 0.0
      %240 = vmatpush.xpose.msra.mxu0 0.0
      %241 = vmatpush.xpose.msra.mxu0 0.0
      %242 = vmatpush.xpose.msra.mxu0 0.0
      %243 = vmatpush.xpose.msra.mxu0 0.0
      %244 = vmatpush.xpose.msra.mxu0 0.0
      %245 = vmatpush.xpose.msra.mxu0 0.0
      %246 = vmatpush.xpose.msra.mxu0 0.0
      %247 = vmatpush.xpose.msra.mxu0 0.0
      %248 = vmatpush.xpose.msra.mxu0 %v234
      %249 = vmatpush.xpose.msra.mxu0 %v231
      %250 = vmatpush.xpose.msra.mxu0 %v228
      %251 = vmatpush.xpose.msra.mxu0 %v225
      %252 = vmatmul.f32.gmra.mxu0 %v213
      %v253 = vpop.f32.mrf.mxu0
      %v254 = vadd.f32 0.0, %v253
      %255 = vmatmul.f32.gmra.mxu0 %v216
      %v256 = vpop.f32.mrf.mxu0
      %v257 = vadd.f32 0.0, %v256
      %258 = vmatmul.f32.gmra.mxu0 %v219
      %v259 = vpop.f32.mrf.mxu0
      %v260 = vadd.f32 0.0, %v259
      %261 = vmatmul.f32.gmra.mxu0 %v222
      %v262 = vpop.f32.mrf.mxu0
      %v263 = vadd.f32 0.0, %v262
      %264 = vdwg.mxu0
      %v265 = vmul.f32 %v203, %v203
      %v266 = vmul.f32 %v204, %v204
      %v267 = vmul.f32 %v205, %v205
      %v268 = vmul.f32 %v206, %v206
      %v269 = vsel %vm211, %v265, 0.0
      %270 = vadd.xlane.f32.xlu0 %v269
      %v271 = vpop.xlane.xlu0 %270
      %v272 = vsel %vm211, %v266, 0.0
      %273 = vadd.xlane.f32.xlu0 %v272
      %v274 = vpop.xlane.xlu0 %273
      %v275 = vsel %vm211, %v267, 0.0
      %276 = vadd.xlane.f32.xlu0 %v275
      %v277 = vpop.xlane.xlu0 %276
      %v278 = vsel %vm211, %v268, 0.0
      %279 = vadd.xlane.f32.xlu0 %v278
      %v280 = vpop.xlane.xlu0 %279
      %v281 = vmul.f32 %v207, %v207
      %v282 = vmul.f32 %v208, %v208
      %v283 = vmul.f32 %v209, %v209
      %v284 = vmul.f32 %v210, %v210
      %v285 = vsel %vm211, %v281, 0.0
      %286 = vadd.xlane.f32.xlu0 %v285
      %v287 = vpop.xlane.xlu0 %286
      %v288 = vsel %vm211, %v282, 0.0
      %289 = vadd.xlane.f32.xlu0 %v288
      %v290 = vpop.xlane.xlu0 %289
      %v291 = vsel %vm211, %v283, 0.0
      %292 = vadd.xlane.f32.xlu0 %v291
      %v293 = vpop.xlane.xlu0 %292
      %v294 = vsel %vm211, %v284, 0.0
      %295 = vadd.xlane.f32.xlu0 %v294
      %v296 = vpop.xlane.xlu0 %295
      %v297 = vmul.f32 %v254, 2.0
      %v298 = vmul.f32 %v257, 2.0
      %v299 = vmul.f32 %v260, 2.0
      %v300 = vmul.f32 %v263, 2.0
      %v301 = vsub.f32 %v297, %v271
      %v302 = vsub.f32 %v298, %v274
      %v303 = vsub.f32 %v299, %v277
      %v304 = vsub.f32 %v300, %v280
      %305 = vxpose.xlu0.b32.start [1/16] %v287, 128
      %306 = vxpose.xlu0.b32.cont [2/16] %v290, 128
      %307 = vxpose.xlu0.b32.cont [3/16] %v293, 128
      %308 = vxpose.xlu0.b32.cont [4/16] %v296, 128
      %309 = vxpose.xlu0.b32.cont [5/16] 0.0, 128
      %310 = vxpose.xlu0.b32.cont [6/16] 0.0, 128
      %311 = vxpose.xlu0.b32.cont [7/16] 0.0, 128
      %312 = vxpose.xlu0.b32.cont [8/16] 0.0, 128
      %313 = vxpose.xlu0.b32.cont [9/16] 0.0, 128
      %314 = vxpose.xlu0.b32.cont [10/16] 0.0, 128
      %315 = vxpose.xlu0.b32.cont [11/16] 0.0, 128
      %316 = vxpose.xlu0.b32.cont [12/16] 0.0, 128
      %317 = vxpose.xlu0.b32.cont [13/16] 0.0, 128
      %318 = vxpose.xlu0.b32.cont [14/16] 0.0, 128
      %319 = vxpose.xlu0.b32.cont [15/16] 0.0, 128
      %320 = vxpose.xlu0.b32.end [16/16] 0.0, 128
      %v321 = vpop.trf.xlu0
      %v322 = vpop.trf.xlu0
      %v323 = vpop.trf.xlu0
      %v324 = vpop.trf.xlu0
      %v325 = vpop.trf.xlu0
      %v326 = vpop.trf.xlu0
      %v327 = vpop.trf.xlu0
      %v328 = vpop.trf.xlu0
      %v329 = vpop.trf.xlu0
      %v330 = vpop.trf.xlu0
      %v331 = vpop.trf.xlu0
      %v332 = vpop.trf.xlu0
      %v333 = vpop.trf.xlu0
      %v334 = vpop.trf.xlu0
      %v335 = vpop.trf.xlu0
      %v336 = vpop.trf.xlu0
      %v337 = vperm.slane %v321, 0
      %v338 = vsub.f32 %v301, %v337
      %v339 = vsub.f32 %v302, %v337
      %v340 = vsub.f32 %v303, %v337
      %v341 = vsub.f32 %v304, %v337
      %vm342 = vcmask 261120
      %343 = vst.msk [vmem:[%s201] sm:$0xff] %vm342, %v338
      %344 = vst.msk [vmem:[%s201 + $0x8] sm:$0xff] %vm342, %v339
      %345 = vst.msk [vmem:[%s201 + $0x10] sm:$0xff] %vm342, %v340
      %346 = vst.msk [vmem:[%s201 + $0x18] sm:$0xff] %vm342, %v341
      %s347 = smul.u32 4, %s18
      %p348 = scmp.lt.s32.totalorder %s17, 1
      %s349 = scalar_select %p348, %s17, 1
      %p350 = scmp.lt.s32.totalorder %s347, 3
      %s351 = scalar_select %p350, %s347, 3
      %s352 = smul.addr %s349, 4
      %s353 = sadd.s32 %s351, %s352
      %s354 = smul.addr %s353, 8
      %s355 = scalar_lea.vmem %s2, %s354
      // Predicated region
      $region29: #{dgcnn_forward.14} parent=27 // pred_check
        %p356 = pneg %p99
      $region30: #{dgcnn_forward.14} parent=27 // pred_check_branch
        %358 = sbr.rel (%p356) target = $region32
      $region31: #{dgcnn_forward.14} parent=27 // pred_region
        %s359 = smul.u32 4, %s18
      $region32: #{dgcnn_forward.14} parent=27 // pred_fallthru
        _
    $region28: #{dgcnn_forward.14} parent=5 // pred_fallthru
      _
    %p360 = scmp.le.s32.totalorder 2, %s8
    // Predicated region
    $region33: #{dgcnn_forward.14} parent=5 // pred_check
      %p361 = pneg %p360
    $region34: #{dgcnn_forward.14} parent=5 // pred_check_branch
      %363 = sbr.rel (%p361) target = $region36
    $region35: #{dgcnn_forward.14} parent=5 // pred_region
      %s364 = ssub.s32 %s8, 2
      // Predicated region
      $region37: #{dgcnn_forward.14} parent=35 // pred_check
        %p365 = pneg %p105
      $region38: #{dgcnn_forward.14} parent=35 // pred_check_branch
        %367 = sbr.rel (%p365) target = $region40
      $region39: #{dgcnn_forward.14} parent=35 // pred_region
        %s368 = smul.u32 4, %s20
        %p369 = scmp.lt.s32.totalorder %s19, 1
        %s370 = scalar_select %p369, %s19, 1
        %p371 = scmp.lt.s32.totalorder %s368, 3
        %s372 = scalar_select %p371, %s368, 3
        %s373 = smul.addr %s370, 4
        %s374 = sadd.s32 %s372, %s373
        %s375 = smul.addr %s374, 8
        %s376 = scalar_lea.vmem %s2, %s375
      $region40: #{dgcnn_forward.14} parent=35 // pred_fallthru
        _
    $region36: #{dgcnn_forward.14} parent=5 // pred_fallthru
      _
  $region6: #{dgcnn_forward.14} parent=0 // loop_footer
    %s12 = sadd.s32 1, %s8
  $region7: #{dgcnn_forward.14} parent=0 // loop_footer_branch
    %7 = sbr.rel target = $region3
  $region8: #{dgcnn_forward.14} parent=0 // loop_exit
    _

// kernel: dgcnn_forward.17
$region0: #{dgcnn_forward.17}
  #allocation0 [shape = 'u32[]', space=smem, size = 0x4, offset = 0x4, fixed_abs, tag = 'smem constant byte address 0x4 - core index']
  #allocation1 [shape = 'u32[72,128]{1,0:T(1,128)}', space=vmem, size = 0x9000, scoped, tag = 'internal scratch']
  #allocation2 [shape = 'f32[1,1024]{1,0:T(1,128)}', space=vmem, size = 0x1000, scoped, tag = 'scratch operand']
  %s0 = inlined_call_operand.vmem [shape: f32[2,32,1024], index: 0, kind: input, shape index: {}]
  %s1 = inlined_call_operand.vmem [shape: f32[2,1,1024], index: 1, kind: output, shape index: {}]
  %s2 = sld [smem:[#allocation0]]
  $region49: #{dgcnn_forward.17} parent=0
    _
  %s4 = ssub.s32 1, %s2
  %s5 = scalar_select 0, %s4, %s2
  loop: start=0, step=1, limit=4
  $region2: #{dgcnn_forward.17} parent=0 // loop_pre_header
    _
  $region3: #{dgcnn_forward.17} parent=0 // loop_header
    %s7 = sphi 0, %s11
    %p8 = scmp.ge.s32.totalorder %s7, 4
    %s14 = sphi 0, %s26
    %s15 = sphi 0, %s22
    %s16 = sphi 0, %s14
    %s17 = sphi 0, %s15
    %s18 = sphi 0, %s16
    %s19 = sphi 0, %s17
    %s31 = sphi 0, %s33
    %s34 = sphi 0, %s31
    %s35 = sphi 0, %s34
    %s51 = sphi 0, %s35
    %s57 = sphi 0, %s59
    %s60 = sphi 0, %s57
    %s61 = sphi 0, %s60
    %s77 = sphi 0, %s61
  $region4: #{dgcnn_forward.17} parent=0 // loop_header_branch
    %10 = sbr.rel (%p8) target = $region8
  $region5: #{dgcnn_forward.17} parent=0 // loop_body
    %s12 = ssub.s32 %s7, 1
    %s13 = ssub.s32 %s7, 2
    %s20 = sadd.s32 1, %s15
    %p21 = scmp.ge.s32.totalorder %s20, 1
    %s22 = scalar_select %p21, 0, %s20
    %s23 = sadd.s32 1, %s14
    %s24 = scalar_select %p21, %s23, %s14
    %p25 = scmp.ge.s32.totalorder %s24, 2
    %s26 = scalar_select %p25, 0, %s24
    %s27 = ssub.s32 %s14, %s26
    %s28 = ssub.s32 %s15, %s22
    %s29 = sor.u32 %s27, %s28
    %p30 = scmp.eq.s32.totalorder %s29, 0
    %s32 = sadd.s32 %s31, 1
    %s33 = scalar_select %p30, %s31, %s32
    %p36 = pneg %p30
    %p37 = scmp.eq.s32.totalorder %s7, 1
    %p38 = por %p36, %p37
    %p39 = scmp.ne.s32.totalorder %s31, %s34
    %p40 = scmp.eq.s32.totalorder %s7, 0
    %p41 = por %p39, %p40
    %p42 = scmp.ne.s32.totalorder %s31, %s34
    %p43 = scmp.eq.s32.totalorder %s12, 1
    %p44 = por %p42, %p43
    %p45 = scmp.ne.s32.totalorder %s34, %s35
    %p46 = scmp.eq.s32.totalorder %s12, 0
    %p47 = por %p45, %p46
    %p48 = scmp.ne.s32.totalorder %s34, %s35
    %p49 = scmp.eq.s32.totalorder %s13, 1
    %p50 = por %p48, %p49
    %p52 = scmp.ne.s32.totalorder %s35, %s51
    %p53 = scmp.eq.s32.totalorder %s13, 0
    %p54 = por %p52, %p53
    %s55 = ssub.s32 %s14, %s26
    %p56 = scmp.eq.s32.totalorder %s55, 0
    %s58 = sadd.s32 %s57, 1
    %s59 = scalar_select %p56, %s57, %s58
    %p62 = pneg %p56
    %p63 = scmp.eq.s32.totalorder %s7, 1
    %p64 = por %p62, %p63
    %p65 = scmp.ne.s32.totalorder %s57, %s60
    %p66 = scmp.eq.s32.totalorder %s7, 0
    %p67 = por %p65, %p66
    %p68 = scmp.ne.s32.totalorder %s57, %s60
    %p69 = scmp.eq.s32.totalorder %s12, 1
    %p70 = por %p68, %p69
    %p71 = scmp.ne.s32.totalorder %s60, %s61
    %p72 = scmp.eq.s32.totalorder %s12, 0
    %p73 = por %p71, %p72
    %p74 = scmp.ne.s32.totalorder %s60, %s61
    %p75 = scmp.eq.s32.totalorder %s13, 1
    %p76 = por %p74, %p75
    %p78 = scmp.ne.s32.totalorder %s61, %s77
    %p79 = scmp.eq.s32.totalorder %s13, 0
    %p80 = por %p78, %p79
    %p81 = scmp.le.s32.totalorder 1, %s7
    %p82 = scmp.lt.s32.totalorder %s7, 3
    %p83 = pnand %p81, %p82
    %p84 = pneg %p83
    // Predicated region
    $region9: #{dgcnn_forward.17} parent=5 // pred_check
      _
    $region10: #{dgcnn_forward.17} parent=5 // pred_check_branch
      %86 = sbr.rel (%p83) target = $region12
    $region11: #{dgcnn_forward.17} parent=5 // pred_region
      %s87 = ssub.s32 %s7, 1
    $region12: #{dgcnn_forward.17} parent=5 // pred_fallthru
      _
    %p88 = scmp.lt.s32.totalorder %s7, 2
    // Predicated region
    $region13: #{dgcnn_forward.17} parent=5 // pred_check
      %p89 = pneg %p88
    $region14: #{dgcnn_forward.17} parent=5 // pred_check_branch
      %91 = sbr.rel (%p89) target = $region16
    $region15: #{dgcnn_forward.17} parent=5 // pred_region
      // Predicated region
      $region17: #{dgcnn_forward.17} parent=15 // pred_check
        %p92 = pneg %p41
      $region18: #{dgcnn_forward.17} parent=15 // pred_check_branch
        %94 = sbr.rel (%p92) target = $region20
      $region19: #{dgcnn_forward.17} parent=15 // pred_region
        %s95 = smul.u32 4, %s15
        %p96 = scmp.lt.s32.totalorder %s14, 1
        %s97 = scalar_select %p96, %s14, 1
        %p98 = scmp.lt.s32.totalorder %s95, 3
        %s99 = scalar_select %p98, %s95, 3
        %s100 = smul.addr %s99, 8
        %s101 = smul.addr %s97, 32
        %s102 = sadd.s32 %s100, %s101
        %s103 = smul.addr %s102, 8
        %s104 = scalar_lea.vmem %s0, %s103
        %s105 = smul.u32 4, %s15
      $region20: #{dgcnn_forward.17} parent=15 // pred_fallthru
        _
    $region16: #{dgcnn_forward.17} parent=5 // pred_fallthru
      _
    %p106 = scmp.le.s32.totalorder 1, %s7
    %p107 = scmp.lt.s32.totalorder %s7, 3
    %p108 = pnand %p106, %p107
    %p109 = pneg %p108
    // Predicated region
    $region21: #{dgcnn_forward.17} parent=5 // pred_check
      _
    $region22: #{dgcnn_forward.17} parent=5 // pred_check_branch
      %111 = sbr.rel (%p108) target = $region24
    $region23: #{dgcnn_forward.17} parent=5 // pred_region
      %s112 = ssub.s32 %s7, 1
      %s113 = smul.u32 4, %s17
      %p114 = scmp.lt.s32.totalorder %s16, 1
      %s115 = scalar_select %p114, %s16, 1
      %p116 = scmp.lt.s32.totalorder %s113, 3
      %s117 = scalar_select %p116, %s113, 3
      %s118 = smul.addr %s117, 8
      %s119 = smul.addr %s115, 32
      %s120 = sadd.s32 %s118, %s119
      %s121 = smul.addr %s120, 8
      %s122 = scalar_lea.vmem %s0, %s121
      %p123 = pneg %p47
      %p124 = pneg %p44
      %p125 = pneg %p73
      %p126 = pneg %p70
      %p127 = scmp.lt.s32.totalorder %s16, 1
      %s128 = scalar_select %p127, %s16, 1
      %s129 = smul.addr %s128, 8
      %s130 = scalar_lea.vmem %s1, %s129
      %s131 = smul.u32 4, %s17
      %p132 = scmp.lt.s32.totalorder %s16, 1
      %s133 = scalar_select %p132, %s16, 1
      %p134 = scmp.lt.s32.totalorder %s131, 3
      %s135 = scalar_select %p134, %s131, 3
      %s136 = smul.addr %s135, 8
      %s137 = smul.addr %s133, 32
      %s138 = sadd.s32 %s136, %s137
      %s139 = smul.addr %s138, 8
      %s140 = scalar_lea.vmem %s0, %s139
      %s141 = smul.u32 4, %s17
      %p142 = scmp.lt.s32.totalorder %s16, 1
      %s143 = scalar_select %p142, %s16, 1
      %s144 = smul.addr %s143, 8
      %s145 = scalar_lea.vmem %s1, %s144
      %v146 = vld [vmem:[%s140] sm:$0xff]
      %v147 = vld [vmem:[%s140 + $0x8] sm:$0xff]
      %v148 = vld [vmem:[%s140 + $0x10] sm:$0xff]
      %v149 = vld [vmem:[%s140 + $0x18] sm:$0xff]
      %v150 = vld [vmem:[%s140 + $0x20] sm:$0xff]
      %v151 = vld [vmem:[%s140 + $0x28] sm:$0xff]
      %v152 = vld [vmem:[%s140 + $0x30] sm:$0xff]
      %v153 = vld [vmem:[%s140 + $0x38] sm:$0xff]
      %v154 = vld [vmem:[%s140 + $0x40] sm:$0xff]
      %v155 = vld [vmem:[%s140 + $0x48] sm:$0xff]
      %v156 = vld [vmem:[%s140 + $0x50] sm:$0xff]
      %v157 = vld [vmem:[%s140 + $0x58] sm:$0xff]
      %v158 = vld [vmem:[%s140 + $0x60] sm:$0xff]
      %v159 = vld [vmem:[%s140 + $0x68] sm:$0xff]
      %v160 = vld [vmem:[%s140 + $0x70] sm:$0xff]
      %v161 = vld [vmem:[%s140 + $0x78] sm:$0xff]
      %v162 = vld [vmem:[%s140 + $0x80] sm:$0xff]
      %v163 = vld [vmem:[%s140 + $0x88] sm:$0xff]
      %v164 = vld [vmem:[%s140 + $0x90] sm:$0xff]
      %v165 = vld [vmem:[%s140 + $0x98] sm:$0xff]
      %v166 = vld [vmem:[%s140 + $0xa0] sm:$0xff]
      %v167 = vld [vmem:[%s140 + $0xa8] sm:$0xff]
      %v168 = vld [vmem:[%s140 + $0xb0] sm:$0xff]
      %v169 = vld [vmem:[%s140 + $0xb8] sm:$0xff]
      %v170 = vld [vmem:[%s140 + $0xc0] sm:$0xff]
      %v171 = vld [vmem:[%s140 + $0xc8] sm:$0xff]
      %v172 = vld [vmem:[%s140 + $0xd0] sm:$0xff]
      %v173 = vld [vmem:[%s140 + $0xd8] sm:$0xff]
      %v174 = vld [vmem:[%s140 + $0xe0] sm:$0xff]
      %v175 = vld [vmem:[%s140 + $0xe8] sm:$0xff]
      %v176 = vld [vmem:[%s140 + $0xf0] sm:$0xff]
      %v177 = vld [vmem:[%s140 + $0xf8] sm:$0xff]
      %v178 = vmax.f32 %v146, %v154
      %v179 = vmax.f32 %v178, %v162
      %v180 = vmax.f32 %v179, %v170
      %v181 = vrot.slane %v180, 4
      %v182 = vmax.f32 %v180, %v181
      %v183 = vrot.slane %v182, 2
      %v184 = vmax.f32 %v182, %v183
      %v185 = vrot.slane %v184, 1
      %v186 = vmax.f32 %v184, %v185
      %v187 = vmax.f32 %v147, %v155
      %v188 = vmax.f32 %v187, %v163
      %v189 = vmax.f32 %v188, %v171
      %v190 = vrot.slane %v189, 4
      %v191 = vmax.f32 %v189, %v190
      %v192 = vrot.slane %v191, 2
      %v193 = vmax.f32 %v191, %v192
      %v194 = vrot.slane %v193, 1
      %v195 = vmax.f32 %v193, %v194
      %v196 = vmax.f32 %v148, %v156
      %v197 = vmax.f32 %v196, %v164
      %v198 = vmax.f32 %v197, %v172
      %v199 = vrot.slane %v198, 4
      %v200 = vmax.f32 %v198, %v199
      %v201 = vrot.slane %v200, 2
      %v202 = vmax.f32 %v200, %v201
      %v203 = vrot.slane %v202, 1
      %v204 = vmax.f32 %v202, %v203
      %v205 = vmax.f32 %v149, %v157
      %v206 = vmax.f32 %v205, %v165
      %v207 = vmax.f32 %v206, %v173
      %v208 = vrot.slane %v207, 4
      %v209 = vmax.f32 %v207, %v208
      %v210 = vrot.slane %v209, 2
      %v211 = vmax.f32 %v209, %v210
      %v212 = vrot.slane %v211, 1
      %v213 = vmax.f32 %v211, %v212
      %v214 = vmax.f32 %v150, %v158
      %v215 = vmax.f32 %v214, %v166
      %v216 = vmax.f32 %v215, %v174
      %v217 = vrot.slane %v216, 4
      %v218 = vmax.f32 %v216, %v217
      %v219 = vrot.slane %v218, 2
      %v220 = vmax.f32 %v218, %v219
      %v221 = vrot.slane %v220, 1
      %v222 = vmax.f32 %v220, %v221
      %v223 = vmax.f32 %v151, %v159
      %v224 = vmax.f32 %v223, %v167
      %v225 = vmax.f32 %v224, %v175
      %v226 = vrot.slane %v225, 4
      %v227 = vmax.f32 %v225, %v226
      %v228 = vrot.slane %v227, 2
      %v229 = vmax.f32 %v227, %v228
      %v230 = vrot.slane %v229, 1
      %v231 = vmax.f32 %v229, %v230
      %v232 = vmax.f32 %v152, %v160
      %v233 = vmax.f32 %v232, %v168
      %v234 = vmax.f32 %v233, %v176
      %v235 = vrot.slane %v234, 4
      %v236 = vmax.f32 %v234, %v235
      %v237 = vrot.slane %v236, 2
      %v238 = vmax.f32 %v236, %v237
      %v239 = vrot.slane %v238, 1
      %v240 = vmax.f32 %v238, %v239
      %v241 = vmax.f32 %v153, %v161
      %v242 = vmax.f32 %v241, %v169
      %v243 = vmax.f32 %v242, %v177
      %v244 = vrot.slane %v243, 4
      %v245 = vmax.f32 %v243, %v244
      %v246 = vrot.slane %v245, 2
      %v247 = vmax.f32 %v245, %v246
      %v248 = vrot.slane %v247, 1
      %v249 = vmax.f32 %v247, %v248
      %p250 = scmp.eq.s32.totalorder %s17, 0
      // Predicated region
      $region25: #{dgcnn_forward.17} parent=23 // pred_check
        %p251 = pneg %p250
      $region26: #{dgcnn_forward.17} parent=23 // pred_check_branch
        %253 = sbr.rel (%p251) target = $region28
      $region27: #{dgcnn_forward.17} parent=23 // pred_region
        %v262 = vrot.slane %v195, 7
        %v263 = vrot.slane %v204, 6
        %v264 = vrot.slane %v213, 5
        %v265 = vrot.slane %v222, 4
        %v266 = vrot.slane %v231, 3
        %v267 = vrot.slane %v240, 2
        %v268 = vrot.slane %v249, 1
        %vm269 = vcmask 1040384
        %v270 = vsel %vm269, %v186, %v262
        %vm271 = vcmask 1042434
        %v272 = vsel %vm271, %v263, %v264
        %vm273 = vcmask 1041408
        %v274 = vsel %vm273, %v270, %v272
        %vm275 = vcmask 1044484
        %v276 = vsel %vm275, %v265, %v266
        %vm277 = vcmask 1046534
        %v278 = vsel %vm277, %v267, %v268
        %vm279 = vcmask 1045508
        %v280 = vsel %vm279, %v276, %v278
        %vm281 = vcmask 1043456
        %v282 = vsel %vm281, %v274, %v280
        %284 = vst [vmem:[#allocation2] sm:$0xff] %v282
      $region28: #{dgcnn_forward.17} parent=23 // pred_fallthru
        _
      %p285 = scmp.gt.s32.totalorder %s17, 0
      // Predicated region
      $region29: #{dgcnn_forward.17} parent=23 // pred_check
        %p286 = pneg %p285
      $region30: #{dgcnn_forward.17} parent=23 // pred_check_branch
        %288 = sbr.rel (%p286) target = $region32
      $region31: #{dgcnn_forward.17} parent=23 // pred_region
        %v289 = vld [vmem:[#allocation2] sm:$0xff]
        %v298 = vrot.slane %v195, 7
        %v299 = vrot.slane %v204, 6
        %v300 = vrot.slane %v213, 5
        %v301 = vrot.slane %v222, 4
        %v302 = vrot.slane %v231, 3
        %v303 = vrot.slane %v240, 2
        %v304 = vrot.slane %v249, 1
        %vm305 = vcmask 1040384
        %v306 = vsel %vm305, %v186, %v298
        %vm307 = vcmask 1042434
        %v308 = vsel %vm307, %v299, %v300
        %vm309 = vcmask 1041408
        %v310 = vsel %vm309, %v306, %v308
        %vm311 = vcmask 1044484
        %v312 = vsel %vm311, %v301, %v302
        %vm313 = vcmask 1046534
        %v314 = vsel %vm313, %v303, %v304
        %vm315 = vcmask 1045508
        %v316 = vsel %vm315, %v312, %v314
        %vm317 = vcmask 1043456
        %v318 = vsel %vm317, %v310, %v316
        %v320 = vmax.f32 %v289, %v318
        %321 = vst [vmem:[#allocation2] sm:$0xff] %v320
      $region32: #{dgcnn_forward.17} parent=23 // pred_fallthru
        _
      // Predicated region
      $region33: #{dgcnn_forward.17} parent=23 // pred_check
        %p322 = pneg %p250
      $region34: #{dgcnn_forward.17} parent=23 // pred_check_branch
        %324 = sbr.rel (%p322) target = $region36
      $region35: #{dgcnn_forward.17} parent=23 // pred_region
        %v325 = vld [vmem:[#allocation2] sm:$0xff]
        %326 = vst [vmem:[%s145] sm:$0xff] %v325
      $region36: #{dgcnn_forward.17} parent=23 // pred_fallthru
        _
      %p327 = scmp.lt.s32.totalorder %s16, 1
      %s328 = scalar_select %p327, %s16, 1
      %s329 = smul.addr %s328, 8
      %s330 = scalar_lea.vmem %s1, %s329
      // Predicated region
      $region37: #{dgcnn_forward.17} parent=23 // pred_check
        %p331 = pneg %p70
      $region38: #{dgcnn_forward.17} parent=23 // pred_check_branch
        %333 = sbr.rel (%p331) target = $region40
      $region39: #{dgcnn_forward.17} parent=23 // pred_region
        _
      $region40: #{dgcnn_forward.17} parent=23 // pred_fallthru
        _
    $region24: #{dgcnn_forward.17} parent=5 // pred_fallthru
      _
    %p334 = scmp.le.s32.totalorder 2, %s7
    // Predicated region
    $region41: #{dgcnn_forward.17} parent=5 // pred_check
      %p335 = pneg %p334
    $region42: #{dgcnn_forward.17} parent=5 // pred_check_branch
      %337 = sbr.rel (%p335) target = $region44
    $region43: #{dgcnn_forward.17} parent=5 // pred_region
      %s338 = ssub.s32 %s7, 2
      // Predicated region
      $region45: #{dgcnn_forward.17} parent=43 // pred_check
        %p339 = pneg %p76
      $region46: #{dgcnn_forward.17} parent=43 // pred_check_branch
        %341 = sbr.rel (%p339) target = $region48
      $region47: #{dgcnn_forward.17} parent=43 // pred_region
        %p342 = scmp.lt.s32.totalorder %s18, 1
        %s343 = scalar_select %p342, %s18, 1
        %s344 = smul.addr %s343, 8
        %s345 = scalar_lea.vmem %s1, %s344
      $region48: #{dgcnn_forward.17} parent=43 // pred_fallthru
        _
    $region44: #{dgcnn_forward.17} parent=5 // pred_fallthru
      _
  $region6: #{dgcnn_forward.17} parent=0 // loop_footer
    %s11 = sadd.s32 1, %s7
  $region7: #{dgcnn_forward.17} parent=0 // loop_footer_branch
    %6 = sbr.rel target = $region3
  $region8: #{dgcnn_forward.17} parent=0 // loop_exit
    _

// kernel: dgcnn_forward.15
$region0: #{dgcnn_forward.15}
  #allocation0 [shape = 'u32[]', space=smem, size = 0x4, offset = 0x4, fixed_abs, tag = 'smem constant byte address 0x4 - core index']
  #allocation1 [shape = 'u32[72,128]{1,0:T(1,128)}', space=vmem, size = 0x9000, scoped, tag = 'internal scratch']
  #allocation2 [shape = 'f32[64,64]{1,0:T(8,128)}', space=vmem, size = 0x8000, scoped, tag = 'scratch operand']
  #allocation3 [shape = 'f32[64,128]{1,0:T(8,128)}', space=vmem, size = 0x8000, scoped, tag = 'scratch operand']
  %s0 = inlined_call_operand.vmem [shape: bf16[20,64,3], index: 0, kind: input, shape index: {}]
  %s1 = inlined_call_operand.vmem [shape: bf16[64,3], index: 1, kind: input, shape index: {}]
  %s2 = inlined_call_operand.vmem [shape: bf16[3,64], index: 2, kind: input, shape index: {}]
  %s3 = inlined_call_operand.vmem [shape: bf16[3,64], index: 3, kind: input, shape index: {}]
  %s4 = inlined_call_operand.vmem [shape: f32[1,64], index: 4, kind: input, shape index: {}]
  %s5 = inlined_call_operand.vmem [shape: f32[1,64], index: 5, kind: input, shape index: {}]
  %s6 = inlined_call_operand.vmem [shape: bf16[64,128], index: 6, kind: input, shape index: {}]
  %s7 = inlined_call_operand.vmem [shape: f32[1,128], index: 7, kind: input, shape index: {}]
  %s8 = inlined_call_operand.vmem [shape: f32[1,128], index: 8, kind: input, shape index: {}]
  %s9 = inlined_call_operand.vmem [shape: f32[64,128], index: 9, kind: output, shape index: {}]
  %s10 = sld [smem:[#allocation0]]
  $region85: #{dgcnn_forward.15} parent=0
    _
  %s12 = ssub.s32 1, %s10
  %s13 = scalar_select 0, %s12, %s10
  loop: start=0, step=1, limit=22
  $region2: #{dgcnn_forward.15} parent=0 // loop_pre_header
    _
  $region3: #{dgcnn_forward.15} parent=0 // loop_header
    %s15 = sphi 0, %s19
    %p16 = scmp.ge.s32.totalorder %s15, 22
    %s22 = sphi 0, %s34
    %s23 = sphi 0, %s30
    %s24 = sphi 0, %s22
    %s25 = sphi 0, %s23
    %s26 = sphi 0, %s24
    %s27 = sphi 0, %s25
    %s39 = sphi 0, %s41
    %s42 = sphi 0, %s39
    %s43 = sphi 0, %s42
    %s59 = sphi 0, %s43
    %s65 = sphi 0, %s67
    %s68 = sphi 0, %s65
    %s69 = sphi 0, %s68
    %s85 = sphi 0, %s69
    %s89 = sphi 0, %s89
    %s91 = sphi 0, %s89
    %s92 = sphi 0, %s91
    %s106 = sphi 0, %s92
    %s110 = sphi 0, %s110
    %s112 = sphi 0, %s110
    %s113 = sphi 0, %s112
    %s127 = sphi 0, %s113
    %s131 = sphi 0, %s131
    %s133 = sphi 0, %s131
    %s134 = sphi 0, %s133
    %s148 = sphi 0, %s134
    %s152 = sphi 0, %s152
    %s154 = sphi 0, %s152
    %s155 = sphi 0, %s154
    %s169 = sphi 0, %s155
    %s173 = sphi 0, %s173
    %s175 = sphi 0, %s173
    %s176 = sphi 0, %s175
    %s190 = sphi 0, %s176
    %s194 = sphi 0, %s194
    %s196 = sphi 0, %s194
    %s197 = sphi 0, %s196
    %s211 = sphi 0, %s197
    %s215 = sphi 0, %s215
    %s217 = sphi 0, %s215
    %s218 = sphi 0, %s217
    %s232 = sphi 0, %s218
    %s238 = sphi 0, %s240
    %s241 = sphi 0, %s238
    %s242 = sphi 0, %s241
    %s258 = sphi 0, %s242
  $region4: #{dgcnn_forward.15} parent=0 // loop_header_branch
    %18 = sbr.rel (%p16) target = $region8
  $region5: #{dgcnn_forward.15} parent=0 // loop_body
    %s20 = ssub.s32 %s15, 1
    %s21 = ssub.s32 %s15, 2
    %s28 = sadd.s32 1, %s23
    %p29 = scmp.ge.s32.totalorder %s28, 20
    %s30 = scalar_select %p29, 0, %s28
    %s31 = sadd.s32 1, %s22
    %s32 = scalar_select %p29, %s31, %s22
    %p33 = scmp.ge.s32.totalorder %s32, 1
    %s34 = scalar_select %p33, 0, %s32
    %s35 = ssub.s32 %s23, %s30
    %s36 = ssub.s32 %s22, %s34
    %s37 = sor.u32 %s35, %s36
    %p38 = scmp.eq.s32.totalorder %s37, 0
    %s40 = sadd.s32 %s39, 1
    %s41 = scalar_select %p38, %s39, %s40
    %p44 = pneg %p38
    %p45 = scmp.eq.s32.totalorder %s15, 19
    %p46 = por %p44, %p45
    %p47 = scmp.ne.s32.totalorder %s39, %s42
    %p48 = scmp.eq.s32.totalorder %s15, 0
    %p49 = por %p47, %p48
    %p50 = scmp.ne.s32.totalorder %s39, %s42
    %p51 = scmp.eq.s32.totalorder %s20, 19
    %p52 = por %p50, %p51
    %p53 = scmp.ne.s32.totalorder %s42, %s43
    %p54 = scmp.eq.s32.totalorder %s20, 0
    %p55 = por %p53, %p54
    %p56 = scmp.ne.s32.totalorder %s42, %s43
    %p57 = scmp.eq.s32.totalorder %s21, 19
    %p58 = por %p56, %p57
    %p60 = scmp.ne.s32.totalorder %s43, %s59
    %p61 = scmp.eq.s32.totalorder %s21, 0
    %p62 = por %p60, %p61
    %s63 = ssub.s32 %s22, %s34
    %p64 = scmp.eq.s32.totalorder %s63, 0
    %s66 = sadd.s32 %s65, 1
    %s67 = scalar_select %p64, %s65, %s66
    %p70 = pneg %p64
    %p71 = scmp.eq.s32.totalorder %s15, 19
    %p72 = por %p70, %p71
    %p73 = scmp.ne.s32.totalorder %s65, %s68
    %p74 = scmp.eq.s32.totalorder %s15, 0
    %p75 = por %p73, %p74
    %p76 = scmp.ne.s32.totalorder %s65, %s68
    %p77 = scmp.eq.s32.totalorder %s20, 19
    %p78 = por %p76, %p77
    %p79 = scmp.ne.s32.totalorder %s68, %s69
    %p80 = scmp.eq.s32.totalorder %s20, 0
    %p81 = por %p79, %p80
    %p82 = scmp.ne.s32.totalorder %s68, %s69
    %p83 = scmp.eq.s32.totalorder %s21, 19
    %p84 = por %p82, %p83
    %p86 = scmp.ne.s32.totalorder %s69, %s85
    %p87 = scmp.eq.s32.totalorder %s21, 0
    %p88 = por %p86, %p87
    %s90 = sadd.s32 %s89, 1
    %p93 = scmp.eq.s32.totalorder %s15, 19
    %p94 = scmp.ne.s32.totalorder %s89, %s91
    %p95 = scmp.eq.s32.totalorder %s15, 0
    %p96 = por %p94, %p95
    %p97 = scmp.ne.s32.totalorder %s89, %s91
    %p98 = scmp.eq.s32.totalorder %s20, 19
    %p99 = por %p97, %p98
    %p100 = scmp.ne.s32.totalorder %s91, %s92
    %p101 = scmp.eq.s32.totalorder %s20, 0
    %p102 = por %p100, %p101
    %p103 = scmp.ne.s32.totalorder %s91, %s92
    %p104 = scmp.eq.s32.totalorder %s21, 19
    %p105 = por %p103, %p104
    %p107 = scmp.ne.s32.totalorder %s92, %s106
    %p108 = scmp.eq.s32.totalorder %s21, 0
    %p109 = por %p107, %p108
    %s111 = sadd.s32 %s110, 1
    %p114 = scmp.eq.s32.totalorder %s15, 19
    %p115 = scmp.ne.s32.totalorder %s110, %s112
    %p116 = scmp.eq.s32.totalorder %s15, 0
    %p117 = por %p115, %p116
    %p118 = scmp.ne.s32.totalorder %s110, %s112
    %p119 = scmp.eq.s32.totalorder %s20, 19
    %p120 = por %p118, %p119
    %p121 = scmp.ne.s32.totalorder %s112, %s113
    %p122 = scmp.eq.s32.totalorder %s20, 0
    %p123 = por %p121, %p122
    %p124 = scmp.ne.s32.totalorder %s112, %s113
    %p125 = scmp.eq.s32.totalorder %s21, 19
    %p126 = por %p124, %p125
    %p128 = scmp.ne.s32.totalorder %s113, %s127
    %p129 = scmp.eq.s32.totalorder %s21, 0
    %p130 = por %p128, %p129
    %s132 = sadd.s32 %s131, 1
    %p135 = scmp.eq.s32.totalorder %s15, 19
    %p136 = scmp.ne.s32.totalorder %s131, %s133
    %p137 = scmp.eq.s32.totalorder %s15, 0
    %p138 = por %p136, %p137
    %p139 = scmp.ne.s32.totalorder %s131, %s133
    %p140 = scmp.eq.s32.totalorder %s20, 19
    %p141 = por %p139, %p140
    %p142 = scmp.ne.s32.totalorder %s133, %s134
    %p143 = scmp.eq.s32.totalorder %s20, 0
    %p144 = por %p142, %p143
    %p145 = scmp.ne.s32.totalorder %s133, %s134
    %p146 = scmp.eq.s32.totalorder %s21, 19
    %p147 = por %p145, %p146
    %p149 = scmp.ne.s32.totalorder %s134, %s148
    %p150 = scmp.eq.s32.totalorder %s21, 0
    %p151 = por %p149, %p150
    %s153 = sadd.s32 %s152, 1
    %p156 = scmp.eq.s32.totalorder %s15, 19
    %p157 = scmp.ne.s32.totalorder %s152, %s154
    %p158 = scmp.eq.s32.totalorder %s15, 0
    %p159 = por %p157, %p158
    %p160 = scmp.ne.s32.totalorder %s152, %s154
    %p161 = scmp.eq.s32.totalorder %s20, 19
    %p162 = por %p160, %p161
    %p163 = scmp.ne.s32.totalorder %s154, %s155
    %p164 = scmp.eq.s32.totalorder %s20, 0
    %p165 = por %p163, %p164
    %p166 = scmp.ne.s32.totalorder %s154, %s155
    %p167 = scmp.eq.s32.totalorder %s21, 19
    %p168 = por %p166, %p167
    %p170 = scmp.ne.s32.totalorder %s155, %s169
    %p171 = scmp.eq.s32.totalorder %s21, 0
    %p172 = por %p170, %p171
    %s174 = sadd.s32 %s173, 1
    %p177 = scmp.eq.s32.totalorder %s15, 19
    %p178 = scmp.ne.s32.totalorder %s173, %s175
    %p179 = scmp.eq.s32.totalorder %s15, 0
    %p180 = por %p178, %p179
    %p181 = scmp.ne.s32.totalorder %s173, %s175
    %p182 = scmp.eq.s32.totalorder %s20, 19
    %p183 = por %p181, %p182
    %p184 = scmp.ne.s32.totalorder %s175, %s176
    %p185 = scmp.eq.s32.totalorder %s20, 0
    %p186 = por %p184, %p185
    %p187 = scmp.ne.s32.totalorder %s175, %s176
    %p188 = scmp.eq.s32.totalorder %s21, 19
    %p189 = por %p187, %p188
    %p191 = scmp.ne.s32.totalorder %s176, %s190
    %p192 = scmp.eq.s32.totalorder %s21, 0
    %p193 = por %p191, %p192
    %s195 = sadd.s32 %s194, 1
    %p198 = scmp.eq.s32.totalorder %s15, 19
    %p199 = scmp.ne.s32.totalorder %s194, %s196
    %p200 = scmp.eq.s32.totalorder %s15, 0
    %p201 = por %p199, %p200
    %p202 = scmp.ne.s32.totalorder %s194, %s196
    %p203 = scmp.eq.s32.totalorder %s20, 19
    %p204 = por %p202, %p203
    %p205 = scmp.ne.s32.totalorder %s196, %s197
    %p206 = scmp.eq.s32.totalorder %s20, 0
    %p207 = por %p205, %p206
    %p208 = scmp.ne.s32.totalorder %s196, %s197
    %p209 = scmp.eq.s32.totalorder %s21, 19
    %p210 = por %p208, %p209
    %p212 = scmp.ne.s32.totalorder %s197, %s211
    %p213 = scmp.eq.s32.totalorder %s21, 0
    %p214 = por %p212, %p213
    %s216 = sadd.s32 %s215, 1
    %p219 = scmp.eq.s32.totalorder %s15, 19
    %p220 = scmp.ne.s32.totalorder %s215, %s217
    %p221 = scmp.eq.s32.totalorder %s15, 0
    %p222 = por %p220, %p221
    %p223 = scmp.ne.s32.totalorder %s215, %s217
    %p224 = scmp.eq.s32.totalorder %s20, 19
    %p225 = por %p223, %p224
    %p226 = scmp.ne.s32.totalorder %s217, %s218
    %p227 = scmp.eq.s32.totalorder %s20, 0
    %p228 = por %p226, %p227
    %p229 = scmp.ne.s32.totalorder %s217, %s218
    %p230 = scmp.eq.s32.totalorder %s21, 19
    %p231 = por %p229, %p230
    %p233 = scmp.ne.s32.totalorder %s218, %s232
    %p234 = scmp.eq.s32.totalorder %s21, 0
    %p235 = por %p233, %p234
    %s236 = ssub.s32 %s22, %s34
    %p237 = scmp.eq.s32.totalorder %s236, 0
    %s239 = sadd.s32 %s238, 1
    %s240 = scalar_select %p237, %s238, %s239
    %p243 = pneg %p237
    %p244 = scmp.eq.s32.totalorder %s15, 19
    %p245 = por %p243, %p244
    %p246 = scmp.ne.s32.totalorder %s238, %s241
    %p247 = scmp.eq.s32.totalorder %s15, 0
    %p248 = por %p246, %p247
    %p249 = scmp.ne.s32.totalorder %s238, %s241
    %p250 = scmp.eq.s32.totalorder %s20, 19
    %p251 = por %p249, %p250
    %p252 = scmp.ne.s32.totalorder %s241, %s242
    %p253 = scmp.eq.s32.totalorder %s20, 0
    %p254 = por %p252, %p253
    %p255 = scmp.ne.s32.totalorder %s241, %s242
    %p256 = scmp.eq.s32.totalorder %s21, 19
    %p257 = por %p255, %p256
    %p259 = scmp.ne.s32.totalorder %s242, %s258
    %p260 = scmp.eq.s32.totalorder %s21, 0
    %p261 = por %p259, %p260
    %p262 = scmp.le.s32.totalorder 1, %s15
    %p263 = scmp.lt.s32.totalorder %s15, 21
    %p264 = pnand %p262, %p263
    %p265 = pneg %p264
    // Predicated region
    $region9: #{dgcnn_forward.15} parent=5 // pred_check
      _
    $region10: #{dgcnn_forward.15} parent=5 // pred_check_branch
      %267 = sbr.rel (%p264) target = $region12
    $region11: #{dgcnn_forward.15} parent=5 // pred_region
      %s268 = ssub.s32 %s15, 1
      // Predicated region
      $region13: #{dgcnn_forward.15} parent=11 // pred_check
        %p269 = pneg %p81
      $region14: #{dgcnn_forward.15} parent=11 // pred_check_branch
        %271 = sbr.rel (%p269) target = $region16
      $region15: #{dgcnn_forward.15} parent=11 // pred_region
        %s272 = smul.u32 8, %s24
        %p273 = scmp.lt.s32.totalorder %s272, 7
        %s274 = scalar_select %p273, %s272, 7
        %s275 = smul.addr %s274, 4
        %s276 = scalar_lea.vmem %s1, %s275
        %s277 = smul.u32 8, %s24
      $region16: #{dgcnn_forward.15} parent=11 // pred_fallthru
        _
      // Predicated region
      $region17: #{dgcnn_forward.15} parent=11 // pred_check
        %p278 = pneg %p102
      $region18: #{dgcnn_forward.15} parent=11 // pred_check_branch
        %280 = sbr.rel (%p278) target = $region20
      $region19: #{dgcnn_forward.15} parent=11 // pred_region
        _
      $region20: #{dgcnn_forward.15} parent=11 // pred_fallthru
        _
      // Predicated region
      $region21: #{dgcnn_forward.15} parent=11 // pred_check
        %p281 = pneg %p123
      $region22: #{dgcnn_forward.15} parent=11 // pred_check_branch
        %283 = sbr.rel (%p281) target = $region24
      $region23: #{dgcnn_forward.15} parent=11 // pred_region
        _
      $region24: #{dgcnn_forward.15} parent=11 // pred_fallthru
        _
      // Predicated region
      $region25: #{dgcnn_forward.15} parent=11 // pred_check
        %p284 = pneg %p144
      $region26: #{dgcnn_forward.15} parent=11 // pred_check_branch
        %286 = sbr.rel (%p284) target = $region28
      $region27: #{dgcnn_forward.15} parent=11 // pred_region
        _
      $region28: #{dgcnn_forward.15} parent=11 // pred_fallthru
        _
      // Predicated region
      $region29: #{dgcnn_forward.15} parent=11 // pred_check
        %p287 = pneg %p165
      $region30: #{dgcnn_forward.15} parent=11 // pred_check_branch
        %289 = sbr.rel (%p287) target = $region32
      $region31: #{dgcnn_forward.15} parent=11 // pred_region
        _
      $region32: #{dgcnn_forward.15} parent=11 // pred_fallthru
        _
      // Predicated region
      $region33: #{dgcnn_forward.15} parent=11 // pred_check
        %p290 = pneg %p186
      $region34: #{dgcnn_forward.15} parent=11 // pred_check_branch
        %292 = sbr.rel (%p290) target = $region36
      $region35: #{dgcnn_forward.15} parent=11 // pred_region
        _
      $region36: #{dgcnn_forward.15} parent=11 // pred_fallthru
        _
      // Predicated region
      $region37: #{dgcnn_forward.15} parent=11 // pred_check
        %p293 = pneg %p207
      $region38: #{dgcnn_forward.15} parent=11 // pred_check_branch
        %295 = sbr.rel (%p293) target = $region40
      $region39: #{dgcnn_forward.15} parent=11 // pred_region
        _
      $region40: #{dgcnn_forward.15} parent=11 // pred_fallthru
        _
      // Predicated region
      $region41: #{dgcnn_forward.15} parent=11 // pred_check
        %p296 = pneg %p228
      $region42: #{dgcnn_forward.15} parent=11 // pred_check_branch
        %298 = sbr.rel (%p296) target = $region44
      $region43: #{dgcnn_forward.15} parent=11 // pred_region
        _
      $region44: #{dgcnn_forward.15} parent=11 // pred_fallthru
        _
    $region12: #{dgcnn_forward.15} parent=5 // pred_fallthru
      _
    %p299 = scmp.lt.s32.totalorder %s15, 20
    // Predicated region
    $region45: #{dgcnn_forward.15} parent=5 // pred_check
      %p300 = pneg %p299
    $region46: #{dgcnn_forward.15} parent=5 // pred_check_branch
      %302 = sbr.rel (%p300) target = $region48
    $region47: #{dgcnn_forward.15} parent=5 // pred_region
      // Predicated region
      $region49: #{dgcnn_forward.15} parent=47 // pred_check
        %p303 = pneg %p49
      $region50: #{dgcnn_forward.15} parent=47 // pred_check_branch
        %305 = sbr.rel (%p303) target = $region52
      $region51: #{dgcnn_forward.15} parent=47 // pred_region
        %s306 = smul.u32 8, %s22
        %p307 = scmp.lt.s32.totalorder %s23, 19
        %s308 = scalar_select %p307, %s23, 19
        %p309 = scmp.lt.s32.totalorder %s306, 7
        %s310 = scalar_select %p309, %s306, 7
        %s311 = smul.addr %s308, 8
        %s312 = sadd.s32 %s310, %s311
        %s313 = smul.addr %s312, 4
        %s314 = scalar_lea.vmem %s0, %s313
        %s315 = smul.u32 8, %s22
      $region52: #{dgcnn_forward.15} parent=47 // pred_fallthru
        _
    $region48: #{dgcnn_forward.15} parent=5 // pred_fallthru
      _
    %p316 = scmp.le.s32.totalorder 1, %s15
    %p317 = scmp.lt.s32.totalorder %s15, 21
    %p318 = pnand %p316, %p317
    %p319 = pneg %p318
    // Predicated region
    $region53: #{dgcnn_forward.15} parent=5 // pred_check
      _
    $region54: #{dgcnn_forward.15} parent=5 // pred_check_branch
      %321 = sbr.rel (%p318) target = $region56
    $region55: #{dgcnn_forward.15} parent=5 // pred_region
      %s322 = ssub.s32 %s15, 1
      %s323 = smul.u32 8, %s24
      %p324 = scmp.lt.s32.totalorder %s25, 19
      %s325 = scalar_select %p324, %s25, 19
      %p326 = scmp.lt.s32.totalorder %s323, 7
      %s327 = scalar_select %p326, %s323, 7
      %s328 = smul.addr %s325, 8
      %s329 = sadd.s32 %s327, %s328
      %s330 = smul.addr %s329, 4
      %s331 = scalar_lea.vmem %s0, %s330
      %p332 = pneg %p55
      %p333 = pneg %p52
      %s334 = smul.u32 8, %s24
      %p335 = scmp.lt.s32.totalorder %s334, 7
      %s336 = scalar_select %p335, %s334, 7
      %s337 = smul.addr %s336, 4
      %s338 = scalar_lea.vmem %s1, %s337
      %p339 = pneg %p81
      %p340 = pneg %p78
      %p341 = pneg %p102
      %p342 = pneg %p99
      %p343 = pneg %p123
      %p344 = pneg %p120
      %p345 = pneg %p144
      %p346 = pneg %p141
      %p347 = pneg %p165
      %p348 = pneg %p162
      %p349 = pneg %p186
      %p350 = pneg %p183
      %p351 = pneg %p207
      %p352 = pneg %p204
      %p353 = pneg %p228
      %p354 = pneg %p225
      %p355 = pneg %p254
      %p356 = pneg %p251
      %s357 = smul.u32 8, %s24
      %p358 = scmp.lt.s32.totalorder %s357, 7
      %s359 = scalar_select %p358, %s357, 7
      %s360 = smul.addr %s359, 8
      %s361 = scalar_lea.vmem %s9, %s360
      %s362 = smul.u32 8, %s24
      %p363 = scmp.lt.s32.totalorder %s25, 19
      %s364 = scalar_select %p363, %s25, 19
      %p365 = scmp.lt.s32.totalorder %s362, 7
      %s366 = scalar_select %p365, %s362, 7
      %s367 = smul.addr %s364, 8
      %s368 = sadd.s32 %s366, %s367
      %s369 = smul.addr %s368, 4
      %s370 = scalar_lea.vmem %s0, %s369
      %s371 = smul.u32 8, %s24
      %s372 = smul.u32 8, %s24
      %p373 = scmp.lt.s32.totalorder %s372, 7
      %s374 = scalar_select %p373, %s372, 7
      %s375 = smul.addr %s374, 4
      %s376 = scalar_lea.vmem %s1, %s375
      %s377 = smul.u32 8, %s24
      %s378 = smul.u32 8, %s24
      %p379 = scmp.lt.s32.totalorder %s378, 7
      %s380 = scalar_select %p379, %s378, 7
      %s381 = smul.addr %s380, 8
      %s382 = scalar_lea.vmem %s9, %s381
      %s383 = smul.u32 8, %s24
      %p385 = scmp.eq.s32.totalorder %s25, 0
      // Predicated region
      $region57: #{dgcnn_forward.15} parent=55 // pred_check
        %p386 = pneg %p385
      $region58: #{dgcnn_forward.15} parent=55 // pred_check_branch
        %388 = sbr.rel (%p386) target = $region60
      $region59: #{dgcnn_forward.15} parent=55 // pred_region
        %v389 = vld [vmem:[%s376] sm:$0xf]
        %v390 = vld [vmem:[%s376 + $0x4] sm:$0xf]
        %v391 = vld [vmem:[%s376 + $0x8] sm:$0xf]
        %v392 = vld [vmem:[%s376 + $0xc] sm:$0xf]
        %v393 = vld [vmem:[%s376 + $0x10] sm:$0xf]
        %v394 = vld [vmem:[%s376 + $0x14] sm:$0xf]
        %v395 = vld [vmem:[%s376 + $0x18] sm:$0xf]
        %v396 = vld [vmem:[%s376 + $0x1c] sm:$0xf]
        %v397 = vld [vmem:[%s3] sm:$0x3]
        %v406 = vunpack.c.l.b16 %v389
        %v407 = vunpack.c.l.b16 %v390
        %v408 = vunpack.c.l.b16 %v391
        %v409 = vunpack.c.l.b16 %v392
        %v410 = vunpack.c.l.b16 %v393
        %v411 = vunpack.c.l.b16 %v394
        %v412 = vunpack.c.l.b16 %v395
        %v413 = vunpack.c.l.b16 %v396
        %v414 = vpack.c.b16 %v407, %v406
        %v415 = vpack.c.b16 %v409, %v408
        %v416 = vpack.c.b16 %v411, %v410
        %v417 = vpack.c.b16 %v413, %v412
        %vm418 = vcmask 23552
        %v420 = vsel %vm418, %v414, 0
        %v423 = vsel %vm418, %v415, 0
        %v426 = vsel %vm418, %v416, 0
        %v429 = vsel %vm418, %v417, 0
        %vm431 = vcmask 1040384
        %vm432 = vcmask 1041408
        %v433 = vsel %vm431, 4294967295, 65535
        %v434 = vsel %vm432, %v433, 0
        %v436 = vand.u32 %v397, %v434
        %438 = vmatpush.bf16.msra.mxu0 0
        %439 = vmatpush.bf16.msra.mxu0 0
        %440 = vmatpush.bf16.msra.mxu0 0
        %441 = vmatpush.bf16.msra.mxu0 0
        %442 = vmatpush.bf16.msra.mxu0 0
        %443 = vmatpush.bf16.msra.mxu0 0
        %444 = vmatpush.bf16.msra.mxu0 0
        %445 = vmatpush.bf16.msra.mxu0 %v436
        %446 = vmatmul.bf16.gmra.mxu0 %v420
        %v447 = vpop.f32.mrf.mxu0
        %v448 = vadd.f32 0.0, %v447
        %v449 = vpop.f32.mrf.mxu0
        %v450 = vadd.f32 0.0, %v449
        %451 = vmatmul.bf16.gmra.mxu0 %v423
        %v452 = vpop.f32.mrf.mxu0
        %v453 = vadd.f32 0.0, %v452
        %v454 = vpop.f32.mrf.mxu0
        %v455 = vadd.f32 0.0, %v454
        %456 = vmatmul.bf16.gmra.mxu0 %v426
        %v457 = vpop.f32.mrf.mxu0
        %v458 = vadd.f32 0.0, %v457
        %v459 = vpop.f32.mrf.mxu0
        %v460 = vadd.f32 0.0, %v459
        %461 = vmatmul.bf16.gmra.mxu0 %v429
        %v462 = vpop.f32.mrf.mxu0
        %v463 = vadd.f32 0.0, %v462
        %v464 = vpop.f32.mrf.mxu0
        %v465 = vadd.f32 0.0, %v464
        %466 = vdwg.mxu0
        %vm467 = vcmask 523264
        %468 = vst.msk [vmem:[#allocation2] sm:$0xff] %vm467, %v448
        %469 = vst.msk [vmem:[#allocation2 + $0x8] sm:$0xff] %vm467, %v450
        %470 = vst.msk [vmem:[#allocation2 + $0x10] sm:$0xff] %vm467, %v453
        %471 = vst.msk [vmem:[#allocation2 + $0x18] sm:$0xff] %vm467, %v455
        %472 = vst.msk [vmem:[#allocation2 + $0x20] sm:$0xff] %vm467, %v458
        %473 = vst.msk [vmem:[#allocation2 + $0x28] sm:$0xff] %vm467, %v460
        %474 = vst.msk [vmem:[#allocation2 + $0x30] sm:$0xff] %vm467, %v463
        %475 = vst.msk [vmem:[#allocation2 + $0x38] sm:$0xff] %vm467, %v465
      $region60: #{dgcnn_forward.15} parent=55 // pred_fallthru
        _
      %v476 = vld [vmem:[%s370] sm:$0xf]
      %v477 = vld [vmem:[%s370 + $0x4] sm:$0xf]
      %v478 = vld [vmem:[%s370 + $0x8] sm:$0xf]
      %v479 = vld [vmem:[%s370 + $0xc] sm:$0xf]
      %v480 = vld [vmem:[%s370 + $0x10] sm:$0xf]
      %v481 = vld [vmem:[%s370 + $0x14] sm:$0xf]
      %v482 = vld [vmem:[%s370 + $0x18] sm:$0xf]
      %v483 = vld [vmem:[%s370 + $0x1c] sm:$0xf]
      %v484 = vld [vmem:[%s2] sm:$0x3]
      %v485 = vld [vmem:[#allocation2] sm:$0xff]
      %v486 = vld [vmem:[#allocation2 + $0x8] sm:$0xff]
      %v487 = vld [vmem:[#allocation2 + $0x10] sm:$0xff]
      %v488 = vld [vmem:[#allocation2 + $0x18] sm:$0xff]
      %v489 = vld [vmem:[#allocation2 + $0x20] sm:$0xff]
      %v490 = vld [vmem:[#allocation2 + $0x28] sm:$0xff]
      %v491 = vld [vmem:[#allocation2 + $0x30] sm:$0xff]
      %v492 = vld [vmem:[#allocation2 + $0x38] sm:$0xff]
      %v501 = vunpack.c.l.b16 %v476
      %v502 = vunpack.c.l.b16 %v477
      %v503 = vunpack.c.l.b16 %v478
      %v504 = vunpack.c.l.b16 %v479
      %v505 = vunpack.c.l.b16 %v480
      %v506 = vunpack.c.l.b16 %v481
      %v507 = vunpack.c.l.b16 %v482
      %v508 = vunpack.c.l.b16 %v483
      %v509 = vpack.c.b16 %v502, %v501
      %v510 = vpack.c.b16 %v504, %v503
      %v511 = vpack.c.b16 %v506, %v505
      %v512 = vpack.c.b16 %v508, %v507
      %vm513 = vcmask 23552
      %v515 = vsel %vm513, %v509, 0
      %v518 = vsel %vm513, %v510, 0
      %v521 = vsel %vm513, %v511, 0
      %v524 = vsel %vm513, %v512, 0
      %vm526 = vcmask 1040384
      %vm527 = vcmask 1041408
      %v528 = vsel %vm526, 4294967295, 65535
      %v529 = vsel %vm527, %v528, 0
      %v531 = vand.u32 %v484, %v529
      %533 = vmatpush.bf16.msra.mxu0 0
      %534 = vmatpush.bf16.msra.mxu0 0
      %535 = vmatpush.bf16.msra.mxu0 0
      %536 = vmatpush.bf16.msra.mxu0 0
      %537 = vmatpush.bf16.msra.mxu0 0
      %538 = vmatpush.bf16.msra.mxu0 0
      %539 = vmatpush.bf16.msra.mxu0 0
      %540 = vmatpush.bf16.msra.mxu0 %v531
      %541 = vmatmul.bf16.gmra.mxu0 %v515
      %v542 = vpop.f32.mrf.mxu0
      %v543 = vadd.f32 %v485, %v542
      %v544 = vpop.f32.mrf.mxu0
      %v545 = vadd.f32 %v486, %v544
      %546 = vmatmul.bf16.gmra.mxu0 %v518
      %v547 = vpop.f32.mrf.mxu0
      %v548 = vadd.f32 %v487, %v547
      %v549 = vpop.f32.mrf.mxu0
      %v550 = vadd.f32 %v488, %v549
      %551 = vmatmul.bf16.gmra.mxu0 %v521
      %v552 = vpop.f32.mrf.mxu0
      %v553 = vadd.f32 %v489, %v552
      %v554 = vpop.f32.mrf.mxu0
      %v555 = vadd.f32 %v490, %v554
      %556 = vmatmul.bf16.gmra.mxu0 %v524
      %v557 = vpop.f32.mrf.mxu0
      %v558 = vadd.f32 %v491, %v557
      %v559 = vpop.f32.mrf.mxu0
      %v560 = vadd.f32 %v492, %v559
      %561 = vdwg.mxu0
      %v562 = vld [vmem:[%s4] sm:$0x1]
      %v564 = vperm.slane %v562, 0
      %v566 = vmul.f32 %v543, %v564
      %v567 = vmul.f32 %v545, %v564
      %v568 = vmul.f32 %v548, %v564
      %v569 = vmul.f32 %v550, %v564
      %v570 = vmul.f32 %v553, %v564
      %v571 = vmul.f32 %v555, %v564
      %v572 = vmul.f32 %v558, %v564
      %v573 = vmul.f32 %v560, %v564
      %v574 = vld [vmem:[%s5] sm:$0x1]
      %v576 = vperm.slane %v574, 0
      %v578 = vadd.f32 %v566, %v576
      %v579 = vadd.f32 %v567, %v576
      %v580 = vadd.f32 %v568, %v576
      %v581 = vadd.f32 %v569, %v576
      %v582 = vadd.f32 %v570, %v576
      %v583 = vadd.f32 %v571, %v576
      %v584 = vadd.f32 %v572, %v576
      %v585 = vadd.f32 %v573, %v576
      %vm586 = vcmp.ge.f32.partialorder %v578, 0.0
      %vm587 = vcmp.ge.f32.partialorder %v579, 0.0
      %vm588 = vcmp.ge.f32.partialorder %v580, 0.0
      %vm589 = vcmp.ge.f32.partialorder %v581, 0.0
      %vm590 = vcmp.ge.f32.partialorder %v582, 0.0
      %vm591 = vcmp.ge.f32.partialorder %v583, 0.0
      %vm592 = vcmp.ge.f32.partialorder %v584, 0.0
      %vm593 = vcmp.ge.f32.partialorder %v585, 0.0
      %v594 = vmul.f32 %v578, 0.2
      %v595 = vmul.f32 %v579, 0.2
      %v596 = vmul.f32 %v580, 0.2
      %v597 = vmul.f32 %v581, 0.2
      %v598 = vmul.f32 %v582, 0.2
      %v599 = vmul.f32 %v583, 0.2
      %v600 = vmul.f32 %v584, 0.2
      %v601 = vmul.f32 %v585, 0.2
      %v602 = vsel %vm586, %v578, %v594
      %v603 = vsel %vm587, %v579, %v595
      %v604 = vsel %vm588, %v580, %v596
      %v605 = vsel %vm589, %v581, %v597
      %v606 = vsel %vm590, %v582, %v598
      %v607 = vsel %vm591, %v583, %v599
      %v608 = vsel %vm592, %v584, %v600
      %v609 = vsel %vm593, %v585, %v601
      %v610 = vpack.c.bf16 %v603, %v602
      %v611 = vpack.c.bf16 %v605, %v604
      %v612 = vpack.c.bf16 %v607, %v606
      %v613 = vpack.c.bf16 %v609, %v608
      %v614 = vld [vmem:[%s6] sm:$0xf]
      %v615 = vld [vmem:[%s6 + $0x4] sm:$0xf]
      %v616 = vld [vmem:[%s6 + $0x8] sm:$0xf]
      %v617 = vld [vmem:[%s6 + $0xc] sm:$0xf]
      %v618 = vld [vmem:[%s6 + $0x10] sm:$0xf]
      %v619 = vld [vmem:[%s6 + $0x14] sm:$0xf]
      %v620 = vld [vmem:[%s6 + $0x18] sm:$0xf]
      %v621 = vld [vmem:[%s6 + $0x1c] sm:$0xf]
      %v630 = vunpack.c.l.b16 %v614
      %v631 = vunpack.c.l.b16 %v615
      %v632 = vunpack.c.l.b16 %v616
      %v633 = vunpack.c.l.b16 %v617
      %v634 = vunpack.c.l.b16 %v618
      %v635 = vunpack.c.l.b16 %v619
      %v636 = vunpack.c.l.b16 %v620
      %v637 = vunpack.c.l.b16 %v621
      %v638 = vpack.c.b16 %v631, %v630
      %v639 = vpack.c.b16 %v633, %v632
      %v640 = vpack.c.b16 %v635, %v634
      %v641 = vpack.c.b16 %v637, %v636
      %vm646 = vcmask 523264
      %v648 = vsel %vm646, %v610, 0
      %v651 = vsel %vm646, %v611, 0
      %v654 = vsel %vm646, %v612, 0
      %v657 = vsel %vm646, %v613, 0
      %659 = vmatpush.bf16.msra.mxu0 0
      %660 = vmatpush.bf16.msra.mxu0 0
      %661 = vmatpush.bf16.msra.mxu0 0
      %662 = vmatpush.bf16.msra.mxu0 0
      %663 = vmatpush.bf16.msra.mxu0 %v641
      %664 = vmatpush.bf16.msra.mxu0 %v640
      %665 = vmatpush.bf16.msra.mxu0 %v639
      %666 = vmatpush.bf16.msra.mxu0 %v638
      %667 = vmatmul.bf16.gmra.mxu0 %v648
      %v668 = vpop.f32.mrf.mxu0
      %v669 = vadd.f32 0.0, %v668
      %v670 = vpop.f32.mrf.mxu0
      %v671 = vadd.f32 0.0, %v670
      %672 = vmatmul.bf16.gmra.mxu0 %v651
      %v673 = vpop.f32.mrf.mxu0
      %v674 = vadd.f32 0.0, %v673
      %v675 = vpop.f32.mrf.mxu0
      %v676 = vadd.f32 0.0, %v675
      %677 = vmatmul.bf16.gmra.mxu0 %v654
      %v678 = vpop.f32.mrf.mxu0
      %v679 = vadd.f32 0.0, %v678
      %v680 = vpop.f32.mrf.mxu0
      %v681 = vadd.f32 0.0, %v680
      %682 = vmatmul.bf16.gmra.mxu0 %v657
      %v683 = vpop.f32.mrf.mxu0
      %v684 = vadd.f32 0.0, %v683
      %v685 = vpop.f32.mrf.mxu0
      %v686 = vadd.f32 0.0, %v685
      %687 = vdwg.mxu0
      %v688 = vld [vmem:[%s7] sm:$0x1]
      %v690 = vperm.slane %v688, 0
      %v692 = vmul.f32 %v669, %v690
      %v693 = vmul.f32 %v671, %v690
      %v694 = vmul.f32 %v674, %v690
      %v695 = vmul.f32 %v676, %v690
      %v696 = vmul.f32 %v679, %v690
      %v697 = vmul.f32 %v681, %v690
      %v698 = vmul.f32 %v684, %v690
      %v699 = vmul.f32 %v686, %v690
      %v700 = vld [vmem:[%s8] sm:$0x1]
      %v702 = vperm.slane %v700, 0
      %v704 = vadd.f32 %v692, %v702
      %v705 = vadd.f32 %v693, %v702
      %v706 = vadd.f32 %v694, %v702
      %v707 = vadd.f32 %v695, %v702
      %v708 = vadd.f32 %v696, %v702
      %v709 = vadd.f32 %v697, %v702
      %v710 = vadd.f32 %v698, %v702
      %v711 = vadd.f32 %v699, %v702
      %vm712 = vcmp.ge.f32.partialorder %v704, 0.0
      %vm713 = vcmp.ge.f32.partialorder %v705, 0.0
      %vm714 = vcmp.ge.f32.partialorder %v706, 0.0
      %vm715 = vcmp.ge.f32.partialorder %v707, 0.0
      %vm716 = vcmp.ge.f32.partialorder %v708, 0.0
      %vm717 = vcmp.ge.f32.partialorder %v709, 0.0
      %vm718 = vcmp.ge.f32.partialorder %v710, 0.0
      %vm719 = vcmp.ge.f32.partialorder %v711, 0.0
      %v720 = vmul.f32 %v704, 0.2
      %v721 = vmul.f32 %v705, 0.2
      %v722 = vmul.f32 %v706, 0.2
      %v723 = vmul.f32 %v707, 0.2
      %v724 = vmul.f32 %v708, 0.2
      %v725 = vmul.f32 %v709, 0.2
      %v726 = vmul.f32 %v710, 0.2
      %v727 = vmul.f32 %v711, 0.2
      %v728 = vsel %vm712, %v704, %v720
      %v729 = vsel %vm713, %v705, %v721
      %v730 = vsel %vm714, %v706, %v722
      %v731 = vsel %vm715, %v707, %v723
      %v732 = vsel %vm716, %v708, %v724
      %v733 = vsel %vm717, %v709, %v725
      %v734 = vsel %vm718, %v710, %v726
      %v735 = vsel %vm719, %v711, %v727
      // Predicated region
      $region61: #{dgcnn_forward.15} parent=55 // pred_check
        %p736 = pneg %p385
      $region62: #{dgcnn_forward.15} parent=55 // pred_check_branch
        %738 = sbr.rel (%p736) target = $region64
      $region63: #{dgcnn_forward.15} parent=55 // pred_region
        %739 = vst [vmem:[#allocation3] sm:$0xff] %v728
        %740 = vst [vmem:[#allocation3 + $0x8] sm:$0xff] %v729
        %741 = vst [vmem:[#allocation3 + $0x10] sm:$0xff] %v730
        %742 = vst [vmem:[#allocation3 + $0x18] sm:$0xff] %v731
        %743 = vst [vmem:[#allocation3 + $0x20] sm:$0xff] %v732
        %744 = vst [vmem:[#allocation3 + $0x28] sm:$0xff] %v733
        %745 = vst [vmem:[#allocation3 + $0x30] sm:$0xff] %v734
        %746 = vst [vmem:[#allocation3 + $0x38] sm:$0xff] %v735
      $region64: #{dgcnn_forward.15} parent=55 // pred_fallthru
        _
      %p747 = scmp.gt.s32.totalorder %s25, 0
      // Predicated region
      $region65: #{dgcnn_forward.15} parent=55 // pred_check
        %p748 = pneg %p747
      $region66: #{dgcnn_forward.15} parent=55 // pred_check_branch
        %750 = sbr.rel (%p748) target = $region68
      $region67: #{dgcnn_forward.15} parent=55 // pred_region
        %v751 = vld [vmem:[#allocation3] sm:$0xff]
        %v752 = vld [vmem:[#allocation3 + $0x8] sm:$0xff]
        %v753 = vld [vmem:[#allocation3 + $0x10] sm:$0xff]
        %v754 = vld [vmem:[#allocation3 + $0x18] sm:$0xff]
        %v755 = vld [vmem:[#allocation3 + $0x20] sm:$0xff]
        %v756 = vld [vmem:[#allocation3 + $0x28] sm:$0xff]
        %v757 = vld [vmem:[#allocation3 + $0x30] sm:$0xff]
        %v758 = vld [vmem:[#allocation3 + $0x38] sm:$0xff]
        %v759 = vmax.f32 %v751, %v728
        %v760 = vmax.f32 %v752, %v729
        %v761 = vmax.f32 %v753, %v730
        %v762 = vmax.f32 %v754, %v731
        %v763 = vmax.f32 %v755, %v732
        %v764 = vmax.f32 %v756, %v733
        %v765 = vmax.f32 %v757, %v734
        %v766 = vmax.f32 %v758, %v735
        %767 = vst [vmem:[#allocation3] sm:$0xff] %v759
        %768 = vst [vmem:[#allocation3 + $0x8] sm:$0xff] %v760
        %769 = vst [vmem:[#allocation3 + $0x10] sm:$0xff] %v761
        %770 = vst [vmem:[#allocation3 + $0x18] sm:$0xff] %v762
        %771 = vst [vmem:[#allocation3 + $0x20] sm:$0xff] %v763
        %772 = vst [vmem:[#allocation3 + $0x28] sm:$0xff] %v764
        %773 = vst [vmem:[#allocation3 + $0x30] sm:$0xff] %v765
        %774 = vst [vmem:[#allocation3 + $0x38] sm:$0xff] %v766
      $region68: #{dgcnn_forward.15} parent=55 // pred_fallthru
        _
      %p775 = scmp.eq.s32.totalorder %s25, 19
      // Predicated region
      $region69: #{dgcnn_forward.15} parent=55 // pred_check
        %p776 = pneg %p775
      $region70: #{dgcnn_forward.15} parent=55 // pred_check_branch
        %778 = sbr.rel (%p776) target = $region72
      $region71: #{dgcnn_forward.15} parent=55 // pred_region
        %v779 = vld [vmem:[#allocation3] sm:$0xff]
        %v780 = vld [vmem:[#allocation3 + $0x8] sm:$0xff]
        %v781 = vld [vmem:[#allocation3 + $0x10] sm:$0xff]
        %v782 = vld [vmem:[#allocation3 + $0x18] sm:$0xff]
        %v783 = vld [vmem:[#allocation3 + $0x20] sm:$0xff]
        %v784 = vld [vmem:[#allocation3 + $0x28] sm:$0xff]
        %v785 = vld [vmem:[#allocation3 + $0x30] sm:$0xff]
        %v786 = vld [vmem:[#allocation3 + $0x38] sm:$0xff]
        %787 = vst [vmem:[%s382] sm:$0xff] %v779
        %788 = vst [vmem:[%s382 + $0x8] sm:$0xff] %v780
        %789 = vst [vmem:[%s382 + $0x10] sm:$0xff] %v781
        %790 = vst [vmem:[%s382 + $0x18] sm:$0xff] %v782
        %791 = vst [vmem:[%s382 + $0x20] sm:$0xff] %v783
        %792 = vst [vmem:[%s382 + $0x28] sm:$0xff] %v784
        %793 = vst [vmem:[%s382 + $0x30] sm:$0xff] %v785
        %794 = vst [vmem:[%s382 + $0x38] sm:$0xff] %v786
      $region72: #{dgcnn_forward.15} parent=55 // pred_fallthru
        _
      %s795 = smul.u32 8, %s24
      %p796 = scmp.lt.s32.totalorder %s795, 7
      %s797 = scalar_select %p796, %s795, 7
      %s798 = smul.addr %s797, 8
      %s799 = scalar_lea.vmem %s9, %s798
      // Predicated region
      $region73: #{dgcnn_forward.15} parent=55 // pred_check
        %p800 = pneg %p251
      $region74: #{dgcnn_forward.15} parent=55 // pred_check_branch
        %802 = sbr.rel (%p800) target = $region76
      $region75: #{dgcnn_forward.15} parent=55 // pred_region
        %s803 = smul.u32 8, %s24
      $region76: #{dgcnn_forward.15} parent=55 // pred_fallthru
        _
      // Predicated region
      $region77: #{dgcnn_forward.15} parent=55 // pred_check
        %p804 = pneg %p251
      $region78: #{dgcnn_forward.15} parent=55 // pred_check_branch
        %806 = sbr.rel (%p804) target = $region80
      $region79: #{dgcnn_forward.15} parent=55 // pred_region
        %s807 = smul.u32 8, %s24
        %p808 = scmp.lt.s32.totalorder %s807, 7
        %s809 = scalar_select %p808, %s807, 7
        %s810 = smul.addr %s809, 8
        %s811 = scalar_lea.vmem %s9, %s810
      $region80: #{dgcnn_forward.15} parent=55 // pred_fallthru
        _
    $region56: #{dgcnn_forward.15} parent=5 // pred_fallthru
      _
    %p812 = scmp.le.s32.totalorder 2, %s15
    // Predicated region
    $region81: #{dgcnn_forward.15} parent=5 // pred_check
      %p813 = pneg %p812
    $region82: #{dgcnn_forward.15} parent=5 // pred_check_branch
      %815 = sbr.rel (%p813) target = $region84
    $region83: #{dgcnn_forward.15} parent=5 // pred_region
      %s816 = ssub.s32 %s15, 2
    $region84: #{dgcnn_forward.15} parent=5 // pred_fallthru
      _
  $region6: #{dgcnn_forward.15} parent=0 // loop_footer
    %s19 = sadd.s32 1, %s15
  $region7: #{dgcnn_forward.15} parent=0 // loop_footer_branch
    %14 = sbr.rel target = $region3
  $region8: #{dgcnn_forward.15} parent=0 // loop_exit
    _

// kernel: dgcnn_forward.20
$region0: #{dgcnn_forward.20}
  #allocation0 [shape = 'u32[]', space=smem, size = 0x4, offset = 0x4, fixed_abs, tag = 'smem constant byte address 0x4 - core index']
  #allocation1 [shape = 'u32[72,128]{1,0:T(1,128)}', space=vmem, size = 0x9000, scoped, tag = 'internal scratch']
  %s0 = inlined_call_operand.vmem [shape: f32[2,32,64], index: 0, kind: input, shape index: {}, may-alias: {0,1}]
  %s1 = inlined_call_operand.vmem [shape: f32[2,32,64], index: 1, kind: input, shape index: {}, may-alias: {0,1}]
  %s2 = inlined_call_operand.vmem [shape: f32[2,32,32], index: 2, kind: output, shape index: {}]
  %s3 = sld [smem:[#allocation0]]
  $region41: #{dgcnn_forward.20} parent=0
    _
  %s5 = ssub.s32 1, %s3
  %s6 = scalar_select 0, %s5, %s3
  loop: start=0, step=1, limit=4
  $region2: #{dgcnn_forward.20} parent=0 // loop_pre_header
    _
  $region3: #{dgcnn_forward.20} parent=0 // loop_header
    %s8 = sphi 0, %s12
    %p9 = scmp.ge.s32.totalorder %s8, 4
    %s15 = sphi 0, %s27
    %s16 = sphi 0, %s23
    %s17 = sphi 0, %s15
    %s18 = sphi 0, %s16
    %s19 = sphi 0, %s17
    %s20 = sphi 0, %s18
    %s32 = sphi 0, %s34
    %s35 = sphi 0, %s32
    %s36 = sphi 0, %s35
    %s52 = sphi 0, %s36
    %s58 = sphi 0, %s60
    %s61 = sphi 0, %s58
    %s62 = sphi 0, %s61
    %s78 = sphi 0, %s62
    %s86 = sphi 0, %s88
    %s89 = sphi 0, %s86
    %s90 = sphi 0, %s89
    %s106 = sphi 0, %s90
  $region4: #{dgcnn_forward.20} parent=0 // loop_header_branch
    %11 = sbr.rel (%p9) target = $region8
  $region5: #{dgcnn_forward.20} parent=0 // loop_body
    %s13 = ssub.s32 %s8, 1
    %s14 = ssub.s32 %s8, 2
    %s21 = sadd.s32 1, %s16
    %p22 = scmp.ge.s32.totalorder %s21, 1
    %s23 = scalar_select %p22, 0, %s21
    %s24 = sadd.s32 1, %s15
    %s25 = scalar_select %p22, %s24, %s15
    %p26 = scmp.ge.s32.totalorder %s25, 2
    %s27 = scalar_select %p26, 0, %s25
    %s28 = ssub.s32 %s15, %s27
    %s29 = ssub.s32 %s16, %s23
    %s30 = sor.u32 %s28, %s29
    %p31 = scmp.eq.s32.totalorder %s30, 0
    %s33 = sadd.s32 %s32, 1
    %s34 = scalar_select %p31, %s32, %s33
    %p37 = pneg %p31
    %p38 = scmp.eq.s32.totalorder %s8, 1
    %p39 = por %p37, %p38
    %p40 = scmp.ne.s32.totalorder %s32, %s35
    %p41 = scmp.eq.s32.totalorder %s8, 0
    %p42 = por %p40, %p41
    %p43 = scmp.ne.s32.totalorder %s32, %s35
    %p44 = scmp.eq.s32.totalorder %s13, 1
    %p45 = por %p43, %p44
    %p46 = scmp.ne.s32.totalorder %s35, %s36
    %p47 = scmp.eq.s32.totalorder %s13, 0
    %p48 = por %p46, %p47
    %p49 = scmp.ne.s32.totalorder %s35, %s36
    %p50 = scmp.eq.s32.totalorder %s14, 1
    %p51 = por %p49, %p50
    %p53 = scmp.ne.s32.totalorder %s36, %s52
    %p54 = scmp.eq.s32.totalorder %s14, 0
    %p55 = por %p53, %p54
    %s56 = ssub.s32 %s15, %s27
    %p57 = scmp.eq.s32.totalorder %s56, 0
    %s59 = sadd.s32 %s58, 1
    %s60 = scalar_select %p57, %s58, %s59
    %p63 = pneg %p57
    %p64 = scmp.eq.s32.totalorder %s8, 1
    %p65 = por %p63, %p64
    %p66 = scmp.ne.s32.totalorder %s58, %s61
    %p67 = scmp.eq.s32.totalorder %s8, 0
    %p68 = por %p66, %p67
    %p69 = scmp.ne.s32.totalorder %s58, %s61
    %p70 = scmp.eq.s32.totalorder %s13, 1
    %p71 = por %p69, %p70
    %p72 = scmp.ne.s32.totalorder %s61, %s62
    %p73 = scmp.eq.s32.totalorder %s13, 0
    %p74 = por %p72, %p73
    %p75 = scmp.ne.s32.totalorder %s61, %s62
    %p76 = scmp.eq.s32.totalorder %s14, 1
    %p77 = por %p75, %p76
    %p79 = scmp.ne.s32.totalorder %s62, %s78
    %p80 = scmp.eq.s32.totalorder %s14, 0
    %p81 = por %p79, %p80
    %s82 = ssub.s32 %s15, %s27
    %s83 = ssub.s32 %s16, %s23
    %s84 = sor.u32 %s82, %s83
    %p85 = scmp.eq.s32.totalorder %s84, 0
    %s87 = sadd.s32 %s86, 1
    %s88 = scalar_select %p85, %s86, %s87
    %p91 = pneg %p85
    %p92 = scmp.eq.s32.totalorder %s8, 1
    %p93 = por %p91, %p92
    %p94 = scmp.ne.s32.totalorder %s86, %s89
    %p95 = scmp.eq.s32.totalorder %s8, 0
    %p96 = por %p94, %p95
    %p97 = scmp.ne.s32.totalorder %s86, %s89
    %p98 = scmp.eq.s32.totalorder %s13, 1
    %p99 = por %p97, %p98
    %p100 = scmp.ne.s32.totalorder %s89, %s90
    %p101 = scmp.eq.s32.totalorder %s13, 0
    %p102 = por %p100, %p101
    %p103 = scmp.ne.s32.totalorder %s89, %s90
    %p104 = scmp.eq.s32.totalorder %s14, 1
    %p105 = por %p103, %p104
    %p107 = scmp.ne.s32.totalorder %s90, %s106
    %p108 = scmp.eq.s32.totalorder %s14, 0
    %p109 = por %p107, %p108
    %p110 = scmp.le.s32.totalorder 1, %s8
    %p111 = scmp.lt.s32.totalorder %s8, 3
    %p112 = pnand %p110, %p111
    %p113 = pneg %p112
    // Predicated region
    $region9: #{dgcnn_forward.20} parent=5 // pred_check
      _
    $region10: #{dgcnn_forward.20} parent=5 // pred_check_branch
      %115 = sbr.rel (%p112) target = $region12
    $region11: #{dgcnn_forward.20} parent=5 // pred_region
      %s116 = ssub.s32 %s8, 1
    $region12: #{dgcnn_forward.20} parent=5 // pred_fallthru
      _
    %p117 = scmp.lt.s32.totalorder %s8, 2
    // Predicated region
    $region13: #{dgcnn_forward.20} parent=5 // pred_check
      %p118 = pneg %p117
    $region14: #{dgcnn_forward.20} parent=5 // pred_check_branch
      %120 = sbr.rel (%p118) target = $region16
    $region15: #{dgcnn_forward.20} parent=5 // pred_region
      // Predicated region
      $region17: #{dgcnn_forward.20} parent=15 // pred_check
        %p121 = pneg %p42
      $region18: #{dgcnn_forward.20} parent=15 // pred_check_branch
        %123 = sbr.rel (%p121) target = $region20
      $region19: #{dgcnn_forward.20} parent=15 // pred_region
        %s124 = smul.u32 4, %s16
        %p125 = scmp.lt.s32.totalorder %s15, 1
        %s126 = scalar_select %p125, %s15, 1
        %p127 = scmp.lt.s32.totalorder %s124, 3
        %s128 = scalar_select %p127, %s124, 3
        %s129 = smul.addr %s126, 4
        %s130 = sadd.s32 %s128, %s129
        %s131 = smul.addr %s130, 8
        %s132 = scalar_lea.vmem %s0, %s131
        %s133 = smul.u32 4, %s16
      $region20: #{dgcnn_forward.20} parent=15 // pred_fallthru
        _
      // Predicated region
      $region21: #{dgcnn_forward.20} parent=15 // pred_check
        %p134 = pneg %p68
      $region22: #{dgcnn_forward.20} parent=15 // pred_check_branch
        %136 = sbr.rel (%p134) target = $region24
      $region23: #{dgcnn_forward.20} parent=15 // pred_region
        %p137 = scmp.lt.s32.totalorder %s15, 1
        %s138 = scalar_select %p137, %s15, 1
        %s139 = smul.addr %s138, 4
        %s140 = smul.addr %s139, 8
        %s141 = scalar_lea.vmem %s1, %s140
      $region24: #{dgcnn_forward.20} parent=15 // pred_fallthru
        _
    $region16: #{dgcnn_forward.20} parent=5 // pred_fallthru
      _
    %p142 = scmp.le.s32.totalorder 1, %s8
    %p143 = scmp.lt.s32.totalorder %s8, 3
    %p144 = pnand %p142, %p143
    %p145 = pneg %p144
    // Predicated region
    $region25: #{dgcnn_forward.20} parent=5 // pred_check
      _
    $region26: #{dgcnn_forward.20} parent=5 // pred_check_branch
      %147 = sbr.rel (%p144) target = $region28
    $region27: #{dgcnn_forward.20} parent=5 // pred_region
      %s148 = ssub.s32 %s8, 1
      %s149 = smul.u32 4, %s18
      %p150 = scmp.lt.s32.totalorder %s17, 1
      %s151 = scalar_select %p150, %s17, 1
      %p152 = scmp.lt.s32.totalorder %s149, 3
      %s153 = scalar_select %p152, %s149, 3
      %s154 = smul.addr %s151, 4
      %s155 = sadd.s32 %s153, %s154
      %s156 = smul.addr %s155, 8
      %s157 = scalar_lea.vmem %s0, %s156
      %p158 = pneg %p48
      %p159 = pneg %p45
      %p160 = scmp.lt.s32.totalorder %s17, 1
      %s161 = scalar_select %p160, %s17, 1
      %s162 = smul.addr %s161, 4
      %s163 = smul.addr %s162, 8
      %s164 = scalar_lea.vmem %s1, %s163
      %p165 = pneg %p74
      %p166 = pneg %p71
      %p167 = pneg %p102
      %p168 = pneg %p99
      %s169 = smul.u32 4, %s18
      %p170 = scmp.lt.s32.totalorder %s17, 1
      %s171 = scalar_select %p170, %s17, 1
      %p172 = scmp.lt.s32.totalorder %s169, 3
      %s173 = scalar_select %p172, %s169, 3
      %s174 = smul.addr %s171, 4
      %s175 = sadd.s32 %s173, %s174
      %s176 = smul.addr %s175, 8
      %s177 = scalar_lea.vmem %s2, %s176
      %s178 = smul.u32 4, %s18
      %p179 = scmp.lt.s32.totalorder %s17, 1
      %s180 = scalar_select %p179, %s17, 1
      %p181 = scmp.lt.s32.totalorder %s178, 3
      %s182 = scalar_select %p181, %s178, 3
      %s183 = smul.addr %s180, 4
      %s184 = sadd.s32 %s182, %s183
      %s185 = smul.addr %s184, 8
      %s186 = scalar_lea.vmem %s0, %s185
      %s187 = smul.u32 4, %s18
      %p188 = scmp.lt.s32.totalorder %s17, 1
      %s189 = scalar_select %p188, %s17, 1
      %s190 = smul.addr %s189, 4
      %s191 = smul.addr %s190, 8
      %s192 = scalar_lea.vmem %s1, %s191
      %s193 = smul.u32 4, %s18
      %p194 = scmp.lt.s32.totalorder %s17, 1
      %s195 = scalar_select %p194, %s17, 1
      %p196 = scmp.lt.s32.totalorder %s193, 3
      %s197 = scalar_select %p196, %s193, 3
      %s198 = smul.addr %s195, 4
      %s199 = sadd.s32 %s197, %s198
      %s200 = smul.addr %s199, 8
      %s201 = scalar_lea.vmem %s2, %s200
      %s202 = smul.u32 4, %s18
      %v203 = vld [vmem:[%s186] sm:$0xff]
      %v204 = vld [vmem:[%s186 + $0x8] sm:$0xff]
      %v205 = vld [vmem:[%s186 + $0x10] sm:$0xff]
      %v206 = vld [vmem:[%s186 + $0x18] sm:$0xff]
      %v207 = vld [vmem:[%s192] sm:$0xff]
      %v208 = vld [vmem:[%s192 + $0x8] sm:$0xff]
      %v209 = vld [vmem:[%s192 + $0x10] sm:$0xff]
      %v210 = vld [vmem:[%s192 + $0x18] sm:$0xff]
      %vm211 = vcmask 523264
      %v213 = vsel %vm211, %v203, 0
      %v216 = vsel %vm211, %v204, 0
      %v219 = vsel %vm211, %v205, 0
      %v222 = vsel %vm211, %v206, 0
      %v225 = vsel %vm211, %v207, 0
      %v228 = vsel %vm211, %v208, 0
      %v231 = vsel %vm211, %v209, 0
      %v234 = vsel %vm211, %v210, 0
      %236 = vmatpush.xpose.msra.mxu0 0.0
      %237 = vmatpush.xpose.msra.mxu0 0.0
      %238 = vmatpush.xpose.msra.mxu0 0.0
      %239 = vmatpush.xpose.msra.mxu0 0.0
      %240 = vmatpush.xpose.msra.mxu0 0.0
      %241 = vmatpush.xpose.msra.mxu0 0.0
      %242 = vmatpush.xpose.msra.mxu0 0.0
      %243 = vmatpush.xpose.msra.mxu0 0.0
      %244 = vmatpush.xpose.msra.mxu0 0.0
      %245 = vmatpush.xpose.msra.mxu0 0.0
      %246 = vmatpush.xpose.msra.mxu0 0.0
      %247 = vmatpush.xpose.msra.mxu0 0.0
      %248 = vmatpush.xpose.msra.mxu0 %v234
      %249 = vmatpush.xpose.msra.mxu0 %v231
      %250 = vmatpush.xpose.msra.mxu0 %v228
      %251 = vmatpush.xpose.msra.mxu0 %v225
      %252 = vmatmul.f32.gmra.mxu0 %v213
      %v253 = vpop.f32.mrf.mxu0
      %v254 = vadd.f32 0.0, %v253
      %255 = vmatmul.f32.gmra.mxu0 %v216
      %v256 = vpop.f32.mrf.mxu0
      %v257 = vadd.f32 0.0, %v256
      %258 = vmatmul.f32.gmra.mxu0 %v219
      %v259 = vpop.f32.mrf.mxu0
      %v260 = vadd.f32 0.0, %v259
      %261 = vmatmul.f32.gmra.mxu0 %v222
      %v262 = vpop.f32.mrf.mxu0
      %v263 = vadd.f32 0.0, %v262
      %264 = vdwg.mxu0
      %v265 = vmul.f32 %v203, %v203
      %v266 = vmul.f32 %v204, %v204
      %v267 = vmul.f32 %v205, %v205
      %v268 = vmul.f32 %v206, %v206
      %v269 = vsel %vm211, %v265, 0.0
      %270 = vadd.xlane.f32.xlu0 %v269
      %v271 = vpop.xlane.xlu0 %270
      %v272 = vsel %vm211, %v266, 0.0
      %273 = vadd.xlane.f32.xlu0 %v272
      %v274 = vpop.xlane.xlu0 %273
      %v275 = vsel %vm211, %v267, 0.0
      %276 = vadd.xlane.f32.xlu0 %v275
      %v277 = vpop.xlane.xlu0 %276
      %v278 = vsel %vm211, %v268, 0.0
      %279 = vadd.xlane.f32.xlu0 %v278
      %v280 = vpop.xlane.xlu0 %279
      %v281 = vmul.f32 %v207, %v207
      %v282 = vmul.f32 %v208, %v208
      %v283 = vmul.f32 %v209, %v209
      %v284 = vmul.f32 %v210, %v210
      %v285 = vsel %vm211, %v281, 0.0
      %286 = vadd.xlane.f32.xlu0 %v285
      %v287 = vpop.xlane.xlu0 %286
      %v288 = vsel %vm211, %v282, 0.0
      %289 = vadd.xlane.f32.xlu0 %v288
      %v290 = vpop.xlane.xlu0 %289
      %v291 = vsel %vm211, %v283, 0.0
      %292 = vadd.xlane.f32.xlu0 %v291
      %v293 = vpop.xlane.xlu0 %292
      %v294 = vsel %vm211, %v284, 0.0
      %295 = vadd.xlane.f32.xlu0 %v294
      %v296 = vpop.xlane.xlu0 %295
      %v297 = vmul.f32 %v254, 2.0
      %v298 = vmul.f32 %v257, 2.0
      %v299 = vmul.f32 %v260, 2.0
      %v300 = vmul.f32 %v263, 2.0
      %v301 = vsub.f32 %v297, %v271
      %v302 = vsub.f32 %v298, %v274
      %v303 = vsub.f32 %v299, %v277
      %v304 = vsub.f32 %v300, %v280
      %305 = vxpose.xlu0.b32.start [1/16] %v287, 128
      %306 = vxpose.xlu0.b32.cont [2/16] %v290, 128
      %307 = vxpose.xlu0.b32.cont [3/16] %v293, 128
      %308 = vxpose.xlu0.b32.cont [4/16] %v296, 128
      %309 = vxpose.xlu0.b32.cont [5/16] 0.0, 128
      %310 = vxpose.xlu0.b32.cont [6/16] 0.0, 128
      %311 = vxpose.xlu0.b32.cont [7/16] 0.0, 128
      %312 = vxpose.xlu0.b32.cont [8/16] 0.0, 128
      %313 = vxpose.xlu0.b32.cont [9/16] 0.0, 128
      %314 = vxpose.xlu0.b32.cont [10/16] 0.0, 128
      %315 = vxpose.xlu0.b32.cont [11/16] 0.0, 128
      %316 = vxpose.xlu0.b32.cont [12/16] 0.0, 128
      %317 = vxpose.xlu0.b32.cont [13/16] 0.0, 128
      %318 = vxpose.xlu0.b32.cont [14/16] 0.0, 128
      %319 = vxpose.xlu0.b32.cont [15/16] 0.0, 128
      %320 = vxpose.xlu0.b32.end [16/16] 0.0, 128
      %v321 = vpop.trf.xlu0
      %v322 = vpop.trf.xlu0
      %v323 = vpop.trf.xlu0
      %v324 = vpop.trf.xlu0
      %v325 = vpop.trf.xlu0
      %v326 = vpop.trf.xlu0
      %v327 = vpop.trf.xlu0
      %v328 = vpop.trf.xlu0
      %v329 = vpop.trf.xlu0
      %v330 = vpop.trf.xlu0
      %v331 = vpop.trf.xlu0
      %v332 = vpop.trf.xlu0
      %v333 = vpop.trf.xlu0
      %v334 = vpop.trf.xlu0
      %v335 = vpop.trf.xlu0
      %v336 = vpop.trf.xlu0
      %v337 = vperm.slane %v321, 0
      %v338 = vsub.f32 %v301, %v337
      %v339 = vsub.f32 %v302, %v337
      %v340 = vsub.f32 %v303, %v337
      %v341 = vsub.f32 %v304, %v337
      %vm342 = vcmask 261120
      %343 = vst.msk [vmem:[%s201] sm:$0xff] %vm342, %v338
      %344 = vst.msk [vmem:[%s201 + $0x8] sm:$0xff] %vm342, %v339
      %345 = vst.msk [vmem:[%s201 + $0x10] sm:$0xff] %vm342, %v340
      %346 = vst.msk [vmem:[%s201 + $0x18] sm:$0xff] %vm342, %v341
      %s347 = smul.u32 4, %s18
      %p348 = scmp.lt.s32.totalorder %s17, 1
      %s349 = scalar_select %p348, %s17, 1
      %p350 = scmp.lt.s32.totalorder %s347, 3
      %s351 = scalar_select %p350, %s347, 3
      %s352 = smul.addr %s349, 4
      %s353 = sadd.s32 %s351, %s352
      %s354 = smul.addr %s353, 8
      %s355 = scalar_lea.vmem %s2, %s354
      // Predicated region
      $region29: #{dgcnn_forward.20} parent=27 // pred_check
        %p356 = pneg %p99
      $region30: #{dgcnn_forward.20} parent=27 // pred_check_branch
        %358 = sbr.rel (%p356) target = $region32
      $region31: #{dgcnn_forward.20} parent=27 // pred_region
        %s359 = smul.u32 4, %s18
      $region32: #{dgcnn_forward.20} parent=27 // pred_fallthru
        _
    $region28: #{dgcnn_forward.20} parent=5 // pred_fallthru
      _
    %p360 = scmp.le.s32.totalorder 2, %s8
    // Predicated region
    $region33: #{dgcnn_forward.20} parent=5 // pred_check
      %p361 = pneg %p360
    $region34: #{dgcnn_forward.20} parent=5 // pred_check_branch
      %363 = sbr.rel (%p361) target = $region36
    $region35: #{dgcnn_forward.20} parent=5 // pred_region
      %s364 = ssub.s32 %s8, 2
      // Predicated region
      $region37: #{dgcnn_forward.20} parent=35 // pred_check
        %p365 = pneg %p105
      $region38: #{dgcnn_forward.20} parent=35 // pred_check_branch
        %367 = sbr.rel (%p365) target = $region40
      $region39: #{dgcnn_forward.20} parent=35 // pred_region
        %s368 = smul.u32 4, %s20
        %p369 = scmp.lt.s32.totalorder %s19, 1
        %s370 = scalar_select %p369, %s19, 1
        %p371 = scmp.lt.s32.totalorder %s368, 3
        %s372 = scalar_select %p371, %s368, 3
        %s373 = smul.addr %s370, 4
        %s374 = sadd.s32 %s372, %s373
        %s375 = smul.addr %s374, 8
        %s376 = scalar_lea.vmem %s2, %s375
      $region40: #{dgcnn_forward.20} parent=35 // pred_fallthru
        _
    $region36: #{dgcnn_forward.20} parent=5 // pred_fallthru
      _
  $region6: #{dgcnn_forward.20} parent=0 // loop_footer
    %s12 = sadd.s32 1, %s8
  $region7: #{dgcnn_forward.20} parent=0 // loop_footer_branch
    %7 = sbr.rel target = $region3
  $region8: #{dgcnn_forward.20} parent=0 // loop_exit
    _

// kernel: dgcnn_forward.16
$region0: #{dgcnn_forward.16}
  #allocation0 [shape = 'u32[]', space=smem, size = 0x4, offset = 0x4, fixed_abs, tag = 'smem constant byte address 0x4 - core index']
  #allocation1 [shape = 'u32[72,128]{1,0:T(1,128)}', space=vmem, size = 0x9000, scoped, tag = 'internal scratch']
  %s0 = inlined_call_operand.vmem [shape: f32[64,128], index: 0, kind: input, shape index: {}]
  %s1 = inlined_call_operand.vmem [shape: bf16[128,1024], index: 1, kind: input, shape index: {}]
  %s2 = inlined_call_operand.vmem [shape: f32[1,1024], index: 2, kind: input, shape index: {}]
  %s3 = inlined_call_operand.vmem [shape: f32[1,1024], index: 3, kind: input, shape index: {}]
  %s4 = inlined_call_operand.vmem [shape: f32[64,1024], index: 4, kind: output, shape index: {}]
  %s5 = sld [smem:[#allocation0]]
  $region26: #{dgcnn_forward.16} parent=0
    _
  %s7 = ssub.s32 1, %s5
  %s8 = scalar_select 0, %s7, %s5
  // Predicated region
  $region2: #{dgcnn_forward.16} parent=0 // pred_check
    _
  $region3: #{dgcnn_forward.16} parent=0 // pred_check_branch
    %10 = sbr.rel (0) target = $region5
  $region4: #{dgcnn_forward.16} parent=0 // pred_region
    _
  $region5: #{dgcnn_forward.16} parent=0 // pred_fallthru
    _
  // Predicated region
  $region6: #{dgcnn_forward.16} parent=0 // pred_check
    _
  $region7: #{dgcnn_forward.16} parent=0 // pred_check_branch
    %12 = sbr.rel (0) target = $region9
  $region8: #{dgcnn_forward.16} parent=0 // pred_region
    _
  $region9: #{dgcnn_forward.16} parent=0 // pred_fallthru
    _
  // Predicated region
  $region10: #{dgcnn_forward.16} parent=0 // pred_check
    _
  $region11: #{dgcnn_forward.16} parent=0 // pred_check_branch
    %14 = sbr.rel (0) target = $region13
  $region12: #{dgcnn_forward.16} parent=0 // pred_region
    _
  $region13: #{dgcnn_forward.16} parent=0 // pred_fallthru
    _
  // Predicated region
  $region14: #{dgcnn_forward.16} parent=0 // pred_check
    _
  $region15: #{dgcnn_forward.16} parent=0 // pred_check_branch
    %16 = sbr.rel (0) target = $region17
  $region16: #{dgcnn_forward.16} parent=0 // pred_region
    _
  $region17: #{dgcnn_forward.16} parent=0 // pred_fallthru
    _
  %v17 = vld [vmem:[%s0] sm:$0xff]
  %v18 = vld [vmem:[%s0 + $0x8] sm:$0xff]
  %v19 = vld [vmem:[%s0 + $0x10] sm:$0xff]
  %v20 = vld [vmem:[%s0 + $0x18] sm:$0xff]
  %v21 = vld [vmem:[%s0 + $0x20] sm:$0xff]
  %v22 = vld [vmem:[%s0 + $0x28] sm:$0xff]
  %v23 = vld [vmem:[%s0 + $0x30] sm:$0xff]
  %v24 = vld [vmem:[%s0 + $0x38] sm:$0xff]
  %v25 = vpack.c.bf16 %v18, %v17
  %v26 = vpack.c.bf16 %v20, %v19
  %v27 = vpack.c.bf16 %v22, %v21
  %v28 = vpack.c.bf16 %v24, %v23
  %v29 = vld [vmem:[%s1] sm:$0xff]
  %v30 = vld [vmem:[%s1 + $0x8] sm:$0xff]
  %v31 = vld [vmem:[%s1 + $0x10] sm:$0xff]
  %v32 = vld [vmem:[%s1 + $0x18] sm:$0xff]
  %v33 = vld [vmem:[%s1 + $0x20] sm:$0xff]
  %v34 = vld [vmem:[%s1 + $0x28] sm:$0xff]
  %v35 = vld [vmem:[%s1 + $0x30] sm:$0xff]
  %v36 = vld [vmem:[%s1 + $0x38] sm:$0xff]
  %v37 = vld [vmem:[%s1 + $0x40] sm:$0xff]
  %v38 = vld [vmem:[%s1 + $0x48] sm:$0xff]
  %v39 = vld [vmem:[%s1 + $0x50] sm:$0xff]
  %v40 = vld [vmem:[%s1 + $0x58] sm:$0xff]
  %v41 = vld [vmem:[%s1 + $0x60] sm:$0xff]
  %v42 = vld [vmem:[%s1 + $0x68] sm:$0xff]
  %v43 = vld [vmem:[%s1 + $0x70] sm:$0xff]
  %v44 = vld [vmem:[%s1 + $0x78] sm:$0xff]
  %v45 = vld [vmem:[%s1 + $0x80] sm:$0xff]
  %v46 = vld [vmem:[%s1 + $0x88] sm:$0xff]
  %v47 = vld [vmem:[%s1 + $0x90] sm:$0xff]
  %v48 = vld [vmem:[%s1 + $0x98] sm:$0xff]
  %v49 = vld [vmem:[%s1 + $0xa0] sm:$0xff]
  %v50 = vld [vmem:[%s1 + $0xa8] sm:$0xff]
  %v51 = vld [vmem:[%s1 + $0xb0] sm:$0xff]
  %v52 = vld [vmem:[%s1 + $0xb8] sm:$0xff]
  %v53 = vld [vmem:[%s1 + $0xc0] sm:$0xff]
  %v54 = vld [vmem:[%s1 + $0xc8] sm:$0xff]
  %v55 = vld [vmem:[%s1 + $0xd0] sm:$0xff]
  %v56 = vld [vmem:[%s1 + $0xd8] sm:$0xff]
  %v57 = vld [vmem:[%s1 + $0xe0] sm:$0xff]
  %v58 = vld [vmem:[%s1 + $0xe8] sm:$0xff]
  %v59 = vld [vmem:[%s1 + $0xf0] sm:$0xff]
  %v60 = vld [vmem:[%s1 + $0xf8] sm:$0xff]
  %v61 = vld [vmem:[%s1 + $0x100] sm:$0xff]
  %v62 = vld [vmem:[%s1 + $0x108] sm:$0xff]
  %v63 = vld [vmem:[%s1 + $0x110] sm:$0xff]
  %v64 = vld [vmem:[%s1 + $0x118] sm:$0xff]
  %v65 = vld [vmem:[%s1 + $0x120] sm:$0xff]
  %v66 = vld [vmem:[%s1 + $0x128] sm:$0xff]
  %v67 = vld [vmem:[%s1 + $0x130] sm:$0xff]
  %v68 = vld [vmem:[%s1 + $0x138] sm:$0xff]
  %v69 = vld [vmem:[%s1 + $0x140] sm:$0xff]
  %v70 = vld [vmem:[%s1 + $0x148] sm:$0xff]
  %v71 = vld [vmem:[%s1 + $0x150] sm:$0xff]
  %v72 = vld [vmem:[%s1 + $0x158] sm:$0xff]
  %v73 = vld [vmem:[%s1 + $0x160] sm:$0xff]
  %v74 = vld [vmem:[%s1 + $0x168] sm:$0xff]
  %v75 = vld [vmem:[%s1 + $0x170] sm:$0xff]
  %v76 = vld [vmem:[%s1 + $0x178] sm:$0xff]
  %v77 = vld [vmem:[%s1 + $0x180] sm:$0xff]
  %v78 = vld [vmem:[%s1 + $0x188] sm:$0xff]
  %v79 = vld [vmem:[%s1 + $0x190] sm:$0xff]
  %v80 = vld [vmem:[%s1 + $0x198] sm:$0xff]
  %v81 = vld [vmem:[%s1 + $0x1a0] sm:$0xff]
  %v82 = vld [vmem:[%s1 + $0x1a8] sm:$0xff]
  %v83 = vld [vmem:[%s1 + $0x1b0] sm:$0xff]
  %v84 = vld [vmem:[%s1 + $0x1b8] sm:$0xff]
  %v85 = vld [vmem:[%s1 + $0x1c0] sm:$0xff]
  %v86 = vld [vmem:[%s1 + $0x1c8] sm:$0xff]
  %v87 = vld [vmem:[%s1 + $0x1d0] sm:$0xff]
  %v88 = vld [vmem:[%s1 + $0x1d8] sm:$0xff]
  %v89 = vld [vmem:[%s1 + $0x1e0] sm:$0xff]
  %v90 = vld [vmem:[%s1 + $0x1e8] sm:$0xff]
  %v91 = vld [vmem:[%s1 + $0x1f0] sm:$0xff]
  %v92 = vld [vmem:[%s1 + $0x1f8] sm:$0xff]
  %v157 = vunpack.c.l.b16 %v29
  %v158 = vunpack.c.h.b16 %v29
  %v159 = vunpack.c.l.b16 %v30
  %v160 = vunpack.c.h.b16 %v30
  %v161 = vunpack.c.l.b16 %v31
  %v162 = vunpack.c.h.b16 %v31
  %v163 = vunpack.c.l.b16 %v32
  %v164 = vunpack.c.h.b16 %v32
  %v165 = vunpack.c.l.b16 %v33
  %v166 = vunpack.c.h.b16 %v33
  %v167 = vunpack.c.l.b16 %v34
  %v168 = vunpack.c.h.b16 %v34
  %v169 = vunpack.c.l.b16 %v35
  %v170 = vunpack.c.h.b16 %v35
  %v171 = vunpack.c.l.b16 %v36
  %v172 = vunpack.c.h.b16 %v36
  %v173 = vunpack.c.l.b16 %v37
  %v174 = vunpack.c.h.b16 %v37
  %v175 = vunpack.c.l.b16 %v38
  %v176 = vunpack.c.h.b16 %v38
  %v177 = vunpack.c.l.b16 %v39
  %v178 = vunpack.c.h.b16 %v39
  %v179 = vunpack.c.l.b16 %v40
  %v180 = vunpack.c.h.b16 %v40
  %v181 = vunpack.c.l.b16 %v41
  %v182 = vunpack.c.h.b16 %v41
  %v183 = vunpack.c.l.b16 %v42
  %v184 = vunpack.c.h.b16 %v42
  %v185 = vunpack.c.l.b16 %v43
  %v186 = vunpack.c.h.b16 %v43
  %v187 = vunpack.c.l.b16 %v44
  %v188 = vunpack.c.h.b16 %v44
  %v189 = vunpack.c.l.b16 %v45
  %v190 = vunpack.c.h.b16 %v45
  %v191 = vunpack.c.l.b16 %v46
  %v192 = vunpack.c.h.b16 %v46
  %v193 = vunpack.c.l.b16 %v47
  %v194 = vunpack.c.h.b16 %v47
  %v195 = vunpack.c.l.b16 %v48
  %v196 = vunpack.c.h.b16 %v48
  %v197 = vunpack.c.l.b16 %v49
  %v198 = vunpack.c.h.b16 %v49
  %v199 = vunpack.c.l.b16 %v50
  %v200 = vunpack.c.h.b16 %v50
  %v201 = vunpack.c.l.b16 %v51
  %v202 = vunpack.c.h.b16 %v51
  %v203 = vunpack.c.l.b16 %v52
  %v204 = vunpack.c.h.b16 %v52
  %v205 = vunpack.c.l.b16 %v53
  %v206 = vunpack.c.h.b16 %v53
  %v207 = vunpack.c.l.b16 %v54
  %v208 = vunpack.c.h.b16 %v54
  %v209 = vunpack.c.l.b16 %v55
  %v210 = vunpack.c.h.b16 %v55
  %v211 = vunpack.c.l.b16 %v56
  %v212 = vunpack.c.h.b16 %v56
  %v213 = vunpack.c.l.b16 %v57
  %v214 = vunpack.c.h.b16 %v57
  %v215 = vunpack.c.l.b16 %v58
  %v216 = vunpack.c.h.b16 %v58
  %v217 = vunpack.c.l.b16 %v59
  %v218 = vunpack.c.h.b16 %v59
  %v219 = vunpack.c.l.b16 %v60
  %v220 = vunpack.c.h.b16 %v60
  %v221 = vunpack.c.l.b16 %v61
  %v222 = vunpack.c.h.b16 %v61
  %v223 = vunpack.c.l.b16 %v62
  %v224 = vunpack.c.h.b16 %v62
  %v225 = vunpack.c.l.b16 %v63
  %v226 = vunpack.c.h.b16 %v63
  %v227 = vunpack.c.l.b16 %v64
  %v228 = vunpack.c.h.b16 %v64
  %v229 = vunpack.c.l.b16 %v65
  %v230 = vunpack.c.h.b16 %v65
  %v231 = vunpack.c.l.b16 %v66
  %v232 = vunpack.c.h.b16 %v66
  %v233 = vunpack.c.l.b16 %v67
  %v234 = vunpack.c.h.b16 %v67
  %v235 = vunpack.c.l.b16 %v68
  %v236 = vunpack.c.h.b16 %v68
  %v237 = vunpack.c.l.b16 %v69
  %v238 = vunpack.c.h.b16 %v69
  %v239 = vunpack.c.l.b16 %v70
  %v240 = vunpack.c.h.b16 %v70
  %v241 = vunpack.c.l.b16 %v71
  %v242 = vunpack.c.h.b16 %v71
  %v243 = vunpack.c.l.b16 %v72
  %v244 = vunpack.c.h.b16 %v72
  %v245 = vunpack.c.l.b16 %v73
  %v246 = vunpack.c.h.b16 %v73
  %v247 = vunpack.c.l.b16 %v74
  %v248 = vunpack.c.h.b16 %v74
  %v249 = vunpack.c.l.b16 %v75
  %v250 = vunpack.c.h.b16 %v75
  %v251 = vunpack.c.l.b16 %v76
  %v252 = vunpack.c.h.b16 %v76
  %v253 = vunpack.c.l.b16 %v77
  %v254 = vunpack.c.h.b16 %v77
  %v255 = vunpack.c.l.b16 %v78
  %v256 = vunpack.c.h.b16 %v78
  %v257 = vunpack.c.l.b16 %v79
  %v258 = vunpack.c.h.b16 %v79
  %v259 = vunpack.c.l.b16 %v80
  %v260 = vunpack.c.h.b16 %v80
  %v261 = vunpack.c.l.b16 %v81
  %v262 = vunpack.c.h.b16 %v81
  %v263 = vunpack.c.l.b16 %v82
  %v264 = vunpack.c.h.b16 %v82
  %v265 = vunpack.c.l.b16 %v83
  %v266 = vunpack.c.h.b16 %v83
  %v267 = vunpack.c.l.b16 %v84
  %v268 = vunpack.c.h.b16 %v84
  %v269 = vunpack.c.l.b16 %v85
  %v270 = vunpack.c.h.b16 %v85
  %v271 = vunpack.c.l.b16 %v86
  %v272 = vunpack.c.h.b16 %v86
  %v273 = vunpack.c.l.b16 %v87
  %v274 = vunpack.c.h.b16 %v87
  %v275 = vunpack.c.l.b16 %v88
  %v276 = vunpack.c.h.b16 %v88
  %v277 = vunpack.c.l.b16 %v89
  %v278 = vunpack.c.h.b16 %v89
  %v279 = vunpack.c.l.b16 %v90
  %v280 = vunpack.c.h.b16 %v90
  %v281 = vunpack.c.l.b16 %v91
  %v282 = vunpack.c.h.b16 %v91
  %v283 = vunpack.c.l.b16 %v92
  %v284 = vunpack.c.h.b16 %v92
  %v285 = vpack.c.b16 %v165, %v157
  %v286 = vpack.c.b16 %v166, %v158
  %v287 = vpack.c.b16 %v167, %v159
  %v288 = vpack.c.b16 %v168, %v160
  %v289 = vpack.c.b16 %v169, %v161
  %v290 = vpack.c.b16 %v170, %v162
  %v291 = vpack.c.b16 %v171, %v163
  %v292 = vpack.c.b16 %v172, %v164
  %v293 = vpack.c.b16 %v181, %v173
  %v294 = vpack.c.b16 %v182, %v174
  %v295 = vpack.c.b16 %v183, %v175
  %v296 = vpack.c.b16 %v184, %v176
  %v297 = vpack.c.b16 %v185, %v177
  %v298 = vpack.c.b16 %v186, %v178
  %v299 = vpack.c.b16 %v187, %v179
  %v300 = vpack.c.b16 %v188, %v180
  %v301 = vpack.c.b16 %v197, %v189
  %v302 = vpack.c.b16 %v198, %v190
  %v303 = vpack.c.b16 %v199, %v191
  %v304 = vpack.c.b16 %v200, %v192
  %v305 = vpack.c.b16 %v201, %v193
  %v306 = vpack.c.b16 %v202, %v194
  %v307 = vpack.c.b16 %v203, %v195
  %v308 = vpack.c.b16 %v204, %v196
  %v309 = vpack.c.b16 %v213, %v205
  %v310 = vpack.c.b16 %v214, %v206
  %v311 = vpack.c.b16 %v215, %v207
  %v312 = vpack.c.b16 %v216, %v208
  %v313 = vpack.c.b16 %v217, %v209
  %v314 = vpack.c.b16 %v218, %v210
  %v315 = vpack.c.b16 %v219, %v211
  %v316 = vpack.c.b16 %v220, %v212
  %v317 = vpack.c.b16 %v229, %v221
  %v318 = vpack.c.b16 %v230, %v222
  %v319 = vpack.c.b16 %v231, %v223
  %v320 = vpack.c.b16 %v232, %v224
  %v321 = vpack.c.b16 %v233, %v225
  %v322 = vpack.c.b16 %v234, %v226
  %v323 = vpack.c.b16 %v235, %v227
  %v324 = vpack.c.b16 %v236, %v228
  %v325 = vpack.c.b16 %v245, %v237
  %v326 = vpack.c.b16 %v246, %v238
  %v327 = vpack.c.b16 %v247, %v239
  %v328 = vpack.c.b16 %v248, %v240
  %v329 = vpack.c.b16 %v249, %v241
  %v330 = vpack.c.b16 %v250, %v242
  %v331 = vpack.c.b16 %v251, %v243
  %v332 = vpack.c.b16 %v252, %v244
  %v333 = vpack.c.b16 %v261, %v253
  %v334 = vpack.c.b16 %v262, %v254
  %v335 = vpack.c.b16 %v263, %v255
  %v336 = vpack.c.b16 %v264, %v256
  %v337 = vpack.c.b16 %v265, %v257
  %v338 = vpack.c.b16 %v266, %v258
  %v339 = vpack.c.b16 %v267, %v259
  %v340 = vpack.c.b16 %v268, %v260
  %v341 = vpack.c.b16 %v277, %v269
  %v342 = vpack.c.b16 %v278, %v270
  %v343 = vpack.c.b16 %v279, %v271
  %v344 = vpack.c.b16 %v280, %v272
  %v345 = vpack.c.b16 %v281, %v273
  %v346 = vpack.c.b16 %v282, %v274
  %v347 = vpack.c.b16 %v283, %v275
  %v348 = vpack.c.b16 %v284, %v276
  %413 = vmatpush.bf16.msra.mxu0 %v341
  %414 = vmatpush.bf16.msra.mxu0 %v333
  %415 = vmatpush.bf16.msra.mxu0 %v325
  %416 = vmatpush.bf16.msra.mxu0 %v317
  %417 = vmatpush.bf16.msra.mxu0 %v309
  %418 = vmatpush.bf16.msra.mxu0 %v301
  %419 = vmatpush.bf16.msra.mxu0 %v293
  %420 = vmatpush.bf16.msra.mxu0 %v285
  %421 = vmatmul.bf16.gmra.mxu0 %v25
  %v422 = vpop.f32.mrf.mxu0
  %v423 = vadd.f32 0.0, %v422
  %v424 = vpop.f32.mrf.mxu0
  %v425 = vadd.f32 0.0, %v424
  %426 = vmatmul.bf16.gmra.mxu0 %v26
  %v427 = vpop.f32.mrf.mxu0
  %v428 = vadd.f32 0.0, %v427
  %v429 = vpop.f32.mrf.mxu0
  %v430 = vadd.f32 0.0, %v429
  %431 = vmatmul.bf16.gmra.mxu0 %v27
  %v432 = vpop.f32.mrf.mxu0
  %v433 = vadd.f32 0.0, %v432
  %v434 = vpop.f32.mrf.mxu0
  %v435 = vadd.f32 0.0, %v434
  %436 = vmatmul.bf16.gmra.mxu0 %v28
  %v437 = vpop.f32.mrf.mxu0
  %v438 = vadd.f32 0.0, %v437
  %v439 = vpop.f32.mrf.mxu0
  %v440 = vadd.f32 0.0, %v439
  %441 = vdwg.mxu0
  %442 = vmatpush.bf16.msra.mxu0 %v342
  %443 = vmatpush.bf16.msra.mxu0 %v334
  %444 = vmatpush.bf16.msra.mxu0 %v326
  %445 = vmatpush.bf16.msra.mxu0 %v318
  %446 = vmatpush.bf16.msra.mxu0 %v310
  %447 = vmatpush.bf16.msra.mxu0 %v302
  %448 = vmatpush.bf16.msra.mxu0 %v294
  %449 = vmatpush.bf16.msra.mxu0 %v286
  %450 = vmatmul.bf16.gmra.mxu0 %v25
  %v451 = vpop.f32.mrf.mxu0
  %v452 = vadd.f32 0.0, %v451
  %v453 = vpop.f32.mrf.mxu0
  %v454 = vadd.f32 0.0, %v453
  %455 = vmatmul.bf16.gmra.mxu0 %v26
  %v456 = vpop.f32.mrf.mxu0
  %v457 = vadd.f32 0.0, %v456
  %v458 = vpop.f32.mrf.mxu0
  %v459 = vadd.f32 0.0, %v458
  %460 = vmatmul.bf16.gmra.mxu0 %v27
  %v461 = vpop.f32.mrf.mxu0
  %v462 = vadd.f32 0.0, %v461
  %v463 = vpop.f32.mrf.mxu0
  %v464 = vadd.f32 0.0, %v463
  %465 = vmatmul.bf16.gmra.mxu0 %v28
  %v466 = vpop.f32.mrf.mxu0
  %v467 = vadd.f32 0.0, %v466
  %v468 = vpop.f32.mrf.mxu0
  %v469 = vadd.f32 0.0, %v468
  %470 = vdwg.mxu0
  %471 = vmatpush.bf16.msra.mxu0 %v343
  %472 = vmatpush.bf16.msra.mxu0 %v335
  %473 = vmatpush.bf16.msra.mxu0 %v327
  %474 = vmatpush.bf16.msra.mxu0 %v319
  %475 = vmatpush.bf16.msra.mxu0 %v311
  %476 = vmatpush.bf16.msra.mxu0 %v303
  %477 = vmatpush.bf16.msra.mxu0 %v295
  %478 = vmatpush.bf16.msra.mxu0 %v287
  %479 = vmatmul.bf16.gmra.mxu0 %v25
  %v480 = vpop.f32.mrf.mxu0
  %v481 = vadd.f32 0.0, %v480
  %v482 = vpop.f32.mrf.mxu0
  %v483 = vadd.f32 0.0, %v482
  %484 = vmatmul.bf16.gmra.mxu0 %v26
  %v485 = vpop.f32.mrf.mxu0
  %v486 = vadd.f32 0.0, %v485
  %v487 = vpop.f32.mrf.mxu0
  %v488 = vadd.f32 0.0, %v487
  %489 = vmatmul.bf16.gmra.mxu0 %v27
  %v490 = vpop.f32.mrf.mxu0
  %v491 = vadd.f32 0.0, %v490
  %v492 = vpop.f32.mrf.mxu0
  %v493 = vadd.f32 0.0, %v492
  %494 = vmatmul.bf16.gmra.mxu0 %v28
  %v495 = vpop.f32.mrf.mxu0
  %v496 = vadd.f32 0.0, %v495
  %v497 = vpop.f32.mrf.mxu0
  %v498 = vadd.f32 0.0, %v497
  %499 = vdwg.mxu0
  %500 = vmatpush.bf16.msra.mxu0 %v344
  %501 = vmatpush.bf16.msra.mxu0 %v336
  %502 = vmatpush.bf16.msra.mxu0 %v328
  %503 = vmatpush.bf16.msra.mxu0 %v320
  %504 = vmatpush.bf16.msra.mxu0 %v312
  %505 = vmatpush.bf16.msra.mxu0 %v304
  %506 = vmatpush.bf16.msra.mxu0 %v296
  %507 = vmatpush.bf16.msra.mxu0 %v288
  %508 = vmatmul.bf16.gmra.mxu0 %v25
  %v509 = vpop.f32.mrf.mxu0
  %v510 = vadd.f32 0.0, %v509
  %v511 = vpop.f32.mrf.mxu0
  %v512 = vadd.f32 0.0, %v511
  %513 = vmatmul.bf16.gmra.mxu0 %v26
  %v514 = vpop.f32.mrf.mxu0
  %v515 = vadd.f32 0.0, %v514
  %v516 = vpop.f32.mrf.mxu0
  %v517 = vadd.f32 0.0, %v516
  %518 = vmatmul.bf16.gmra.mxu0 %v27
  %v519 = vpop.f32.mrf.mxu0
  %v520 = vadd.f32 0.0, %v519
  %v521 = vpop.f32.mrf.mxu0
  %v522 = vadd.f32 0.0, %v521
  %523 = vmatmul.bf16.gmra.mxu0 %v28
  %v524 = vpop.f32.mrf.mxu0
  %v525 = vadd.f32 0.0, %v524
  %v526 = vpop.f32.mrf.mxu0
  %v527 = vadd.f32 0.0, %v526
  %528 = vdwg.mxu0
  %529 = vmatpush.bf16.msra.mxu0 %v345
  %530 = vmatpush.bf16.msra.mxu0 %v337
  %531 = vmatpush.bf16.msra.mxu0 %v329
  %532 = vmatpush.bf16.msra.mxu0 %v321
  %533 = vmatpush.bf16.msra.mxu0 %v313
  %534 = vmatpush.bf16.msra.mxu0 %v305
  %535 = vmatpush.bf16.msra.mxu0 %v297
  %536 = vmatpush.bf16.msra.mxu0 %v289
  %537 = vmatmul.bf16.gmra.mxu0 %v25
  %v538 = vpop.f32.mrf.mxu0
  %v539 = vadd.f32 0.0, %v538
  %v540 = vpop.f32.mrf.mxu0
  %v541 = vadd.f32 0.0, %v540
  %542 = vmatmul.bf16.gmra.mxu0 %v26
  %v543 = vpop.f32.mrf.mxu0
  %v544 = vadd.f32 0.0, %v543
  %v545 = vpop.f32.mrf.mxu0
  %v546 = vadd.f32 0.0, %v545
  %547 = vmatmul.bf16.gmra.mxu0 %v27
  %v548 = vpop.f32.mrf.mxu0
  %v549 = vadd.f32 0.0, %v548
  %v550 = vpop.f32.mrf.mxu0
  %v551 = vadd.f32 0.0, %v550
  %552 = vmatmul.bf16.gmra.mxu0 %v28
  %v553 = vpop.f32.mrf.mxu0
  %v554 = vadd.f32 0.0, %v553
  %v555 = vpop.f32.mrf.mxu0
  %v556 = vadd.f32 0.0, %v555
  %557 = vdwg.mxu0
  %558 = vmatpush.bf16.msra.mxu0 %v346
  %559 = vmatpush.bf16.msra.mxu0 %v338
  %560 = vmatpush.bf16.msra.mxu0 %v330
  %561 = vmatpush.bf16.msra.mxu0 %v322
  %562 = vmatpush.bf16.msra.mxu0 %v314
  %563 = vmatpush.bf16.msra.mxu0 %v306
  %564 = vmatpush.bf16.msra.mxu0 %v298
  %565 = vmatpush.bf16.msra.mxu0 %v290
  %566 = vmatmul.bf16.gmra.mxu0 %v25
  %v567 = vpop.f32.mrf.mxu0
  %v568 = vadd.f32 0.0, %v567
  %v569 = vpop.f32.mrf.mxu0
  %v570 = vadd.f32 0.0, %v569
  %571 = vmatmul.bf16.gmra.mxu0 %v26
  %v572 = vpop.f32.mrf.mxu0
  %v573 = vadd.f32 0.0, %v572
  %v574 = vpop.f32.mrf.mxu0
  %v575 = vadd.f32 0.0, %v574
  %576 = vmatmul.bf16.gmra.mxu0 %v27
  %v577 = vpop.f32.mrf.mxu0
  %v578 = vadd.f32 0.0, %v577
  %v579 = vpop.f32.mrf.mxu0
  %v580 = vadd.f32 0.0, %v579
  %581 = vmatmul.bf16.gmra.mxu0 %v28
  %v582 = vpop.f32.mrf.mxu0
  %v583 = vadd.f32 0.0, %v582
  %v584 = vpop.f32.mrf.mxu0
  %v585 = vadd.f32 0.0, %v584
  %586 = vdwg.mxu0
  %587 = vmatpush.bf16.msra.mxu0 %v347
  %588 = vmatpush.bf16.msra.mxu0 %v339
  %589 = vmatpush.bf16.msra.mxu0 %v331
  %590 = vmatpush.bf16.msra.mxu0 %v323
  %591 = vmatpush.bf16.msra.mxu0 %v315
  %592 = vmatpush.bf16.msra.mxu0 %v307
  %593 = vmatpush.bf16.msra.mxu0 %v299
  %594 = vmatpush.bf16.msra.mxu0 %v291
  %595 = vmatmul.bf16.gmra.mxu0 %v25
  %v596 = vpop.f32.mrf.mxu0
  %v597 = vadd.f32 0.0, %v596
  %v598 = vpop.f32.mrf.mxu0
  %v599 = vadd.f32 0.0, %v598
  %600 = vmatmul.bf16.gmra.mxu0 %v26
  %v601 = vpop.f32.mrf.mxu0
  %v602 = vadd.f32 0.0, %v601
  %v603 = vpop.f32.mrf.mxu0
  %v604 = vadd.f32 0.0, %v603
  %605 = vmatmul.bf16.gmra.mxu0 %v27
  %v606 = vpop.f32.mrf.mxu0
  %v607 = vadd.f32 0.0, %v606
  %v608 = vpop.f32.mrf.mxu0
  %v609 = vadd.f32 0.0, %v608
  %610 = vmatmul.bf16.gmra.mxu0 %v28
  %v611 = vpop.f32.mrf.mxu0
  %v612 = vadd.f32 0.0, %v611
  %v613 = vpop.f32.mrf.mxu0
  %v614 = vadd.f32 0.0, %v613
  %615 = vdwg.mxu0
  %616 = vmatpush.bf16.msra.mxu0 %v348
  %617 = vmatpush.bf16.msra.mxu0 %v340
  %618 = vmatpush.bf16.msra.mxu0 %v332
  %619 = vmatpush.bf16.msra.mxu0 %v324
  %620 = vmatpush.bf16.msra.mxu0 %v316
  %621 = vmatpush.bf16.msra.mxu0 %v308
  %622 = vmatpush.bf16.msra.mxu0 %v300
  %623 = vmatpush.bf16.msra.mxu0 %v292
  %624 = vmatmul.bf16.gmra.mxu0 %v25
  %v625 = vpop.f32.mrf.mxu0
  %v626 = vadd.f32 0.0, %v625
  %v627 = vpop.f32.mrf.mxu0
  %v628 = vadd.f32 0.0, %v627
  %629 = vmatmul.bf16.gmra.mxu0 %v26
  %v630 = vpop.f32.mrf.mxu0
  %v631 = vadd.f32 0.0, %v630
  %v632 = vpop.f32.mrf.mxu0
  %v633 = vadd.f32 0.0, %v632
  %634 = vmatmul.bf16.gmra.mxu0 %v27
  %v635 = vpop.f32.mrf.mxu0
  %v636 = vadd.f32 0.0, %v635
  %v637 = vpop.f32.mrf.mxu0
  %v638 = vadd.f32 0.0, %v637
  %639 = vmatmul.bf16.gmra.mxu0 %v28
  %v640 = vpop.f32.mrf.mxu0
  %v641 = vadd.f32 0.0, %v640
  %v642 = vpop.f32.mrf.mxu0
  %v643 = vadd.f32 0.0, %v642
  %644 = vdwg.mxu0
  %v645 = vld [vmem:[%s2] sm:$0xff]
  %v647 = vperm.slane %v645, 0
  %v648 = vperm.slane %v645, 1
  %v649 = vperm.slane %v645, 2
  %v650 = vperm.slane %v645, 3
  %v651 = vperm.slane %v645, 4
  %v652 = vperm.slane %v645, 5
  %v653 = vperm.slane %v645, 6
  %v654 = vperm.slane %v645, 7
  %v663 = vmul.f32 %v423, %v647
  %v664 = vmul.f32 %v452, %v648
  %v665 = vmul.f32 %v481, %v649
  %v666 = vmul.f32 %v510, %v650
  %v667 = vmul.f32 %v539, %v651
  %v668 = vmul.f32 %v568, %v652
  %v669 = vmul.f32 %v597, %v653
  %v670 = vmul.f32 %v626, %v654
  %v671 = vmul.f32 %v425, %v647
  %v672 = vmul.f32 %v454, %v648
  %v673 = vmul.f32 %v483, %v649
  %v674 = vmul.f32 %v512, %v650
  %v675 = vmul.f32 %v541, %v651
  %v676 = vmul.f32 %v570, %v652
  %v677 = vmul.f32 %v599, %v653
  %v678 = vmul.f32 %v628, %v654
  %v679 = vmul.f32 %v428, %v647
  %v680 = vmul.f32 %v457, %v648
  %v681 = vmul.f32 %v486, %v649
  %v682 = vmul.f32 %v515, %v650
  %v683 = vmul.f32 %v544, %v651
  %v684 = vmul.f32 %v573, %v652
  %v685 = vmul.f32 %v602, %v653
  %v686 = vmul.f32 %v631, %v654
  %v687 = vmul.f32 %v430, %v647
  %v688 = vmul.f32 %v459, %v648
  %v689 = vmul.f32 %v488, %v649
  %v690 = vmul.f32 %v517, %v650
  %v691 = vmul.f32 %v546, %v651
  %v692 = vmul.f32 %v575, %v652
  %v693 = vmul.f32 %v604, %v653
  %v694 = vmul.f32 %v633, %v654
  %v695 = vmul.f32 %v433, %v647
  %v696 = vmul.f32 %v462, %v648
  %v697 = vmul.f32 %v491, %v649
  %v698 = vmul.f32 %v520, %v650
  %v699 = vmul.f32 %v549, %v651
  %v700 = vmul.f32 %v578, %v652
  %v701 = vmul.f32 %v607, %v653
  %v702 = vmul.f32 %v636, %v654
  %v703 = vmul.f32 %v435, %v647
  %v704 = vmul.f32 %v464, %v648
  %v705 = vmul.f32 %v493, %v649
  %v706 = vmul.f32 %v522, %v650
  %v707 = vmul.f32 %v551, %v651
  %v708 = vmul.f32 %v580, %v652
  %v709 = vmul.f32 %v609, %v653
  %v710 = vmul.f32 %v638, %v654
  %v711 = vmul.f32 %v438, %v647
  %v712 = vmul.f32 %v467, %v648
  %v713 = vmul.f32 %v496, %v649
  %v714 = vmul.f32 %v525, %v650
  %v715 = vmul.f32 %v554, %v651
  %v716 = vmul.f32 %v583, %v652
  %v717 = vmul.f32 %v612, %v653
  %v718 = vmul.f32 %v641, %v654
  %v719 = vmul.f32 %v440, %v647
  %v720 = vmul.f32 %v469, %v648
  %v721 = vmul.f32 %v498, %v649
  %v722 = vmul.f32 %v527, %v650
  %v723 = vmul.f32 %v556, %v651
  %v724 = vmul.f32 %v585, %v652
  %v725 = vmul.f32 %v614, %v653
  %v726 = vmul.f32 %v643, %v654
  %v727 = vld [vmem:[%s3] sm:$0xff]
  %v729 = vperm.slane %v727, 0
  %v730 = vperm.slane %v727, 1
  %v731 = vperm.slane %v727, 2
  %v732 = vperm.slane %v727, 3
  %v733 = vperm.slane %v727, 4
  %v734 = vperm.slane %v727, 5
  %v735 = vperm.slane %v727, 6
  %v736 = vperm.slane %v727, 7
  %v745 = vadd.f32 %v663, %v729
  %v746 = vadd.f32 %v664, %v730
  %v747 = vadd.f32 %v665, %v731
  %v748 = vadd.f32 %v666, %v732
  %v749 = vadd.f32 %v667, %v733
  %v750 = vadd.f32 %v668, %v734
  %v751 = vadd.f32 %v669, %v735
  %v752 = vadd.f32 %v670, %v736
  %v753 = vadd.f32 %v671, %v729
  %v754 = vadd.f32 %v672, %v730
  %v755 = vadd.f32 %v673, %v731
  %v756 = vadd.f32 %v674, %v732
  %v757 = vadd.f32 %v675, %v733
  %v758 = vadd.f32 %v676, %v734
  %v759 = vadd.f32 %v677, %v735
  %v760 = vadd.f32 %v678, %v736
  %v761 = vadd.f32 %v679, %v729
  %v762 = vadd.f32 %v680, %v730
  %v763 = vadd.f32 %v681, %v731
  %v764 = vadd.f32 %v682, %v732
  %v765 = vadd.f32 %v683, %v733
  %v766 = vadd.f32 %v684, %v734
  %v767 = vadd.f32 %v685, %v735
  %v768 = vadd.f32 %v686, %v736
  %v769 = vadd.f32 %v687, %v729
  %v770 = vadd.f32 %v688, %v730
  %v771 = vadd.f32 %v689, %v731
  %v772 = vadd.f32 %v690, %v732
  %v773 = vadd.f32 %v691, %v733
  %v774 = vadd.f32 %v692, %v734
  %v775 = vadd.f32 %v693, %v735
  %v776 = vadd.f32 %v694, %v736
  %v777 = vadd.f32 %v695, %v729
  %v778 = vadd.f32 %v696, %v730
  %v779 = vadd.f32 %v697, %v731
  %v780 = vadd.f32 %v698, %v732
  %v781 = vadd.f32 %v699, %v733
  %v782 = vadd.f32 %v700, %v734
  %v783 = vadd.f32 %v701, %v735
  %v784 = vadd.f32 %v702, %v736
  %v785 = vadd.f32 %v703, %v729
  %v786 = vadd.f32 %v704, %v730
  %v787 = vadd.f32 %v705, %v731
  %v788 = vadd.f32 %v706, %v732
  %v789 = vadd.f32 %v707, %v733
  %v790 = vadd.f32 %v708, %v734
  %v791 = vadd.f32 %v709, %v735
  %v792 = vadd.f32 %v710, %v736
  %v793 = vadd.f32 %v711, %v729
  %v794 = vadd.f32 %v712, %v730
  %v795 = vadd.f32 %v713, %v731
  %v796 = vadd.f32 %v714, %v732
  %v797 = vadd.f32 %v715, %v733
  %v798 = vadd.f32 %v716, %v734
  %v799 = vadd.f32 %v717, %v735
  %v800 = vadd.f32 %v718, %v736
  %v801 = vadd.f32 %v719, %v729
  %v802 = vadd.f32 %v720, %v730
  %v803 = vadd.f32 %v721, %v731
  %v804 = vadd.f32 %v722, %v732
  %v805 = vadd.f32 %v723, %v733
  %v806 = vadd.f32 %v724, %v734
  %v807 = vadd.f32 %v725, %v735
  %v808 = vadd.f32 %v726, %v736
  %vm809 = vcmp.ge.f32.partialorder %v745, 0.0
  %vm810 = vcmp.ge.f32.partialorder %v746, 0.0
  %vm811 = vcmp.ge.f32.partialorder %v747, 0.0
  %vm812 = vcmp.ge.f32.partialorder %v748, 0.0
  %vm813 = vcmp.ge.f32.partialorder %v749, 0.0
  %vm814 = vcmp.ge.f32.partialorder %v750, 0.0
  %vm815 = vcmp.ge.f32.partialorder %v751, 0.0
  %vm816 = vcmp.ge.f32.partialorder %v752, 0.0
  %vm817 = vcmp.ge.f32.partialorder %v753, 0.0
  %vm818 = vcmp.ge.f32.partialorder %v754, 0.0
  %vm819 = vcmp.ge.f32.partialorder %v755, 0.0
  %vm820 = vcmp.ge.f32.partialorder %v756, 0.0
  %vm821 = vcmp.ge.f32.partialorder %v757, 0.0
  %vm822 = vcmp.ge.f32.partialorder %v758, 0.0
  %vm823 = vcmp.ge.f32.partialorder %v759, 0.0
  %vm824 = vcmp.ge.f32.partialorder %v760, 0.0
  %vm825 = vcmp.ge.f32.partialorder %v761, 0.0
  %vm826 = vcmp.ge.f32.partialorder %v762, 0.0
  %vm827 = vcmp.ge.f32.partialorder %v763, 0.0
  %vm828 = vcmp.ge.f32.partialorder %v764, 0.0
  %vm829 = vcmp.ge.f32.partialorder %v765, 0.0
  %vm830 = vcmp.ge.f32.partialorder %v766, 0.0
  %vm831 = vcmp.ge.f32.partialorder %v767, 0.0
  %vm832 = vcmp.ge.f32.partialorder %v768, 0.0
  %vm833 = vcmp.ge.f32.partialorder %v769, 0.0
  %vm834 = vcmp.ge.f32.partialorder %v770, 0.0
  %vm835 = vcmp.ge.f32.partialorder %v771, 0.0
  %vm836 = vcmp.ge.f32.partialorder %v772, 0.0
  %vm837 = vcmp.ge.f32.partialorder %v773, 0.0
  %vm838 = vcmp.ge.f32.partialorder %v774, 0.0
  %vm839 = vcmp.ge.f32.partialorder %v775, 0.0
  %vm840 = vcmp.ge.f32.partialorder %v776, 0.0
  %vm841 = vcmp.ge.f32.partialorder %v777, 0.0
  %vm842 = vcmp.ge.f32.partialorder %v778, 0.0
  %vm843 = vcmp.ge.f32.partialorder %v779, 0.0
  %vm844 = vcmp.ge.f32.partialorder %v780, 0.0
  %vm845 = vcmp.ge.f32.partialorder %v781, 0.0
  %vm846 = vcmp.ge.f32.partialorder %v782, 0.0
  %vm847 = vcmp.ge.f32.partialorder %v783, 0.0
  %vm848 = vcmp.ge.f32.partialorder %v784, 0.0
  %vm849 = vcmp.ge.f32.partialorder %v785, 0.0
  %vm850 = vcmp.ge.f32.partialorder %v786, 0.0
  %vm851 = vcmp.ge.f32.partialorder %v787, 0.0
  %vm852 = vcmp.ge.f32.partialorder %v788, 0.0
  %vm853 = vcmp.ge.f32.partialorder %v789, 0.0
  %vm854 = vcmp.ge.f32.partialorder %v790, 0.0
  %vm855 = vcmp.ge.f32.partialorder %v791, 0.0
  %vm856 = vcmp.ge.f32.partialorder %v792, 0.0
  %vm857 = vcmp.ge.f32.partialorder %v793, 0.0
  %vm858 = vcmp.ge.f32.partialorder %v794, 0.0
  %vm859 = vcmp.ge.f32.partialorder %v795, 0.0
  %vm860 = vcmp.ge.f32.partialorder %v796, 0.0
  %vm861 = vcmp.ge.f32.partialorder %v797, 0.0
  %vm862 = vcmp.ge.f32.partialorder %v798, 0.0
  %vm863 = vcmp.ge.f32.partialorder %v799, 0.0
  %vm864 = vcmp.ge.f32.partialorder %v800, 0.0
  %vm865 = vcmp.ge.f32.partialorder %v801, 0.0
  %vm866 = vcmp.ge.f32.partialorder %v802, 0.0
  %vm867 = vcmp.ge.f32.partialorder %v803, 0.0
  %vm868 = vcmp.ge.f32.partialorder %v804, 0.0
  %vm869 = vcmp.ge.f32.partialorder %v805, 0.0
  %vm870 = vcmp.ge.f32.partialorder %v806, 0.0
  %vm871 = vcmp.ge.f32.partialorder %v807, 0.0
  %vm872 = vcmp.ge.f32.partialorder %v808, 0.0
  %v873 = vmul.f32 %v745, 0.2
  %v874 = vmul.f32 %v746, 0.2
  %v875 = vmul.f32 %v747, 0.2
  %v876 = vmul.f32 %v748, 0.2
  %v877 = vmul.f32 %v749, 0.2
  %v878 = vmul.f32 %v750, 0.2
  %v879 = vmul.f32 %v751, 0.2
  %v880 = vmul.f32 %v752, 0.2
  %v881 = vmul.f32 %v753, 0.2
  %v882 = vmul.f32 %v754, 0.2
  %v883 = vmul.f32 %v755, 0.2
  %v884 = vmul.f32 %v756, 0.2
  %v885 = vmul.f32 %v757, 0.2
  %v886 = vmul.f32 %v758, 0.2
  %v887 = vmul.f32 %v759, 0.2
  %v888 = vmul.f32 %v760, 0.2
  %v889 = vmul.f32 %v761, 0.2
  %v890 = vmul.f32 %v762, 0.2
  %v891 = vmul.f32 %v763, 0.2
  %v892 = vmul.f32 %v764, 0.2
  %v893 = vmul.f32 %v765, 0.2
  %v894 = vmul.f32 %v766, 0.2
  %v895 = vmul.f32 %v767, 0.2
  %v896 = vmul.f32 %v768, 0.2
  %v897 = vmul.f32 %v769, 0.2
  %v898 = vmul.f32 %v770, 0.2
  %v899 = vmul.f32 %v771, 0.2
  %v900 = vmul.f32 %v772, 0.2
  %v901 = vmul.f32 %v773, 0.2
  %v902 = vmul.f32 %v774, 0.2
  %v903 = vmul.f32 %v775, 0.2
  %v904 = vmul.f32 %v776, 0.2
  %v905 = vmul.f32 %v777, 0.2
  %v906 = vmul.f32 %v778, 0.2
  %v907 = vmul.f32 %v779, 0.2
  %v908 = vmul.f32 %v780, 0.2
  %v909 = vmul.f32 %v781, 0.2
  %v910 = vmul.f32 %v782, 0.2
  %v911 = vmul.f32 %v783, 0.2
  %v912 = vmul.f32 %v784, 0.2
  %v913 = vmul.f32 %v785, 0.2
  %v914 = vmul.f32 %v786, 0.2
  %v915 = vmul.f32 %v787, 0.2
  %v916 = vmul.f32 %v788, 0.2
  %v917 = vmul.f32 %v789, 0.2
  %v918 = vmul.f32 %v790, 0.2
  %v919 = vmul.f32 %v791, 0.2
  %v920 = vmul.f32 %v792, 0.2
  %v921 = vmul.f32 %v793, 0.2
  %v922 = vmul.f32 %v794, 0.2
  %v923 = vmul.f32 %v795, 0.2
  %v924 = vmul.f32 %v796, 0.2
  %v925 = vmul.f32 %v797, 0.2
  %v926 = vmul.f32 %v798, 0.2
  %v927 = vmul.f32 %v799, 0.2
  %v928 = vmul.f32 %v800, 0.2
  %v929 = vmul.f32 %v801, 0.2
  %v930 = vmul.f32 %v802, 0.2
  %v931 = vmul.f32 %v803, 0.2
  %v932 = vmul.f32 %v804, 0.2
  %v933 = vmul.f32 %v805, 0.2
  %v934 = vmul.f32 %v806, 0.2
  %v935 = vmul.f32 %v807, 0.2
  %v936 = vmul.f32 %v808, 0.2
  %v937 = vsel %vm809, %v745, %v873
  %v938 = vsel %vm810, %v746, %v874
  %v939 = vsel %vm811, %v747, %v875
  %v940 = vsel %vm812, %v748, %v876
  %v941 = vsel %vm813, %v749, %v877
  %v942 = vsel %vm814, %v750, %v878
  %v943 = vsel %vm815, %v751, %v879
  %v944 = vsel %vm816, %v752, %v880
  %v945 = vsel %vm817, %v753, %v881
  %v946 = vsel %vm818, %v754, %v882
  %v947 = vsel %vm819, %v755, %v883
  %v948 = vsel %vm820, %v756, %v884
  %v949 = vsel %vm821, %v757, %v885
  %v950 = vsel %vm822, %v758, %v886
  %v951 = vsel %vm823, %v759, %v887
  %v952 = vsel %vm824, %v760, %v888
  %v953 = vsel %vm825, %v761, %v889
  %v954 = vsel %vm826, %v762, %v890
  %v955 = vsel %vm827, %v763, %v891
  %v956 = vsel %vm828, %v764, %v892
  %v957 = vsel %vm829, %v765, %v893
  %v958 = vsel %vm830, %v766, %v894
  %v959 = vsel %vm831, %v767, %v895
  %v960 = vsel %vm832, %v768, %v896
  %v961 = vsel %vm833, %v769, %v897
  %v962 = vsel %vm834, %v770, %v898
  %v963 = vsel %vm835, %v771, %v899
  %v964 = vsel %vm836, %v772, %v900
  %v965 = vsel %vm837, %v773, %v901
  %v966 = vsel %vm838, %v774, %v902
  %v967 = vsel %vm839, %v775, %v903
  %v968 = vsel %vm840, %v776, %v904
  %v969 = vsel %vm841, %v777, %v905
  %v970 = vsel %vm842, %v778, %v906
  %v971 = vsel %vm843, %v779, %v907
  %v972 = vsel %vm844, %v780, %v908
  %v973 = vsel %vm845, %v781, %v909
  %v974 = vsel %vm846, %v782, %v910
  %v975 = vsel %vm847, %v783, %v911
  %v976 = vsel %vm848, %v784, %v912
  %v977 = vsel %vm849, %v785, %v913
  %v978 = vsel %vm850, %v786, %v914
  %v979 = vsel %vm851, %v787, %v915
  %v980 = vsel %vm852, %v788, %v916
  %v981 = vsel %vm853, %v789, %v917
  %v982 = vsel %vm854, %v790, %v918
  %v983 = vsel %vm855, %v791, %v919
  %v984 = vsel %vm856, %v792, %v920
  %v985 = vsel %vm857, %v793, %v921
  %v986 = vsel %vm858, %v794, %v922
  %v987 = vsel %vm859, %v795, %v923
  %v988 = vsel %vm860, %v796, %v924
  %v989 = vsel %vm861, %v797, %v925
  %v990 = vsel %vm862, %v798, %v926
  %v991 = vsel %vm863, %v799, %v927
  %v992 = vsel %vm864, %v800, %v928
  %v993 = vsel %vm865, %v801, %v929
  %v994 = vsel %vm866, %v802, %v930
  %v995 = vsel %vm867, %v803, %v931
  %v996 = vsel %vm868, %v804, %v932
  %v997 = vsel %vm869, %v805, %v933
  %v998 = vsel %vm870, %v806, %v934
  %v999 = vsel %vm871, %v807, %v935
  %v1000 = vsel %vm872, %v808, %v936
  %1001 = vst [vmem:[%s4] sm:$0xff] %v937
  %1002 = vst [vmem:[%s4 + $0x8] sm:$0xff] %v938
  %1003 = vst [vmem:[%s4 + $0x10] sm:$0xff] %v939
  %1004 = vst [vmem:[%s4 + $0x18] sm:$0xff] %v940
  %1005 = vst [vmem:[%s4 + $0x20] sm:$0xff] %v941
  %1006 = vst [vmem:[%s4 + $0x28] sm:$0xff] %v942
  %1007 = vst [vmem:[%s4 + $0x30] sm:$0xff] %v943
  %1008 = vst [vmem:[%s4 + $0x38] sm:$0xff] %v944
  %1009 = vst [vmem:[%s4 + $0x40] sm:$0xff] %v945
  %1010 = vst [vmem:[%s4 + $0x48] sm:$0xff] %v946
  %1011 = vst [vmem:[%s4 + $0x50] sm:$0xff] %v947
  %1012 = vst [vmem:[%s4 + $0x58] sm:$0xff] %v948
  %1013 = vst [vmem:[%s4 + $0x60] sm:$0xff] %v949
  %1014 = vst [vmem:[%s4 + $0x68] sm:$0xff] %v950
  %1015 = vst [vmem:[%s4 + $0x70] sm:$0xff] %v951
  %1016 = vst [vmem:[%s4 + $0x78] sm:$0xff] %v952
  %1017 = vst [vmem:[%s4 + $0x80] sm:$0xff] %v953
  %1018 = vst [vmem:[%s4 + $0x88] sm:$0xff] %v954
  %1019 = vst [vmem:[%s4 + $0x90] sm:$0xff] %v955
  %1020 = vst [vmem:[%s4 + $0x98] sm:$0xff] %v956
  %1021 = vst [vmem:[%s4 + $0xa0] sm:$0xff] %v957
  %1022 = vst [vmem:[%s4 + $0xa8] sm:$0xff] %v958
  %1023 = vst [vmem:[%s4 + $0xb0] sm:$0xff] %v959
  %1024 = vst [vmem:[%s4 + $0xb8] sm:$0xff] %v960
  %1025 = vst [vmem:[%s4 + $0xc0] sm:$0xff] %v961
  %1026 = vst [vmem:[%s4 + $0xc8] sm:$0xff] %v962
  %1027 = vst [vmem:[%s4 + $0xd0] sm:$0xff] %v963
  %1028 = vst [vmem:[%s4 + $0xd8] sm:$0xff] %v964
  %1029 = vst [vmem:[%s4 + $0xe0] sm:$0xff] %v965
  %1030 = vst [vmem:[%s4 + $0xe8] sm:$0xff] %v966
  %1031 = vst [vmem:[%s4 + $0xf0] sm:$0xff] %v967
  %1032 = vst [vmem:[%s4 + $0xf8] sm:$0xff] %v968
  %1033 = vst [vmem:[%s4 + $0x100] sm:$0xff] %v969
  %1034 = vst [vmem:[%s4 + $0x108] sm:$0xff] %v970
  %1035 = vst [vmem:[%s4 + $0x110] sm:$0xff] %v971
  %1036 = vst [vmem:[%s4 + $0x118] sm:$0xff] %v972
  %1037 = vst [vmem:[%s4 + $0x120] sm:$0xff] %v973
  %1038 = vst [vmem:[%s4 + $0x128] sm:$0xff] %v974
  %1039 = vst [vmem:[%s4 + $0x130] sm:$0xff] %v975
  %1040 = vst [vmem:[%s4 + $0x138] sm:$0xff] %v976
  %1041 = vst [vmem:[%s4 + $0x140] sm:$0xff] %v977
  %1042 = vst [vmem:[%s4 + $0x148] sm:$0xff] %v978
  %1043 = vst [vmem:[%s4 + $0x150] sm:$0xff] %v979
  %1044 = vst [vmem:[%s4 + $0x158] sm:$0xff] %v980
  %1045 = vst [vmem:[%s4 + $0x160] sm:$0xff] %v981
  %1046 = vst [vmem:[%s4 + $0x168] sm:$0xff] %v982
  %1047 = vst [vmem:[%s4 + $0x170] sm:$0xff] %v983
  %1048 = vst [vmem:[%s4 + $0x178] sm:$0xff] %v984
  %1049 = vst [vmem:[%s4 + $0x180] sm:$0xff] %v985
  %1050 = vst [vmem:[%s4 + $0x188] sm:$0xff] %v986
  %1051 = vst [vmem:[%s4 + $0x190] sm:$0xff] %v987
  %1052 = vst [vmem:[%s4 + $0x198] sm:$0xff] %v988
  %1053 = vst [vmem:[%s4 + $0x1a0] sm:$0xff] %v989
  %1054 = vst [vmem:[%s4 + $0x1a8] sm:$0xff] %v990
  %1055 = vst [vmem:[%s4 + $0x1b0] sm:$0xff] %v991
  %1056 = vst [vmem:[%s4 + $0x1b8] sm:$0xff] %v992
  %1057 = vst [vmem:[%s4 + $0x1c0] sm:$0xff] %v993
  %1058 = vst [vmem:[%s4 + $0x1c8] sm:$0xff] %v994
  %1059 = vst [vmem:[%s4 + $0x1d0] sm:$0xff] %v995
  %1060 = vst [vmem:[%s4 + $0x1d8] sm:$0xff] %v996
  %1061 = vst [vmem:[%s4 + $0x1e0] sm:$0xff] %v997
  %1062 = vst [vmem:[%s4 + $0x1e8] sm:$0xff] %v998
  %1063 = vst [vmem:[%s4 + $0x1f0] sm:$0xff] %v999
  %1064 = vst [vmem:[%s4 + $0x1f8] sm:$0xff] %v1000
  // Predicated region
  $region18: #{dgcnn_forward.16} parent=0 // pred_check
    _
  $region19: #{dgcnn_forward.16} parent=0 // pred_check_branch
    %1066 = sbr.rel (0) target = $region21
  $region20: #{dgcnn_forward.16} parent=0 // pred_region
    _
  $region21: #{dgcnn_forward.16} parent=0 // pred_fallthru
    _
  // Predicated region
  $region22: #{dgcnn_forward.16} parent=0 // pred_check
    _
  $region23: #{dgcnn_forward.16} parent=0 // pred_check_branch
    %1068 = sbr.rel (0) target = $region25
  $region24: #{dgcnn_forward.16} parent=0 // pred_region
    _
  $region25: #{dgcnn_forward.16} parent=0 // pred_fallthru
    _

// kernel: dgcnn_forward.19
$region0: #{dgcnn_forward.19}
  #allocation0 [shape = 'u32[]', space=smem, size = 0x4, offset = 0x4, fixed_abs, tag = 'smem constant byte address 0x4 - core index']
  #allocation1 [shape = 'u32[72,128]{1,0:T(1,128)}', space=vmem, size = 0x9000, scoped, tag = 'internal scratch']
  #allocation2 [shape = 'f32[64,64]{1,0:T(8,128)}', space=vmem, size = 0x8000, scoped, tag = 'scratch operand']
  #allocation3 [shape = 'f32[64,64]{1,0:T(8,128)}', space=vmem, size = 0x8000, scoped, tag = 'scratch operand']
  %s0 = inlined_call_operand.vmem [shape: bf16[20,64,3], index: 0, kind: input, shape index: {}]
  %s1 = inlined_call_operand.vmem [shape: bf16[64,3], index: 1, kind: input, shape index: {}]
  %s2 = inlined_call_operand.vmem [shape: bf16[3,64], index: 2, kind: input, shape index: {}]
  %s3 = inlined_call_operand.vmem [shape: bf16[3,64], index: 3, kind: input, shape index: {}]
  %s4 = inlined_call_operand.vmem [shape: f32[1,64], index: 4, kind: input, shape index: {}]
  %s5 = inlined_call_operand.vmem [shape: f32[1,64], index: 5, kind: input, shape index: {}]
  %s6 = inlined_call_operand.vmem [shape: f32[64,64], index: 6, kind: output, shape index: {}]
  %s7 = sld [smem:[#allocation0]]
  $region73: #{dgcnn_forward.19} parent=0
    _
  %s9 = ssub.s32 1, %s7
  %s10 = scalar_select 0, %s9, %s7
  loop: start=0, step=1, limit=22
  $region2: #{dgcnn_forward.19} parent=0 // loop_pre_header
    _
  $region3: #{dgcnn_forward.19} parent=0 // loop_header
    %s12 = sphi 0, %s16
    %p13 = scmp.ge.s32.totalorder %s12, 22
    %s19 = sphi 0, %s31
    %s20 = sphi 0, %s27
    %s21 = sphi 0, %s19
    %s22 = sphi 0, %s20
    %s23 = sphi 0, %s21
    %s24 = sphi 0, %s22
    %s36 = sphi 0, %s38
    %s39 = sphi 0, %s36
    %s40 = sphi 0, %s39
    %s56 = sphi 0, %s40
    %s62 = sphi 0, %s64
    %s65 = sphi 0, %s62
    %s66 = sphi 0, %s65
    %s82 = sphi 0, %s66
    %s86 = sphi 0, %s86
    %s88 = sphi 0, %s86
    %s89 = sphi 0, %s88
    %s103 = sphi 0, %s89
    %s107 = sphi 0, %s107
    %s109 = sphi 0, %s107
    %s110 = sphi 0, %s109
    %s124 = sphi 0, %s110
    %s128 = sphi 0, %s128
    %s130 = sphi 0, %s128
    %s131 = sphi 0, %s130
    %s145 = sphi 0, %s131
    %s149 = sphi 0, %s149
    %s151 = sphi 0, %s149
    %s152 = sphi 0, %s151
    %s166 = sphi 0, %s152
    %s172 = sphi 0, %s174
    %s175 = sphi 0, %s172
    %s176 = sphi 0, %s175
    %s192 = sphi 0, %s176
  $region4: #{dgcnn_forward.19} parent=0 // loop_header_branch
    %15 = sbr.rel (%p13) target = $region8
  $region5: #{dgcnn_forward.19} parent=0 // loop_body
    %s17 = ssub.s32 %s12, 1
    %s18 = ssub.s32 %s12, 2
    %s25 = sadd.s32 1, %s20
    %p26 = scmp.ge.s32.totalorder %s25, 20
    %s27 = scalar_select %p26, 0, %s25
    %s28 = sadd.s32 1, %s19
    %s29 = scalar_select %p26, %s28, %s19
    %p30 = scmp.ge.s32.totalorder %s29, 1
    %s31 = scalar_select %p30, 0, %s29
    %s32 = ssub.s32 %s20, %s27
    %s33 = ssub.s32 %s19, %s31
    %s34 = sor.u32 %s32, %s33
    %p35 = scmp.eq.s32.totalorder %s34, 0
    %s37 = sadd.s32 %s36, 1
    %s38 = scalar_select %p35, %s36, %s37
    %p41 = pneg %p35
    %p42 = scmp.eq.s32.totalorder %s12, 19
    %p43 = por %p41, %p42
    %p44 = scmp.ne.s32.totalorder %s36, %s39
    %p45 = scmp.eq.s32.totalorder %s12, 0
    %p46 = por %p44, %p45
    %p47 = scmp.ne.s32.totalorder %s36, %s39
    %p48 = scmp.eq.s32.totalorder %s17, 19
    %p49 = por %p47, %p48
    %p50 = scmp.ne.s32.totalorder %s39, %s40
    %p51 = scmp.eq.s32.totalorder %s17, 0
    %p52 = por %p50, %p51
    %p53 = scmp.ne.s32.totalorder %s39, %s40
    %p54 = scmp.eq.s32.totalorder %s18, 19
    %p55 = por %p53, %p54
    %p57 = scmp.ne.s32.totalorder %s40, %s56
    %p58 = scmp.eq.s32.totalorder %s18, 0
    %p59 = por %p57, %p58
    %s60 = ssub.s32 %s19, %s31
    %p61 = scmp.eq.s32.totalorder %s60, 0
    %s63 = sadd.s32 %s62, 1
    %s64 = scalar_select %p61, %s62, %s63
    %p67 = pneg %p61
    %p68 = scmp.eq.s32.totalorder %s12, 19
    %p69 = por %p67, %p68
    %p70 = scmp.ne.s32.totalorder %s62, %s65
    %p71 = scmp.eq.s32.totalorder %s12, 0
    %p72 = por %p70, %p71
    %p73 = scmp.ne.s32.totalorder %s62, %s65
    %p74 = scmp.eq.s32.totalorder %s17, 19
    %p75 = por %p73, %p74
    %p76 = scmp.ne.s32.totalorder %s65, %s66
    %p77 = scmp.eq.s32.totalorder %s17, 0
    %p78 = por %p76, %p77
    %p79 = scmp.ne.s32.totalorder %s65, %s66
    %p80 = scmp.eq.s32.totalorder %s18, 19
    %p81 = por %p79, %p80
    %p83 = scmp.ne.s32.totalorder %s66, %s82
    %p84 = scmp.eq.s32.totalorder %s18, 0
    %p85 = por %p83, %p84
    %s87 = sadd.s32 %s86, 1
    %p90 = scmp.eq.s32.totalorder %s12, 19
    %p91 = scmp.ne.s32.totalorder %s86, %s88
    %p92 = scmp.eq.s32.totalorder %s12, 0
    %p93 = por %p91, %p92
    %p94 = scmp.ne.s32.totalorder %s86, %s88
    %p95 = scmp.eq.s32.totalorder %s17, 19
    %p96 = por %p94, %p95
    %p97 = scmp.ne.s32.totalorder %s88, %s89
    %p98 = scmp.eq.s32.totalorder %s17, 0
    %p99 = por %p97, %p98
    %p100 = scmp.ne.s32.totalorder %s88, %s89
    %p101 = scmp.eq.s32.totalorder %s18, 19
    %p102 = por %p100, %p101
    %p104 = scmp.ne.s32.totalorder %s89, %s103
    %p105 = scmp.eq.s32.totalorder %s18, 0
    %p106 = por %p104, %p105
    %s108 = sadd.s32 %s107, 1
    %p111 = scmp.eq.s32.totalorder %s12, 19
    %p112 = scmp.ne.s32.totalorder %s107, %s109
    %p113 = scmp.eq.s32.totalorder %s12, 0
    %p114 = por %p112, %p113
    %p115 = scmp.ne.s32.totalorder %s107, %s109
    %p116 = scmp.eq.s32.totalorder %s17, 19
    %p117 = por %p115, %p116
    %p118 = scmp.ne.s32.totalorder %s109, %s110
    %p119 = scmp.eq.s32.totalorder %s17, 0
    %p120 = por %p118, %p119
    %p121 = scmp.ne.s32.totalorder %s109, %s110
    %p122 = scmp.eq.s32.totalorder %s18, 19
    %p123 = por %p121, %p122
    %p125 = scmp.ne.s32.totalorder %s110, %s124
    %p126 = scmp.eq.s32.totalorder %s18, 0
    %p127 = por %p125, %p126
    %s129 = sadd.s32 %s128, 1
    %p132 = scmp.eq.s32.totalorder %s12, 19
    %p133 = scmp.ne.s32.totalorder %s128, %s130
    %p134 = scmp.eq.s32.totalorder %s12, 0
    %p135 = por %p133, %p134
    %p136 = scmp.ne.s32.totalorder %s128, %s130
    %p137 = scmp.eq.s32.totalorder %s17, 19
    %p138 = por %p136, %p137
    %p139 = scmp.ne.s32.totalorder %s130, %s131
    %p140 = scmp.eq.s32.totalorder %s17, 0
    %p141 = por %p139, %p140
    %p142 = scmp.ne.s32.totalorder %s130, %s131
    %p143 = scmp.eq.s32.totalorder %s18, 19
    %p144 = por %p142, %p143
    %p146 = scmp.ne.s32.totalorder %s131, %s145
    %p147 = scmp.eq.s32.totalorder %s18, 0
    %p148 = por %p146, %p147
    %s150 = sadd.s32 %s149, 1
    %p153 = scmp.eq.s32.totalorder %s12, 19
    %p154 = scmp.ne.s32.totalorder %s149, %s151
    %p155 = scmp.eq.s32.totalorder %s12, 0
    %p156 = por %p154, %p155
    %p157 = scmp.ne.s32.totalorder %s149, %s151
    %p158 = scmp.eq.s32.totalorder %s17, 19
    %p159 = por %p157, %p158
    %p160 = scmp.ne.s32.totalorder %s151, %s152
    %p161 = scmp.eq.s32.totalorder %s17, 0
    %p162 = por %p160, %p161
    %p163 = scmp.ne.s32.totalorder %s151, %s152
    %p164 = scmp.eq.s32.totalorder %s18, 19
    %p165 = por %p163, %p164
    %p167 = scmp.ne.s32.totalorder %s152, %s166
    %p168 = scmp.eq.s32.totalorder %s18, 0
    %p169 = por %p167, %p168
    %s170 = ssub.s32 %s19, %s31
    %p171 = scmp.eq.s32.totalorder %s170, 0
    %s173 = sadd.s32 %s172, 1
    %s174 = scalar_select %p171, %s172, %s173
    %p177 = pneg %p171
    %p178 = scmp.eq.s32.totalorder %s12, 19
    %p179 = por %p177, %p178
    %p180 = scmp.ne.s32.totalorder %s172, %s175
    %p181 = scmp.eq.s32.totalorder %s12, 0
    %p182 = por %p180, %p181
    %p183 = scmp.ne.s32.totalorder %s172, %s175
    %p184 = scmp.eq.s32.totalorder %s17, 19
    %p185 = por %p183, %p184
    %p186 = scmp.ne.s32.totalorder %s175, %s176
    %p187 = scmp.eq.s32.totalorder %s17, 0
    %p188 = por %p186, %p187
    %p189 = scmp.ne.s32.totalorder %s175, %s176
    %p190 = scmp.eq.s32.totalorder %s18, 19
    %p191 = por %p189, %p190
    %p193 = scmp.ne.s32.totalorder %s176, %s192
    %p194 = scmp.eq.s32.totalorder %s18, 0
    %p195 = por %p193, %p194
    %p196 = scmp.le.s32.totalorder 1, %s12
    %p197 = scmp.lt.s32.totalorder %s12, 21
    %p198 = pnand %p196, %p197
    %p199 = pneg %p198
    // Predicated region
    $region9: #{dgcnn_forward.19} parent=5 // pred_check
      _
    $region10: #{dgcnn_forward.19} parent=5 // pred_check_branch
      %201 = sbr.rel (%p198) target = $region12
    $region11: #{dgcnn_forward.19} parent=5 // pred_region
      %s202 = ssub.s32 %s12, 1
      // Predicated region
      $region13: #{dgcnn_forward.19} parent=11 // pred_check
        %p203 = pneg %p78
      $region14: #{dgcnn_forward.19} parent=11 // pred_check_branch
        %205 = sbr.rel (%p203) target = $region16
      $region15: #{dgcnn_forward.19} parent=11 // pred_region
        %s206 = smul.u32 8, %s21
        %p207 = scmp.lt.s32.totalorder %s206, 7
        %s208 = scalar_select %p207, %s206, 7
        %s209 = smul.addr %s208, 4
        %s210 = scalar_lea.vmem %s1, %s209
        %s211 = smul.u32 8, %s21
      $region16: #{dgcnn_forward.19} parent=11 // pred_fallthru
        _
      // Predicated region
      $region17: #{dgcnn_forward.19} parent=11 // pred_check
        %p212 = pneg %p99
      $region18: #{dgcnn_forward.19} parent=11 // pred_check_branch
        %214 = sbr.rel (%p212) target = $region20
      $region19: #{dgcnn_forward.19} parent=11 // pred_region
        _
      $region20: #{dgcnn_forward.19} parent=11 // pred_fallthru
        _
      // Predicated region
      $region21: #{dgcnn_forward.19} parent=11 // pred_check
        %p215 = pneg %p120
      $region22: #{dgcnn_forward.19} parent=11 // pred_check_branch
        %217 = sbr.rel (%p215) target = $region24
      $region23: #{dgcnn_forward.19} parent=11 // pred_region
        _
      $region24: #{dgcnn_forward.19} parent=11 // pred_fallthru
        _
      // Predicated region
      $region25: #{dgcnn_forward.19} parent=11 // pred_check
        %p218 = pneg %p141
      $region26: #{dgcnn_forward.19} parent=11 // pred_check_branch
        %220 = sbr.rel (%p218) target = $region28
      $region27: #{dgcnn_forward.19} parent=11 // pred_region
        _
      $region28: #{dgcnn_forward.19} parent=11 // pred_fallthru
        _
      // Predicated region
      $region29: #{dgcnn_forward.19} parent=11 // pred_check
        %p221 = pneg %p162
      $region30: #{dgcnn_forward.19} parent=11 // pred_check_branch
        %223 = sbr.rel (%p221) target = $region32
      $region31: #{dgcnn_forward.19} parent=11 // pred_region
        _
      $region32: #{dgcnn_forward.19} parent=11 // pred_fallthru
        _
    $region12: #{dgcnn_forward.19} parent=5 // pred_fallthru
      _
    %p224 = scmp.lt.s32.totalorder %s12, 20
    // Predicated region
    $region33: #{dgcnn_forward.19} parent=5 // pred_check
      %p225 = pneg %p224
    $region34: #{dgcnn_forward.19} parent=5 // pred_check_branch
      %227 = sbr.rel (%p225) target = $region36
    $region35: #{dgcnn_forward.19} parent=5 // pred_region
      // Predicated region
      $region37: #{dgcnn_forward.19} parent=35 // pred_check
        %p228 = pneg %p46
      $region38: #{dgcnn_forward.19} parent=35 // pred_check_branch
        %230 = sbr.rel (%p228) target = $region40
      $region39: #{dgcnn_forward.19} parent=35 // pred_region
        %s231 = smul.u32 8, %s19
        %p232 = scmp.lt.s32.totalorder %s20, 19
        %s233 = scalar_select %p232, %s20, 19
        %p234 = scmp.lt.s32.totalorder %s231, 7
        %s235 = scalar_select %p234, %s231, 7
        %s236 = smul.addr %s233, 8
        %s237 = sadd.s32 %s235, %s236
        %s238 = smul.addr %s237, 4
        %s239 = scalar_lea.vmem %s0, %s238
        %s240 = smul.u32 8, %s19
      $region40: #{dgcnn_forward.19} parent=35 // pred_fallthru
        _
    $region36: #{dgcnn_forward.19} parent=5 // pred_fallthru
      _
    %p241 = scmp.le.s32.totalorder 1, %s12
    %p242 = scmp.lt.s32.totalorder %s12, 21
    %p243 = pnand %p241, %p242
    %p244 = pneg %p243
    // Predicated region
    $region41: #{dgcnn_forward.19} parent=5 // pred_check
      _
    $region42: #{dgcnn_forward.19} parent=5 // pred_check_branch
      %246 = sbr.rel (%p243) target = $region44
    $region43: #{dgcnn_forward.19} parent=5 // pred_region
      %s247 = ssub.s32 %s12, 1
      %s248 = smul.u32 8, %s21
      %p249 = scmp.lt.s32.totalorder %s22, 19
      %s250 = scalar_select %p249, %s22, 19
      %p251 = scmp.lt.s32.totalorder %s248, 7
      %s252 = scalar_select %p251, %s248, 7
      %s253 = smul.addr %s250, 8
      %s254 = sadd.s32 %s252, %s253
      %s255 = smul.addr %s254, 4
      %s256 = scalar_lea.vmem %s0, %s255
      %p257 = pneg %p52
      %p258 = pneg %p49
      %s259 = smul.u32 8, %s21
      %p260 = scmp.lt.s32.totalorder %s259, 7
      %s261 = scalar_select %p260, %s259, 7
      %s262 = smul.addr %s261, 4
      %s263 = scalar_lea.vmem %s1, %s262
      %p264 = pneg %p78
      %p265 = pneg %p75
      %p266 = pneg %p99
      %p267 = pneg %p96
      %p268 = pneg %p120
      %p269 = pneg %p117
      %p270 = pneg %p141
      %p271 = pneg %p138
      %p272 = pneg %p162
      %p273 = pneg %p159
      %p274 = pneg %p188
      %p275 = pneg %p185
      %s276 = smul.u32 8, %s21
      %p277 = scmp.lt.s32.totalorder %s276, 7
      %s278 = scalar_select %p277, %s276, 7
      %s279 = smul.addr %s278, 8
      %s280 = scalar_lea.vmem %s6, %s279
      %s281 = smul.u32 8, %s21
      %p282 = scmp.lt.s32.totalorder %s22, 19
      %s283 = scalar_select %p282, %s22, 19
      %p284 = scmp.lt.s32.totalorder %s281, 7
      %s285 = scalar_select %p284, %s281, 7
      %s286 = smul.addr %s283, 8
      %s287 = sadd.s32 %s285, %s286
      %s288 = smul.addr %s287, 4
      %s289 = scalar_lea.vmem %s0, %s288
      %s290 = smul.u32 8, %s21
      %s291 = smul.u32 8, %s21
      %p292 = scmp.lt.s32.totalorder %s291, 7
      %s293 = scalar_select %p292, %s291, 7
      %s294 = smul.addr %s293, 4
      %s295 = scalar_lea.vmem %s1, %s294
      %s296 = smul.u32 8, %s21
      %s297 = smul.u32 8, %s21
      %p298 = scmp.lt.s32.totalorder %s297, 7
      %s299 = scalar_select %p298, %s297, 7
      %s300 = smul.addr %s299, 8
      %s301 = scalar_lea.vmem %s6, %s300
      %s302 = smul.u32 8, %s21
      %p304 = scmp.eq.s32.totalorder %s22, 0
      // Predicated region
      $region45: #{dgcnn_forward.19} parent=43 // pred_check
        %p305 = pneg %p304
      $region46: #{dgcnn_forward.19} parent=43 // pred_check_branch
        %307 = sbr.rel (%p305) target = $region48
      $region47: #{dgcnn_forward.19} parent=43 // pred_region
        %v308 = vld [vmem:[%s295] sm:$0xf]
        %v309 = vld [vmem:[%s295 + $0x4] sm:$0xf]
        %v310 = vld [vmem:[%s295 + $0x8] sm:$0xf]
        %v311 = vld [vmem:[%s295 + $0xc] sm:$0xf]
        %v312 = vld [vmem:[%s295 + $0x10] sm:$0xf]
        %v313 = vld [vmem:[%s295 + $0x14] sm:$0xf]
        %v314 = vld [vmem:[%s295 + $0x18] sm:$0xf]
        %v315 = vld [vmem:[%s295 + $0x1c] sm:$0xf]
        %v316 = vld [vmem:[%s3] sm:$0x3]
        %v325 = vunpack.c.l.b16 %v308
        %v326 = vunpack.c.l.b16 %v309
        %v327 = vunpack.c.l.b16 %v310
        %v328 = vunpack.c.l.b16 %v311
        %v329 = vunpack.c.l.b16 %v312
        %v330 = vunpack.c.l.b16 %v313
        %v331 = vunpack.c.l.b16 %v314
        %v332 = vunpack.c.l.b16 %v315
        %v333 = vpack.c.b16 %v326, %v325
        %v334 = vpack.c.b16 %v328, %v327
        %v335 = vpack.c.b16 %v330, %v329
        %v336 = vpack.c.b16 %v332, %v331
        %vm337 = vcmask 23552
        %v339 = vsel %vm337, %v333, 0
        %v342 = vsel %vm337, %v334, 0
        %v345 = vsel %vm337, %v335, 0
        %v348 = vsel %vm337, %v336, 0
        %vm350 = vcmask 1040384
        %vm351 = vcmask 1041408
        %v352 = vsel %vm350, 4294967295, 65535
        %v353 = vsel %vm351, %v352, 0
        %v355 = vand.u32 %v316, %v353
        %357 = vmatpush.bf16.msra.mxu0 0
        %358 = vmatpush.bf16.msra.mxu0 0
        %359 = vmatpush.bf16.msra.mxu0 0
        %360 = vmatpush.bf16.msra.mxu0 0
        %361 = vmatpush.bf16.msra.mxu0 0
        %362 = vmatpush.bf16.msra.mxu0 0
        %363 = vmatpush.bf16.msra.mxu0 0
        %364 = vmatpush.bf16.msra.mxu0 %v355
        %365 = vmatmul.bf16.gmra.mxu0 %v339
        %v366 = vpop.f32.mrf.mxu0
        %v367 = vadd.f32 0.0, %v366
        %v368 = vpop.f32.mrf.mxu0
        %v369 = vadd.f32 0.0, %v368
        %370 = vmatmul.bf16.gmra.mxu0 %v342
        %v371 = vpop.f32.mrf.mxu0
        %v372 = vadd.f32 0.0, %v371
        %v373 = vpop.f32.mrf.mxu0
        %v374 = vadd.f32 0.0, %v373
        %375 = vmatmul.bf16.gmra.mxu0 %v345
        %v376 = vpop.f32.mrf.mxu0
        %v377 = vadd.f32 0.0, %v376
        %v378 = vpop.f32.mrf.mxu0
        %v379 = vadd.f32 0.0, %v378
        %380 = vmatmul.bf16.gmra.mxu0 %v348
        %v381 = vpop.f32.mrf.mxu0
        %v382 = vadd.f32 0.0, %v381
        %v383 = vpop.f32.mrf.mxu0
        %v384 = vadd.f32 0.0, %v383
        %385 = vdwg.mxu0
        %vm386 = vcmask 523264
        %387 = vst.msk [vmem:[#allocation2] sm:$0xff] %vm386, %v367
        %388 = vst.msk [vmem:[#allocation2 + $0x8] sm:$0xff] %vm386, %v369
        %389 = vst.msk [vmem:[#allocation2 + $0x10] sm:$0xff] %vm386, %v372
        %390 = vst.msk [vmem:[#allocation2 + $0x18] sm:$0xff] %vm386, %v374
        %391 = vst.msk [vmem:[#allocation2 + $0x20] sm:$0xff] %vm386, %v377
        %392 = vst.msk [vmem:[#allocation2 + $0x28] sm:$0xff] %vm386, %v379
        %393 = vst.msk [vmem:[#allocation2 + $0x30] sm:$0xff] %vm386, %v382
        %394 = vst.msk [vmem:[#allocation2 + $0x38] sm:$0xff] %vm386, %v384
      $region48: #{dgcnn_forward.19} parent=43 // pred_fallthru
        _
      %v395 = vld [vmem:[%s289] sm:$0xf]
      %v396 = vld [vmem:[%s289 + $0x4] sm:$0xf]
      %v397 = vld [vmem:[%s289 + $0x8] sm:$0xf]
      %v398 = vld [vmem:[%s289 + $0xc] sm:$0xf]
      %v399 = vld [vmem:[%s289 + $0x10] sm:$0xf]
      %v400 = vld [vmem:[%s289 + $0x14] sm:$0xf]
      %v401 = vld [vmem:[%s289 + $0x18] sm:$0xf]
      %v402 = vld [vmem:[%s289 + $0x1c] sm:$0xf]
      %v403 = vld [vmem:[%s2] sm:$0x3]
      %v404 = vld [vmem:[#allocation2] sm:$0xff]
      %v405 = vld [vmem:[#allocation2 + $0x8] sm:$0xff]
      %v406 = vld [vmem:[#allocation2 + $0x10] sm:$0xff]
      %v407 = vld [vmem:[#allocation2 + $0x18] sm:$0xff]
      %v408 = vld [vmem:[#allocation2 + $0x20] sm:$0xff]
      %v409 = vld [vmem:[#allocation2 + $0x28] sm:$0xff]
      %v410 = vld [vmem:[#allocation2 + $0x30] sm:$0xff]
      %v411 = vld [vmem:[#allocation2 + $0x38] sm:$0xff]
      %v420 = vunpack.c.l.b16 %v395
      %v421 = vunpack.c.l.b16 %v396
      %v422 = vunpack.c.l.b16 %v397
      %v423 = vunpack.c.l.b16 %v398
      %v424 = vunpack.c.l.b16 %v399
      %v425 = vunpack.c.l.b16 %v400
      %v426 = vunpack.c.l.b16 %v401
      %v427 = vunpack.c.l.b16 %v402
      %v428 = vpack.c.b16 %v421, %v420
      %v429 = vpack.c.b16 %v423, %v422
      %v430 = vpack.c.b16 %v425, %v424
      %v431 = vpack.c.b16 %v427, %v426
      %vm432 = vcmask 23552
      %v434 = vsel %vm432, %v428, 0
      %v437 = vsel %vm432, %v429, 0
      %v440 = vsel %vm432, %v430, 0
      %v443 = vsel %vm432, %v431, 0
      %vm445 = vcmask 1040384
      %vm446 = vcmask 1041408
      %v447 = vsel %vm445, 4294967295, 65535
      %v448 = vsel %vm446, %v447, 0
      %v450 = vand.u32 %v403, %v448
      %452 = vmatpush.bf16.msra.mxu0 0
      %453 = vmatpush.bf16.msra.mxu0 0
      %454 = vmatpush.bf16.msra.mxu0 0
      %455 = vmatpush.bf16.msra.mxu0 0
      %456 = vmatpush.bf16.msra.mxu0 0
      %457 = vmatpush.bf16.msra.mxu0 0
      %458 = vmatpush.bf16.msra.mxu0 0
      %459 = vmatpush.bf16.msra.mxu0 %v450
      %460 = vmatmul.bf16.gmra.mxu0 %v434
      %v461 = vpop.f32.mrf.mxu0
      %v462 = vadd.f32 %v404, %v461
      %v463 = vpop.f32.mrf.mxu0
      %v464 = vadd.f32 %v405, %v463
      %465 = vmatmul.bf16.gmra.mxu0 %v437
      %v466 = vpop.f32.mrf.mxu0
      %v467 = vadd.f32 %v406, %v466
      %v468 = vpop.f32.mrf.mxu0
      %v469 = vadd.f32 %v407, %v468
      %470 = vmatmul.bf16.gmra.mxu0 %v440
      %v471 = vpop.f32.mrf.mxu0
      %v472 = vadd.f32 %v408, %v471
      %v473 = vpop.f32.mrf.mxu0
      %v474 = vadd.f32 %v409, %v473
      %475 = vmatmul.bf16.gmra.mxu0 %v443
      %v476 = vpop.f32.mrf.mxu0
      %v477 = vadd.f32 %v410, %v476
      %v478 = vpop.f32.mrf.mxu0
      %v479 = vadd.f32 %v411, %v478
      %480 = vdwg.mxu0
      %v481 = vld [vmem:[%s4] sm:$0x1]
      %v483 = vperm.slane %v481, 0
      %v485 = vmul.f32 %v462, %v483
      %v486 = vmul.f32 %v464, %v483
      %v487 = vmul.f32 %v467, %v483
      %v488 = vmul.f32 %v469, %v483
      %v489 = vmul.f32 %v472, %v483
      %v490 = vmul.f32 %v474, %v483
      %v491 = vmul.f32 %v477, %v483
      %v492 = vmul.f32 %v479, %v483
      %v493 = vld [vmem:[%s5] sm:$0x1]
      %v495 = vperm.slane %v493, 0
      %v497 = vadd.f32 %v485, %v495
      %v498 = vadd.f32 %v486, %v495
      %v499 = vadd.f32 %v487, %v495
      %v500 = vadd.f32 %v488, %v495
      %v501 = vadd.f32 %v489, %v495
      %v502 = vadd.f32 %v490, %v495
      %v503 = vadd.f32 %v491, %v495
      %v504 = vadd.f32 %v492, %v495
      %vm505 = vcmp.ge.f32.partialorder %v497, 0.0
      %vm506 = vcmp.ge.f32.partialorder %v498, 0.0
      %vm507 = vcmp.ge.f32.partialorder %v499, 0.0
      %vm508 = vcmp.ge.f32.partialorder %v500, 0.0
      %vm509 = vcmp.ge.f32.partialorder %v501, 0.0
      %vm510 = vcmp.ge.f32.partialorder %v502, 0.0
      %vm511 = vcmp.ge.f32.partialorder %v503, 0.0
      %vm512 = vcmp.ge.f32.partialorder %v504, 0.0
      %v513 = vmul.f32 %v497, 0.2
      %v514 = vmul.f32 %v498, 0.2
      %v515 = vmul.f32 %v499, 0.2
      %v516 = vmul.f32 %v500, 0.2
      %v517 = vmul.f32 %v501, 0.2
      %v518 = vmul.f32 %v502, 0.2
      %v519 = vmul.f32 %v503, 0.2
      %v520 = vmul.f32 %v504, 0.2
      %v521 = vsel %vm505, %v497, %v513
      %v522 = vsel %vm506, %v498, %v514
      %v523 = vsel %vm507, %v499, %v515
      %v524 = vsel %vm508, %v500, %v516
      %v525 = vsel %vm509, %v501, %v517
      %v526 = vsel %vm510, %v502, %v518
      %v527 = vsel %vm511, %v503, %v519
      %v528 = vsel %vm512, %v504, %v520
      // Predicated region
      $region49: #{dgcnn_forward.19} parent=43 // pred_check
        %p529 = pneg %p304
      $region50: #{dgcnn_forward.19} parent=43 // pred_check_branch
        %531 = sbr.rel (%p529) target = $region52
      $region51: #{dgcnn_forward.19} parent=43 // pred_region
        %vm532 = vcmask 523264
        %533 = vst.msk [vmem:[#allocation3] sm:$0xff] %vm532, %v521
        %534 = vst.msk [vmem:[#allocation3 + $0x8] sm:$0xff] %vm532, %v522
        %535 = vst.msk [vmem:[#allocation3 + $0x10] sm:$0xff] %vm532, %v523
        %536 = vst.msk [vmem:[#allocation3 + $0x18] sm:$0xff] %vm532, %v524
        %537 = vst.msk [vmem:[#allocation3 + $0x20] sm:$0xff] %vm532, %v525
        %538 = vst.msk [vmem:[#allocation3 + $0x28] sm:$0xff] %vm532, %v526
        %539 = vst.msk [vmem:[#allocation3 + $0x30] sm:$0xff] %vm532, %v527
        %540 = vst.msk [vmem:[#allocation3 + $0x38] sm:$0xff] %vm532, %v528
      $region52: #{dgcnn_forward.19} parent=43 // pred_fallthru
        _
      %p541 = scmp.gt.s32.totalorder %s22, 0
      // Predicated region
      $region53: #{dgcnn_forward.19} parent=43 // pred_check
        %p542 = pneg %p541
      $region54: #{dgcnn_forward.19} parent=43 // pred_check_branch
        %544 = sbr.rel (%p542) target = $region56
      $region55: #{dgcnn_forward.19} parent=43 // pred_region
        %v545 = vld [vmem:[#allocation3] sm:$0xff]
        %v546 = vld [vmem:[#allocation3 + $0x8] sm:$0xff]
        %v547 = vld [vmem:[#allocation3 + $0x10] sm:$0xff]
        %v548 = vld [vmem:[#allocation3 + $0x18] sm:$0xff]
        %v549 = vld [vmem:[#allocation3 + $0x20] sm:$0xff]
        %v550 = vld [vmem:[#allocation3 + $0x28] sm:$0xff]
        %v551 = vld [vmem:[#allocation3 + $0x30] sm:$0xff]
        %v552 = vld [vmem:[#allocation3 + $0x38] sm:$0xff]
        %v553 = vmax.f32 %v545, %v521
        %v554 = vmax.f32 %v546, %v522
        %v555 = vmax.f32 %v547, %v523
        %v556 = vmax.f32 %v548, %v524
        %v557 = vmax.f32 %v549, %v525
        %v558 = vmax.f32 %v550, %v526
        %v559 = vmax.f32 %v551, %v527
        %v560 = vmax.f32 %v552, %v528
        %vm561 = vcmask 523264
        %562 = vst.msk [vmem:[#allocation3] sm:$0xff] %vm561, %v553
        %563 = vst.msk [vmem:[#allocation3 + $0x8] sm:$0xff] %vm561, %v554
        %564 = vst.msk [vmem:[#allocation3 + $0x10] sm:$0xff] %vm561, %v555
        %565 = vst.msk [vmem:[#allocation3 + $0x18] sm:$0xff] %vm561, %v556
        %566 = vst.msk [vmem:[#allocation3 + $0x20] sm:$0xff] %vm561, %v557
        %567 = vst.msk [vmem:[#allocation3 + $0x28] sm:$0xff] %vm561, %v558
        %568 = vst.msk [vmem:[#allocation3 + $0x30] sm:$0xff] %vm561, %v559
        %569 = vst.msk [vmem:[#allocation3 + $0x38] sm:$0xff] %vm561, %v560
      $region56: #{dgcnn_forward.19} parent=43 // pred_fallthru
        _
      %p570 = scmp.eq.s32.totalorder %s22, 19
      // Predicated region
      $region57: #{dgcnn_forward.19} parent=43 // pred_check
        %p571 = pneg %p570
      $region58: #{dgcnn_forward.19} parent=43 // pred_check_branch
        %573 = sbr.rel (%p571) target = $region60
      $region59: #{dgcnn_forward.19} parent=43 // pred_region
        %v574 = vld [vmem:[#allocation3] sm:$0xff]
        %v575 = vld [vmem:[#allocation3 + $0x8] sm:$0xff]
        %v576 = vld [vmem:[#allocation3 + $0x10] sm:$0xff]
        %v577 = vld [vmem:[#allocation3 + $0x18] sm:$0xff]
        %v578 = vld [vmem:[#allocation3 + $0x20] sm:$0xff]
        %v579 = vld [vmem:[#allocation3 + $0x28] sm:$0xff]
        %v580 = vld [vmem:[#allocation3 + $0x30] sm:$0xff]
        %v581 = vld [vmem:[#allocation3 + $0x38] sm:$0xff]
        %vm582 = vcmask 523264
        %583 = vst.msk [vmem:[%s301] sm:$0xff] %vm582, %v574
        %584 = vst.msk [vmem:[%s301 + $0x8] sm:$0xff] %vm582, %v575
        %585 = vst.msk [vmem:[%s301 + $0x10] sm:$0xff] %vm582, %v576
        %586 = vst.msk [vmem:[%s301 + $0x18] sm:$0xff] %vm582, %v577
        %587 = vst.msk [vmem:[%s301 + $0x20] sm:$0xff] %vm582, %v578
        %588 = vst.msk [vmem:[%s301 + $0x28] sm:$0xff] %vm582, %v579
        %589 = vst.msk [vmem:[%s301 + $0x30] sm:$0xff] %vm582, %v580
        %590 = vst.msk [vmem:[%s301 + $0x38] sm:$0xff] %vm582, %v581
      $region60: #{dgcnn_forward.19} parent=43 // pred_fallthru
        _
      %s591 = smul.u32 8, %s21
      %p592 = scmp.lt.s32.totalorder %s591, 7
      %s593 = scalar_select %p592, %s591, 7
      %s594 = smul.addr %s593, 8
      %s595 = scalar_lea.vmem %s6, %s594
      // Predicated region
      $region61: #{dgcnn_forward.19} parent=43 // pred_check
        %p596 = pneg %p185
      $region62: #{dgcnn_forward.19} parent=43 // pred_check_branch
        %598 = sbr.rel (%p596) target = $region64
      $region63: #{dgcnn_forward.19} parent=43 // pred_region
        %s599 = smul.u32 8, %s21
      $region64: #{dgcnn_forward.19} parent=43 // pred_fallthru
        _
      // Predicated region
      $region65: #{dgcnn_forward.19} parent=43 // pred_check
        %p600 = pneg %p185
      $region66: #{dgcnn_forward.19} parent=43 // pred_check_branch
        %602 = sbr.rel (%p600) target = $region68
      $region67: #{dgcnn_forward.19} parent=43 // pred_region
        %s603 = smul.u32 8, %s21
        %p604 = scmp.lt.s32.totalorder %s603, 7
        %s605 = scalar_select %p604, %s603, 7
        %s606 = smul.addr %s605, 8
        %s607 = scalar_lea.vmem %s6, %s606
      $region68: #{dgcnn_forward.19} parent=43 // pred_fallthru
        _
    $region44: #{dgcnn_forward.19} parent=5 // pred_fallthru
      _
    %p608 = scmp.le.s32.totalorder 2, %s12
    // Predicated region
    $region69: #{dgcnn_forward.19} parent=5 // pred_check
      %p609 = pneg %p608
    $region70: #{dgcnn_forward.19} parent=5 // pred_check_branch
      %611 = sbr.rel (%p609) target = $region72
    $region71: #{dgcnn_forward.19} parent=5 // pred_region
      %s612 = ssub.s32 %s12, 2
    $region72: #{dgcnn_forward.19} parent=5 // pred_fallthru
      _
  $region6: #{dgcnn_forward.19} parent=0 // loop_footer
    %s16 = sadd.s32 1, %s12
  $region7: #{dgcnn_forward.19} parent=0 // loop_footer_branch
    %11 = sbr.rel target = $region3
  $region8: #{dgcnn_forward.19} parent=0 // loop_exit
    _

// kernel: dgcnn_forward.21
$region0: #{dgcnn_forward.21}
  #allocation0 [shape = 'u32[]', space=smem, size = 0x4, offset = 0x4, fixed_abs, tag = 'smem constant byte address 0x4 - core index']
  #allocation1 [shape = 'u32[72,128]{1,0:T(1,128)}', space=vmem, size = 0x9000, scoped, tag = 'internal scratch']
  #allocation2 [shape = 'f32[64,64]{1,0:T(8,128)}', space=vmem, size = 0x8000, scoped, tag = 'scratch operand']
  #allocation3 [shape = 'f32[64,64]{1,0:T(8,128)}', space=vmem, size = 0x8000, scoped, tag = 'scratch operand']
  %s0 = inlined_call_operand.vmem [shape: bf16[20,64,64], index: 0, kind: input, shape index: {}]
  %s1 = inlined_call_operand.vmem [shape: bf16[64,64], index: 1, kind: input, shape index: {}]
  %s2 = inlined_call_operand.vmem [shape: bf16[64,64], index: 2, kind: input, shape index: {}]
  %s3 = inlined_call_operand.vmem [shape: bf16[64,64], index: 3, kind: input, shape index: {}]
  %s4 = inlined_call_operand.vmem [shape: f32[1,64], index: 4, kind: input, shape index: {}]
  %s5 = inlined_call_operand.vmem [shape: f32[1,64], index: 5, kind: input, shape index: {}]
  %s6 = inlined_call_operand.vmem [shape: f32[64,64], index: 6, kind: output, shape index: {}]
  %s7 = sld [smem:[#allocation0]]
  $region73: #{dgcnn_forward.21} parent=0
    _
  %s9 = ssub.s32 1, %s7
  %s10 = scalar_select 0, %s9, %s7
  loop: start=0, step=1, limit=22
  $region2: #{dgcnn_forward.21} parent=0 // loop_pre_header
    _
  $region3: #{dgcnn_forward.21} parent=0 // loop_header
    %s12 = sphi 0, %s16
    %p13 = scmp.ge.s32.totalorder %s12, 22
    %s19 = sphi 0, %s31
    %s20 = sphi 0, %s27
    %s21 = sphi 0, %s19
    %s22 = sphi 0, %s20
    %s23 = sphi 0, %s21
    %s24 = sphi 0, %s22
    %s36 = sphi 0, %s38
    %s39 = sphi 0, %s36
    %s40 = sphi 0, %s39
    %s56 = sphi 0, %s40
    %s62 = sphi 0, %s64
    %s65 = sphi 0, %s62
    %s66 = sphi 0, %s65
    %s82 = sphi 0, %s66
    %s86 = sphi 0, %s86
    %s88 = sphi 0, %s86
    %s89 = sphi 0, %s88
    %s103 = sphi 0, %s89
    %s107 = sphi 0, %s107
    %s109 = sphi 0, %s107
    %s110 = sphi 0, %s109
    %s124 = sphi 0, %s110
    %s128 = sphi 0, %s128
    %s130 = sphi 0, %s128
    %s131 = sphi 0, %s130
    %s145 = sphi 0, %s131
    %s149 = sphi 0, %s149
    %s151 = sphi 0, %s149
    %s152 = sphi 0, %s151
    %s166 = sphi 0, %s152
    %s172 = sphi 0, %s174
    %s175 = sphi 0, %s172
    %s176 = sphi 0, %s175
    %s192 = sphi 0, %s176
  $region4: #{dgcnn_forward.21} parent=0 // loop_header_branch
    %15 = sbr.rel (%p13) target = $region8
  $region5: #{dgcnn_forward.21} parent=0 // loop_body
    %s17 = ssub.s32 %s12, 1
    %s18 = ssub.s32 %s12, 2
    %s25 = sadd.s32 1, %s20
    %p26 = scmp.ge.s32.totalorder %s25, 20
    %s27 = scalar_select %p26, 0, %s25
    %s28 = sadd.s32 1, %s19
    %s29 = scalar_select %p26, %s28, %s19
    %p30 = scmp.ge.s32.totalorder %s29, 1
    %s31 = scalar_select %p30, 0, %s29
    %s32 = ssub.s32 %s20, %s27
    %s33 = ssub.s32 %s19, %s31
    %s34 = sor.u32 %s32, %s33
    %p35 = scmp.eq.s32.totalorder %s34, 0
    %s37 = sadd.s32 %s36, 1
    %s38 = scalar_select %p35, %s36, %s37
    %p41 = pneg %p35
    %p42 = scmp.eq.s32.totalorder %s12, 19
    %p43 = por %p41, %p42
    %p44 = scmp.ne.s32.totalorder %s36, %s39
    %p45 = scmp.eq.s32.totalorder %s12, 0
    %p46 = por %p44, %p45
    %p47 = scmp.ne.s32.totalorder %s36, %s39
    %p48 = scmp.eq.s32.totalorder %s17, 19
    %p49 = por %p47, %p48
    %p50 = scmp.ne.s32.totalorder %s39, %s40
    %p51 = scmp.eq.s32.totalorder %s17, 0
    %p52 = por %p50, %p51
    %p53 = scmp.ne.s32.totalorder %s39, %s40
    %p54 = scmp.eq.s32.totalorder %s18, 19
    %p55 = por %p53, %p54
    %p57 = scmp.ne.s32.totalorder %s40, %s56
    %p58 = scmp.eq.s32.totalorder %s18, 0
    %p59 = por %p57, %p58
    %s60 = ssub.s32 %s19, %s31
    %p61 = scmp.eq.s32.totalorder %s60, 0
    %s63 = sadd.s32 %s62, 1
    %s64 = scalar_select %p61, %s62, %s63
    %p67 = pneg %p61
    %p68 = scmp.eq.s32.totalorder %s12, 19
    %p69 = por %p67, %p68
    %p70 = scmp.ne.s32.totalorder %s62, %s65
    %p71 = scmp.eq.s32.totalorder %s12, 0
    %p72 = por %p70, %p71
    %p73 = scmp.ne.s32.totalorder %s62, %s65
    %p74 = scmp.eq.s32.totalorder %s17, 19
    %p75 = por %p73, %p74
    %p76 = scmp.ne.s32.totalorder %s65, %s66
    %p77 = scmp.eq.s32.totalorder %s17, 0
    %p78 = por %p76, %p77
    %p79 = scmp.ne.s32.totalorder %s65, %s66
    %p80 = scmp.eq.s32.totalorder %s18, 19
    %p81 = por %p79, %p80
    %p83 = scmp.ne.s32.totalorder %s66, %s82
    %p84 = scmp.eq.s32.totalorder %s18, 0
    %p85 = por %p83, %p84
    %s87 = sadd.s32 %s86, 1
    %p90 = scmp.eq.s32.totalorder %s12, 19
    %p91 = scmp.ne.s32.totalorder %s86, %s88
    %p92 = scmp.eq.s32.totalorder %s12, 0
    %p93 = por %p91, %p92
    %p94 = scmp.ne.s32.totalorder %s86, %s88
    %p95 = scmp.eq.s32.totalorder %s17, 19
    %p96 = por %p94, %p95
    %p97 = scmp.ne.s32.totalorder %s88, %s89
    %p98 = scmp.eq.s32.totalorder %s17, 0
    %p99 = por %p97, %p98
    %p100 = scmp.ne.s32.totalorder %s88, %s89
    %p101 = scmp.eq.s32.totalorder %s18, 19
    %p102 = por %p100, %p101
    %p104 = scmp.ne.s32.totalorder %s89, %s103
    %p105 = scmp.eq.s32.totalorder %s18, 0
    %p106 = por %p104, %p105
    %s108 = sadd.s32 %s107, 1
    %p111 = scmp.eq.s32.totalorder %s12, 19
    %p112 = scmp.ne.s32.totalorder %s107, %s109
    %p113 = scmp.eq.s32.totalorder %s12, 0
    %p114 = por %p112, %p113
    %p115 = scmp.ne.s32.totalorder %s107, %s109
    %p116 = scmp.eq.s32.totalorder %s17, 19
    %p117 = por %p115, %p116
    %p118 = scmp.ne.s32.totalorder %s109, %s110
    %p119 = scmp.eq.s32.totalorder %s17, 0
    %p120 = por %p118, %p119
    %p121 = scmp.ne.s32.totalorder %s109, %s110
    %p122 = scmp.eq.s32.totalorder %s18, 19
    %p123 = por %p121, %p122
    %p125 = scmp.ne.s32.totalorder %s110, %s124
    %p126 = scmp.eq.s32.totalorder %s18, 0
    %p127 = por %p125, %p126
    %s129 = sadd.s32 %s128, 1
    %p132 = scmp.eq.s32.totalorder %s12, 19
    %p133 = scmp.ne.s32.totalorder %s128, %s130
    %p134 = scmp.eq.s32.totalorder %s12, 0
    %p135 = por %p133, %p134
    %p136 = scmp.ne.s32.totalorder %s128, %s130
    %p137 = scmp.eq.s32.totalorder %s17, 19
    %p138 = por %p136, %p137
    %p139 = scmp.ne.s32.totalorder %s130, %s131
    %p140 = scmp.eq.s32.totalorder %s17, 0
    %p141 = por %p139, %p140
    %p142 = scmp.ne.s32.totalorder %s130, %s131
    %p143 = scmp.eq.s32.totalorder %s18, 19
    %p144 = por %p142, %p143
    %p146 = scmp.ne.s32.totalorder %s131, %s145
    %p147 = scmp.eq.s32.totalorder %s18, 0
    %p148 = por %p146, %p147
    %s150 = sadd.s32 %s149, 1
    %p153 = scmp.eq.s32.totalorder %s12, 19
    %p154 = scmp.ne.s32.totalorder %s149, %s151
    %p155 = scmp.eq.s32.totalorder %s12, 0
    %p156 = por %p154, %p155
    %p157 = scmp.ne.s32.totalorder %s149, %s151
    %p158 = scmp.eq.s32.totalorder %s17, 19
    %p159 = por %p157, %p158
    %p160 = scmp.ne.s32.totalorder %s151, %s152
    %p161 = scmp.eq.s32.totalorder %s17, 0
    %p162 = por %p160, %p161
    %p163 = scmp.ne.s32.totalorder %s151, %s152
    %p164 = scmp.eq.s32.totalorder %s18, 19
    %p165 = por %p163, %p164
    %p167 = scmp.ne.s32.totalorder %s152, %s166
    %p168 = scmp.eq.s32.totalorder %s18, 0
    %p169 = por %p167, %p168
    %s170 = ssub.s32 %s19, %s31
    %p171 = scmp.eq.s32.totalorder %s170, 0
    %s173 = sadd.s32 %s172, 1
    %s174 = scalar_select %p171, %s172, %s173
    %p177 = pneg %p171
    %p178 = scmp.eq.s32.totalorder %s12, 19
    %p179 = por %p177, %p178
    %p180 = scmp.ne.s32.totalorder %s172, %s175
    %p181 = scmp.eq.s32.totalorder %s12, 0
    %p182 = por %p180, %p181
    %p183 = scmp.ne.s32.totalorder %s172, %s175
    %p184 = scmp.eq.s32.totalorder %s17, 19
    %p185 = por %p183, %p184
    %p186 = scmp.ne.s32.totalorder %s175, %s176
    %p187 = scmp.eq.s32.totalorder %s17, 0
    %p188 = por %p186, %p187
    %p189 = scmp.ne.s32.totalorder %s175, %s176
    %p190 = scmp.eq.s32.totalorder %s18, 19
    %p191 = por %p189, %p190
    %p193 = scmp.ne.s32.totalorder %s176, %s192
    %p194 = scmp.eq.s32.totalorder %s18, 0
    %p195 = por %p193, %p194
    %p196 = scmp.le.s32.totalorder 1, %s12
    %p197 = scmp.lt.s32.totalorder %s12, 21
    %p198 = pnand %p196, %p197
    %p199 = pneg %p198
    // Predicated region
    $region9: #{dgcnn_forward.21} parent=5 // pred_check
      _
    $region10: #{dgcnn_forward.21} parent=5 // pred_check_branch
      %201 = sbr.rel (%p198) target = $region12
    $region11: #{dgcnn_forward.21} parent=5 // pred_region
      %s202 = ssub.s32 %s12, 1
      // Predicated region
      $region13: #{dgcnn_forward.21} parent=11 // pred_check
        %p203 = pneg %p78
      $region14: #{dgcnn_forward.21} parent=11 // pred_check_branch
        %205 = sbr.rel (%p203) target = $region16
      $region15: #{dgcnn_forward.21} parent=11 // pred_region
        %s206 = smul.u32 8, %s21
        %p207 = scmp.lt.s32.totalorder %s206, 7
        %s208 = scalar_select %p207, %s206, 7
        %s209 = smul.addr %s208, 4
        %s210 = scalar_lea.vmem %s1, %s209
        %s211 = smul.u32 8, %s21
      $region16: #{dgcnn_forward.21} parent=11 // pred_fallthru
        _
      // Predicated region
      $region17: #{dgcnn_forward.21} parent=11 // pred_check
        %p212 = pneg %p99
      $region18: #{dgcnn_forward.21} parent=11 // pred_check_branch
        %214 = sbr.rel (%p212) target = $region20
      $region19: #{dgcnn_forward.21} parent=11 // pred_region
        _
      $region20: #{dgcnn_forward.21} parent=11 // pred_fallthru
        _
      // Predicated region
      $region21: #{dgcnn_forward.21} parent=11 // pred_check
        %p215 = pneg %p120
      $region22: #{dgcnn_forward.21} parent=11 // pred_check_branch
        %217 = sbr.rel (%p215) target = $region24
      $region23: #{dgcnn_forward.21} parent=11 // pred_region
        _
      $region24: #{dgcnn_forward.21} parent=11 // pred_fallthru
        _
      // Predicated region
      $region25: #{dgcnn_forward.21} parent=11 // pred_check
        %p218 = pneg %p141
      $region26: #{dgcnn_forward.21} parent=11 // pred_check_branch
        %220 = sbr.rel (%p218) target = $region28
      $region27: #{dgcnn_forward.21} parent=11 // pred_region
        _
      $region28: #{dgcnn_forward.21} parent=11 // pred_fallthru
        _
      // Predicated region
      $region29: #{dgcnn_forward.21} parent=11 // pred_check
        %p221 = pneg %p162
      $region30: #{dgcnn_forward.21} parent=11 // pred_check_branch
        %223 = sbr.rel (%p221) target = $region32
      $region31: #{dgcnn_forward.21} parent=11 // pred_region
        _
      $region32: #{dgcnn_forward.21} parent=11 // pred_fallthru
        _
    $region12: #{dgcnn_forward.21} parent=5 // pred_fallthru
      _
    %p224 = scmp.lt.s32.totalorder %s12, 20
    // Predicated region
    $region33: #{dgcnn_forward.21} parent=5 // pred_check
      %p225 = pneg %p224
    $region34: #{dgcnn_forward.21} parent=5 // pred_check_branch
      %227 = sbr.rel (%p225) target = $region36
    $region35: #{dgcnn_forward.21} parent=5 // pred_region
      // Predicated region
      $region37: #{dgcnn_forward.21} parent=35 // pred_check
        %p228 = pneg %p46
      $region38: #{dgcnn_forward.21} parent=35 // pred_check_branch
        %230 = sbr.rel (%p228) target = $region40
      $region39: #{dgcnn_forward.21} parent=35 // pred_region
        %s231 = smul.u32 8, %s19
        %p232 = scmp.lt.s32.totalorder %s20, 19
        %s233 = scalar_select %p232, %s20, 19
        %p234 = scmp.lt.s32.totalorder %s231, 7
        %s235 = scalar_select %p234, %s231, 7
        %s236 = smul.addr %s233, 8
        %s237 = sadd.s32 %s235, %s236
        %s238 = smul.addr %s237, 4
        %s239 = scalar_lea.vmem %s0, %s238
        %s240 = smul.u32 8, %s19
      $region40: #{dgcnn_forward.21} parent=35 // pred_fallthru
        _
    $region36: #{dgcnn_forward.21} parent=5 // pred_fallthru
      _
    %p241 = scmp.le.s32.totalorder 1, %s12
    %p242 = scmp.lt.s32.totalorder %s12, 21
    %p243 = pnand %p241, %p242
    %p244 = pneg %p243
    // Predicated region
    $region41: #{dgcnn_forward.21} parent=5 // pred_check
      _
    $region42: #{dgcnn_forward.21} parent=5 // pred_check_branch
      %246 = sbr.rel (%p243) target = $region44
    $region43: #{dgcnn_forward.21} parent=5 // pred_region
      %s247 = ssub.s32 %s12, 1
      %s248 = smul.u32 8, %s21
      %p249 = scmp.lt.s32.totalorder %s22, 19
      %s250 = scalar_select %p249, %s22, 19
      %p251 = scmp.lt.s32.totalorder %s248, 7
      %s252 = scalar_select %p251, %s248, 7
      %s253 = smul.addr %s250, 8
      %s254 = sadd.s32 %s252, %s253
      %s255 = smul.addr %s254, 4
      %s256 = scalar_lea.vmem %s0, %s255
      %p257 = pneg %p52
      %p258 = pneg %p49
      %s259 = smul.u32 8, %s21
      %p260 = scmp.lt.s32.totalorder %s259, 7
      %s261 = scalar_select %p260, %s259, 7
      %s262 = smul.addr %s261, 4
      %s263 = scalar_lea.vmem %s1, %s262
      %p264 = pneg %p78
      %p265 = pneg %p75
      %p266 = pneg %p99
      %p267 = pneg %p96
      %p268 = pneg %p120
      %p269 = pneg %p117
      %p270 = pneg %p141
      %p271 = pneg %p138
      %p272 = pneg %p162
      %p273 = pneg %p159
      %p274 = pneg %p188
      %p275 = pneg %p185
      %s276 = smul.u32 8, %s21
      %p277 = scmp.lt.s32.totalorder %s276, 7
      %s278 = scalar_select %p277, %s276, 7
      %s279 = smul.addr %s278, 8
      %s280 = scalar_lea.vmem %s6, %s279
      %s281 = smul.u32 8, %s21
      %p282 = scmp.lt.s32.totalorder %s22, 19
      %s283 = scalar_select %p282, %s22, 19
      %p284 = scmp.lt.s32.totalorder %s281, 7
      %s285 = scalar_select %p284, %s281, 7
      %s286 = smul.addr %s283, 8
      %s287 = sadd.s32 %s285, %s286
      %s288 = smul.addr %s287, 4
      %s289 = scalar_lea.vmem %s0, %s288
      %s290 = smul.u32 8, %s21
      %s291 = smul.u32 8, %s21
      %p292 = scmp.lt.s32.totalorder %s291, 7
      %s293 = scalar_select %p292, %s291, 7
      %s294 = smul.addr %s293, 4
      %s295 = scalar_lea.vmem %s1, %s294
      %s296 = smul.u32 8, %s21
      %s297 = smul.u32 8, %s21
      %p298 = scmp.lt.s32.totalorder %s297, 7
      %s299 = scalar_select %p298, %s297, 7
      %s300 = smul.addr %s299, 8
      %s301 = scalar_lea.vmem %s6, %s300
      %s302 = smul.u32 8, %s21
      %p304 = scmp.eq.s32.totalorder %s22, 0
      // Predicated region
      $region45: #{dgcnn_forward.21} parent=43 // pred_check
        %p305 = pneg %p304
      $region46: #{dgcnn_forward.21} parent=43 // pred_check_branch
        %307 = sbr.rel (%p305) target = $region48
      $region47: #{dgcnn_forward.21} parent=43 // pred_region
        %v308 = vld [vmem:[%s295] sm:$0xf]
        %v309 = vld [vmem:[%s295 + $0x4] sm:$0xf]
        %v310 = vld [vmem:[%s295 + $0x8] sm:$0xf]
        %v311 = vld [vmem:[%s295 + $0xc] sm:$0xf]
        %v312 = vld [vmem:[%s295 + $0x10] sm:$0xf]
        %v313 = vld [vmem:[%s295 + $0x14] sm:$0xf]
        %v314 = vld [vmem:[%s295 + $0x18] sm:$0xf]
        %v315 = vld [vmem:[%s295 + $0x1c] sm:$0xf]
        %v316 = vld [vmem:[%s3] sm:$0xf]
        %v317 = vld [vmem:[%s3 + $0x4] sm:$0xf]
        %v318 = vld [vmem:[%s3 + $0x8] sm:$0xf]
        %v319 = vld [vmem:[%s3 + $0xc] sm:$0xf]
        %v320 = vld [vmem:[%s3 + $0x10] sm:$0xf]
        %v321 = vld [vmem:[%s3 + $0x14] sm:$0xf]
        %v322 = vld [vmem:[%s3 + $0x18] sm:$0xf]
        %v323 = vld [vmem:[%s3 + $0x1c] sm:$0xf]
        %v332 = vunpack.c.l.b16 %v308
        %v333 = vunpack.c.l.b16 %v309
        %v334 = vunpack.c.l.b16 %v310
        %v335 = vunpack.c.l.b16 %v311
        %v336 = vunpack.c.l.b16 %v312
        %v337 = vunpack.c.l.b16 %v313
        %v338 = vunpack.c.l.b16 %v314
        %v339 = vunpack.c.l.b16 %v315
        %v340 = vpack.c.b16 %v333, %v332
        %v341 = vpack.c.b16 %v335, %v334
        %v342 = vpack.c.b16 %v337, %v336
        %v343 = vpack.c.b16 %v339, %v338
        %v352 = vunpack.c.l.b16 %v316
        %v353 = vunpack.c.l.b16 %v317
        %v354 = vunpack.c.l.b16 %v318
        %v355 = vunpack.c.l.b16 %v319
        %v356 = vunpack.c.l.b16 %v320
        %v357 = vunpack.c.l.b16 %v321
        %v358 = vunpack.c.l.b16 %v322
        %v359 = vunpack.c.l.b16 %v323
        %v360 = vpack.c.b16 %v353, %v352
        %v361 = vpack.c.b16 %v355, %v354
        %v362 = vpack.c.b16 %v357, %v356
        %v363 = vpack.c.b16 %v359, %v358
        %vm368 = vcmask 523264
        %v370 = vsel %vm368, %v340, 0
        %v373 = vsel %vm368, %v341, 0
        %v376 = vsel %vm368, %v342, 0
        %v379 = vsel %vm368, %v343, 0
        %381 = vmatpush.bf16.msra.mxu0 0
        %382 = vmatpush.bf16.msra.mxu0 0
        %383 = vmatpush.bf16.msra.mxu0 0
        %384 = vmatpush.bf16.msra.mxu0 0
        %385 = vmatpush.bf16.msra.mxu0 %v363
        %386 = vmatpush.bf16.msra.mxu0 %v362
        %387 = vmatpush.bf16.msra.mxu0 %v361
        %388 = vmatpush.bf16.msra.mxu0 %v360
        %389 = vmatmul.bf16.gmra.mxu0 %v370
        %v390 = vpop.f32.mrf.mxu0
        %v391 = vadd.f32 0.0, %v390
        %v392 = vpop.f32.mrf.mxu0
        %v393 = vadd.f32 0.0, %v392
        %394 = vmatmul.bf16.gmra.mxu0 %v373
        %v395 = vpop.f32.mrf.mxu0
        %v396 = vadd.f32 0.0, %v395
        %v397 = vpop.f32.mrf.mxu0
        %v398 = vadd.f32 0.0, %v397
        %399 = vmatmul.bf16.gmra.mxu0 %v376
        %v400 = vpop.f32.mrf.mxu0
        %v401 = vadd.f32 0.0, %v400
        %v402 = vpop.f32.mrf.mxu0
        %v403 = vadd.f32 0.0, %v402
        %404 = vmatmul.bf16.gmra.mxu0 %v379
        %v405 = vpop.f32.mrf.mxu0
        %v406 = vadd.f32 0.0, %v405
        %v407 = vpop.f32.mrf.mxu0
        %v408 = vadd.f32 0.0, %v407
        %409 = vdwg.mxu0
        %410 = vst.msk [vmem:[#allocation2] sm:$0xff] %vm368, %v391
        %411 = vst.msk [vmem:[#allocation2 + $0x8] sm:$0xff] %vm368, %v393
        %412 = vst.msk [vmem:[#allocation2 + $0x10] sm:$0xff] %vm368, %v396
        %413 = vst.msk [vmem:[#allocation2 + $0x18] sm:$0xff] %vm368, %v398
        %414 = vst.msk [vmem:[#allocation2 + $0x20] sm:$0xff] %vm368, %v401
        %415 = vst.msk [vmem:[#allocation2 + $0x28] sm:$0xff] %vm368, %v403
        %416 = vst.msk [vmem:[#allocation2 + $0x30] sm:$0xff] %vm368, %v406
        %417 = vst.msk [vmem:[#allocation2 + $0x38] sm:$0xff] %vm368, %v408
      $region48: #{dgcnn_forward.21} parent=43 // pred_fallthru
        _
      %v418 = vld [vmem:[%s289] sm:$0xf]
      %v419 = vld [vmem:[%s289 + $0x4] sm:$0xf]
      %v420 = vld [vmem:[%s289 + $0x8] sm:$0xf]
      %v421 = vld [vmem:[%s289 + $0xc] sm:$0xf]
      %v422 = vld [vmem:[%s289 + $0x10] sm:$0xf]
      %v423 = vld [vmem:[%s289 + $0x14] sm:$0xf]
      %v424 = vld [vmem:[%s289 + $0x18] sm:$0xf]
      %v425 = vld [vmem:[%s289 + $0x1c] sm:$0xf]
      %v426 = vld [vmem:[%s2] sm:$0xf]
      %v427 = vld [vmem:[%s2 + $0x4] sm:$0xf]
      %v428 = vld [vmem:[%s2 + $0x8] sm:$0xf]
      %v429 = vld [vmem:[%s2 + $0xc] sm:$0xf]
      %v430 = vld [vmem:[%s2 + $0x10] sm:$0xf]
      %v431 = vld [vmem:[%s2 + $0x14] sm:$0xf]
      %v432 = vld [vmem:[%s2 + $0x18] sm:$0xf]
      %v433 = vld [vmem:[%s2 + $0x1c] sm:$0xf]
      %v434 = vld [vmem:[#allocation2] sm:$0xff]
      %v435 = vld [vmem:[#allocation2 + $0x8] sm:$0xff]
      %v436 = vld [vmem:[#allocation2 + $0x10] sm:$0xff]
      %v437 = vld [vmem:[#allocation2 + $0x18] sm:$0xff]
      %v438 = vld [vmem:[#allocation2 + $0x20] sm:$0xff]
      %v439 = vld [vmem:[#allocation2 + $0x28] sm:$0xff]
      %v440 = vld [vmem:[#allocation2 + $0x30] sm:$0xff]
      %v441 = vld [vmem:[#allocation2 + $0x38] sm:$0xff]
      %v450 = vunpack.c.l.b16 %v418
      %v451 = vunpack.c.l.b16 %v419
      %v452 = vunpack.c.l.b16 %v420
      %v453 = vunpack.c.l.b16 %v421
      %v454 = vunpack.c.l.b16 %v422
      %v455 = vunpack.c.l.b16 %v423
      %v456 = vunpack.c.l.b16 %v424
      %v457 = vunpack.c.l.b16 %v425
      %v458 = vpack.c.b16 %v451, %v450
      %v459 = vpack.c.b16 %v453, %v452
      %v460 = vpack.c.b16 %v455, %v454
      %v461 = vpack.c.b16 %v457, %v456
      %v470 = vunpack.c.l.b16 %v426
      %v471 = vunpack.c.l.b16 %v427
      %v472 = vunpack.c.l.b16 %v428
      %v473 = vunpack.c.l.b16 %v429
      %v474 = vunpack.c.l.b16 %v430
      %v475 = vunpack.c.l.b16 %v431
      %v476 = vunpack.c.l.b16 %v432
      %v477 = vunpack.c.l.b16 %v433
      %v478 = vpack.c.b16 %v471, %v470
      %v479 = vpack.c.b16 %v473, %v472
      %v480 = vpack.c.b16 %v475, %v474
      %v481 = vpack.c.b16 %v477, %v476
      %vm486 = vcmask 523264
      %v488 = vsel %vm486, %v458, 0
      %v491 = vsel %vm486, %v459, 0
      %v494 = vsel %vm486, %v460, 0
      %v497 = vsel %vm486, %v461, 0
      %499 = vmatpush.bf16.msra.mxu0 0
      %500 = vmatpush.bf16.msra.mxu0 0
      %501 = vmatpush.bf16.msra.mxu0 0
      %502 = vmatpush.bf16.msra.mxu0 0
      %503 = vmatpush.bf16.msra.mxu0 %v481
      %504 = vmatpush.bf16.msra.mxu0 %v480
      %505 = vmatpush.bf16.msra.mxu0 %v479
      %506 = vmatpush.bf16.msra.mxu0 %v478
      %507 = vmatmul.bf16.gmra.mxu0 %v488
      %v508 = vpop.f32.mrf.mxu0
      %v509 = vadd.f32 %v434, %v508
      %v510 = vpop.f32.mrf.mxu0
      %v511 = vadd.f32 %v435, %v510
      %512 = vmatmul.bf16.gmra.mxu0 %v491
      %v513 = vpop.f32.mrf.mxu0
      %v514 = vadd.f32 %v436, %v513
      %v515 = vpop.f32.mrf.mxu0
      %v516 = vadd.f32 %v437, %v515
      %517 = vmatmul.bf16.gmra.mxu0 %v494
      %v518 = vpop.f32.mrf.mxu0
      %v519 = vadd.f32 %v438, %v518
      %v520 = vpop.f32.mrf.mxu0
      %v521 = vadd.f32 %v439, %v520
      %522 = vmatmul.bf16.gmra.mxu0 %v497
      %v523 = vpop.f32.mrf.mxu0
      %v524 = vadd.f32 %v440, %v523
      %v525 = vpop.f32.mrf.mxu0
      %v526 = vadd.f32 %v441, %v525
      %527 = vdwg.mxu0
      %v528 = vld [vmem:[%s4] sm:$0x1]
      %v530 = vperm.slane %v528, 0
      %v532 = vmul.f32 %v509, %v530
      %v533 = vmul.f32 %v511, %v530
      %v534 = vmul.f32 %v514, %v530
      %v535 = vmul.f32 %v516, %v530
      %v536 = vmul.f32 %v519, %v530
      %v537 = vmul.f32 %v521, %v530
      %v538 = vmul.f32 %v524, %v530
      %v539 = vmul.f32 %v526, %v530
      %v540 = vld [vmem:[%s5] sm:$0x1]
      %v542 = vperm.slane %v540, 0
      %v544 = vadd.f32 %v532, %v542
      %v545 = vadd.f32 %v533, %v542
      %v546 = vadd.f32 %v534, %v542
      %v547 = vadd.f32 %v535, %v542
      %v548 = vadd.f32 %v536, %v542
      %v549 = vadd.f32 %v537, %v542
      %v550 = vadd.f32 %v538, %v542
      %v551 = vadd.f32 %v539, %v542
      %vm552 = vcmp.ge.f32.partialorder %v544, 0.0
      %vm553 = vcmp.ge.f32.partialorder %v545, 0.0
      %vm554 = vcmp.ge.f32.partialorder %v546, 0.0
      %vm555 = vcmp.ge.f32.partialorder %v547, 0.0
      %vm556 = vcmp.ge.f32.partialorder %v548, 0.0
      %vm557 = vcmp.ge.f32.partialorder %v549, 0.0
      %vm558 = vcmp.ge.f32.partialorder %v550, 0.0
      %vm559 = vcmp.ge.f32.partialorder %v551, 0.0
      %v560 = vmul.f32 %v544, 0.2
      %v561 = vmul.f32 %v545, 0.2
      %v562 = vmul.f32 %v546, 0.2
      %v563 = vmul.f32 %v547, 0.2
      %v564 = vmul.f32 %v548, 0.2
      %v565 = vmul.f32 %v549, 0.2
      %v566 = vmul.f32 %v550, 0.2
      %v567 = vmul.f32 %v551, 0.2
      %v568 = vsel %vm552, %v544, %v560
      %v569 = vsel %vm553, %v545, %v561
      %v570 = vsel %vm554, %v546, %v562
      %v571 = vsel %vm555, %v547, %v563
      %v572 = vsel %vm556, %v548, %v564
      %v573 = vsel %vm557, %v549, %v565
      %v574 = vsel %vm558, %v550, %v566
      %v575 = vsel %vm559, %v551, %v567
      // Predicated region
      $region49: #{dgcnn_forward.21} parent=43 // pred_check
        %p576 = pneg %p304
      $region50: #{dgcnn_forward.21} parent=43 // pred_check_branch
        %578 = sbr.rel (%p576) target = $region52
      $region51: #{dgcnn_forward.21} parent=43 // pred_region
        %579 = vst.msk [vmem:[#allocation3] sm:$0xff] %vm486, %v568
        %580 = vst.msk [vmem:[#allocation3 + $0x8] sm:$0xff] %vm486, %v569
        %581 = vst.msk [vmem:[#allocation3 + $0x10] sm:$0xff] %vm486, %v570
        %582 = vst.msk [vmem:[#allocation3 + $0x18] sm:$0xff] %vm486, %v571
        %583 = vst.msk [vmem:[#allocation3 + $0x20] sm:$0xff] %vm486, %v572
        %584 = vst.msk [vmem:[#allocation3 + $0x28] sm:$0xff] %vm486, %v573
        %585 = vst.msk [vmem:[#allocation3 + $0x30] sm:$0xff] %vm486, %v574
        %586 = vst.msk [vmem:[#allocation3 + $0x38] sm:$0xff] %vm486, %v575
      $region52: #{dgcnn_forward.21} parent=43 // pred_fallthru
        _
      %p587 = scmp.gt.s32.totalorder %s22, 0
      // Predicated region
      $region53: #{dgcnn_forward.21} parent=43 // pred_check
        %p588 = pneg %p587
      $region54: #{dgcnn_forward.21} parent=43 // pred_check_branch
        %590 = sbr.rel (%p588) target = $region56
      $region55: #{dgcnn_forward.21} parent=43 // pred_region
        %v591 = vld [vmem:[#allocation3] sm:$0xff]
        %v592 = vld [vmem:[#allocation3 + $0x8] sm:$0xff]
        %v593 = vld [vmem:[#allocation3 + $0x10] sm:$0xff]
        %v594 = vld [vmem:[#allocation3 + $0x18] sm:$0xff]
        %v595 = vld [vmem:[#allocation3 + $0x20] sm:$0xff]
        %v596 = vld [vmem:[#allocation3 + $0x28] sm:$0xff]
        %v597 = vld [vmem:[#allocation3 + $0x30] sm:$0xff]
        %v598 = vld [vmem:[#allocation3 + $0x38] sm:$0xff]
        %v599 = vmax.f32 %v591, %v568
        %v600 = vmax.f32 %v592, %v569
        %v601 = vmax.f32 %v593, %v570
        %v602 = vmax.f32 %v594, %v571
        %v603 = vmax.f32 %v595, %v572
        %v604 = vmax.f32 %v596, %v573
        %v605 = vmax.f32 %v597, %v574
        %v606 = vmax.f32 %v598, %v575
        %607 = vst.msk [vmem:[#allocation3] sm:$0xff] %vm486, %v599
        %608 = vst.msk [vmem:[#allocation3 + $0x8] sm:$0xff] %vm486, %v600
        %609 = vst.msk [vmem:[#allocation3 + $0x10] sm:$0xff] %vm486, %v601
        %610 = vst.msk [vmem:[#allocation3 + $0x18] sm:$0xff] %vm486, %v602
        %611 = vst.msk [vmem:[#allocation3 + $0x20] sm:$0xff] %vm486, %v603
        %612 = vst.msk [vmem:[#allocation3 + $0x28] sm:$0xff] %vm486, %v604
        %613 = vst.msk [vmem:[#allocation3 + $0x30] sm:$0xff] %vm486, %v605
        %614 = vst.msk [vmem:[#allocation3 + $0x38] sm:$0xff] %vm486, %v606
      $region56: #{dgcnn_forward.21} parent=43 // pred_fallthru
        _
      %p615 = scmp.eq.s32.totalorder %s22, 19
      // Predicated region
      $region57: #{dgcnn_forward.21} parent=43 // pred_check
        %p616 = pneg %p615
      $region58: #{dgcnn_forward.21} parent=43 // pred_check_branch
        %618 = sbr.rel (%p616) target = $region60
      $region59: #{dgcnn_forward.21} parent=43 // pred_region
        %v619 = vld [vmem:[#allocation3] sm:$0xff]
        %v620 = vld [vmem:[#allocation3 + $0x8] sm:$0xff]
        %v621 = vld [vmem:[#allocation3 + $0x10] sm:$0xff]
        %v622 = vld [vmem:[#allocation3 + $0x18] sm:$0xff]
        %v623 = vld [vmem:[#allocation3 + $0x20] sm:$0xff]
        %v624 = vld [vmem:[#allocation3 + $0x28] sm:$0xff]
        %v625 = vld [vmem:[#allocation3 + $0x30] sm:$0xff]
        %v626 = vld [vmem:[#allocation3 + $0x38] sm:$0xff]
        %627 = vst.msk [vmem:[%s301] sm:$0xff] %vm486, %v619
        %628 = vst.msk [vmem:[%s301 + $0x8] sm:$0xff] %vm486, %v620
        %629 = vst.msk [vmem:[%s301 + $0x10] sm:$0xff] %vm486, %v621
        %630 = vst.msk [vmem:[%s301 + $0x18] sm:$0xff] %vm486, %v622
        %631 = vst.msk [vmem:[%s301 + $0x20] sm:$0xff] %vm486, %v623
        %632 = vst.msk [vmem:[%s301 + $0x28] sm:$0xff] %vm486, %v624
        %633 = vst.msk [vmem:[%s301 + $0x30] sm:$0xff] %vm486, %v625
        %634 = vst.msk [vmem:[%s301 + $0x38] sm:$0xff] %vm486, %v626
      $region60: #{dgcnn_forward.21} parent=43 // pred_fallthru
        _
      %s635 = smul.u32 8, %s21
      %p636 = scmp.lt.s32.totalorder %s635, 7
      %s637 = scalar_select %p636, %s635, 7
      %s638 = smul.addr %s637, 8
      %s639 = scalar_lea.vmem %s6, %s638
      // Predicated region
      $region61: #{dgcnn_forward.21} parent=43 // pred_check
        %p640 = pneg %p185
      $region62: #{dgcnn_forward.21} parent=43 // pred_check_branch
        %642 = sbr.rel (%p640) target = $region64
      $region63: #{dgcnn_forward.21} parent=43 // pred_region
        %s643 = smul.u32 8, %s21
      $region64: #{dgcnn_forward.21} parent=43 // pred_fallthru
        _
      // Predicated region
      $region65: #{dgcnn_forward.21} parent=43 // pred_check
        %p644 = pneg %p185
      $region66: #{dgcnn_forward.21} parent=43 // pred_check_branch
        %646 = sbr.rel (%p644) target = $region68
      $region67: #{dgcnn_forward.21} parent=43 // pred_region
        %s647 = smul.u32 8, %s21
        %p648 = scmp.lt.s32.totalorder %s647, 7
        %s649 = scalar_select %p648, %s647, 7
        %s650 = smul.addr %s649, 8
        %s651 = scalar_lea.vmem %s6, %s650
      $region68: #{dgcnn_forward.21} parent=43 // pred_fallthru
        _
    $region44: #{dgcnn_forward.21} parent=5 // pred_fallthru
      _
    %p652 = scmp.le.s32.totalorder 2, %s12
    // Predicated region
    $region69: #{dgcnn_forward.21} parent=5 // pred_check
      %p653 = pneg %p652
    $region70: #{dgcnn_forward.21} parent=5 // pred_check_branch
      %655 = sbr.rel (%p653) target = $region72
    $region71: #{dgcnn_forward.21} parent=5 // pred_region
      %s656 = ssub.s32 %s12, 2
    $region72: #{dgcnn_forward.21} parent=5 // pred_fallthru
      _
  $region6: #{dgcnn_forward.21} parent=0 // loop_footer
    %s16 = sadd.s32 1, %s12
  $region7: #{dgcnn_forward.21} parent=0 // loop_footer_branch
    %11 = sbr.rel target = $region3
  $region8: #{dgcnn_forward.21} parent=0 // loop_exit
    _

// kernel: dgcnn_forward.23
$region0: #{dgcnn_forward.23}
  #allocation0 [shape = 'u32[]', space=smem, size = 0x4, offset = 0x4, fixed_abs, tag = 'smem constant byte address 0x4 - core index']
  #allocation1 [shape = 'u32[72,128]{1,0:T(1,128)}', space=vmem, size = 0x9000, scoped, tag = 'internal scratch']
  #allocation2 [shape = 'f32[64,128]{1,0:T(8,128)}', space=vmem, size = 0x8000, scoped, tag = 'scratch operand']
  #allocation3 [shape = 'f32[64,128]{1,0:T(8,128)}', space=vmem, size = 0x8000, scoped, tag = 'scratch operand']
  %s0 = inlined_call_operand.vmem [shape: bf16[20,64,64], index: 0, kind: input, shape index: {}]
  %s1 = inlined_call_operand.vmem [shape: bf16[64,64], index: 1, kind: input, shape index: {}]
  %s2 = inlined_call_operand.vmem [shape: bf16[64,128], index: 2, kind: input, shape index: {}]
  %s3 = inlined_call_operand.vmem [shape: bf16[64,128], index: 3, kind: input, shape index: {}]
  %s4 = inlined_call_operand.vmem [shape: f32[1,128], index: 4, kind: input, shape index: {}]
  %s5 = inlined_call_operand.vmem [shape: f32[1,128], index: 5, kind: input, shape index: {}]
  %s6 = inlined_call_operand.vmem [shape: f32[64,128], index: 6, kind: output, shape index: {}]
  %s7 = sld [smem:[#allocation0]]
  $region73: #{dgcnn_forward.23} parent=0
    _
  %s9 = ssub.s32 1, %s7
  %s10 = scalar_select 0, %s9, %s7
  loop: start=0, step=1, limit=22
  $region2: #{dgcnn_forward.23} parent=0 // loop_pre_header
    _
  $region3: #{dgcnn_forward.23} parent=0 // loop_header
    %s12 = sphi 0, %s16
    %p13 = scmp.ge.s32.totalorder %s12, 22
    %s19 = sphi 0, %s31
    %s20 = sphi 0, %s27
    %s21 = sphi 0, %s19
    %s22 = sphi 0, %s20
    %s23 = sphi 0, %s21
    %s24 = sphi 0, %s22
    %s36 = sphi 0, %s38
    %s39 = sphi 0, %s36
    %s40 = sphi 0, %s39
    %s56 = sphi 0, %s40
    %s62 = sphi 0, %s64
    %s65 = sphi 0, %s62
    %s66 = sphi 0, %s65
    %s82 = sphi 0, %s66
    %s86 = sphi 0, %s86
    %s88 = sphi 0, %s86
    %s89 = sphi 0, %s88
    %s103 = sphi 0, %s89
    %s107 = sphi 0, %s107
    %s109 = sphi 0, %s107
    %s110 = sphi 0, %s109
    %s124 = sphi 0, %s110
    %s128 = sphi 0, %s128
    %s130 = sphi 0, %s128
    %s131 = sphi 0, %s130
    %s145 = sphi 0, %s131
    %s149 = sphi 0, %s149
    %s151 = sphi 0, %s149
    %s152 = sphi 0, %s151
    %s166 = sphi 0, %s152
    %s172 = sphi 0, %s174
    %s175 = sphi 0, %s172
    %s176 = sphi 0, %s175
    %s192 = sphi 0, %s176
  $region4: #{dgcnn_forward.23} parent=0 // loop_header_branch
    %15 = sbr.rel (%p13) target = $region8
  $region5: #{dgcnn_forward.23} parent=0 // loop_body
    %s17 = ssub.s32 %s12, 1
    %s18 = ssub.s32 %s12, 2
    %s25 = sadd.s32 1, %s20
    %p26 = scmp.ge.s32.totalorder %s25, 20
    %s27 = scalar_select %p26, 0, %s25
    %s28 = sadd.s32 1, %s19
    %s29 = scalar_select %p26, %s28, %s19
    %p30 = scmp.ge.s32.totalorder %s29, 1
    %s31 = scalar_select %p30, 0, %s29
    %s32 = ssub.s32 %s20, %s27
    %s33 = ssub.s32 %s19, %s31
    %s34 = sor.u32 %s32, %s33
    %p35 = scmp.eq.s32.totalorder %s34, 0
    %s37 = sadd.s32 %s36, 1
    %s38 = scalar_select %p35, %s36, %s37
    %p41 = pneg %p35
    %p42 = scmp.eq.s32.totalorder %s12, 19
    %p43 = por %p41, %p42
    %p44 = scmp.ne.s32.totalorder %s36, %s39
    %p45 = scmp.eq.s32.totalorder %s12, 0
    %p46 = por %p44, %p45
    %p47 = scmp.ne.s32.totalorder %s36, %s39
    %p48 = scmp.eq.s32.totalorder %s17, 19
    %p49 = por %p47, %p48
    %p50 = scmp.ne.s32.totalorder %s39, %s40
    %p51 = scmp.eq.s32.totalorder %s17, 0
    %p52 = por %p50, %p51
    %p53 = scmp.ne.s32.totalorder %s39, %s40
    %p54 = scmp.eq.s32.totalorder %s18, 19
    %p55 = por %p53, %p54
    %p57 = scmp.ne.s32.totalorder %s40, %s56
    %p58 = scmp.eq.s32.totalorder %s18, 0
    %p59 = por %p57, %p58
    %s60 = ssub.s32 %s19, %s31
    %p61 = scmp.eq.s32.totalorder %s60, 0
    %s63 = sadd.s32 %s62, 1
    %s64 = scalar_select %p61, %s62, %s63
    %p67 = pneg %p61
    %p68 = scmp.eq.s32.totalorder %s12, 19
    %p69 = por %p67, %p68
    %p70 = scmp.ne.s32.totalorder %s62, %s65
    %p71 = scmp.eq.s32.totalorder %s12, 0
    %p72 = por %p70, %p71
    %p73 = scmp.ne.s32.totalorder %s62, %s65
    %p74 = scmp.eq.s32.totalorder %s17, 19
    %p75 = por %p73, %p74
    %p76 = scmp.ne.s32.totalorder %s65, %s66
    %p77 = scmp.eq.s32.totalorder %s17, 0
    %p78 = por %p76, %p77
    %p79 = scmp.ne.s32.totalorder %s65, %s66
    %p80 = scmp.eq.s32.totalorder %s18, 19
    %p81 = por %p79, %p80
    %p83 = scmp.ne.s32.totalorder %s66, %s82
    %p84 = scmp.eq.s32.totalorder %s18, 0
    %p85 = por %p83, %p84
    %s87 = sadd.s32 %s86, 1
    %p90 = scmp.eq.s32.totalorder %s12, 19
    %p91 = scmp.ne.s32.totalorder %s86, %s88
    %p92 = scmp.eq.s32.totalorder %s12, 0
    %p93 = por %p91, %p92
    %p94 = scmp.ne.s32.totalorder %s86, %s88
    %p95 = scmp.eq.s32.totalorder %s17, 19
    %p96 = por %p94, %p95
    %p97 = scmp.ne.s32.totalorder %s88, %s89
    %p98 = scmp.eq.s32.totalorder %s17, 0
    %p99 = por %p97, %p98
    %p100 = scmp.ne.s32.totalorder %s88, %s89
    %p101 = scmp.eq.s32.totalorder %s18, 19
    %p102 = por %p100, %p101
    %p104 = scmp.ne.s32.totalorder %s89, %s103
    %p105 = scmp.eq.s32.totalorder %s18, 0
    %p106 = por %p104, %p105
    %s108 = sadd.s32 %s107, 1
    %p111 = scmp.eq.s32.totalorder %s12, 19
    %p112 = scmp.ne.s32.totalorder %s107, %s109
    %p113 = scmp.eq.s32.totalorder %s12, 0
    %p114 = por %p112, %p113
    %p115 = scmp.ne.s32.totalorder %s107, %s109
    %p116 = scmp.eq.s32.totalorder %s17, 19
    %p117 = por %p115, %p116
    %p118 = scmp.ne.s32.totalorder %s109, %s110
    %p119 = scmp.eq.s32.totalorder %s17, 0
    %p120 = por %p118, %p119
    %p121 = scmp.ne.s32.totalorder %s109, %s110
    %p122 = scmp.eq.s32.totalorder %s18, 19
    %p123 = por %p121, %p122
    %p125 = scmp.ne.s32.totalorder %s110, %s124
    %p126 = scmp.eq.s32.totalorder %s18, 0
    %p127 = por %p125, %p126
    %s129 = sadd.s32 %s128, 1
    %p132 = scmp.eq.s32.totalorder %s12, 19
    %p133 = scmp.ne.s32.totalorder %s128, %s130
    %p134 = scmp.eq.s32.totalorder %s12, 0
    %p135 = por %p133, %p134
    %p136 = scmp.ne.s32.totalorder %s128, %s130
    %p137 = scmp.eq.s32.totalorder %s17, 19
    %p138 = por %p136, %p137
    %p139 = scmp.ne.s32.totalorder %s130, %s131
    %p140 = scmp.eq.s32.totalorder %s17, 0
    %p141 = por %p139, %p140
    %p142 = scmp.ne.s32.totalorder %s130, %s131
    %p143 = scmp.eq.s32.totalorder %s18, 19
    %p144 = por %p142, %p143
    %p146 = scmp.ne.s32.totalorder %s131, %s145
    %p147 = scmp.eq.s32.totalorder %s18, 0
    %p148 = por %p146, %p147
    %s150 = sadd.s32 %s149, 1
    %p153 = scmp.eq.s32.totalorder %s12, 19
    %p154 = scmp.ne.s32.totalorder %s149, %s151
    %p155 = scmp.eq.s32.totalorder %s12, 0
    %p156 = por %p154, %p155
    %p157 = scmp.ne.s32.totalorder %s149, %s151
    %p158 = scmp.eq.s32.totalorder %s17, 19
    %p159 = por %p157, %p158
    %p160 = scmp.ne.s32.totalorder %s151, %s152
    %p161 = scmp.eq.s32.totalorder %s17, 0
    %p162 = por %p160, %p161
    %p163 = scmp.ne.s32.totalorder %s151, %s152
    %p164 = scmp.eq.s32.totalorder %s18, 19
    %p165 = por %p163, %p164
    %p167 = scmp.ne.s32.totalorder %s152, %s166
    %p168 = scmp.eq.s32.totalorder %s18, 0
    %p169 = por %p167, %p168
    %s170 = ssub.s32 %s19, %s31
    %p171 = scmp.eq.s32.totalorder %s170, 0
    %s173 = sadd.s32 %s172, 1
    %s174 = scalar_select %p171, %s172, %s173
    %p177 = pneg %p171
    %p178 = scmp.eq.s32.totalorder %s12, 19
    %p179 = por %p177, %p178
    %p180 = scmp.ne.s32.totalorder %s172, %s175
    %p181 = scmp.eq.s32.totalorder %s12, 0
    %p182 = por %p180, %p181
    %p183 = scmp.ne.s32.totalorder %s172, %s175
    %p184 = scmp.eq.s32.totalorder %s17, 19
    %p185 = por %p183, %p184
    %p186 = scmp.ne.s32.totalorder %s175, %s176
    %p187 = scmp.eq.s32.totalorder %s17, 0
    %p188 = por %p186, %p187
    %p189 = scmp.ne.s32.totalorder %s175, %s176
    %p190 = scmp.eq.s32.totalorder %s18, 19
    %p191 = por %p189, %p190
    %p193 = scmp.ne.s32.totalorder %s176, %s192
    %p194 = scmp.eq.s32.totalorder %s18, 0
    %p195 = por %p193, %p194
    %p196 = scmp.le.s32.totalorder 1, %s12
    %p197 = scmp.lt.s32.totalorder %s12, 21
    %p198 = pnand %p196, %p197
    %p199 = pneg %p198
    // Predicated region
    $region9: #{dgcnn_forward.23} parent=5 // pred_check
      _
    $region10: #{dgcnn_forward.23} parent=5 // pred_check_branch
      %201 = sbr.rel (%p198) target = $region12
    $region11: #{dgcnn_forward.23} parent=5 // pred_region
      %s202 = ssub.s32 %s12, 1
      // Predicated region
      $region13: #{dgcnn_forward.23} parent=11 // pred_check
        %p203 = pneg %p78
      $region14: #{dgcnn_forward.23} parent=11 // pred_check_branch
        %205 = sbr.rel (%p203) target = $region16
      $region15: #{dgcnn_forward.23} parent=11 // pred_region
        %s206 = smul.u32 8, %s21
        %p207 = scmp.lt.s32.totalorder %s206, 7
        %s208 = scalar_select %p207, %s206, 7
        %s209 = smul.addr %s208, 4
        %s210 = scalar_lea.vmem %s1, %s209
        %s211 = smul.u32 8, %s21
      $region16: #{dgcnn_forward.23} parent=11 // pred_fallthru
        _
      // Predicated region
      $region17: #{dgcnn_forward.23} parent=11 // pred_check
        %p212 = pneg %p99
      $region18: #{dgcnn_forward.23} parent=11 // pred_check_branch
        %214 = sbr.rel (%p212) target = $region20
      $region19: #{dgcnn_forward.23} parent=11 // pred_region
        _
      $region20: #{dgcnn_forward.23} parent=11 // pred_fallthru
        _
      // Predicated region
      $region21: #{dgcnn_forward.23} parent=11 // pred_check
        %p215 = pneg %p120
      $region22: #{dgcnn_forward.23} parent=11 // pred_check_branch
        %217 = sbr.rel (%p215) target = $region24
      $region23: #{dgcnn_forward.23} parent=11 // pred_region
        _
      $region24: #{dgcnn_forward.23} parent=11 // pred_fallthru
        _
      // Predicated region
      $region25: #{dgcnn_forward.23} parent=11 // pred_check
        %p218 = pneg %p141
      $region26: #{dgcnn_forward.23} parent=11 // pred_check_branch
        %220 = sbr.rel (%p218) target = $region28
      $region27: #{dgcnn_forward.23} parent=11 // pred_region
        _
      $region28: #{dgcnn_forward.23} parent=11 // pred_fallthru
        _
      // Predicated region
      $region29: #{dgcnn_forward.23} parent=11 // pred_check
        %p221 = pneg %p162
      $region30: #{dgcnn_forward.23} parent=11 // pred_check_branch
        %223 = sbr.rel (%p221) target = $region32
      $region31: #{dgcnn_forward.23} parent=11 // pred_region
        _
      $region32: #{dgcnn_forward.23} parent=11 // pred_fallthru
        _
    $region12: #{dgcnn_forward.23} parent=5 // pred_fallthru
      _
    %p224 = scmp.lt.s32.totalorder %s12, 20
    // Predicated region
    $region33: #{dgcnn_forward.23} parent=5 // pred_check
      %p225 = pneg %p224
    $region34: #{dgcnn_forward.23} parent=5 // pred_check_branch
      %227 = sbr.rel (%p225) target = $region36
    $region35: #{dgcnn_forward.23} parent=5 // pred_region
      // Predicated region
      $region37: #{dgcnn_forward.23} parent=35 // pred_check
        %p228 = pneg %p46
      $region38: #{dgcnn_forward.23} parent=35 // pred_check_branch
        %230 = sbr.rel (%p228) target = $region40
      $region39: #{dgcnn_forward.23} parent=35 // pred_region
        %s231 = smul.u32 8, %s19
        %p232 = scmp.lt.s32.totalorder %s20, 19
        %s233 = scalar_select %p232, %s20, 19
        %p234 = scmp.lt.s32.totalorder %s231, 7
        %s235 = scalar_select %p234, %s231, 7
        %s236 = smul.addr %s233, 8
        %s237 = sadd.s32 %s235, %s236
        %s238 = smul.addr %s237, 4
        %s239 = scalar_lea.vmem %s0, %s238
        %s240 = smul.u32 8, %s19
      $region40: #{dgcnn_forward.23} parent=35 // pred_fallthru
        _
    $region36: #{dgcnn_forward.23} parent=5 // pred_fallthru
      _
    %p241 = scmp.le.s32.totalorder 1, %s12
    %p242 = scmp.lt.s32.totalorder %s12, 21
    %p243 = pnand %p241, %p242
    %p244 = pneg %p243
    // Predicated region
    $region41: #{dgcnn_forward.23} parent=5 // pred_check
      _
    $region42: #{dgcnn_forward.23} parent=5 // pred_check_branch
      %246 = sbr.rel (%p243) target = $region44
    $region43: #{dgcnn_forward.23} parent=5 // pred_region
      %s247 = ssub.s32 %s12, 1
      %s248 = smul.u32 8, %s21
      %p249 = scmp.lt.s32.totalorder %s22, 19
      %s250 = scalar_select %p249, %s22, 19
      %p251 = scmp.lt.s32.totalorder %s248, 7
      %s252 = scalar_select %p251, %s248, 7
      %s253 = smul.addr %s250, 8
      %s254 = sadd.s32 %s252, %s253
      %s255 = smul.addr %s254, 4
      %s256 = scalar_lea.vmem %s0, %s255
      %p257 = pneg %p52
      %p258 = pneg %p49
      %s259 = smul.u32 8, %s21
      %p260 = scmp.lt.s32.totalorder %s259, 7
      %s261 = scalar_select %p260, %s259, 7
      %s262 = smul.addr %s261, 4
      %s263 = scalar_lea.vmem %s1, %s262
      %p264 = pneg %p78
      %p265 = pneg %p75
      %p266 = pneg %p99
      %p267 = pneg %p96
      %p268 = pneg %p120
      %p269 = pneg %p117
      %p270 = pneg %p141
      %p271 = pneg %p138
      %p272 = pneg %p162
      %p273 = pneg %p159
      %p274 = pneg %p188
      %p275 = pneg %p185
      %s276 = smul.u32 8, %s21
      %p277 = scmp.lt.s32.totalorder %s276, 7
      %s278 = scalar_select %p277, %s276, 7
      %s279 = smul.addr %s278, 8
      %s280 = scalar_lea.vmem %s6, %s279
      %s281 = smul.u32 8, %s21
      %p282 = scmp.lt.s32.totalorder %s22, 19
      %s283 = scalar_select %p282, %s22, 19
      %p284 = scmp.lt.s32.totalorder %s281, 7
      %s285 = scalar_select %p284, %s281, 7
      %s286 = smul.addr %s283, 8
      %s287 = sadd.s32 %s285, %s286
      %s288 = smul.addr %s287, 4
      %s289 = scalar_lea.vmem %s0, %s288
      %s290 = smul.u32 8, %s21
      %s291 = smul.u32 8, %s21
      %p292 = scmp.lt.s32.totalorder %s291, 7
      %s293 = scalar_select %p292, %s291, 7
      %s294 = smul.addr %s293, 4
      %s295 = scalar_lea.vmem %s1, %s294
      %s296 = smul.u32 8, %s21
      %s297 = smul.u32 8, %s21
      %p298 = scmp.lt.s32.totalorder %s297, 7
      %s299 = scalar_select %p298, %s297, 7
      %s300 = smul.addr %s299, 8
      %s301 = scalar_lea.vmem %s6, %s300
      %s302 = smul.u32 8, %s21
      %p304 = scmp.eq.s32.totalorder %s22, 0
      // Predicated region
      $region45: #{dgcnn_forward.23} parent=43 // pred_check
        %p305 = pneg %p304
      $region46: #{dgcnn_forward.23} parent=43 // pred_check_branch
        %307 = sbr.rel (%p305) target = $region48
      $region47: #{dgcnn_forward.23} parent=43 // pred_region
        %v308 = vld [vmem:[%s295] sm:$0xf]
        %v309 = vld [vmem:[%s295 + $0x4] sm:$0xf]
        %v310 = vld [vmem:[%s295 + $0x8] sm:$0xf]
        %v311 = vld [vmem:[%s295 + $0xc] sm:$0xf]
        %v312 = vld [vmem:[%s295 + $0x10] sm:$0xf]
        %v313 = vld [vmem:[%s295 + $0x14] sm:$0xf]
        %v314 = vld [vmem:[%s295 + $0x18] sm:$0xf]
        %v315 = vld [vmem:[%s295 + $0x1c] sm:$0xf]
        %v316 = vld [vmem:[%s3] sm:$0xf]
        %v317 = vld [vmem:[%s3 + $0x4] sm:$0xf]
        %v318 = vld [vmem:[%s3 + $0x8] sm:$0xf]
        %v319 = vld [vmem:[%s3 + $0xc] sm:$0xf]
        %v320 = vld [vmem:[%s3 + $0x10] sm:$0xf]
        %v321 = vld [vmem:[%s3 + $0x14] sm:$0xf]
        %v322 = vld [vmem:[%s3 + $0x18] sm:$0xf]
        %v323 = vld [vmem:[%s3 + $0x1c] sm:$0xf]
        %v332 = vunpack.c.l.b16 %v308
        %v333 = vunpack.c.l.b16 %v309
        %v334 = vunpack.c.l.b16 %v310
        %v335 = vunpack.c.l.b16 %v311
        %v336 = vunpack.c.l.b16 %v312
        %v337 = vunpack.c.l.b16 %v313
        %v338 = vunpack.c.l.b16 %v314
        %v339 = vunpack.c.l.b16 %v315
        %v340 = vpack.c.b16 %v333, %v332
        %v341 = vpack.c.b16 %v335, %v334
        %v342 = vpack.c.b16 %v337, %v336
        %v343 = vpack.c.b16 %v339, %v338
        %v352 = vunpack.c.l.b16 %v316
        %v353 = vunpack.c.l.b16 %v317
        %v354 = vunpack.c.l.b16 %v318
        %v355 = vunpack.c.l.b16 %v319
        %v356 = vunpack.c.l.b16 %v320
        %v357 = vunpack.c.l.b16 %v321
        %v358 = vunpack.c.l.b16 %v322
        %v359 = vunpack.c.l.b16 %v323
        %v360 = vpack.c.b16 %v353, %v352
        %v361 = vpack.c.b16 %v355, %v354
        %v362 = vpack.c.b16 %v357, %v356
        %v363 = vpack.c.b16 %v359, %v358
        %vm368 = vcmask 523264
        %v370 = vsel %vm368, %v340, 0
        %v373 = vsel %vm368, %v341, 0
        %v376 = vsel %vm368, %v342, 0
        %v379 = vsel %vm368, %v343, 0
        %381 = vmatpush.bf16.msra.mxu0 0
        %382 = vmatpush.bf16.msra.mxu0 0
        %383 = vmatpush.bf16.msra.mxu0 0
        %384 = vmatpush.bf16.msra.mxu0 0
        %385 = vmatpush.bf16.msra.mxu0 %v363
        %386 = vmatpush.bf16.msra.mxu0 %v362
        %387 = vmatpush.bf16.msra.mxu0 %v361
        %388 = vmatpush.bf16.msra.mxu0 %v360
        %389 = vmatmul.bf16.gmra.mxu0 %v370
        %v390 = vpop.f32.mrf.mxu0
        %v391 = vadd.f32 0.0, %v390
        %v392 = vpop.f32.mrf.mxu0
        %v393 = vadd.f32 0.0, %v392
        %394 = vmatmul.bf16.gmra.mxu0 %v373
        %v395 = vpop.f32.mrf.mxu0
        %v396 = vadd.f32 0.0, %v395
        %v397 = vpop.f32.mrf.mxu0
        %v398 = vadd.f32 0.0, %v397
        %399 = vmatmul.bf16.gmra.mxu0 %v376
        %v400 = vpop.f32.mrf.mxu0
        %v401 = vadd.f32 0.0, %v400
        %v402 = vpop.f32.mrf.mxu0
        %v403 = vadd.f32 0.0, %v402
        %404 = vmatmul.bf16.gmra.mxu0 %v379
        %v405 = vpop.f32.mrf.mxu0
        %v406 = vadd.f32 0.0, %v405
        %v407 = vpop.f32.mrf.mxu0
        %v408 = vadd.f32 0.0, %v407
        %409 = vdwg.mxu0
        %410 = vst [vmem:[#allocation2] sm:$0xff] %v391
        %411 = vst [vmem:[#allocation2 + $0x8] sm:$0xff] %v393
        %412 = vst [vmem:[#allocation2 + $0x10] sm:$0xff] %v396
        %413 = vst [vmem:[#allocation2 + $0x18] sm:$0xff] %v398
        %414 = vst [vmem:[#allocation2 + $0x20] sm:$0xff] %v401
        %415 = vst [vmem:[#allocation2 + $0x28] sm:$0xff] %v403
        %416 = vst [vmem:[#allocation2 + $0x30] sm:$0xff] %v406
        %417 = vst [vmem:[#allocation2 + $0x38] sm:$0xff] %v408
      $region48: #{dgcnn_forward.23} parent=43 // pred_fallthru
        _
      %v418 = vld [vmem:[%s289] sm:$0xf]
      %v419 = vld [vmem:[%s289 + $0x4] sm:$0xf]
      %v420 = vld [vmem:[%s289 + $0x8] sm:$0xf]
      %v421 = vld [vmem:[%s289 + $0xc] sm:$0xf]
      %v422 = vld [vmem:[%s289 + $0x10] sm:$0xf]
      %v423 = vld [vmem:[%s289 + $0x14] sm:$0xf]
      %v424 = vld [vmem:[%s289 + $0x18] sm:$0xf]
      %v425 = vld [vmem:[%s289 + $0x1c] sm:$0xf]
      %v426 = vld [vmem:[%s2] sm:$0xf]
      %v427 = vld [vmem:[%s2 + $0x4] sm:$0xf]
      %v428 = vld [vmem:[%s2 + $0x8] sm:$0xf]
      %v429 = vld [vmem:[%s2 + $0xc] sm:$0xf]
      %v430 = vld [vmem:[%s2 + $0x10] sm:$0xf]
      %v431 = vld [vmem:[%s2 + $0x14] sm:$0xf]
      %v432 = vld [vmem:[%s2 + $0x18] sm:$0xf]
      %v433 = vld [vmem:[%s2 + $0x1c] sm:$0xf]
      %v434 = vld [vmem:[#allocation2] sm:$0xff]
      %v435 = vld [vmem:[#allocation2 + $0x8] sm:$0xff]
      %v436 = vld [vmem:[#allocation2 + $0x10] sm:$0xff]
      %v437 = vld [vmem:[#allocation2 + $0x18] sm:$0xff]
      %v438 = vld [vmem:[#allocation2 + $0x20] sm:$0xff]
      %v439 = vld [vmem:[#allocation2 + $0x28] sm:$0xff]
      %v440 = vld [vmem:[#allocation2 + $0x30] sm:$0xff]
      %v441 = vld [vmem:[#allocation2 + $0x38] sm:$0xff]
      %v450 = vunpack.c.l.b16 %v418
      %v451 = vunpack.c.l.b16 %v419
      %v452 = vunpack.c.l.b16 %v420
      %v453 = vunpack.c.l.b16 %v421
      %v454 = vunpack.c.l.b16 %v422
      %v455 = vunpack.c.l.b16 %v423
      %v456 = vunpack.c.l.b16 %v424
      %v457 = vunpack.c.l.b16 %v425
      %v458 = vpack.c.b16 %v451, %v450
      %v459 = vpack.c.b16 %v453, %v452
      %v460 = vpack.c.b16 %v455, %v454
      %v461 = vpack.c.b16 %v457, %v456
      %v470 = vunpack.c.l.b16 %v426
      %v471 = vunpack.c.l.b16 %v427
      %v472 = vunpack.c.l.b16 %v428
      %v473 = vunpack.c.l.b16 %v429
      %v474 = vunpack.c.l.b16 %v430
      %v475 = vunpack.c.l.b16 %v431
      %v476 = vunpack.c.l.b16 %v432
      %v477 = vunpack.c.l.b16 %v433
      %v478 = vpack.c.b16 %v471, %v470
      %v479 = vpack.c.b16 %v473, %v472
      %v480 = vpack.c.b16 %v475, %v474
      %v481 = vpack.c.b16 %v477, %v476
      %vm486 = vcmask 523264
      %v488 = vsel %vm486, %v458, 0
      %v491 = vsel %vm486, %v459, 0
      %v494 = vsel %vm486, %v460, 0
      %v497 = vsel %vm486, %v461, 0
      %499 = vmatpush.bf16.msra.mxu0 0
      %500 = vmatpush.bf16.msra.mxu0 0
      %501 = vmatpush.bf16.msra.mxu0 0
      %502 = vmatpush.bf16.msra.mxu0 0
      %503 = vmatpush.bf16.msra.mxu0 %v481
      %504 = vmatpush.bf16.msra.mxu0 %v480
      %505 = vmatpush.bf16.msra.mxu0 %v479
      %506 = vmatpush.bf16.msra.mxu0 %v478
      %507 = vmatmul.bf16.gmra.mxu0 %v488
      %v508 = vpop.f32.mrf.mxu0
      %v509 = vadd.f32 %v434, %v508
      %v510 = vpop.f32.mrf.mxu0
      %v511 = vadd.f32 %v435, %v510
      %512 = vmatmul.bf16.gmra.mxu0 %v491
      %v513 = vpop.f32.mrf.mxu0
      %v514 = vadd.f32 %v436, %v513
      %v515 = vpop.f32.mrf.mxu0
      %v516 = vadd.f32 %v437, %v515
      %517 = vmatmul.bf16.gmra.mxu0 %v494
      %v518 = vpop.f32.mrf.mxu0
      %v519 = vadd.f32 %v438, %v518
      %v520 = vpop.f32.mrf.mxu0
      %v521 = vadd.f32 %v439, %v520
      %522 = vmatmul.bf16.gmra.mxu0 %v497
      %v523 = vpop.f32.mrf.mxu0
      %v524 = vadd.f32 %v440, %v523
      %v525 = vpop.f32.mrf.mxu0
      %v526 = vadd.f32 %v441, %v525
      %527 = vdwg.mxu0
      %v528 = vld [vmem:[%s4] sm:$0x1]
      %v530 = vperm.slane %v528, 0
      %v532 = vmul.f32 %v509, %v530
      %v533 = vmul.f32 %v511, %v530
      %v534 = vmul.f32 %v514, %v530
      %v535 = vmul.f32 %v516, %v530
      %v536 = vmul.f32 %v519, %v530
      %v537 = vmul.f32 %v521, %v530
      %v538 = vmul.f32 %v524, %v530
      %v539 = vmul.f32 %v526, %v530
      %v540 = vld [vmem:[%s5] sm:$0x1]
      %v542 = vperm.slane %v540, 0
      %v544 = vadd.f32 %v532, %v542
      %v545 = vadd.f32 %v533, %v542
      %v546 = vadd.f32 %v534, %v542
      %v547 = vadd.f32 %v535, %v542
      %v548 = vadd.f32 %v536, %v542
      %v549 = vadd.f32 %v537, %v542
      %v550 = vadd.f32 %v538, %v542
      %v551 = vadd.f32 %v539, %v542
      %vm552 = vcmp.ge.f32.partialorder %v544, 0.0
      %vm553 = vcmp.ge.f32.partialorder %v545, 0.0
      %vm554 = vcmp.ge.f32.partialorder %v546, 0.0
      %vm555 = vcmp.ge.f32.partialorder %v547, 0.0
      %vm556 = vcmp.ge.f32.partialorder %v548, 0.0
      %vm557 = vcmp.ge.f32.partialorder %v549, 0.0
      %vm558 = vcmp.ge.f32.partialorder %v550, 0.0
      %vm559 = vcmp.ge.f32.partialorder %v551, 0.0
      %v560 = vmul.f32 %v544, 0.2
      %v561 = vmul.f32 %v545, 0.2
      %v562 = vmul.f32 %v546, 0.2
      %v563 = vmul.f32 %v547, 0.2
      %v564 = vmul.f32 %v548, 0.2
      %v565 = vmul.f32 %v549, 0.2
      %v566 = vmul.f32 %v550, 0.2
      %v567 = vmul.f32 %v551, 0.2
      %v568 = vsel %vm552, %v544, %v560
      %v569 = vsel %vm553, %v545, %v561
      %v570 = vsel %vm554, %v546, %v562
      %v571 = vsel %vm555, %v547, %v563
      %v572 = vsel %vm556, %v548, %v564
      %v573 = vsel %vm557, %v549, %v565
      %v574 = vsel %vm558, %v550, %v566
      %v575 = vsel %vm559, %v551, %v567
      // Predicated region
      $region49: #{dgcnn_forward.23} parent=43 // pred_check
        %p576 = pneg %p304
      $region50: #{dgcnn_forward.23} parent=43 // pred_check_branch
        %578 = sbr.rel (%p576) target = $region52
      $region51: #{dgcnn_forward.23} parent=43 // pred_region
        %579 = vst [vmem:[#allocation3] sm:$0xff] %v568
        %580 = vst [vmem:[#allocation3 + $0x8] sm:$0xff] %v569
        %581 = vst [vmem:[#allocation3 + $0x10] sm:$0xff] %v570
        %582 = vst [vmem:[#allocation3 + $0x18] sm:$0xff] %v571
        %583 = vst [vmem:[#allocation3 + $0x20] sm:$0xff] %v572
        %584 = vst [vmem:[#allocation3 + $0x28] sm:$0xff] %v573
        %585 = vst [vmem:[#allocation3 + $0x30] sm:$0xff] %v574
        %586 = vst [vmem:[#allocation3 + $0x38] sm:$0xff] %v575
      $region52: #{dgcnn_forward.23} parent=43 // pred_fallthru
        _
      %p587 = scmp.gt.s32.totalorder %s22, 0
      // Predicated region
      $region53: #{dgcnn_forward.23} parent=43 // pred_check
        %p588 = pneg %p587
      $region54: #{dgcnn_forward.23} parent=43 // pred_check_branch
        %590 = sbr.rel (%p588) target = $region56
      $region55: #{dgcnn_forward.23} parent=43 // pred_region
        %v591 = vld [vmem:[#allocation3] sm:$0xff]
        %v592 = vld [vmem:[#allocation3 + $0x8] sm:$0xff]
        %v593 = vld [vmem:[#allocation3 + $0x10] sm:$0xff]
        %v594 = vld [vmem:[#allocation3 + $0x18] sm:$0xff]
        %v595 = vld [vmem:[#allocation3 + $0x20] sm:$0xff]
        %v596 = vld [vmem:[#allocation3 + $0x28] sm:$0xff]
        %v597 = vld [vmem:[#allocation3 + $0x30] sm:$0xff]
        %v598 = vld [vmem:[#allocation3 + $0x38] sm:$0xff]
        %v599 = vmax.f32 %v591, %v568
        %v600 = vmax.f32 %v592, %v569
        %v601 = vmax.f32 %v593, %v570
        %v602 = vmax.f32 %v594, %v571
        %v603 = vmax.f32 %v595, %v572
        %v604 = vmax.f32 %v596, %v573
        %v605 = vmax.f32 %v597, %v574
        %v606 = vmax.f32 %v598, %v575
        %607 = vst [vmem:[#allocation3] sm:$0xff] %v599
        %608 = vst [vmem:[#allocation3 + $0x8] sm:$0xff] %v600
        %609 = vst [vmem:[#allocation3 + $0x10] sm:$0xff] %v601
        %610 = vst [vmem:[#allocation3 + $0x18] sm:$0xff] %v602
        %611 = vst [vmem:[#allocation3 + $0x20] sm:$0xff] %v603
        %612 = vst [vmem:[#allocation3 + $0x28] sm:$0xff] %v604
        %613 = vst [vmem:[#allocation3 + $0x30] sm:$0xff] %v605
        %614 = vst [vmem:[#allocation3 + $0x38] sm:$0xff] %v606
      $region56: #{dgcnn_forward.23} parent=43 // pred_fallthru
        _
      %p615 = scmp.eq.s32.totalorder %s22, 19
      // Predicated region
      $region57: #{dgcnn_forward.23} parent=43 // pred_check
        %p616 = pneg %p615
      $region58: #{dgcnn_forward.23} parent=43 // pred_check_branch
        %618 = sbr.rel (%p616) target = $region60
      $region59: #{dgcnn_forward.23} parent=43 // pred_region
        %v619 = vld [vmem:[#allocation3] sm:$0xff]
        %v620 = vld [vmem:[#allocation3 + $0x8] sm:$0xff]
        %v621 = vld [vmem:[#allocation3 + $0x10] sm:$0xff]
        %v622 = vld [vmem:[#allocation3 + $0x18] sm:$0xff]
        %v623 = vld [vmem:[#allocation3 + $0x20] sm:$0xff]
        %v624 = vld [vmem:[#allocation3 + $0x28] sm:$0xff]
        %v625 = vld [vmem:[#allocation3 + $0x30] sm:$0xff]
        %v626 = vld [vmem:[#allocation3 + $0x38] sm:$0xff]
        %627 = vst [vmem:[%s301] sm:$0xff] %v619
        %628 = vst [vmem:[%s301 + $0x8] sm:$0xff] %v620
        %629 = vst [vmem:[%s301 + $0x10] sm:$0xff] %v621
        %630 = vst [vmem:[%s301 + $0x18] sm:$0xff] %v622
        %631 = vst [vmem:[%s301 + $0x20] sm:$0xff] %v623
        %632 = vst [vmem:[%s301 + $0x28] sm:$0xff] %v624
        %633 = vst [vmem:[%s301 + $0x30] sm:$0xff] %v625
        %634 = vst [vmem:[%s301 + $0x38] sm:$0xff] %v626
      $region60: #{dgcnn_forward.23} parent=43 // pred_fallthru
        _
      %s635 = smul.u32 8, %s21
      %p636 = scmp.lt.s32.totalorder %s635, 7
      %s637 = scalar_select %p636, %s635, 7
      %s638 = smul.addr %s637, 8
      %s639 = scalar_lea.vmem %s6, %s638
      // Predicated region
      $region61: #{dgcnn_forward.23} parent=43 // pred_check
        %p640 = pneg %p185
      $region62: #{dgcnn_forward.23} parent=43 // pred_check_branch
        %642 = sbr.rel (%p640) target = $region64
      $region63: #{dgcnn_forward.23} parent=43 // pred_region
        %s643 = smul.u32 8, %s21
      $region64: #{dgcnn_forward.23} parent=43 // pred_fallthru
        _
      // Predicated region
      $region65: #{dgcnn_forward.23} parent=43 // pred_check
        %p644 = pneg %p185
      $region66: #{dgcnn_forward.23} parent=43 // pred_check_branch
        %646 = sbr.rel (%p644) target = $region68
      $region67: #{dgcnn_forward.23} parent=43 // pred_region
        %s647 = smul.u32 8, %s21
        %p648 = scmp.lt.s32.totalorder %s647, 7
        %s649 = scalar_select %p648, %s647, 7
        %s650 = smul.addr %s649, 8
        %s651 = scalar_lea.vmem %s6, %s650
      $region68: #{dgcnn_forward.23} parent=43 // pred_fallthru
        _
    $region44: #{dgcnn_forward.23} parent=5 // pred_fallthru
      _
    %p652 = scmp.le.s32.totalorder 2, %s12
    // Predicated region
    $region69: #{dgcnn_forward.23} parent=5 // pred_check
      %p653 = pneg %p652
    $region70: #{dgcnn_forward.23} parent=5 // pred_check_branch
      %655 = sbr.rel (%p653) target = $region72
    $region71: #{dgcnn_forward.23} parent=5 // pred_region
      %s656 = ssub.s32 %s12, 2
    $region72: #{dgcnn_forward.23} parent=5 // pred_fallthru
      _
  $region6: #{dgcnn_forward.23} parent=0 // loop_footer
    %s16 = sadd.s32 1, %s12
  $region7: #{dgcnn_forward.23} parent=0 // loop_footer_branch
    %11 = sbr.rel target = $region3
  $region8: #{dgcnn_forward.23} parent=0 // loop_exit
    _

// kernel: dgcnn_forward.24
$region0: #{dgcnn_forward.24}
  #allocation0 [shape = 'u32[]', space=smem, size = 0x4, offset = 0x4, fixed_abs, tag = 'smem constant byte address 0x4 - core index']
  #allocation1 [shape = 'u32[72,128]{1,0:T(1,128)}', space=vmem, size = 0x9000, scoped, tag = 'internal scratch']
  %s0 = inlined_call_operand.vmem [shape: f32[2,32,128], index: 0, kind: input, shape index: {}, may-alias: {0,1}]
  %s1 = inlined_call_operand.vmem [shape: f32[2,32,128], index: 1, kind: input, shape index: {}, may-alias: {0,1}]
  %s2 = inlined_call_operand.vmem [shape: f32[2,32,32], index: 2, kind: output, shape index: {}]
  %s3 = sld [smem:[#allocation0]]
  $region41: #{dgcnn_forward.24} parent=0
    _
  %s5 = ssub.s32 1, %s3
  %s6 = scalar_select 0, %s5, %s3
  loop: start=0, step=1, limit=4
  $region2: #{dgcnn_forward.24} parent=0 // loop_pre_header
    _
  $region3: #{dgcnn_forward.24} parent=0 // loop_header
    %s8 = sphi 0, %s12
    %p9 = scmp.ge.s32.totalorder %s8, 4
    %s15 = sphi 0, %s27
    %s16 = sphi 0, %s23
    %s17 = sphi 0, %s15
    %s18 = sphi 0, %s16
    %s19 = sphi 0, %s17
    %s20 = sphi 0, %s18
    %s32 = sphi 0, %s34
    %s35 = sphi 0, %s32
    %s36 = sphi 0, %s35
    %s52 = sphi 0, %s36
    %s58 = sphi 0, %s60
    %s61 = sphi 0, %s58
    %s62 = sphi 0, %s61
    %s78 = sphi 0, %s62
    %s86 = sphi 0, %s88
    %s89 = sphi 0, %s86
    %s90 = sphi 0, %s89
    %s106 = sphi 0, %s90
  $region4: #{dgcnn_forward.24} parent=0 // loop_header_branch
    %11 = sbr.rel (%p9) target = $region8
  $region5: #{dgcnn_forward.24} parent=0 // loop_body
    %s13 = ssub.s32 %s8, 1
    %s14 = ssub.s32 %s8, 2
    %s21 = sadd.s32 1, %s16
    %p22 = scmp.ge.s32.totalorder %s21, 1
    %s23 = scalar_select %p22, 0, %s21
    %s24 = sadd.s32 1, %s15
    %s25 = scalar_select %p22, %s24, %s15
    %p26 = scmp.ge.s32.totalorder %s25, 2
    %s27 = scalar_select %p26, 0, %s25
    %s28 = ssub.s32 %s15, %s27
    %s29 = ssub.s32 %s16, %s23
    %s30 = sor.u32 %s28, %s29
    %p31 = scmp.eq.s32.totalorder %s30, 0
    %s33 = sadd.s32 %s32, 1
    %s34 = scalar_select %p31, %s32, %s33
    %p37 = pneg %p31
    %p38 = scmp.eq.s32.totalorder %s8, 1
    %p39 = por %p37, %p38
    %p40 = scmp.ne.s32.totalorder %s32, %s35
    %p41 = scmp.eq.s32.totalorder %s8, 0
    %p42 = por %p40, %p41
    %p43 = scmp.ne.s32.totalorder %s32, %s35
    %p44 = scmp.eq.s32.totalorder %s13, 1
    %p45 = por %p43, %p44
    %p46 = scmp.ne.s32.totalorder %s35, %s36
    %p47 = scmp.eq.s32.totalorder %s13, 0
    %p48 = por %p46, %p47
    %p49 = scmp.ne.s32.totalorder %s35, %s36
    %p50 = scmp.eq.s32.totalorder %s14, 1
    %p51 = por %p49, %p50
    %p53 = scmp.ne.s32.totalorder %s36, %s52
    %p54 = scmp.eq.s32.totalorder %s14, 0
    %p55 = por %p53, %p54
    %s56 = ssub.s32 %s15, %s27
    %p57 = scmp.eq.s32.totalorder %s56, 0
    %s59 = sadd.s32 %s58, 1
    %s60 = scalar_select %p57, %s58, %s59
    %p63 = pneg %p57
    %p64 = scmp.eq.s32.totalorder %s8, 1
    %p65 = por %p63, %p64
    %p66 = scmp.ne.s32.totalorder %s58, %s61
    %p67 = scmp.eq.s32.totalorder %s8, 0
    %p68 = por %p66, %p67
    %p69 = scmp.ne.s32.totalorder %s58, %s61
    %p70 = scmp.eq.s32.totalorder %s13, 1
    %p71 = por %p69, %p70
    %p72 = scmp.ne.s32.totalorder %s61, %s62
    %p73 = scmp.eq.s32.totalorder %s13, 0
    %p74 = por %p72, %p73
    %p75 = scmp.ne.s32.totalorder %s61, %s62
    %p76 = scmp.eq.s32.totalorder %s14, 1
    %p77 = por %p75, %p76
    %p79 = scmp.ne.s32.totalorder %s62, %s78
    %p80 = scmp.eq.s32.totalorder %s14, 0
    %p81 = por %p79, %p80
    %s82 = ssub.s32 %s15, %s27
    %s83 = ssub.s32 %s16, %s23
    %s84 = sor.u32 %s82, %s83
    %p85 = scmp.eq.s32.totalorder %s84, 0
    %s87 = sadd.s32 %s86, 1
    %s88 = scalar_select %p85, %s86, %s87
    %p91 = pneg %p85
    %p92 = scmp.eq.s32.totalorder %s8, 1
    %p93 = por %p91, %p92
    %p94 = scmp.ne.s32.totalorder %s86, %s89
    %p95 = scmp.eq.s32.totalorder %s8, 0
    %p96 = por %p94, %p95
    %p97 = scmp.ne.s32.totalorder %s86, %s89
    %p98 = scmp.eq.s32.totalorder %s13, 1
    %p99 = por %p97, %p98
    %p100 = scmp.ne.s32.totalorder %s89, %s90
    %p101 = scmp.eq.s32.totalorder %s13, 0
    %p102 = por %p100, %p101
    %p103 = scmp.ne.s32.totalorder %s89, %s90
    %p104 = scmp.eq.s32.totalorder %s14, 1
    %p105 = por %p103, %p104
    %p107 = scmp.ne.s32.totalorder %s90, %s106
    %p108 = scmp.eq.s32.totalorder %s14, 0
    %p109 = por %p107, %p108
    %p110 = scmp.le.s32.totalorder 1, %s8
    %p111 = scmp.lt.s32.totalorder %s8, 3
    %p112 = pnand %p110, %p111
    %p113 = pneg %p112
    // Predicated region
    $region9: #{dgcnn_forward.24} parent=5 // pred_check
      _
    $region10: #{dgcnn_forward.24} parent=5 // pred_check_branch
      %115 = sbr.rel (%p112) target = $region12
    $region11: #{dgcnn_forward.24} parent=5 // pred_region
      %s116 = ssub.s32 %s8, 1
    $region12: #{dgcnn_forward.24} parent=5 // pred_fallthru
      _
    %p117 = scmp.lt.s32.totalorder %s8, 2
    // Predicated region
    $region13: #{dgcnn_forward.24} parent=5 // pred_check
      %p118 = pneg %p117
    $region14: #{dgcnn_forward.24} parent=5 // pred_check_branch
      %120 = sbr.rel (%p118) target = $region16
    $region15: #{dgcnn_forward.24} parent=5 // pred_region
      // Predicated region
      $region17: #{dgcnn_forward.24} parent=15 // pred_check
        %p121 = pneg %p42
      $region18: #{dgcnn_forward.24} parent=15 // pred_check_branch
        %123 = sbr.rel (%p121) target = $region20
      $region19: #{dgcnn_forward.24} parent=15 // pred_region
        %s124 = smul.u32 4, %s16
        %p125 = scmp.lt.s32.totalorder %s15, 1
        %s126 = scalar_select %p125, %s15, 1
        %p127 = scmp.lt.s32.totalorder %s124, 3
        %s128 = scalar_select %p127, %s124, 3
        %s129 = smul.addr %s126, 4
        %s130 = sadd.s32 %s128, %s129
        %s131 = smul.addr %s130, 8
        %s132 = scalar_lea.vmem %s0, %s131
        %s133 = smul.u32 4, %s16
      $region20: #{dgcnn_forward.24} parent=15 // pred_fallthru
        _
      // Predicated region
      $region21: #{dgcnn_forward.24} parent=15 // pred_check
        %p134 = pneg %p68
      $region22: #{dgcnn_forward.24} parent=15 // pred_check_branch
        %136 = sbr.rel (%p134) target = $region24
      $region23: #{dgcnn_forward.24} parent=15 // pred_region
        %p137 = scmp.lt.s32.totalorder %s15, 1
        %s138 = scalar_select %p137, %s15, 1
        %s139 = smul.addr %s138, 4
        %s140 = smul.addr %s139, 8
        %s141 = scalar_lea.vmem %s1, %s140
      $region24: #{dgcnn_forward.24} parent=15 // pred_fallthru
        _
    $region16: #{dgcnn_forward.24} parent=5 // pred_fallthru
      _
    %p142 = scmp.le.s32.totalorder 1, %s8
    %p143 = scmp.lt.s32.totalorder %s8, 3
    %p144 = pnand %p142, %p143
    %p145 = pneg %p144
    // Predicated region
    $region25: #{dgcnn_forward.24} parent=5 // pred_check
      _
    $region26: #{dgcnn_forward.24} parent=5 // pred_check_branch
      %147 = sbr.rel (%p144) target = $region28
    $region27: #{dgcnn_forward.24} parent=5 // pred_region
      %s148 = ssub.s32 %s8, 1
      %s149 = smul.u32 4, %s18
      %p150 = scmp.lt.s32.totalorder %s17, 1
      %s151 = scalar_select %p150, %s17, 1
      %p152 = scmp.lt.s32.totalorder %s149, 3
      %s153 = scalar_select %p152, %s149, 3
      %s154 = smul.addr %s151, 4
      %s155 = sadd.s32 %s153, %s154
      %s156 = smul.addr %s155, 8
      %s157 = scalar_lea.vmem %s0, %s156
      %p158 = pneg %p48
      %p159 = pneg %p45
      %p160 = scmp.lt.s32.totalorder %s17, 1
      %s161 = scalar_select %p160, %s17, 1
      %s162 = smul.addr %s161, 4
      %s163 = smul.addr %s162, 8
      %s164 = scalar_lea.vmem %s1, %s163
      %p165 = pneg %p74
      %p166 = pneg %p71
      %p167 = pneg %p102
      %p168 = pneg %p99
      %s169 = smul.u32 4, %s18
      %p170 = scmp.lt.s32.totalorder %s17, 1
      %s171 = scalar_select %p170, %s17, 1
      %p172 = scmp.lt.s32.totalorder %s169, 3
      %s173 = scalar_select %p172, %s169, 3
      %s174 = smul.addr %s171, 4
      %s175 = sadd.s32 %s173, %s174
      %s176 = smul.addr %s175, 8
      %s177 = scalar_lea.vmem %s2, %s176
      %s178 = smul.u32 4, %s18
      %p179 = scmp.lt.s32.totalorder %s17, 1
      %s180 = scalar_select %p179, %s17, 1
      %p181 = scmp.lt.s32.totalorder %s178, 3
      %s182 = scalar_select %p181, %s178, 3
      %s183 = smul.addr %s180, 4
      %s184 = sadd.s32 %s182, %s183
      %s185 = smul.addr %s184, 8
      %s186 = scalar_lea.vmem %s0, %s185
      %s187 = smul.u32 4, %s18
      %p188 = scmp.lt.s32.totalorder %s17, 1
      %s189 = scalar_select %p188, %s17, 1
      %s190 = smul.addr %s189, 4
      %s191 = smul.addr %s190, 8
      %s192 = scalar_lea.vmem %s1, %s191
      %s193 = smul.u32 4, %s18
      %p194 = scmp.lt.s32.totalorder %s17, 1
      %s195 = scalar_select %p194, %s17, 1
      %p196 = scmp.lt.s32.totalorder %s193, 3
      %s197 = scalar_select %p196, %s193, 3
      %s198 = smul.addr %s195, 4
      %s199 = sadd.s32 %s197, %s198
      %s200 = smul.addr %s199, 8
      %s201 = scalar_lea.vmem %s2, %s200
      %s202 = smul.u32 4, %s18
      %v203 = vld [vmem:[%s186] sm:$0xff]
      %v204 = vld [vmem:[%s186 + $0x8] sm:$0xff]
      %v205 = vld [vmem:[%s186 + $0x10] sm:$0xff]
      %v206 = vld [vmem:[%s186 + $0x18] sm:$0xff]
      %v207 = vld [vmem:[%s192] sm:$0xff]
      %v208 = vld [vmem:[%s192 + $0x8] sm:$0xff]
      %v209 = vld [vmem:[%s192 + $0x10] sm:$0xff]
      %v210 = vld [vmem:[%s192 + $0x18] sm:$0xff]
      %211 = vmatpush.xpose.msra.mxu0 0.0
      %212 = vmatpush.xpose.msra.mxu0 0.0
      %213 = vmatpush.xpose.msra.mxu0 0.0
      %214 = vmatpush.xpose.msra.mxu0 0.0
      %215 = vmatpush.xpose.msra.mxu0 0.0
      %216 = vmatpush.xpose.msra.mxu0 0.0
      %217 = vmatpush.xpose.msra.mxu0 0.0
      %218 = vmatpush.xpose.msra.mxu0 0.0
      %219 = vmatpush.xpose.msra.mxu0 0.0
      %220 = vmatpush.xpose.msra.mxu0 0.0
      %221 = vmatpush.xpose.msra.mxu0 0.0
      %222 = vmatpush.xpose.msra.mxu0 0.0
      %223 = vmatpush.xpose.msra.mxu0 %v210
      %224 = vmatpush.xpose.msra.mxu0 %v209
      %225 = vmatpush.xpose.msra.mxu0 %v208
      %226 = vmatpush.xpose.msra.mxu0 %v207
      %227 = vmatmul.f32.gmra.mxu0 %v203
      %v228 = vpop.f32.mrf.mxu0
      %v229 = vadd.f32 0.0, %v228
      %230 = vmatmul.f32.gmra.mxu0 %v204
      %v231 = vpop.f32.mrf.mxu0
      %v232 = vadd.f32 0.0, %v231
      %233 = vmatmul.f32.gmra.mxu0 %v205
      %v234 = vpop.f32.mrf.mxu0
      %v235 = vadd.f32 0.0, %v234
      %236 = vmatmul.f32.gmra.mxu0 %v206
      %v237 = vpop.f32.mrf.mxu0
      %v238 = vadd.f32 0.0, %v237
      %239 = vdwg.mxu0
      %v240 = vmul.f32 %v203, %v203
      %v241 = vmul.f32 %v204, %v204
      %v242 = vmul.f32 %v205, %v205
      %v243 = vmul.f32 %v206, %v206
      %244 = vadd.xlane.f32.xlu0 %v240
      %v245 = vpop.xlane.xlu0 %244
      %246 = vadd.xlane.f32.xlu0 %v241
      %v247 = vpop.xlane.xlu0 %246
      %248 = vadd.xlane.f32.xlu0 %v242
      %v249 = vpop.xlane.xlu0 %248
      %250 = vadd.xlane.f32.xlu0 %v243
      %v251 = vpop.xlane.xlu0 %250
      %v252 = vmul.f32 %v207, %v207
      %v253 = vmul.f32 %v208, %v208
      %v254 = vmul.f32 %v209, %v209
      %v255 = vmul.f32 %v210, %v210
      %256 = vadd.xlane.f32.xlu0 %v252
      %v257 = vpop.xlane.xlu0 %256
      %258 = vadd.xlane.f32.xlu0 %v253
      %v259 = vpop.xlane.xlu0 %258
      %260 = vadd.xlane.f32.xlu0 %v254
      %v261 = vpop.xlane.xlu0 %260
      %262 = vadd.xlane.f32.xlu0 %v255
      %v263 = vpop.xlane.xlu0 %262
      %v264 = vmul.f32 %v229, 2.0
      %v265 = vmul.f32 %v232, 2.0
      %v266 = vmul.f32 %v235, 2.0
      %v267 = vmul.f32 %v238, 2.0
      %v268 = vsub.f32 %v264, %v245
      %v269 = vsub.f32 %v265, %v247
      %v270 = vsub.f32 %v266, %v249
      %v271 = vsub.f32 %v267, %v251
      %272 = vxpose.xlu0.b32.start [1/16] %v257, 128
      %273 = vxpose.xlu0.b32.cont [2/16] %v259, 128
      %274 = vxpose.xlu0.b32.cont [3/16] %v261, 128
      %275 = vxpose.xlu0.b32.cont [4/16] %v263, 128
      %276 = vxpose.xlu0.b32.cont [5/16] 0.0, 128
      %277 = vxpose.xlu0.b32.cont [6/16] 0.0, 128
      %278 = vxpose.xlu0.b32.cont [7/16] 0.0, 128
      %279 = vxpose.xlu0.b32.cont [8/16] 0.0, 128
      %280 = vxpose.xlu0.b32.cont [9/16] 0.0, 128
      %281 = vxpose.xlu0.b32.cont [10/16] 0.0, 128
      %282 = vxpose.xlu0.b32.cont [11/16] 0.0, 128
      %283 = vxpose.xlu0.b32.cont [12/16] 0.0, 128
      %284 = vxpose.xlu0.b32.cont [13/16] 0.0, 128
      %285 = vxpose.xlu0.b32.cont [14/16] 0.0, 128
      %286 = vxpose.xlu0.b32.cont [15/16] 0.0, 128
      %287 = vxpose.xlu0.b32.end [16/16] 0.0, 128
      %v288 = vpop.trf.xlu0
      %v289 = vpop.trf.xlu0
      %v290 = vpop.trf.xlu0
      %v291 = vpop.trf.xlu0
      %v292 = vpop.trf.xlu0
      %v293 = vpop.trf.xlu0
      %v294 = vpop.trf.xlu0
      %v295 = vpop.trf.xlu0
      %v296 = vpop.trf.xlu0
      %v297 = vpop.trf.xlu0
      %v298 = vpop.trf.xlu0
      %v299 = vpop.trf.xlu0
      %v300 = vpop.trf.xlu0
      %v301 = vpop.trf.xlu0
      %v302 = vpop.trf.xlu0
      %v303 = vpop.trf.xlu0
      %v304 = vperm.slane %v288, 0
      %v305 = vsub.f32 %v268, %v304
      %v306 = vsub.f32 %v269, %v304
      %v307 = vsub.f32 %v270, %v304
      %v308 = vsub.f32 %v271, %v304
      %vm309 = vcmask 261120
      %310 = vst.msk [vmem:[%s201] sm:$0xff] %vm309, %v305
      %311 = vst.msk [vmem:[%s201 + $0x8] sm:$0xff] %vm309, %v306
      %312 = vst.msk [vmem:[%s201 + $0x10] sm:$0xff] %vm309, %v307
      %313 = vst.msk [vmem:[%s201 + $0x18] sm:$0xff] %vm309, %v308
      %s314 = smul.u32 4, %s18
      %p315 = scmp.lt.s32.totalorder %s17, 1
      %s316 = scalar_select %p315, %s17, 1
      %p317 = scmp.lt.s32.totalorder %s314, 3
      %s318 = scalar_select %p317, %s314, 3
      %s319 = smul.addr %s316, 4
      %s320 = sadd.s32 %s318, %s319
      %s321 = smul.addr %s320, 8
      %s322 = scalar_lea.vmem %s2, %s321
      // Predicated region
      $region29: #{dgcnn_forward.24} parent=27 // pred_check
        %p323 = pneg %p99
      $region30: #{dgcnn_forward.24} parent=27 // pred_check_branch
        %325 = sbr.rel (%p323) target = $region32
      $region31: #{dgcnn_forward.24} parent=27 // pred_region
        %s326 = smul.u32 4, %s18
      $region32: #{dgcnn_forward.24} parent=27 // pred_fallthru
        _
    $region28: #{dgcnn_forward.24} parent=5 // pred_fallthru
      _
    %p327 = scmp.le.s32.totalorder 2, %s8
    // Predicated region
    $region33: #{dgcnn_forward.24} parent=5 // pred_check
      %p328 = pneg %p327
    $region34: #{dgcnn_forward.24} parent=5 // pred_check_branch
      %330 = sbr.rel (%p328) target = $region36
    $region35: #{dgcnn_forward.24} parent=5 // pred_region
      %s331 = ssub.s32 %s8, 2
      // Predicated region
      $region37: #{dgcnn_forward.24} parent=35 // pred_check
        %p332 = pneg %p105
      $region38: #{dgcnn_forward.24} parent=35 // pred_check_branch
        %334 = sbr.rel (%p332) target = $region40
      $region39: #{dgcnn_forward.24} parent=35 // pred_region
        %s335 = smul.u32 4, %s20
        %p336 = scmp.lt.s32.totalorder %s19, 1
        %s337 = scalar_select %p336, %s19, 1
        %p338 = scmp.lt.s32.totalorder %s335, 3
        %s339 = scalar_select %p338, %s335, 3
        %s340 = smul.addr %s337, 4
        %s341 = sadd.s32 %s339, %s340
        %s342 = smul.addr %s341, 8
        %s343 = scalar_lea.vmem %s2, %s342
      $region40: #{dgcnn_forward.24} parent=35 // pred_fallthru
        _
    $region36: #{dgcnn_forward.24} parent=5 // pred_fallthru
      _
  $region6: #{dgcnn_forward.24} parent=0 // loop_footer
    %s12 = sadd.s32 1, %s8
  $region7: #{dgcnn_forward.24} parent=0 // loop_footer_branch
    %7 = sbr.rel target = $region3
  $region8: #{dgcnn_forward.24} parent=0 // loop_exit
    _

// kernel: dgcnn_forward.25
$region0: #{dgcnn_forward.25}
  #allocation0 [shape = 'u32[]', space=smem, size = 0x4, offset = 0x4, fixed_abs, tag = 'smem constant byte address 0x4 - core index']
  #allocation1 [shape = 'u32[72,128]{1,0:T(1,128)}', space=vmem, size = 0x9000, scoped, tag = 'internal scratch']
  #allocation2 [shape = 'f32[64,256]{1,0:T(8,128)}', space=vmem, size = 0x10000, scoped, tag = 'scratch operand']
  #allocation3 [shape = 'f32[64,256]{1,0:T(8,128)}', space=vmem, size = 0x10000, scoped, tag = 'scratch operand']
  %s0 = inlined_call_operand.vmem [shape: bf16[20,64,128], index: 0, kind: input, shape index: {}]
  %s1 = inlined_call_operand.vmem [shape: bf16[64,128], index: 1, kind: input, shape index: {}]
  %s2 = inlined_call_operand.vmem [shape: bf16[128,256], index: 2, kind: input, shape index: {}]
  %s3 = inlined_call_operand.vmem [shape: bf16[128,256], index: 3, kind: input, shape index: {}]
  %s4 = inlined_call_operand.vmem [shape: f32[1,256], index: 4, kind: input, shape index: {}]
  %s5 = inlined_call_operand.vmem [shape: f32[1,256], index: 5, kind: input, shape index: {}]
  %s6 = inlined_call_operand.vmem [shape: f32[64,256], index: 6, kind: output, shape index: {}]
  %s7 = sld [smem:[#allocation0]]
  $region73: #{dgcnn_forward.25} parent=0
    _
  %s9 = ssub.s32 1, %s7
  %s10 = scalar_select 0, %s9, %s7
  loop: start=0, step=1, limit=22
  $region2: #{dgcnn_forward.25} parent=0 // loop_pre_header
    _
  $region3: #{dgcnn_forward.25} parent=0 // loop_header
    %s12 = sphi 0, %s16
    %p13 = scmp.ge.s32.totalorder %s12, 22
    %s19 = sphi 0, %s31
    %s20 = sphi 0, %s27
    %s21 = sphi 0, %s19
    %s22 = sphi 0, %s20
    %s23 = sphi 0, %s21
    %s24 = sphi 0, %s22
    %s36 = sphi 0, %s38
    %s39 = sphi 0, %s36
    %s40 = sphi 0, %s39
    %s56 = sphi 0, %s40
    %s62 = sphi 0, %s64
    %s65 = sphi 0, %s62
    %s66 = sphi 0, %s65
    %s82 = sphi 0, %s66
    %s86 = sphi 0, %s86
    %s88 = sphi 0, %s86
    %s89 = sphi 0, %s88
    %s103 = sphi 0, %s89
    %s107 = sphi 0, %s107
    %s109 = sphi 0, %s107
    %s110 = sphi 0, %s109
    %s124 = sphi 0, %s110
    %s128 = sphi 0, %s128
    %s130 = sphi 0, %s128
    %s131 = sphi 0, %s130
    %s145 = sphi 0, %s131
    %s149 = sphi 0, %s149
    %s151 = sphi 0, %s149
    %s152 = sphi 0, %s151
    %s166 = sphi 0, %s152
    %s172 = sphi 0, %s174
    %s175 = sphi 0, %s172
    %s176 = sphi 0, %s175
    %s192 = sphi 0, %s176
  $region4: #{dgcnn_forward.25} parent=0 // loop_header_branch
    %15 = sbr.rel (%p13) target = $region8
  $region5: #{dgcnn_forward.25} parent=0 // loop_body
    %s17 = ssub.s32 %s12, 1
    %s18 = ssub.s32 %s12, 2
    %s25 = sadd.s32 1, %s20
    %p26 = scmp.ge.s32.totalorder %s25, 20
    %s27 = scalar_select %p26, 0, %s25
    %s28 = sadd.s32 1, %s19
    %s29 = scalar_select %p26, %s28, %s19
    %p30 = scmp.ge.s32.totalorder %s29, 1
    %s31 = scalar_select %p30, 0, %s29
    %s32 = ssub.s32 %s20, %s27
    %s33 = ssub.s32 %s19, %s31
    %s34 = sor.u32 %s32, %s33
    %p35 = scmp.eq.s32.totalorder %s34, 0
    %s37 = sadd.s32 %s36, 1
    %s38 = scalar_select %p35, %s36, %s37
    %p41 = pneg %p35
    %p42 = scmp.eq.s32.totalorder %s12, 19
    %p43 = por %p41, %p42
    %p44 = scmp.ne.s32.totalorder %s36, %s39
    %p45 = scmp.eq.s32.totalorder %s12, 0
    %p46 = por %p44, %p45
    %p47 = scmp.ne.s32.totalorder %s36, %s39
    %p48 = scmp.eq.s32.totalorder %s17, 19
    %p49 = por %p47, %p48
    %p50 = scmp.ne.s32.totalorder %s39, %s40
    %p51 = scmp.eq.s32.totalorder %s17, 0
    %p52 = por %p50, %p51
    %p53 = scmp.ne.s32.totalorder %s39, %s40
    %p54 = scmp.eq.s32.totalorder %s18, 19
    %p55 = por %p53, %p54
    %p57 = scmp.ne.s32.totalorder %s40, %s56
    %p58 = scmp.eq.s32.totalorder %s18, 0
    %p59 = por %p57, %p58
    %s60 = ssub.s32 %s19, %s31
    %p61 = scmp.eq.s32.totalorder %s60, 0
    %s63 = sadd.s32 %s62, 1
    %s64 = scalar_select %p61, %s62, %s63
    %p67 = pneg %p61
    %p68 = scmp.eq.s32.totalorder %s12, 19
    %p69 = por %p67, %p68
    %p70 = scmp.ne.s32.totalorder %s62, %s65
    %p71 = scmp.eq.s32.totalorder %s12, 0
    %p72 = por %p70, %p71
    %p73 = scmp.ne.s32.totalorder %s62, %s65
    %p74 = scmp.eq.s32.totalorder %s17, 19
    %p75 = por %p73, %p74
    %p76 = scmp.ne.s32.totalorder %s65, %s66
    %p77 = scmp.eq.s32.totalorder %s17, 0
    %p78 = por %p76, %p77
    %p79 = scmp.ne.s32.totalorder %s65, %s66
    %p80 = scmp.eq.s32.totalorder %s18, 19
    %p81 = por %p79, %p80
    %p83 = scmp.ne.s32.totalorder %s66, %s82
    %p84 = scmp.eq.s32.totalorder %s18, 0
    %p85 = por %p83, %p84
    %s87 = sadd.s32 %s86, 1
    %p90 = scmp.eq.s32.totalorder %s12, 19
    %p91 = scmp.ne.s32.totalorder %s86, %s88
    %p92 = scmp.eq.s32.totalorder %s12, 0
    %p93 = por %p91, %p92
    %p94 = scmp.ne.s32.totalorder %s86, %s88
    %p95 = scmp.eq.s32.totalorder %s17, 19
    %p96 = por %p94, %p95
    %p97 = scmp.ne.s32.totalorder %s88, %s89
    %p98 = scmp.eq.s32.totalorder %s17, 0
    %p99 = por %p97, %p98
    %p100 = scmp.ne.s32.totalorder %s88, %s89
    %p101 = scmp.eq.s32.totalorder %s18, 19
    %p102 = por %p100, %p101
    %p104 = scmp.ne.s32.totalorder %s89, %s103
    %p105 = scmp.eq.s32.totalorder %s18, 0
    %p106 = por %p104, %p105
    %s108 = sadd.s32 %s107, 1
    %p111 = scmp.eq.s32.totalorder %s12, 19
    %p112 = scmp.ne.s32.totalorder %s107, %s109
    %p113 = scmp.eq.s32.totalorder %s12, 0
    %p114 = por %p112, %p113
    %p115 = scmp.ne.s32.totalorder %s107, %s109
    %p116 = scmp.eq.s32.totalorder %s17, 19
    %p117 = por %p115, %p116
    %p118 = scmp.ne.s32.totalorder %s109, %s110
    %p119 = scmp.eq.s32.totalorder %s17, 0
    %p120 = por %p118, %p119
    %p121 = scmp.ne.s32.totalorder %s109, %s110
    %p122 = scmp.eq.s32.totalorder %s18, 19
    %p123 = por %p121, %p122
    %p125 = scmp.ne.s32.totalorder %s110, %s124
    %p126 = scmp.eq.s32.totalorder %s18, 0
    %p127 = por %p125, %p126
    %s129 = sadd.s32 %s128, 1
    %p132 = scmp.eq.s32.totalorder %s12, 19
    %p133 = scmp.ne.s32.totalorder %s128, %s130
    %p134 = scmp.eq.s32.totalorder %s12, 0
    %p135 = por %p133, %p134
    %p136 = scmp.ne.s32.totalorder %s128, %s130
    %p137 = scmp.eq.s32.totalorder %s17, 19
    %p138 = por %p136, %p137
    %p139 = scmp.ne.s32.totalorder %s130, %s131
    %p140 = scmp.eq.s32.totalorder %s17, 0
    %p141 = por %p139, %p140
    %p142 = scmp.ne.s32.totalorder %s130, %s131
    %p143 = scmp.eq.s32.totalorder %s18, 19
    %p144 = por %p142, %p143
    %p146 = scmp.ne.s32.totalorder %s131, %s145
    %p147 = scmp.eq.s32.totalorder %s18, 0
    %p148 = por %p146, %p147
    %s150 = sadd.s32 %s149, 1
    %p153 = scmp.eq.s32.totalorder %s12, 19
    %p154 = scmp.ne.s32.totalorder %s149, %s151
    %p155 = scmp.eq.s32.totalorder %s12, 0
    %p156 = por %p154, %p155
    %p157 = scmp.ne.s32.totalorder %s149, %s151
    %p158 = scmp.eq.s32.totalorder %s17, 19
    %p159 = por %p157, %p158
    %p160 = scmp.ne.s32.totalorder %s151, %s152
    %p161 = scmp.eq.s32.totalorder %s17, 0
    %p162 = por %p160, %p161
    %p163 = scmp.ne.s32.totalorder %s151, %s152
    %p164 = scmp.eq.s32.totalorder %s18, 19
    %p165 = por %p163, %p164
    %p167 = scmp.ne.s32.totalorder %s152, %s166
    %p168 = scmp.eq.s32.totalorder %s18, 0
    %p169 = por %p167, %p168
    %s170 = ssub.s32 %s19, %s31
    %p171 = scmp.eq.s32.totalorder %s170, 0
    %s173 = sadd.s32 %s172, 1
    %s174 = scalar_select %p171, %s172, %s173
    %p177 = pneg %p171
    %p178 = scmp.eq.s32.totalorder %s12, 19
    %p179 = por %p177, %p178
    %p180 = scmp.ne.s32.totalorder %s172, %s175
    %p181 = scmp.eq.s32.totalorder %s12, 0
    %p182 = por %p180, %p181
    %p183 = scmp.ne.s32.totalorder %s172, %s175
    %p184 = scmp.eq.s32.totalorder %s17, 19
    %p185 = por %p183, %p184
    %p186 = scmp.ne.s32.totalorder %s175, %s176
    %p187 = scmp.eq.s32.totalorder %s17, 0
    %p188 = por %p186, %p187
    %p189 = scmp.ne.s32.totalorder %s175, %s176
    %p190 = scmp.eq.s32.totalorder %s18, 19
    %p191 = por %p189, %p190
    %p193 = scmp.ne.s32.totalorder %s176, %s192
    %p194 = scmp.eq.s32.totalorder %s18, 0
    %p195 = por %p193, %p194
    %p196 = scmp.le.s32.totalorder 1, %s12
    %p197 = scmp.lt.s32.totalorder %s12, 21
    %p198 = pnand %p196, %p197
    %p199 = pneg %p198
    // Predicated region
    $region9: #{dgcnn_forward.25} parent=5 // pred_check
      _
    $region10: #{dgcnn_forward.25} parent=5 // pred_check_branch
      %201 = sbr.rel (%p198) target = $region12
    $region11: #{dgcnn_forward.25} parent=5 // pred_region
      %s202 = ssub.s32 %s12, 1
      // Predicated region
      $region13: #{dgcnn_forward.25} parent=11 // pred_check
        %p203 = pneg %p78
      $region14: #{dgcnn_forward.25} parent=11 // pred_check_branch
        %205 = sbr.rel (%p203) target = $region16
      $region15: #{dgcnn_forward.25} parent=11 // pred_region
        %s206 = smul.u32 8, %s21
        %p207 = scmp.lt.s32.totalorder %s206, 7
        %s208 = scalar_select %p207, %s206, 7
        %s209 = smul.addr %s208, 4
        %s210 = scalar_lea.vmem %s1, %s209
        %s211 = smul.u32 8, %s21
      $region16: #{dgcnn_forward.25} parent=11 // pred_fallthru
        _
      // Predicated region
      $region17: #{dgcnn_forward.25} parent=11 // pred_check
        %p212 = pneg %p99
      $region18: #{dgcnn_forward.25} parent=11 // pred_check_branch
        %214 = sbr.rel (%p212) target = $region20
      $region19: #{dgcnn_forward.25} parent=11 // pred_region
        _
      $region20: #{dgcnn_forward.25} parent=11 // pred_fallthru
        _
      // Predicated region
      $region21: #{dgcnn_forward.25} parent=11 // pred_check
        %p215 = pneg %p120
      $region22: #{dgcnn_forward.25} parent=11 // pred_check_branch
        %217 = sbr.rel (%p215) target = $region24
      $region23: #{dgcnn_forward.25} parent=11 // pred_region
        _
      $region24: #{dgcnn_forward.25} parent=11 // pred_fallthru
        _
      // Predicated region
      $region25: #{dgcnn_forward.25} parent=11 // pred_check
        %p218 = pneg %p141
      $region26: #{dgcnn_forward.25} parent=11 // pred_check_branch
        %220 = sbr.rel (%p218) target = $region28
      $region27: #{dgcnn_forward.25} parent=11 // pred_region
        _
      $region28: #{dgcnn_forward.25} parent=11 // pred_fallthru
        _
      // Predicated region
      $region29: #{dgcnn_forward.25} parent=11 // pred_check
        %p221 = pneg %p162
      $region30: #{dgcnn_forward.25} parent=11 // pred_check_branch
        %223 = sbr.rel (%p221) target = $region32
      $region31: #{dgcnn_forward.25} parent=11 // pred_region
        _
      $region32: #{dgcnn_forward.25} parent=11 // pred_fallthru
        _
    $region12: #{dgcnn_forward.25} parent=5 // pred_fallthru
      _
    %p224 = scmp.lt.s32.totalorder %s12, 20
    // Predicated region
    $region33: #{dgcnn_forward.25} parent=5 // pred_check
      %p225 = pneg %p224
    $region34: #{dgcnn_forward.25} parent=5 // pred_check_branch
      %227 = sbr.rel (%p225) target = $region36
    $region35: #{dgcnn_forward.25} parent=5 // pred_region
      // Predicated region
      $region37: #{dgcnn_forward.25} parent=35 // pred_check
        %p228 = pneg %p46
      $region38: #{dgcnn_forward.25} parent=35 // pred_check_branch
        %230 = sbr.rel (%p228) target = $region40
      $region39: #{dgcnn_forward.25} parent=35 // pred_region
        %s231 = smul.u32 8, %s19
        %p232 = scmp.lt.s32.totalorder %s20, 19
        %s233 = scalar_select %p232, %s20, 19
        %p234 = scmp.lt.s32.totalorder %s231, 7
        %s235 = scalar_select %p234, %s231, 7
        %s236 = smul.addr %s233, 8
        %s237 = sadd.s32 %s235, %s236
        %s238 = smul.addr %s237, 4
        %s239 = scalar_lea.vmem %s0, %s238
        %s240 = smul.u32 8, %s19
      $region40: #{dgcnn_forward.25} parent=35 // pred_fallthru
        _
    $region36: #{dgcnn_forward.25} parent=5 // pred_fallthru
      _
    %p241 = scmp.le.s32.totalorder 1, %s12
    %p242 = scmp.lt.s32.totalorder %s12, 21
    %p243 = pnand %p241, %p242
    %p244 = pneg %p243
    // Predicated region
    $region41: #{dgcnn_forward.25} parent=5 // pred_check
      _
    $region42: #{dgcnn_forward.25} parent=5 // pred_check_branch
      %246 = sbr.rel (%p243) target = $region44
    $region43: #{dgcnn_forward.25} parent=5 // pred_region
      %s247 = ssub.s32 %s12, 1
      %s248 = smul.u32 8, %s21
      %p249 = scmp.lt.s32.totalorder %s22, 19
      %s250 = scalar_select %p249, %s22, 19
      %p251 = scmp.lt.s32.totalorder %s248, 7
      %s252 = scalar_select %p251, %s248, 7
      %s253 = smul.addr %s250, 8
      %s254 = sadd.s32 %s252, %s253
      %s255 = smul.addr %s254, 4
      %s256 = scalar_lea.vmem %s0, %s255
      %p257 = pneg %p52
      %p258 = pneg %p49
      %s259 = smul.u32 8, %s21
      %p260 = scmp.lt.s32.totalorder %s259, 7
      %s261 = scalar_select %p260, %s259, 7
      %s262 = smul.addr %s261, 4
      %s263 = scalar_lea.vmem %s1, %s262
      %p264 = pneg %p78
      %p265 = pneg %p75
      %p266 = pneg %p99
      %p267 = pneg %p96
      %p268 = pneg %p120
      %p269 = pneg %p117
      %p270 = pneg %p141
      %p271 = pneg %p138
      %p272 = pneg %p162
      %p273 = pneg %p159
      %p274 = pneg %p188
      %p275 = pneg %p185
      %s276 = smul.u32 8, %s21
      %p277 = scmp.lt.s32.totalorder %s276, 7
      %s278 = scalar_select %p277, %s276, 7
      %s279 = smul.addr %s278, 2
      %s280 = smul.addr %s279, 8
      %s281 = scalar_lea.vmem %s6, %s280
      %s282 = smul.u32 8, %s21
      %p283 = scmp.lt.s32.totalorder %s22, 19
      %s284 = scalar_select %p283, %s22, 19
      %p285 = scmp.lt.s32.totalorder %s282, 7
      %s286 = scalar_select %p285, %s282, 7
      %s287 = smul.addr %s284, 8
      %s288 = sadd.s32 %s286, %s287
      %s289 = smul.addr %s288, 4
      %s290 = scalar_lea.vmem %s0, %s289
      %s291 = smul.u32 8, %s21
      %s292 = smul.u32 8, %s21
      %p293 = scmp.lt.s32.totalorder %s292, 7
      %s294 = scalar_select %p293, %s292, 7
      %s295 = smul.addr %s294, 4
      %s296 = scalar_lea.vmem %s1, %s295
      %s297 = smul.u32 8, %s21
      %s298 = smul.u32 8, %s21
      %p299 = scmp.lt.s32.totalorder %s298, 7
      %s300 = scalar_select %p299, %s298, 7
      %s301 = smul.addr %s300, 2
      %s302 = smul.addr %s301, 8
      %s303 = scalar_lea.vmem %s6, %s302
      %s304 = smul.u32 8, %s21
      %p305 = scmp.eq.s32.totalorder %s22, 0
      // Predicated region
      $region45: #{dgcnn_forward.25} parent=43 // pred_check
        %p306 = pneg %p305
      $region46: #{dgcnn_forward.25} parent=43 // pred_check_branch
        %308 = sbr.rel (%p306) target = $region48
      $region47: #{dgcnn_forward.25} parent=43 // pred_region
        %v309 = vld [vmem:[%s296] sm:$0xf]
        %v310 = vld [vmem:[%s296 + $0x4] sm:$0xf]
        %v311 = vld [vmem:[%s296 + $0x8] sm:$0xf]
        %v312 = vld [vmem:[%s296 + $0xc] sm:$0xf]
        %v313 = vld [vmem:[%s296 + $0x10] sm:$0xf]
        %v314 = vld [vmem:[%s296 + $0x14] sm:$0xf]
        %v315 = vld [vmem:[%s296 + $0x18] sm:$0xf]
        %v316 = vld [vmem:[%s296 + $0x1c] sm:$0xf]
        %v317 = vld [vmem:[%s3] sm:$0xff]
        %v318 = vld [vmem:[%s3 + $0x8] sm:$0xff]
        %v319 = vld [vmem:[%s3 + $0x10] sm:$0xff]
        %v320 = vld [vmem:[%s3 + $0x18] sm:$0xff]
        %v321 = vld [vmem:[%s3 + $0x20] sm:$0xff]
        %v322 = vld [vmem:[%s3 + $0x28] sm:$0xff]
        %v323 = vld [vmem:[%s3 + $0x30] sm:$0xff]
        %v324 = vld [vmem:[%s3 + $0x38] sm:$0xff]
        %v325 = vld [vmem:[%s3 + $0x40] sm:$0xff]
        %v326 = vld [vmem:[%s3 + $0x48] sm:$0xff]
        %v327 = vld [vmem:[%s3 + $0x50] sm:$0xff]
        %v328 = vld [vmem:[%s3 + $0x58] sm:$0xff]
        %v329 = vld [vmem:[%s3 + $0x60] sm:$0xff]
        %v330 = vld [vmem:[%s3 + $0x68] sm:$0xff]
        %v331 = vld [vmem:[%s3 + $0x70] sm:$0xff]
        %v332 = vld [vmem:[%s3 + $0x78] sm:$0xff]
        %v341 = vunpack.c.l.b16 %v309
        %v342 = vunpack.c.l.b16 %v310
        %v343 = vunpack.c.l.b16 %v311
        %v344 = vunpack.c.l.b16 %v312
        %v345 = vunpack.c.l.b16 %v313
        %v346 = vunpack.c.l.b16 %v314
        %v347 = vunpack.c.l.b16 %v315
        %v348 = vunpack.c.l.b16 %v316
        %v349 = vpack.c.b16 %v342, %v341
        %v350 = vpack.c.b16 %v344, %v343
        %v351 = vpack.c.b16 %v346, %v345
        %v352 = vpack.c.b16 %v348, %v347
        %v373 = vunpack.c.l.b16 %v317
        %v374 = vunpack.c.h.b16 %v317
        %v375 = vunpack.c.l.b16 %v318
        %v376 = vunpack.c.h.b16 %v318
        %v377 = vunpack.c.l.b16 %v319
        %v378 = vunpack.c.h.b16 %v319
        %v379 = vunpack.c.l.b16 %v320
        %v380 = vunpack.c.h.b16 %v320
        %v381 = vunpack.c.l.b16 %v321
        %v382 = vunpack.c.h.b16 %v321
        %v383 = vunpack.c.l.b16 %v322
        %v384 = vunpack.c.h.b16 %v322
        %v385 = vunpack.c.l.b16 %v323
        %v386 = vunpack.c.h.b16 %v323
        %v387 = vunpack.c.l.b16 %v324
        %v388 = vunpack.c.h.b16 %v324
        %v389 = vunpack.c.l.b16 %v325
        %v390 = vunpack.c.h.b16 %v325
        %v391 = vunpack.c.l.b16 %v326
        %v392 = vunpack.c.h.b16 %v326
        %v393 = vunpack.c.l.b16 %v327
        %v394 = vunpack.c.h.b16 %v327
        %v395 = vunpack.c.l.b16 %v328
        %v396 = vunpack.c.h.b16 %v328
        %v397 = vunpack.c.l.b16 %v329
        %v398 = vunpack.c.h.b16 %v329
        %v399 = vunpack.c.l.b16 %v330
        %v400 = vunpack.c.h.b16 %v330
        %v401 = vunpack.c.l.b16 %v331
        %v402 = vunpack.c.h.b16 %v331
        %v403 = vunpack.c.l.b16 %v332
        %v404 = vunpack.c.h.b16 %v332
        %v405 = vpack.c.b16 %v375, %v373
        %v406 = vpack.c.b16 %v376, %v374
        %v407 = vpack.c.b16 %v379, %v377
        %v408 = vpack.c.b16 %v380, %v378
        %v409 = vpack.c.b16 %v383, %v381
        %v410 = vpack.c.b16 %v384, %v382
        %v411 = vpack.c.b16 %v387, %v385
        %v412 = vpack.c.b16 %v388, %v386
        %v413 = vpack.c.b16 %v391, %v389
        %v414 = vpack.c.b16 %v392, %v390
        %v415 = vpack.c.b16 %v395, %v393
        %v416 = vpack.c.b16 %v396, %v394
        %v417 = vpack.c.b16 %v399, %v397
        %v418 = vpack.c.b16 %v400, %v398
        %v419 = vpack.c.b16 %v403, %v401
        %v420 = vpack.c.b16 %v404, %v402
        %437 = vmatpush.bf16.msra.mxu0 %v419
        %438 = vmatpush.bf16.msra.mxu0 %v417
        %439 = vmatpush.bf16.msra.mxu0 %v415
        %440 = vmatpush.bf16.msra.mxu0 %v413
        %441 = vmatpush.bf16.msra.mxu0 %v411
        %442 = vmatpush.bf16.msra.mxu0 %v409
        %443 = vmatpush.bf16.msra.mxu0 %v407
        %444 = vmatpush.bf16.msra.mxu0 %v405
        %445 = vmatmul.bf16.gmra.mxu0 %v349
        %v446 = vpop.f32.mrf.mxu0
        %v447 = vadd.f32 0.0, %v446
        %v448 = vpop.f32.mrf.mxu0
        %v449 = vadd.f32 0.0, %v448
        %450 = vmatmul.bf16.gmra.mxu0 %v350
        %v451 = vpop.f32.mrf.mxu0
        %v452 = vadd.f32 0.0, %v451
        %v453 = vpop.f32.mrf.mxu0
        %v454 = vadd.f32 0.0, %v453
        %455 = vmatmul.bf16.gmra.mxu0 %v351
        %v456 = vpop.f32.mrf.mxu0
        %v457 = vadd.f32 0.0, %v456
        %v458 = vpop.f32.mrf.mxu0
        %v459 = vadd.f32 0.0, %v458
        %460 = vmatmul.bf16.gmra.mxu0 %v352
        %v461 = vpop.f32.mrf.mxu0
        %v462 = vadd.f32 0.0, %v461
        %v463 = vpop.f32.mrf.mxu0
        %v464 = vadd.f32 0.0, %v463
        %465 = vdwg.mxu0
        %466 = vmatpush.bf16.msra.mxu0 %v420
        %467 = vmatpush.bf16.msra.mxu0 %v418
        %468 = vmatpush.bf16.msra.mxu0 %v416
        %469 = vmatpush.bf16.msra.mxu0 %v414
        %470 = vmatpush.bf16.msra.mxu0 %v412
        %471 = vmatpush.bf16.msra.mxu0 %v410
        %472 = vmatpush.bf16.msra.mxu0 %v408
        %473 = vmatpush.bf16.msra.mxu0 %v406
        %474 = vmatmul.bf16.gmra.mxu0 %v349
        %v475 = vpop.f32.mrf.mxu0
        %v476 = vadd.f32 0.0, %v475
        %v477 = vpop.f32.mrf.mxu0
        %v478 = vadd.f32 0.0, %v477
        %479 = vmatmul.bf16.gmra.mxu0 %v350
        %v480 = vpop.f32.mrf.mxu0
        %v481 = vadd.f32 0.0, %v480
        %v482 = vpop.f32.mrf.mxu0
        %v483 = vadd.f32 0.0, %v482
        %484 = vmatmul.bf16.gmra.mxu0 %v351
        %v485 = vpop.f32.mrf.mxu0
        %v486 = vadd.f32 0.0, %v485
        %v487 = vpop.f32.mrf.mxu0
        %v488 = vadd.f32 0.0, %v487
        %489 = vmatmul.bf16.gmra.mxu0 %v352
        %v490 = vpop.f32.mrf.mxu0
        %v491 = vadd.f32 0.0, %v490
        %v492 = vpop.f32.mrf.mxu0
        %v493 = vadd.f32 0.0, %v492
        %494 = vdwg.mxu0
        %495 = vst [vmem:[#allocation2] sm:$0xff] %v447
        %496 = vst [vmem:[#allocation2 + $0x8] sm:$0xff] %v476
        %497 = vst [vmem:[#allocation2 + $0x10] sm:$0xff] %v449
        %498 = vst [vmem:[#allocation2 + $0x18] sm:$0xff] %v478
        %499 = vst [vmem:[#allocation2 + $0x20] sm:$0xff] %v452
        %500 = vst [vmem:[#allocation2 + $0x28] sm:$0xff] %v481
        %501 = vst [vmem:[#allocation2 + $0x30] sm:$0xff] %v454
        %502 = vst [vmem:[#allocation2 + $0x38] sm:$0xff] %v483
        %503 = vst [vmem:[#allocation2 + $0x40] sm:$0xff] %v457
        %504 = vst [vmem:[#allocation2 + $0x48] sm:$0xff] %v486
        %505 = vst [vmem:[#allocation2 + $0x50] sm:$0xff] %v459
        %506 = vst [vmem:[#allocation2 + $0x58] sm:$0xff] %v488
        %507 = vst [vmem:[#allocation2 + $0x60] sm:$0xff] %v462
        %508 = vst [vmem:[#allocation2 + $0x68] sm:$0xff] %v491
        %509 = vst [vmem:[#allocation2 + $0x70] sm:$0xff] %v464
        %510 = vst [vmem:[#allocation2 + $0x78] sm:$0xff] %v493
      $region48: #{dgcnn_forward.25} parent=43 // pred_fallthru
        _
      %v511 = vld [vmem:[%s290] sm:$0xf]
      %v512 = vld [vmem:[%s290 + $0x4] sm:$0xf]
      %v513 = vld [vmem:[%s290 + $0x8] sm:$0xf]
      %v514 = vld [vmem:[%s290 + $0xc] sm:$0xf]
      %v515 = vld [vmem:[%s290 + $0x10] sm:$0xf]
      %v516 = vld [vmem:[%s290 + $0x14] sm:$0xf]
      %v517 = vld [vmem:[%s290 + $0x18] sm:$0xf]
      %v518 = vld [vmem:[%s290 + $0x1c] sm:$0xf]
      %v519 = vld [vmem:[%s2] sm:$0xff]
      %v520 = vld [vmem:[%s2 + $0x8] sm:$0xff]
      %v521 = vld [vmem:[%s2 + $0x10] sm:$0xff]
      %v522 = vld [vmem:[%s2 + $0x18] sm:$0xff]
      %v523 = vld [vmem:[%s2 + $0x20] sm:$0xff]
      %v524 = vld [vmem:[%s2 + $0x28] sm:$0xff]
      %v525 = vld [vmem:[%s2 + $0x30] sm:$0xff]
      %v526 = vld [vmem:[%s2 + $0x38] sm:$0xff]
      %v527 = vld [vmem:[%s2 + $0x40] sm:$0xff]
      %v528 = vld [vmem:[%s2 + $0x48] sm:$0xff]
      %v529 = vld [vmem:[%s2 + $0x50] sm:$0xff]
      %v530 = vld [vmem:[%s2 + $0x58] sm:$0xff]
      %v531 = vld [vmem:[%s2 + $0x60] sm:$0xff]
      %v532 = vld [vmem:[%s2 + $0x68] sm:$0xff]
      %v533 = vld [vmem:[%s2 + $0x70] sm:$0xff]
      %v534 = vld [vmem:[%s2 + $0x78] sm:$0xff]
      %v535 = vld [vmem:[#allocation2] sm:$0xff]
      %v536 = vld [vmem:[#allocation2 + $0x8] sm:$0xff]
      %v537 = vld [vmem:[#allocation2 + $0x10] sm:$0xff]
      %v538 = vld [vmem:[#allocation2 + $0x18] sm:$0xff]
      %v539 = vld [vmem:[#allocation2 + $0x20] sm:$0xff]
      %v540 = vld [vmem:[#allocation2 + $0x28] sm:$0xff]
      %v541 = vld [vmem:[#allocation2 + $0x30] sm:$0xff]
      %v542 = vld [vmem:[#allocation2 + $0x38] sm:$0xff]
      %v543 = vld [vmem:[#allocation2 + $0x40] sm:$0xff]
      %v544 = vld [vmem:[#allocation2 + $0x48] sm:$0xff]
      %v545 = vld [vmem:[#allocation2 + $0x50] sm:$0xff]
      %v546 = vld [vmem:[#allocation2 + $0x58] sm:$0xff]
      %v547 = vld [vmem:[#allocation2 + $0x60] sm:$0xff]
      %v548 = vld [vmem:[#allocation2 + $0x68] sm:$0xff]
      %v549 = vld [vmem:[#allocation2 + $0x70] sm:$0xff]
      %v550 = vld [vmem:[#allocation2 + $0x78] sm:$0xff]
      %v559 = vunpack.c.l.b16 %v511
      %v560 = vunpack.c.l.b16 %v512
      %v561 = vunpack.c.l.b16 %v513
      %v562 = vunpack.c.l.b16 %v514
      %v563 = vunpack.c.l.b16 %v515
      %v564 = vunpack.c.l.b16 %v516
      %v565 = vunpack.c.l.b16 %v517
      %v566 = vunpack.c.l.b16 %v518
      %v567 = vpack.c.b16 %v560, %v559
      %v568 = vpack.c.b16 %v562, %v561
      %v569 = vpack.c.b16 %v564, %v563
      %v570 = vpack.c.b16 %v566, %v565
      %v591 = vunpack.c.l.b16 %v519
      %v592 = vunpack.c.h.b16 %v519
      %v593 = vunpack.c.l.b16 %v520
      %v594 = vunpack.c.h.b16 %v520
      %v595 = vunpack.c.l.b16 %v521
      %v596 = vunpack.c.h.b16 %v521
      %v597 = vunpack.c.l.b16 %v522
      %v598 = vunpack.c.h.b16 %v522
      %v599 = vunpack.c.l.b16 %v523
      %v600 = vunpack.c.h.b16 %v523
      %v601 = vunpack.c.l.b16 %v524
      %v602 = vunpack.c.h.b16 %v524
      %v603 = vunpack.c.l.b16 %v525
      %v604 = vunpack.c.h.b16 %v525
      %v605 = vunpack.c.l.b16 %v526
      %v606 = vunpack.c.h.b16 %v526
      %v607 = vunpack.c.l.b16 %v527
      %v608 = vunpack.c.h.b16 %v527
      %v609 = vunpack.c.l.b16 %v528
      %v610 = vunpack.c.h.b16 %v528
      %v611 = vunpack.c.l.b16 %v529
      %v612 = vunpack.c.h.b16 %v529
      %v613 = vunpack.c.l.b16 %v530
      %v614 = vunpack.c.h.b16 %v530
      %v615 = vunpack.c.l.b16 %v531
      %v616 = vunpack.c.h.b16 %v531
      %v617 = vunpack.c.l.b16 %v532
      %v618 = vunpack.c.h.b16 %v532
      %v619 = vunpack.c.l.b16 %v533
      %v620 = vunpack.c.h.b16 %v533
      %v621 = vunpack.c.l.b16 %v534
      %v622 = vunpack.c.h.b16 %v534
      %v623 = vpack.c.b16 %v593, %v591
      %v624 = vpack.c.b16 %v594, %v592
      %v625 = vpack.c.b16 %v597, %v595
      %v626 = vpack.c.b16 %v598, %v596
      %v627 = vpack.c.b16 %v601, %v599
      %v628 = vpack.c.b16 %v602, %v600
      %v629 = vpack.c.b16 %v605, %v603
      %v630 = vpack.c.b16 %v606, %v604
      %v631 = vpack.c.b16 %v609, %v607
      %v632 = vpack.c.b16 %v610, %v608
      %v633 = vpack.c.b16 %v613, %v611
      %v634 = vpack.c.b16 %v614, %v612
      %v635 = vpack.c.b16 %v617, %v615
      %v636 = vpack.c.b16 %v618, %v616
      %v637 = vpack.c.b16 %v621, %v619
      %v638 = vpack.c.b16 %v622, %v620
      %655 = vmatpush.bf16.msra.mxu0 %v637
      %656 = vmatpush.bf16.msra.mxu0 %v635
      %657 = vmatpush.bf16.msra.mxu0 %v633
      %658 = vmatpush.bf16.msra.mxu0 %v631
      %659 = vmatpush.bf16.msra.mxu0 %v629
      %660 = vmatpush.bf16.msra.mxu0 %v627
      %661 = vmatpush.bf16.msra.mxu0 %v625
      %662 = vmatpush.bf16.msra.mxu0 %v623
      %663 = vmatmul.bf16.gmra.mxu0 %v567
      %v664 = vpop.f32.mrf.mxu0
      %v665 = vadd.f32 %v535, %v664
      %v666 = vpop.f32.mrf.mxu0
      %v667 = vadd.f32 %v537, %v666
      %668 = vmatmul.bf16.gmra.mxu0 %v568
      %v669 = vpop.f32.mrf.mxu0
      %v670 = vadd.f32 %v539, %v669
      %v671 = vpop.f32.mrf.mxu0
      %v672 = vadd.f32 %v541, %v671
      %673 = vmatmul.bf16.gmra.mxu0 %v569
      %v674 = vpop.f32.mrf.mxu0
      %v675 = vadd.f32 %v543, %v674
      %v676 = vpop.f32.mrf.mxu0
      %v677 = vadd.f32 %v545, %v676
      %678 = vmatmul.bf16.gmra.mxu0 %v570
      %v679 = vpop.f32.mrf.mxu0
      %v680 = vadd.f32 %v547, %v679
      %v681 = vpop.f32.mrf.mxu0
      %v682 = vadd.f32 %v549, %v681
      %683 = vdwg.mxu0
      %684 = vmatpush.bf16.msra.mxu0 %v638
      %685 = vmatpush.bf16.msra.mxu0 %v636
      %686 = vmatpush.bf16.msra.mxu0 %v634
      %687 = vmatpush.bf16.msra.mxu0 %v632
      %688 = vmatpush.bf16.msra.mxu0 %v630
      %689 = vmatpush.bf16.msra.mxu0 %v628
      %690 = vmatpush.bf16.msra.mxu0 %v626
      %691 = vmatpush.bf16.msra.mxu0 %v624
      %692 = vmatmul.bf16.gmra.mxu0 %v567
      %v693 = vpop.f32.mrf.mxu0
      %v694 = vadd.f32 %v536, %v693
      %v695 = vpop.f32.mrf.mxu0
      %v696 = vadd.f32 %v538, %v695
      %697 = vmatmul.bf16.gmra.mxu0 %v568
      %v698 = vpop.f32.mrf.mxu0
      %v699 = vadd.f32 %v540, %v698
      %v700 = vpop.f32.mrf.mxu0
      %v701 = vadd.f32 %v542, %v700
      %702 = vmatmul.bf16.gmra.mxu0 %v569
      %v703 = vpop.f32.mrf.mxu0
      %v704 = vadd.f32 %v544, %v703
      %v705 = vpop.f32.mrf.mxu0
      %v706 = vadd.f32 %v546, %v705
      %707 = vmatmul.bf16.gmra.mxu0 %v570
      %v708 = vpop.f32.mrf.mxu0
      %v709 = vadd.f32 %v548, %v708
      %v710 = vpop.f32.mrf.mxu0
      %v711 = vadd.f32 %v550, %v710
      %712 = vdwg.mxu0
      %v713 = vld [vmem:[%s4] sm:$0x3]
      %v715 = vperm.slane %v713, 0
      %v716 = vperm.slane %v713, 1
      %v719 = vmul.f32 %v665, %v715
      %v720 = vmul.f32 %v694, %v716
      %v721 = vmul.f32 %v667, %v715
      %v722 = vmul.f32 %v696, %v716
      %v723 = vmul.f32 %v670, %v715
      %v724 = vmul.f32 %v699, %v716
      %v725 = vmul.f32 %v672, %v715
      %v726 = vmul.f32 %v701, %v716
      %v727 = vmul.f32 %v675, %v715
      %v728 = vmul.f32 %v704, %v716
      %v729 = vmul.f32 %v677, %v715
      %v730 = vmul.f32 %v706, %v716
      %v731 = vmul.f32 %v680, %v715
      %v732 = vmul.f32 %v709, %v716
      %v733 = vmul.f32 %v682, %v715
      %v734 = vmul.f32 %v711, %v716
      %v735 = vld [vmem:[%s5] sm:$0x3]
      %v737 = vperm.slane %v735, 0
      %v738 = vperm.slane %v735, 1
      %v741 = vadd.f32 %v719, %v737
      %v742 = vadd.f32 %v720, %v738
      %v743 = vadd.f32 %v721, %v737
      %v744 = vadd.f32 %v722, %v738
      %v745 = vadd.f32 %v723, %v737
      %v746 = vadd.f32 %v724, %v738
      %v747 = vadd.f32 %v725, %v737
      %v748 = vadd.f32 %v726, %v738
      %v749 = vadd.f32 %v727, %v737
      %v750 = vadd.f32 %v728, %v738
      %v751 = vadd.f32 %v729, %v737
      %v752 = vadd.f32 %v730, %v738
      %v753 = vadd.f32 %v731, %v737
      %v754 = vadd.f32 %v732, %v738
      %v755 = vadd.f32 %v733, %v737
      %v756 = vadd.f32 %v734, %v738
      %vm757 = vcmp.ge.f32.partialorder %v741, 0.0
      %vm758 = vcmp.ge.f32.partialorder %v742, 0.0
      %vm759 = vcmp.ge.f32.partialorder %v743, 0.0
      %vm760 = vcmp.ge.f32.partialorder %v744, 0.0
      %vm761 = vcmp.ge.f32.partialorder %v745, 0.0
      %vm762 = vcmp.ge.f32.partialorder %v746, 0.0
      %vm763 = vcmp.ge.f32.partialorder %v747, 0.0
      %vm764 = vcmp.ge.f32.partialorder %v748, 0.0
      %vm765 = vcmp.ge.f32.partialorder %v749, 0.0
      %vm766 = vcmp.ge.f32.partialorder %v750, 0.0
      %vm767 = vcmp.ge.f32.partialorder %v751, 0.0
      %vm768 = vcmp.ge.f32.partialorder %v752, 0.0
      %vm769 = vcmp.ge.f32.partialorder %v753, 0.0
      %vm770 = vcmp.ge.f32.partialorder %v754, 0.0
      %vm771 = vcmp.ge.f32.partialorder %v755, 0.0
      %vm772 = vcmp.ge.f32.partialorder %v756, 0.0
      %v773 = vmul.f32 %v741, 0.2
      %v774 = vmul.f32 %v742, 0.2
      %v775 = vmul.f32 %v743, 0.2
      %v776 = vmul.f32 %v744, 0.2
      %v777 = vmul.f32 %v745, 0.2
      %v778 = vmul.f32 %v746, 0.2
      %v779 = vmul.f32 %v747, 0.2
      %v780 = vmul.f32 %v748, 0.2
      %v781 = vmul.f32 %v749, 0.2
      %v782 = vmul.f32 %v750, 0.2
      %v783 = vmul.f32 %v751, 0.2
      %v784 = vmul.f32 %v752, 0.2
      %v785 = vmul.f32 %v753, 0.2
      %v786 = vmul.f32 %v754, 0.2
      %v787 = vmul.f32 %v755, 0.2
      %v788 = vmul.f32 %v756, 0.2
      %v789 = vsel %vm757, %v741, %v773
      %v790 = vsel %vm758, %v742, %v774
      %v791 = vsel %vm759, %v743, %v775
      %v792 = vsel %vm760, %v744, %v776
      %v793 = vsel %vm761, %v745, %v777
      %v794 = vsel %vm762, %v746, %v778
      %v795 = vsel %vm763, %v747, %v779
      %v796 = vsel %vm764, %v748, %v780
      %v797 = vsel %vm765, %v749, %v781
      %v798 = vsel %vm766, %v750, %v782
      %v799 = vsel %vm767, %v751, %v783
      %v800 = vsel %vm768, %v752, %v784
      %v801 = vsel %vm769, %v753, %v785
      %v802 = vsel %vm770, %v754, %v786
      %v803 = vsel %vm771, %v755, %v787
      %v804 = vsel %vm772, %v756, %v788
      // Predicated region
      $region49: #{dgcnn_forward.25} parent=43 // pred_check
        %p805 = pneg %p305
      $region50: #{dgcnn_forward.25} parent=43 // pred_check_branch
        %807 = sbr.rel (%p805) target = $region52
      $region51: #{dgcnn_forward.25} parent=43 // pred_region
        %808 = vst [vmem:[#allocation3] sm:$0xff] %v789
        %809 = vst [vmem:[#allocation3 + $0x8] sm:$0xff] %v790
        %810 = vst [vmem:[#allocation3 + $0x10] sm:$0xff] %v791
        %811 = vst [vmem:[#allocation3 + $0x18] sm:$0xff] %v792
        %812 = vst [vmem:[#allocation3 + $0x20] sm:$0xff] %v793
        %813 = vst [vmem:[#allocation3 + $0x28] sm:$0xff] %v794
        %814 = vst [vmem:[#allocation3 + $0x30] sm:$0xff] %v795
        %815 = vst [vmem:[#allocation3 + $0x38] sm:$0xff] %v796
        %816 = vst [vmem:[#allocation3 + $0x40] sm:$0xff] %v797
        %817 = vst [vmem:[#allocation3 + $0x48] sm:$0xff] %v798
        %818 = vst [vmem:[#allocation3 + $0x50] sm:$0xff] %v799
        %819 = vst [vmem:[#allocation3 + $0x58] sm:$0xff] %v800
        %820 = vst [vmem:[#allocation3 + $0x60] sm:$0xff] %v801
        %821 = vst [vmem:[#allocation3 + $0x68] sm:$0xff] %v802
        %822 = vst [vmem:[#allocation3 + $0x70] sm:$0xff] %v803
        %823 = vst [vmem:[#allocation3 + $0x78] sm:$0xff] %v804
      $region52: #{dgcnn_forward.25} parent=43 // pred_fallthru
        _
      %p824 = scmp.gt.s32.totalorder %s22, 0
      // Predicated region
      $region53: #{dgcnn_forward.25} parent=43 // pred_check
        %p825 = pneg %p824
      $region54: #{dgcnn_forward.25} parent=43 // pred_check_branch
        %827 = sbr.rel (%p825) target = $region56
      $region55: #{dgcnn_forward.25} parent=43 // pred_region
        %v828 = vld [vmem:[#allocation3] sm:$0xff]
        %v829 = vld [vmem:[#allocation3 + $0x8] sm:$0xff]
        %v830 = vld [vmem:[#allocation3 + $0x10] sm:$0xff]
        %v831 = vld [vmem:[#allocation3 + $0x18] sm:$0xff]
        %v832 = vld [vmem:[#allocation3 + $0x20] sm:$0xff]
        %v833 = vld [vmem:[#allocation3 + $0x28] sm:$0xff]
        %v834 = vld [vmem:[#allocation3 + $0x30] sm:$0xff]
        %v835 = vld [vmem:[#allocation3 + $0x38] sm:$0xff]
        %v836 = vld [vmem:[#allocation3 + $0x40] sm:$0xff]
        %v837 = vld [vmem:[#allocation3 + $0x48] sm:$0xff]
        %v838 = vld [vmem:[#allocation3 + $0x50] sm:$0xff]
        %v839 = vld [vmem:[#allocation3 + $0x58] sm:$0xff]
        %v840 = vld [vmem:[#allocation3 + $0x60] sm:$0xff]
        %v841 = vld [vmem:[#allocation3 + $0x68] sm:$0xff]
        %v842 = vld [vmem:[#allocation3 + $0x70] sm:$0xff]
        %v843 = vld [vmem:[#allocation3 + $0x78] sm:$0xff]
        %v844 = vmax.f32 %v828, %v789
        %v845 = vmax.f32 %v829, %v790
        %v846 = vmax.f32 %v830, %v791
        %v847 = vmax.f32 %v831, %v792
        %v848 = vmax.f32 %v832, %v793
        %v849 = vmax.f32 %v833, %v794
        %v850 = vmax.f32 %v834, %v795
        %v851 = vmax.f32 %v835, %v796
        %v852 = vmax.f32 %v836, %v797
        %v853 = vmax.f32 %v837, %v798
        %v854 = vmax.f32 %v838, %v799
        %v855 = vmax.f32 %v839, %v800
        %v856 = vmax.f32 %v840, %v801
        %v857 = vmax.f32 %v841, %v802
        %v858 = vmax.f32 %v842, %v803
        %v859 = vmax.f32 %v843, %v804
        %860 = vst [vmem:[#allocation3] sm:$0xff] %v844
        %861 = vst [vmem:[#allocation3 + $0x8] sm:$0xff] %v845
        %862 = vst [vmem:[#allocation3 + $0x10] sm:$0xff] %v846
        %863 = vst [vmem:[#allocation3 + $0x18] sm:$0xff] %v847
        %864 = vst [vmem:[#allocation3 + $0x20] sm:$0xff] %v848
        %865 = vst [vmem:[#allocation3 + $0x28] sm:$0xff] %v849
        %866 = vst [vmem:[#allocation3 + $0x30] sm:$0xff] %v850
        %867 = vst [vmem:[#allocation3 + $0x38] sm:$0xff] %v851
        %868 = vst [vmem:[#allocation3 + $0x40] sm:$0xff] %v852
        %869 = vst [vmem:[#allocation3 + $0x48] sm:$0xff] %v853
        %870 = vst [vmem:[#allocation3 + $0x50] sm:$0xff] %v854
        %871 = vst [vmem:[#allocation3 + $0x58] sm:$0xff] %v855
        %872 = vst [vmem:[#allocation3 + $0x60] sm:$0xff] %v856
        %873 = vst [vmem:[#allocation3 + $0x68] sm:$0xff] %v857
        %874 = vst [vmem:[#allocation3 + $0x70] sm:$0xff] %v858
        %875 = vst [vmem:[#allocation3 + $0x78] sm:$0xff] %v859
      $region56: #{dgcnn_forward.25} parent=43 // pred_fallthru
        _
      %p876 = scmp.eq.s32.totalorder %s22, 19
      // Predicated region
      $region57: #{dgcnn_forward.25} parent=43 // pred_check
        %p877 = pneg %p876
      $region58: #{dgcnn_forward.25} parent=43 // pred_check_branch
        %879 = sbr.rel (%p877) target = $region60
      $region59: #{dgcnn_forward.25} parent=43 // pred_region
        %v880 = vld [vmem:[#allocation3] sm:$0xff]
        %v881 = vld [vmem:[#allocation3 + $0x8] sm:$0xff]
        %v882 = vld [vmem:[#allocation3 + $0x10] sm:$0xff]
        %v883 = vld [vmem:[#allocation3 + $0x18] sm:$0xff]
        %v884 = vld [vmem:[#allocation3 + $0x20] sm:$0xff]
        %v885 = vld [vmem:[#allocation3 + $0x28] sm:$0xff]
        %v886 = vld [vmem:[#allocation3 + $0x30] sm:$0xff]
        %v887 = vld [vmem:[#allocation3 + $0x38] sm:$0xff]
        %v888 = vld [vmem:[#allocation3 + $0x40] sm:$0xff]
        %v889 = vld [vmem:[#allocation3 + $0x48] sm:$0xff]
        %v890 = vld [vmem:[#allocation3 + $0x50] sm:$0xff]
        %v891 = vld [vmem:[#allocation3 + $0x58] sm:$0xff]
        %v892 = vld [vmem:[#allocation3 + $0x60] sm:$0xff]
        %v893 = vld [vmem:[#allocation3 + $0x68] sm:$0xff]
        %v894 = vld [vmem:[#allocation3 + $0x70] sm:$0xff]
        %v895 = vld [vmem:[#allocation3 + $0x78] sm:$0xff]
        %896 = vst [vmem:[%s303] sm:$0xff] %v880
        %897 = vst [vmem:[%s303 + $0x8] sm:$0xff] %v881
        %898 = vst [vmem:[%s303 + $0x10] sm:$0xff] %v882
        %899 = vst [vmem:[%s303 + $0x18] sm:$0xff] %v883
        %900 = vst [vmem:[%s303 + $0x20] sm:$0xff] %v884
        %901 = vst [vmem:[%s303 + $0x28] sm:$0xff] %v885
        %902 = vst [vmem:[%s303 + $0x30] sm:$0xff] %v886
        %903 = vst [vmem:[%s303 + $0x38] sm:$0xff] %v887
        %904 = vst [vmem:[%s303 + $0x40] sm:$0xff] %v888
        %905 = vst [vmem:[%s303 + $0x48] sm:$0xff] %v889
        %906 = vst [vmem:[%s303 + $0x50] sm:$0xff] %v890
        %907 = vst [vmem:[%s303 + $0x58] sm:$0xff] %v891
        %908 = vst [vmem:[%s303 + $0x60] sm:$0xff] %v892
        %909 = vst [vmem:[%s303 + $0x68] sm:$0xff] %v893
        %910 = vst [vmem:[%s303 + $0x70] sm:$0xff] %v894
        %911 = vst [vmem:[%s303 + $0x78] sm:$0xff] %v895
      $region60: #{dgcnn_forward.25} parent=43 // pred_fallthru
        _
      %s912 = smul.u32 8, %s21
      %p913 = scmp.lt.s32.totalorder %s912, 7
      %s914 = scalar_select %p913, %s912, 7
      %s915 = smul.addr %s914, 2
      %s916 = smul.addr %s915, 8
      %s917 = scalar_lea.vmem %s6, %s916
      // Predicated region
      $region61: #{dgcnn_forward.25} parent=43 // pred_check
        %p918 = pneg %p185
      $region62: #{dgcnn_forward.25} parent=43 // pred_check_branch
        %920 = sbr.rel (%p918) target = $region64
      $region63: #{dgcnn_forward.25} parent=43 // pred_region
        %s921 = smul.u32 8, %s21
      $region64: #{dgcnn_forward.25} parent=43 // pred_fallthru
        _
      // Predicated region
      $region65: #{dgcnn_forward.25} parent=43 // pred_check
        %p922 = pneg %p185
      $region66: #{dgcnn_forward.25} parent=43 // pred_check_branch
        %924 = sbr.rel (%p922) target = $region68
      $region67: #{dgcnn_forward.25} parent=43 // pred_region
        %s925 = smul.u32 8, %s21
        %p926 = scmp.lt.s32.totalorder %s925, 7
        %s927 = scalar_select %p926, %s925, 7
        %s928 = smul.addr %s927, 2
        %s929 = smul.addr %s928, 8
        %s930 = scalar_lea.vmem %s6, %s929
      $region68: #{dgcnn_forward.25} parent=43 // pred_fallthru
        _
    $region44: #{dgcnn_forward.25} parent=5 // pred_fallthru
      _
    %p931 = scmp.le.s32.totalorder 2, %s12
    // Predicated region
    $region69: #{dgcnn_forward.25} parent=5 // pred_check
      %p932 = pneg %p931
    $region70: #{dgcnn_forward.25} parent=5 // pred_check_branch
      %934 = sbr.rel (%p932) target = $region72
    $region71: #{dgcnn_forward.25} parent=5 // pred_region
      %s935 = ssub.s32 %s12, 2
    $region72: #{dgcnn_forward.25} parent=5 // pred_fallthru
      _
  $region6: #{dgcnn_forward.25} parent=0 // loop_footer
    %s16 = sadd.s32 1, %s12
  $region7: #{dgcnn_forward.25} parent=0 // loop_footer_branch
    %11 = sbr.rel target = $region3
  $region8: #{dgcnn_forward.25} parent=0 // loop_exit
    _

// kernel: dgcnn_forward.26
$region0: #{dgcnn_forward.26}
  #allocation0 [shape = 'u32[]', space=smem, size = 0x4, offset = 0x4, fixed_abs, tag = 'smem constant byte address 0x4 - core index']
  #allocation1 [shape = 'u32[72,128]{1,0:T(1,128)}', space=vmem, size = 0x9000, scoped, tag = 'internal scratch']
  %s0 = inlined_call_operand.vmem [shape: f32[64,512], index: 0, kind: input, shape index: {}]
  %s1 = inlined_call_operand.vmem [shape: bf16[512,1024], index: 1, kind: input, shape index: {}]
  %s2 = inlined_call_operand.vmem [shape: f32[1,1024], index: 2, kind: input, shape index: {}]
  %s3 = inlined_call_operand.vmem [shape: f32[1,1024], index: 3, kind: input, shape index: {}]
  %s4 = inlined_call_operand.vmem [shape: f32[64,1024], index: 4, kind: output, shape index: {}]
  %s5 = sld [smem:[#allocation0]]
  $region26: #{dgcnn_forward.26} parent=0
    _
  %s7 = ssub.s32 1, %s5
  %s8 = scalar_select 0, %s7, %s5
  // Predicated region
  $region2: #{dgcnn_forward.26} parent=0 // pred_check
    _
  $region3: #{dgcnn_forward.26} parent=0 // pred_check_branch
    %10 = sbr.rel (0) target = $region5
  $region4: #{dgcnn_forward.26} parent=0 // pred_region
    _
  $region5: #{dgcnn_forward.26} parent=0 // pred_fallthru
    _
  // Predicated region
  $region6: #{dgcnn_forward.26} parent=0 // pred_check
    _
  $region7: #{dgcnn_forward.26} parent=0 // pred_check_branch
    %12 = sbr.rel (0) target = $region9
  $region8: #{dgcnn_forward.26} parent=0 // pred_region
    _
  $region9: #{dgcnn_forward.26} parent=0 // pred_fallthru
    _
  // Predicated region
  $region10: #{dgcnn_forward.26} parent=0 // pred_check
    _
  $region11: #{dgcnn_forward.26} parent=0 // pred_check_branch
    %14 = sbr.rel (0) target = $region13
  $region12: #{dgcnn_forward.26} parent=0 // pred_region
    _
  $region13: #{dgcnn_forward.26} parent=0 // pred_fallthru
    _
  // Predicated region
  $region14: #{dgcnn_forward.26} parent=0 // pred_check
    _
  $region15: #{dgcnn_forward.26} parent=0 // pred_check_branch
    %16 = sbr.rel (0) target = $region17
  $region16: #{dgcnn_forward.26} parent=0 // pred_region
    _
  $region17: #{dgcnn_forward.26} parent=0 // pred_fallthru
    _
  %v17 = vld [vmem:[%s0] sm:$0xff]
  %v18 = vld [vmem:[%s0 + $0x8] sm:$0xff]
  %v19 = vld [vmem:[%s0 + $0x10] sm:$0xff]
  %v20 = vld [vmem:[%s0 + $0x18] sm:$0xff]
  %v21 = vld [vmem:[%s0 + $0x20] sm:$0xff]
  %v22 = vld [vmem:[%s0 + $0x28] sm:$0xff]
  %v23 = vld [vmem:[%s0 + $0x30] sm:$0xff]
  %v24 = vld [vmem:[%s0 + $0x38] sm:$0xff]
  %v25 = vld [vmem:[%s0 + $0x40] sm:$0xff]
  %v26 = vld [vmem:[%s0 + $0x48] sm:$0xff]
  %v27 = vld [vmem:[%s0 + $0x50] sm:$0xff]
  %v28 = vld [vmem:[%s0 + $0x58] sm:$0xff]
  %v29 = vld [vmem:[%s0 + $0x60] sm:$0xff]
  %v30 = vld [vmem:[%s0 + $0x68] sm:$0xff]
  %v31 = vld [vmem:[%s0 + $0x70] sm:$0xff]
  %v32 = vld [vmem:[%s0 + $0x78] sm:$0xff]
  %v33 = vld [vmem:[%s0 + $0x80] sm:$0xff]
  %v34 = vld [vmem:[%s0 + $0x88] sm:$0xff]
  %v35 = vld [vmem:[%s0 + $0x90] sm:$0xff]
  %v36 = vld [vmem:[%s0 + $0x98] sm:$0xff]
  %v37 = vld [vmem:[%s0 + $0xa0] sm:$0xff]
  %v38 = vld [vmem:[%s0 + $0xa8] sm:$0xff]
  %v39 = vld [vmem:[%s0 + $0xb0] sm:$0xff]
  %v40 = vld [vmem:[%s0 + $0xb8] sm:$0xff]
  %v41 = vld [vmem:[%s0 + $0xc0] sm:$0xff]
  %v42 = vld [vmem:[%s0 + $0xc8] sm:$0xff]
  %v43 = vld [vmem:[%s0 + $0xd0] sm:$0xff]
  %v44 = vld [vmem:[%s0 + $0xd8] sm:$0xff]
  %v45 = vld [vmem:[%s0 + $0xe0] sm:$0xff]
  %v46 = vld [vmem:[%s0 + $0xe8] sm:$0xff]
  %v47 = vld [vmem:[%s0 + $0xf0] sm:$0xff]
  %v48 = vld [vmem:[%s0 + $0xf8] sm:$0xff]
  %v49 = vpack.c.bf16 %v21, %v17
  %v50 = vpack.c.bf16 %v22, %v18
  %v51 = vpack.c.bf16 %v23, %v19
  %v52 = vpack.c.bf16 %v24, %v20
  %v53 = vpack.c.bf16 %v29, %v25
  %v54 = vpack.c.bf16 %v30, %v26
  %v55 = vpack.c.bf16 %v31, %v27
  %v56 = vpack.c.bf16 %v32, %v28
  %v57 = vpack.c.bf16 %v37, %v33
  %v58 = vpack.c.bf16 %v38, %v34
  %v59 = vpack.c.bf16 %v39, %v35
  %v60 = vpack.c.bf16 %v40, %v36
  %v61 = vpack.c.bf16 %v45, %v41
  %v62 = vpack.c.bf16 %v46, %v42
  %v63 = vpack.c.bf16 %v47, %v43
  %v64 = vpack.c.bf16 %v48, %v44
  %v65 = vld [vmem:[%s1] sm:$0xff]
  %v66 = vld [vmem:[%s1 + $0x8] sm:$0xff]
  %v67 = vld [vmem:[%s1 + $0x10] sm:$0xff]
  %v68 = vld [vmem:[%s1 + $0x18] sm:$0xff]
  %v69 = vld [vmem:[%s1 + $0x20] sm:$0xff]
  %v70 = vld [vmem:[%s1 + $0x28] sm:$0xff]
  %v71 = vld [vmem:[%s1 + $0x30] sm:$0xff]
  %v72 = vld [vmem:[%s1 + $0x38] sm:$0xff]
  %v73 = vld [vmem:[%s1 + $0x40] sm:$0xff]
  %v74 = vld [vmem:[%s1 + $0x48] sm:$0xff]
  %v75 = vld [vmem:[%s1 + $0x50] sm:$0xff]
  %v76 = vld [vmem:[%s1 + $0x58] sm:$0xff]
  %v77 = vld [vmem:[%s1 + $0x60] sm:$0xff]
  %v78 = vld [vmem:[%s1 + $0x68] sm:$0xff]
  %v79 = vld [vmem:[%s1 + $0x70] sm:$0xff]
  %v80 = vld [vmem:[%s1 + $0x78] sm:$0xff]
  %v81 = vld [vmem:[%s1 + $0x80] sm:$0xff]
  %v82 = vld [vmem:[%s1 + $0x88] sm:$0xff]
  %v83 = vld [vmem:[%s1 + $0x90] sm:$0xff]
  %v84 = vld [vmem:[%s1 + $0x98] sm:$0xff]
  %v85 = vld [vmem:[%s1 + $0xa0] sm:$0xff]
  %v86 = vld [vmem:[%s1 + $0xa8] sm:$0xff]
  %v87 = vld [vmem:[%s1 + $0xb0] sm:$0xff]
  %v88 = vld [vmem:[%s1 + $0xb8] sm:$0xff]
  %v89 = vld [vmem:[%s1 + $0xc0] sm:$0xff]
  %v90 = vld [vmem:[%s1 + $0xc8] sm:$0xff]
  %v91 = vld [vmem:[%s1 + $0xd0] sm:$0xff]
  %v92 = vld [vmem:[%s1 + $0xd8] sm:$0xff]
  %v93 = vld [vmem:[%s1 + $0xe0] sm:$0xff]
  %v94 = vld [vmem:[%s1 + $0xe8] sm:$0xff]
  %v95 = vld [vmem:[%s1 + $0xf0] sm:$0xff]
  %v96 = vld [vmem:[%s1 + $0xf8] sm:$0xff]
  %v97 = vld [vmem:[%s1 + $0x100] sm:$0xff]
  %v98 = vld [vmem:[%s1 + $0x108] sm:$0xff]
  %v99 = vld [vmem:[%s1 + $0x110] sm:$0xff]
  %v100 = vld [vmem:[%s1 + $0x118] sm:$0xff]
  %v101 = vld [vmem:[%s1 + $0x120] sm:$0xff]
  %v102 = vld [vmem:[%s1 + $0x128] sm:$0xff]
  %v103 = vld [vmem:[%s1 + $0x130] sm:$0xff]
  %v104 = vld [vmem:[%s1 + $0x138] sm:$0xff]
  %v105 = vld [vmem:[%s1 + $0x140] sm:$0xff]
  %v106 = vld [vmem:[%s1 + $0x148] sm:$0xff]
  %v107 = vld [vmem:[%s1 + $0x150] sm:$0xff]
  %v108 = vld [vmem:[%s1 + $0x158] sm:$0xff]
  %v109 = vld [vmem:[%s1 + $0x160] sm:$0xff]
  %v110 = vld [vmem:[%s1 + $0x168] sm:$0xff]
  %v111 = vld [vmem:[%s1 + $0x170] sm:$0xff]
  %v112 = vld [vmem:[%s1 + $0x178] sm:$0xff]
  %v113 = vld [vmem:[%s1 + $0x180] sm:$0xff]
  %v114 = vld [vmem:[%s1 + $0x188] sm:$0xff]
  %v115 = vld [vmem:[%s1 + $0x190] sm:$0xff]
  %v116 = vld [vmem:[%s1 + $0x198] sm:$0xff]
  %v117 = vld [vmem:[%s1 + $0x1a0] sm:$0xff]
  %v118 = vld [vmem:[%s1 + $0x1a8] sm:$0xff]
  %v119 = vld [vmem:[%s1 + $0x1b0] sm:$0xff]
  %v120 = vld [vmem:[%s1 + $0x1b8] sm:$0xff]
  %v121 = vld [vmem:[%s1 + $0x1c0] sm:$0xff]
  %v122 = vld [vmem:[%s1 + $0x1c8] sm:$0xff]
  %v123 = vld [vmem:[%s1 + $0x1d0] sm:$0xff]
  %v124 = vld [vmem:[%s1 + $0x1d8] sm:$0xff]
  %v125 = vld [vmem:[%s1 + $0x1e0] sm:$0xff]
  %v126 = vld [vmem:[%s1 + $0x1e8] sm:$0xff]
  %v127 = vld [vmem:[%s1 + $0x1f0] sm:$0xff]
  %v128 = vld [vmem:[%s1 + $0x1f8] sm:$0xff]
  %v129 = vld [vmem:[%s1 + $0x200] sm:$0xff]
  %v130 = vld [vmem:[%s1 + $0x208] sm:$0xff]
  %v131 = vld [vmem:[%s1 + $0x210] sm:$0xff]
  %v132 = vld [vmem:[%s1 + $0x218] sm:$0xff]
  %v133 = vld [vmem:[%s1 + $0x220] sm:$0xff]
  %v134 = vld [vmem:[%s1 + $0x228] sm:$0xff]
  %v135 = vld [vmem:[%s1 + $0x230] sm:$0xff]
  %v136 = vld [vmem:[%s1 + $0x238] sm:$0xff]
  %v137 = vld [vmem:[%s1 + $0x240] sm:$0xff]
  %v138 = vld [vmem:[%s1 + $0x248] sm:$0xff]
  %v139 = vld [vmem:[%s1 + $0x250] sm:$0xff]
  %v140 = vld [vmem:[%s1 + $0x258] sm:$0xff]
  %v141 = vld [vmem:[%s1 + $0x260] sm:$0xff]
  %v142 = vld [vmem:[%s1 + $0x268] sm:$0xff]
  %v143 = vld [vmem:[%s1 + $0x270] sm:$0xff]
  %v144 = vld [vmem:[%s1 + $0x278] sm:$0xff]
  %v145 = vld [vmem:[%s1 + $0x280] sm:$0xff]
  %v146 = vld [vmem:[%s1 + $0x288] sm:$0xff]
  %v147 = vld [vmem:[%s1 + $0x290] sm:$0xff]
  %v148 = vld [vmem:[%s1 + $0x298] sm:$0xff]
  %v149 = vld [vmem:[%s1 + $0x2a0] sm:$0xff]
  %v150 = vld [vmem:[%s1 + $0x2a8] sm:$0xff]
  %v151 = vld [vmem:[%s1 + $0x2b0] sm:$0xff]
  %v152 = vld [vmem:[%s1 + $0x2b8] sm:$0xff]
  %v153 = vld [vmem:[%s1 + $0x2c0] sm:$0xff]
  %v154 = vld [vmem:[%s1 + $0x2c8] sm:$0xff]
  %v155 = vld [vmem:[%s1 + $0x2d0] sm:$0xff]
  %v156 = vld [vmem:[%s1 + $0x2d8] sm:$0xff]
  %v157 = vld [vmem:[%s1 + $0x2e0] sm:$0xff]
  %v158 = vld [vmem:[%s1 + $0x2e8] sm:$0xff]
  %v159 = vld [vmem:[%s1 + $0x2f0] sm:$0xff]
  %v160 = vld [vmem:[%s1 + $0x2f8] sm:$0xff]
  %v161 = vld [vmem:[%s1 + $0x300] sm:$0xff]
  %v162 = vld [vmem:[%s1 + $0x308] sm:$0xff]
  %v163 = vld [vmem:[%s1 + $0x310] sm:$0xff]
  %v164 = vld [vmem:[%s1 + $0x318] sm:$0xff]
  %v165 = vld [vmem:[%s1 + $0x320] sm:$0xff]
  %v166 = vld [vmem:[%s1 + $0x328] sm:$0xff]
  %v167 = vld [vmem:[%s1 + $0x330] sm:$0xff]
  %v168 = vld [vmem:[%s1 + $0x338] sm:$0xff]
  %v169 = vld [vmem:[%s1 + $0x340] sm:$0xff]
  %v170 = vld [vmem:[%s1 + $0x348] sm:$0xff]
  %v171 = vld [vmem:[%s1 + $0x350] sm:$0xff]
  %v172 = vld [vmem:[%s1 + $0x358] sm:$0xff]
  %v173 = vld [vmem:[%s1 + $0x360] sm:$0xff]
  %v174 = vld [vmem:[%s1 + $0x368] sm:$0xff]
  %v175 = vld [vmem:[%s1 + $0x370] sm:$0xff]
  %v176 = vld [vmem:[%s1 + $0x378] sm:$0xff]
  %v177 = vld [vmem:[%s1 + $0x380] sm:$0xff]
  %v178 = vld [vmem:[%s1 + $0x388] sm:$0xff]
  %v179 = vld [vmem:[%s1 + $0x390] sm:$0xff]
  %v180 = vld [vmem:[%s1 + $0x398] sm:$0xff]
  %v181 = vld [vmem:[%s1 + $0x3a0] sm:$0xff]
  %v182 = vld [vmem:[%s1 + $0x3a8] sm:$0xff]
  %v183 = vld [vmem:[%s1 + $0x3b0] sm:$0xff]
  %v184 = vld [vmem:[%s1 + $0x3b8] sm:$0xff]
  %v185 = vld [vmem:[%s1 + $0x3c0] sm:$0xff]
  %v186 = vld [vmem:[%s1 + $0x3c8] sm:$0xff]
  %v187 = vld [vmem:[%s1 + $0x3d0] sm:$0xff]
  %v188 = vld [vmem:[%s1 + $0x3d8] sm:$0xff]
  %v189 = vld [vmem:[%s1 + $0x3e0] sm:$0xff]
  %v190 = vld [vmem:[%s1 + $0x3e8] sm:$0xff]
  %v191 = vld [vmem:[%s1 + $0x3f0] sm:$0xff]
  %v192 = vld [vmem:[%s1 + $0x3f8] sm:$0xff]
  %v193 = vld [vmem:[%s1 + $0x400] sm:$0xff]
  %v194 = vld [vmem:[%s1 + $0x408] sm:$0xff]
  %v195 = vld [vmem:[%s1 + $0x410] sm:$0xff]
  %v196 = vld [vmem:[%s1 + $0x418] sm:$0xff]
  %v197 = vld [vmem:[%s1 + $0x420] sm:$0xff]
  %v198 = vld [vmem:[%s1 + $0x428] sm:$0xff]
  %v199 = vld [vmem:[%s1 + $0x430] sm:$0xff]
  %v200 = vld [vmem:[%s1 + $0x438] sm:$0xff]
  %v201 = vld [vmem:[%s1 + $0x440] sm:$0xff]
  %v202 = vld [vmem:[%s1 + $0x448] sm:$0xff]
  %v203 = vld [vmem:[%s1 + $0x450] sm:$0xff]
  %v204 = vld [vmem:[%s1 + $0x458] sm:$0xff]
  %v205 = vld [vmem:[%s1 + $0x460] sm:$0xff]
  %v206 = vld [vmem:[%s1 + $0x468] sm:$0xff]
  %v207 = vld [vmem:[%s1 + $0x470] sm:$0xff]
  %v208 = vld [vmem:[%s1 + $0x478] sm:$0xff]
  %v209 = vld [vmem:[%s1 + $0x480] sm:$0xff]
  %v210 = vld [vmem:[%s1 + $0x488] sm:$0xff]
  %v211 = vld [vmem:[%s1 + $0x490] sm:$0xff]
  %v212 = vld [vmem:[%s1 + $0x498] sm:$0xff]
  %v213 = vld [vmem:[%s1 + $0x4a0] sm:$0xff]
  %v214 = vld [vmem:[%s1 + $0x4a8] sm:$0xff]
  %v215 = vld [vmem:[%s1 + $0x4b0] sm:$0xff]
  %v216 = vld [vmem:[%s1 + $0x4b8] sm:$0xff]
  %v217 = vld [vmem:[%s1 + $0x4c0] sm:$0xff]
  %v218 = vld [vmem:[%s1 + $0x4c8] sm:$0xff]
  %v219 = vld [vmem:[%s1 + $0x4d0] sm:$0xff]
  %v220 = vld [vmem:[%s1 + $0x4d8] sm:$0xff]
  %v221 = vld [vmem:[%s1 + $0x4e0] sm:$0xff]
  %v222 = vld [vmem:[%s1 + $0x4e8] sm:$0xff]
  %v223 = vld [vmem:[%s1 + $0x4f0] sm:$0xff]
  %v224 = vld [vmem:[%s1 + $0x4f8] sm:$0xff]
  %v225 = vld [vmem:[%s1 + $0x500] sm:$0xff]
  %v226 = vld [vmem:[%s1 + $0x508] sm:$0xff]
  %v227 = vld [vmem:[%s1 + $0x510] sm:$0xff]
  %v228 = vld [vmem:[%s1 + $0x518] sm:$0xff]
  %v229 = vld [vmem:[%s1 + $0x520] sm:$0xff]
  %v230 = vld [vmem:[%s1 + $0x528] sm:$0xff]
  %v231 = vld [vmem:[%s1 + $0x530] sm:$0xff]
  %v232 = vld [vmem:[%s1 + $0x538] sm:$0xff]
  %v233 = vld [vmem:[%s1 + $0x540] sm:$0xff]
  %v234 = vld [vmem:[%s1 + $0x548] sm:$0xff]
  %v235 = vld [vmem:[%s1 + $0x550] sm:$0xff]
  %v236 = vld [vmem:[%s1 + $0x558] sm:$0xff]
  %v237 = vld [vmem:[%s1 + $0x560] sm:$0xff]
  %v238 = vld [vmem:[%s1 + $0x568] sm:$0xff]
  %v239 = vld [vmem:[%s1 + $0x570] sm:$0xff]
  %v240 = vld [vmem:[%s1 + $0x578] sm:$0xff]
  %v241 = vld [vmem:[%s1 + $0x580] sm:$0xff]
  %v242 = vld [vmem:[%s1 + $0x588] sm:$0xff]
  %v243 = vld [vmem:[%s1 + $0x590] sm:$0xff]
  %v244 = vld [vmem:[%s1 + $0x598] sm:$0xff]
  %v245 = vld [vmem:[%s1 + $0x5a0] sm:$0xff]
  %v246 = vld [vmem:[%s1 + $0x5a8] sm:$0xff]
  %v247 = vld [vmem:[%s1 + $0x5b0] sm:$0xff]
  %v248 = vld [vmem:[%s1 + $0x5b8] sm:$0xff]
  %v249 = vld [vmem:[%s1 + $0x5c0] sm:$0xff]
  %v250 = vld [vmem:[%s1 + $0x5c8] sm:$0xff]
  %v251 = vld [vmem:[%s1 + $0x5d0] sm:$0xff]
  %v252 = vld [vmem:[%s1 + $0x5d8] sm:$0xff]
  %v253 = vld [vmem:[%s1 + $0x5e0] sm:$0xff]
  %v254 = vld [vmem:[%s1 + $0x5e8] sm:$0xff]
  %v255 = vld [vmem:[%s1 + $0x5f0] sm:$0xff]
  %v256 = vld [vmem:[%s1 + $0x5f8] sm:$0xff]
  %v257 = vld [vmem:[%s1 + $0x600] sm:$0xff]
  %v258 = vld [vmem:[%s1 + $0x608] sm:$0xff]
  %v259 = vld [vmem:[%s1 + $0x610] sm:$0xff]
  %v260 = vld [vmem:[%s1 + $0x618] sm:$0xff]
  %v261 = vld [vmem:[%s1 + $0x620] sm:$0xff]
  %v262 = vld [vmem:[%s1 + $0x628] sm:$0xff]
  %v263 = vld [vmem:[%s1 + $0x630] sm:$0xff]
  %v264 = vld [vmem:[%s1 + $0x638] sm:$0xff]
  %v265 = vld [vmem:[%s1 + $0x640] sm:$0xff]
  %v266 = vld [vmem:[%s1 + $0x648] sm:$0xff]
  %v267 = vld [vmem:[%s1 + $0x650] sm:$0xff]
  %v268 = vld [vmem:[%s1 + $0x658] sm:$0xff]
  %v269 = vld [vmem:[%s1 + $0x660] sm:$0xff]
  %v270 = vld [vmem:[%s1 + $0x668] sm:$0xff]
  %v271 = vld [vmem:[%s1 + $0x670] sm:$0xff]
  %v272 = vld [vmem:[%s1 + $0x678] sm:$0xff]
  %v273 = vld [vmem:[%s1 + $0x680] sm:$0xff]
  %v274 = vld [vmem:[%s1 + $0x688] sm:$0xff]
  %v275 = vld [vmem:[%s1 + $0x690] sm:$0xff]
  %v276 = vld [vmem:[%s1 + $0x698] sm:$0xff]
  %v277 = vld [vmem:[%s1 + $0x6a0] sm:$0xff]
  %v278 = vld [vmem:[%s1 + $0x6a8] sm:$0xff]
  %v279 = vld [vmem:[%s1 + $0x6b0] sm:$0xff]
  %v280 = vld [vmem:[%s1 + $0x6b8] sm:$0xff]
  %v281 = vld [vmem:[%s1 + $0x6c0] sm:$0xff]
  %v282 = vld [vmem:[%s1 + $0x6c8] sm:$0xff]
  %v283 = vld [vmem:[%s1 + $0x6d0] sm:$0xff]
  %v284 = vld [vmem:[%s1 + $0x6d8] sm:$0xff]
  %v285 = vld [vmem:[%s1 + $0x6e0] sm:$0xff]
  %v286 = vld [vmem:[%s1 + $0x6e8] sm:$0xff]
  %v287 = vld [vmem:[%s1 + $0x6f0] sm:$0xff]
  %v288 = vld [vmem:[%s1 + $0x6f8] sm:$0xff]
  %v289 = vld [vmem:[%s1 + $0x700] sm:$0xff]
  %v290 = vld [vmem:[%s1 + $0x708] sm:$0xff]
  %v291 = vld [vmem:[%s1 + $0x710] sm:$0xff]
  %v292 = vld [vmem:[%s1 + $0x718] sm:$0xff]
  %v293 = vld [vmem:[%s1 + $0x720] sm:$0xff]
  %v294 = vld [vmem:[%s1 + $0x728] sm:$0xff]
  %v295 = vld [vmem:[%s1 + $0x730] sm:$0xff]
  %v296 = vld [vmem:[%s1 + $0x738] sm:$0xff]
  %v297 = vld [vmem:[%s1 + $0x740] sm:$0xff]
  %v298 = vld [vmem:[%s1 + $0x748] sm:$0xff]
  %v299 = vld [vmem:[%s1 + $0x750] sm:$0xff]
  %v300 = vld [vmem:[%s1 + $0x758] sm:$0xff]
  %v301 = vld [vmem:[%s1 + $0x760] sm:$0xff]
  %v302 = vld [vmem:[%s1 + $0x768] sm:$0xff]
  %v303 = vld [vmem:[%s1 + $0x770] sm:$0xff]
  %v304 = vld [vmem:[%s1 + $0x778] sm:$0xff]
  %v305 = vld [vmem:[%s1 + $0x780] sm:$0xff]
  %v306 = vld [vmem:[%s1 + $0x788] sm:$0xff]
  %v307 = vld [vmem:[%s1 + $0x790] sm:$0xff]
  %v308 = vld [vmem:[%s1 + $0x798] sm:$0xff]
  %v309 = vld [vmem:[%s1 + $0x7a0] sm:$0xff]
  %v310 = vld [vmem:[%s1 + $0x7a8] sm:$0xff]
  %v311 = vld [vmem:[%s1 + $0x7b0] sm:$0xff]
  %v312 = vld [vmem:[%s1 + $0x7b8] sm:$0xff]
  %v313 = vld [vmem:[%s1 + $0x7c0] sm:$0xff]
  %v314 = vld [vmem:[%s1 + $0x7c8] sm:$0xff]
  %v315 = vld [vmem:[%s1 + $0x7d0] sm:$0xff]
  %v316 = vld [vmem:[%s1 + $0x7d8] sm:$0xff]
  %v317 = vld [vmem:[%s1 + $0x7e0] sm:$0xff]
  %v318 = vld [vmem:[%s1 + $0x7e8] sm:$0xff]
  %v319 = vld [vmem:[%s1 + $0x7f0] sm:$0xff]
  %v320 = vld [vmem:[%s1 + $0x7f8] sm:$0xff]
  %v577 = vunpack.c.l.b16 %v65
  %v578 = vunpack.c.h.b16 %v65
  %v579 = vunpack.c.l.b16 %v66
  %v580 = vunpack.c.h.b16 %v66
  %v581 = vunpack.c.l.b16 %v67
  %v582 = vunpack.c.h.b16 %v67
  %v583 = vunpack.c.l.b16 %v68
  %v584 = vunpack.c.h.b16 %v68
  %v585 = vunpack.c.l.b16 %v69
  %v586 = vunpack.c.h.b16 %v69
  %v587 = vunpack.c.l.b16 %v70
  %v588 = vunpack.c.h.b16 %v70
  %v589 = vunpack.c.l.b16 %v71
  %v590 = vunpack.c.h.b16 %v71
  %v591 = vunpack.c.l.b16 %v72
  %v592 = vunpack.c.h.b16 %v72
  %v593 = vunpack.c.l.b16 %v73
  %v594 = vunpack.c.h.b16 %v73
  %v595 = vunpack.c.l.b16 %v74
  %v596 = vunpack.c.h.b16 %v74
  %v597 = vunpack.c.l.b16 %v75
  %v598 = vunpack.c.h.b16 %v75
  %v599 = vunpack.c.l.b16 %v76
  %v600 = vunpack.c.h.b16 %v76
  %v601 = vunpack.c.l.b16 %v77
  %v602 = vunpack.c.h.b16 %v77
  %v603 = vunpack.c.l.b16 %v78
  %v604 = vunpack.c.h.b16 %v78
  %v605 = vunpack.c.l.b16 %v79
  %v606 = vunpack.c.h.b16 %v79
  %v607 = vunpack.c.l.b16 %v80
  %v608 = vunpack.c.h.b16 %v80
  %v609 = vunpack.c.l.b16 %v81
  %v610 = vunpack.c.h.b16 %v81
  %v611 = vunpack.c.l.b16 %v82
  %v612 = vunpack.c.h.b16 %v82
  %v613 = vunpack.c.l.b16 %v83
  %v614 = vunpack.c.h.b16 %v83
  %v615 = vunpack.c.l.b16 %v84
  %v616 = vunpack.c.h.b16 %v84
  %v617 = vunpack.c.l.b16 %v85
  %v618 = vunpack.c.h.b16 %v85
  %v619 = vunpack.c.l.b16 %v86
  %v620 = vunpack.c.h.b16 %v86
  %v621 = vunpack.c.l.b16 %v87
  %v622 = vunpack.c.h.b16 %v87
  %v623 = vunpack.c.l.b16 %v88
  %v624 = vunpack.c.h.b16 %v88
  %v625 = vunpack.c.l.b16 %v89
  %v626 = vunpack.c.h.b16 %v89
  %v627 = vunpack.c.l.b16 %v90
  %v628 = vunpack.c.h.b16 %v90
  %v629 = vunpack.c.l.b16 %v91
  %v630 = vunpack.c.h.b16 %v91
  %v631 = vunpack.c.l.b16 %v92
  %v632 = vunpack.c.h.b16 %v92
  %v633 = vunpack.c.l.b16 %v93
  %v634 = vunpack.c.h.b16 %v93
  %v635 = vunpack.c.l.b16 %v94
  %v636 = vunpack.c.h.b16 %v94
  %v637 = vunpack.c.l.b16 %v95
  %v638 = vunpack.c.h.b16 %v95
  %v639 = vunpack.c.l.b16 %v96
  %v640 = vunpack.c.h.b16 %v96
  %v641 = vunpack.c.l.b16 %v97
  %v642 = vunpack.c.h.b16 %v97
  %v643 = vunpack.c.l.b16 %v98
  %v644 = vunpack.c.h.b16 %v98
  %v645 = vunpack.c.l.b16 %v99
  %v646 = vunpack.c.h.b16 %v99
  %v647 = vunpack.c.l.b16 %v100
  %v648 = vunpack.c.h.b16 %v100
  %v649 = vunpack.c.l.b16 %v101
  %v650 = vunpack.c.h.b16 %v101
  %v651 = vunpack.c.l.b16 %v102
  %v652 = vunpack.c.h.b16 %v102
  %v653 = vunpack.c.l.b16 %v103
  %v654 = vunpack.c.h.b16 %v103
  %v655 = vunpack.c.l.b16 %v104
  %v656 = vunpack.c.h.b16 %v104
  %v657 = vunpack.c.l.b16 %v105
  %v658 = vunpack.c.h.b16 %v105
  %v659 = vunpack.c.l.b16 %v106
  %v660 = vunpack.c.h.b16 %v106
  %v661 = vunpack.c.l.b16 %v107
  %v662 = vunpack.c.h.b16 %v107
  %v663 = vunpack.c.l.b16 %v108
  %v664 = vunpack.c.h.b16 %v108
  %v665 = vunpack.c.l.b16 %v109
  %v666 = vunpack.c.h.b16 %v109
  %v667 = vunpack.c.l.b16 %v110
  %v668 = vunpack.c.h.b16 %v110
  %v669 = vunpack.c.l.b16 %v111
  %v670 = vunpack.c.h.b16 %v111
  %v671 = vunpack.c.l.b16 %v112
  %v672 = vunpack.c.h.b16 %v112
  %v673 = vunpack.c.l.b16 %v113
  %v674 = vunpack.c.h.b16 %v113
  %v675 = vunpack.c.l.b16 %v114
  %v676 = vunpack.c.h.b16 %v114
  %v677 = vunpack.c.l.b16 %v115
  %v678 = vunpack.c.h.b16 %v115
  %v679 = vunpack.c.l.b16 %v116
  %v680 = vunpack.c.h.b16 %v116
  %v681 = vunpack.c.l.b16 %v117
  %v682 = vunpack.c.h.b16 %v117
  %v683 = vunpack.c.l.b16 %v118
  %v684 = vunpack.c.h.b16 %v118
  %v685 = vunpack.c.l.b16 %v119
  %v686 = vunpack.c.h.b16 %v119
  %v687 = vunpack.c.l.b16 %v120
  %v688 = vunpack.c.h.b16 %v120
  %v689 = vunpack.c.l.b16 %v121
  %v690 = vunpack.c.h.b16 %v121
  %v691 = vunpack.c.l.b16 %v122
  %v692 = vunpack.c.h.b16 %v122
  %v693 = vunpack.c.l.b16 %v123
  %v694 = vunpack.c.h.b16 %v123
  %v695 = vunpack.c.l.b16 %v124
  %v696 = vunpack.c.h.b16 %v124
  %v697 = vunpack.c.l.b16 %v125
  %v698 = vunpack.c.h.b16 %v125
  %v699 = vunpack.c.l.b16 %v126
  %v700 = vunpack.c.h.b16 %v126
  %v701 = vunpack.c.l.b16 %v127
  %v702 = vunpack.c.h.b16 %v127
  %v703 = vunpack.c.l.b16 %v128
  %v704 = vunpack.c.h.b16 %v128
  %v705 = vunpack.c.l.b16 %v129
  %v706 = vunpack.c.h.b16 %v129
  %v707 = vunpack.c.l.b16 %v130
  %v708 = vunpack.c.h.b16 %v130
  %v709 = vunpack.c.l.b16 %v131
  %v710 = vunpack.c.h.b16 %v131
  %v711 = vunpack.c.l.b16 %v132
  %v712 = vunpack.c.h.b16 %v132
  %v713 = vunpack.c.l.b16 %v133
  %v714 = vunpack.c.h.b16 %v133
  %v715 = vunpack.c.l.b16 %v134
  %v716 = vunpack.c.h.b16 %v134
  %v717 = vunpack.c.l.b16 %v135
  %v718 = vunpack.c.h.b16 %v135
  %v719 = vunpack.c.l.b16 %v136
  %v720 = vunpack.c.h.b16 %v136
  %v721 = vunpack.c.l.b16 %v137
  %v722 = vunpack.c.h.b16 %v137
  %v723 = vunpack.c.l.b16 %v138
  %v724 = vunpack.c.h.b16 %v138
  %v725 = vunpack.c.l.b16 %v139
  %v726 = vunpack.c.h.b16 %v139
  %v727 = vunpack.c.l.b16 %v140
  %v728 = vunpack.c.h.b16 %v140
  %v729 = vunpack.c.l.b16 %v141
  %v730 = vunpack.c.h.b16 %v141
  %v731 = vunpack.c.l.b16 %v142
  %v732 = vunpack.c.h.b16 %v142
  %v733 = vunpack.c.l.b16 %v143
  %v734 = vunpack.c.h.b16 %v143
  %v735 = vunpack.c.l.b16 %v144
  %v736 = vunpack.c.h.b16 %v144
  %v737 = vunpack.c.l.b16 %v145
  %v738 = vunpack.c.h.b16 %v145
  %v739 = vunpack.c.l.b16 %v146
  %v740 = vunpack.c.h.b16 %v146
  %v741 = vunpack.c.l.b16 %v147
  %v742 = vunpack.c.h.b16 %v147
  %v743 = vunpack.c.l.b16 %v148
  %v744 = vunpack.c.h.b16 %v148
  %v745 = vunpack.c.l.b16 %v149
  %v746 = vunpack.c.h.b16 %v149
  %v747 = vunpack.c.l.b16 %v150
  %v748 = vunpack.c.h.b16 %v150
  %v749 = vunpack.c.l.b16 %v151
  %v750 = vunpack.c.h.b16 %v151
  %v751 = vunpack.c.l.b16 %v152
  %v752 = vunpack.c.h.b16 %v152
  %v753 = vunpack.c.l.b16 %v153
  %v754 = vunpack.c.h.b16 %v153
  %v755 = vunpack.c.l.b16 %v154
  %v756 = vunpack.c.h.b16 %v154
  %v757 = vunpack.c.l.b16 %v155
  %v758 = vunpack.c.h.b16 %v155
  %v759 = vunpack.c.l.b16 %v156
  %v760 = vunpack.c.h.b16 %v156
  %v761 = vunpack.c.l.b16 %v157
  %v762 = vunpack.c.h.b16 %v157
  %v763 = vunpack.c.l.b16 %v158
  %v764 = vunpack.c.h.b16 %v158
  %v765 = vunpack.c.l.b16 %v159
  %v766 = vunpack.c.h.b16 %v159
  %v767 = vunpack.c.l.b16 %v160
  %v768 = vunpack.c.h.b16 %v160
  %v769 = vunpack.c.l.b16 %v161
  %v770 = vunpack.c.h.b16 %v161
  %v771 = vunpack.c.l.b16 %v162
  %v772 = vunpack.c.h.b16 %v162
  %v773 = vunpack.c.l.b16 %v163
  %v774 = vunpack.c.h.b16 %v163
  %v775 = vunpack.c.l.b16 %v164
  %v776 = vunpack.c.h.b16 %v164
  %v777 = vunpack.c.l.b16 %v165
  %v778 = vunpack.c.h.b16 %v165
  %v779 = vunpack.c.l.b16 %v166
  %v780 = vunpack.c.h.b16 %v166
  %v781 = vunpack.c.l.b16 %v167
  %v782 = vunpack.c.h.b16 %v167
  %v783 = vunpack.c.l.b16 %v168
  %v784 = vunpack.c.h.b16 %v168
  %v785 = vunpack.c.l.b16 %v169
  %v786 = vunpack.c.h.b16 %v169
  %v787 = vunpack.c.l.b16 %v170
  %v788 = vunpack.c.h.b16 %v170
  %v789 = vunpack.c.l.b16 %v171
  %v790 = vunpack.c.h.b16 %v171
  %v791 = vunpack.c.l.b16 %v172
  %v792 = vunpack.c.h.b16 %v172
  %v793 = vunpack.c.l.b16 %v173
  %v794 = vunpack.c.h.b16 %v173
  %v795 = vunpack.c.l.b16 %v174
  %v796 = vunpack.c.h.b16 %v174
  %v797 = vunpack.c.l.b16 %v175
  %v798 = vunpack.c.h.b16 %v175
  %v799 = vunpack.c.l.b16 %v176
  %v800 = vunpack.c.h.b16 %v176
  %v801 = vunpack.c.l.b16 %v177
  %v802 = vunpack.c.h.b16 %v177
  %v803 = vunpack.c.l.b16 %v178
  %v804 = vunpack.c.h.b16 %v178
  %v805 = vunpack.c.l.b16 %v179
  %v806 = vunpack.c.h.b16 %v179
  %v807 = vunpack.c.l.b16 %v180
  %v808 = vunpack.c.h.b16 %v180
  %v809 = vunpack.c.l.b16 %v181
  %v810 = vunpack.c.h.b16 %v181
  %v811 = vunpack.c.l.b16 %v182
  %v812 = vunpack.c.h.b16 %v182
  %v813 = vunpack.c.l.b16 %v183
  %v814 = vunpack.c.h.b16 %v183
  %v815 = vunpack.c.l.b16 %v184
  %v816 = vunpack.c.h.b16 %v184
  %v817 = vunpack.c.l.b16 %v185
  %v818 = vunpack.c.h.b16 %v185
  %v819 = vunpack.c.l.b16 %v186
  %v820 = vunpack.c.h.b16 %v186
  %v821 = vunpack.c.l.b16 %v187
  %v822 = vunpack.c.h.b16 %v187
  %v823 = vunpack.c.l.b16 %v188
  %v824 = vunpack.c.h.b16 %v188
  %v825 = vunpack.c.l.b16 %v189
  %v826 = vunpack.c.h.b16 %v189
  %v827 = vunpack.c.l.b16 %v190
  %v828 = vunpack.c.h.b16 %v190
  %v829 = vunpack.c.l.b16 %v191
  %v830 = vunpack.c.h.b16 %v191
  %v831 = vunpack.c.l.b16 %v192
  %v832 = vunpack.c.h.b16 %v192
  %v833 = vunpack.c.l.b16 %v193
  %v834 = vunpack.c.h.b16 %v193
  %v835 = vunpack.c.l.b16 %v194
  %v836 = vunpack.c.h.b16 %v194
  %v837 = vunpack.c.l.b16 %v195
  %v838 = vunpack.c.h.b16 %v195
  %v839 = vunpack.c.l.b16 %v196
  %v840 = vunpack.c.h.b16 %v196
  %v841 = vunpack.c.l.b16 %v197
  %v842 = vunpack.c.h.b16 %v197
  %v843 = vunpack.c.l.b16 %v198
  %v844 = vunpack.c.h.b16 %v198
  %v845 = vunpack.c.l.b16 %v199
  %v846 = vunpack.c.h.b16 %v199
  %v847 = vunpack.c.l.b16 %v200
  %v848 = vunpack.c.h.b16 %v200
  %v849 = vunpack.c.l.b16 %v201
  %v850 = vunpack.c.h.b16 %v201
  %v851 = vunpack.c.l.b16 %v202
  %v852 = vunpack.c.h.b16 %v202
  %v853 = vunpack.c.l.b16 %v203
  %v854 = vunpack.c.h.b16 %v203
  %v855 = vunpack.c.l.b16 %v204
  %v856 = vunpack.c.h.b16 %v204
  %v857 = vunpack.c.l.b16 %v205
  %v858 = vunpack.c.h.b16 %v205
  %v859 = vunpack.c.l.b16 %v206
  %v860 = vunpack.c.h.b16 %v206
  %v861 = vunpack.c.l.b16 %v207
  %v862 = vunpack.c.h.b16 %v207
  %v863 = vunpack.c.l.b16 %v208
  %v864 = vunpack.c.h.b16 %v208
  %v865 = vunpack.c.l.b16 %v209
  %v866 = vunpack.c.h.b16 %v209
  %v867 = vunpack.c.l.b16 %v210
  %v868 = vunpack.c.h.b16 %v210
  %v869 = vunpack.c.l.b16 %v211
  %v870 = vunpack.c.h.b16 %v211
  %v871 = vunpack.c.l.b16 %v212
  %v872 = vunpack.c.h.b16 %v212
  %v873 = vunpack.c.l.b16 %v213
  %v874 = vunpack.c.h.b16 %v213
  %v875 = vunpack.c.l.b16 %v214
  %v876 = vunpack.c.h.b16 %v214
  %v877 = vunpack.c.l.b16 %v215
  %v878 = vunpack.c.h.b16 %v215
  %v879 = vunpack.c.l.b16 %v216
  %v880 = vunpack.c.h.b16 %v216
  %v881 = vunpack.c.l.b16 %v217
  %v882 = vunpack.c.h.b16 %v217
  %v883 = vunpack.c.l.b16 %v218
  %v884 = vunpack.c.h.b16 %v218
  %v885 = vunpack.c.l.b16 %v219
  %v886 = vunpack.c.h.b16 %v219
  %v887 = vunpack.c.l.b16 %v220
  %v888 = vunpack.c.h.b16 %v220
  %v889 = vunpack.c.l.b16 %v221
  %v890 = vunpack.c.h.b16 %v221
  %v891 = vunpack.c.l.b16 %v222
  %v892 = vunpack.c.h.b16 %v222
  %v893 = vunpack.c.l.b16 %v223
  %v894 = vunpack.c.h.b16 %v223
  %v895 = vunpack.c.l.b16 %v224
  %v896 = vunpack.c.h.b16 %v224
  %v897 = vunpack.c.l.b16 %v225
  %v898 = vunpack.c.h.b16 %v225
  %v899 = vunpack.c.l.b16 %v226
  %v900 = vunpack.c.h.b16 %v226
  %v901 = vunpack.c.l.b16 %v227
  %v902 = vunpack.c.h.b16 %v227
  %v903 = vunpack.c.l.b16 %v228
  %v904 = vunpack.c.h.b16 %v228
  %v905 = vunpack.c.l.b16 %v229
  %v906 = vunpack.c.h.b16 %v229
  %v907 = vunpack.c.l.b16 %v230
  %v908 = vunpack.c.h.b16 %v230
  %v909 = vunpack.c.l.b16 %v231
  %v910 = vunpack.c.h.b16 %v231
  %v911 = vunpack.c.l.b16 %v232
  %v912 = vunpack.c.h.b16 %v232
  %v913 = vunpack.c.l.b16 %v233
  %v914 = vunpack.c.h.b16 %v233
  %v915 = vunpack.c.l.b16 %v234
  %v916 = vunpack.c.h.b16 %v234
  %v917 = vunpack.c.l.b16 %v235
  %v918 = vunpack.c.h.b16 %v235
  %v919 = vunpack.c.l.b16 %v236
  %v920 = vunpack.c.h.b16 %v236
  %v921 = vunpack.c.l.b16 %v237
  %v922 = vunpack.c.h.b16 %v237
  %v923 = vunpack.c.l.b16 %v238
  %v924 = vunpack.c.h.b16 %v238
  %v925 = vunpack.c.l.b16 %v239
  %v926 = vunpack.c.h.b16 %v239
  %v927 = vunpack.c.l.b16 %v240
  %v928 = vunpack.c.h.b16 %v240
  %v929 = vunpack.c.l.b16 %v241
  %v930 = vunpack.c.h.b16 %v241
  %v931 = vunpack.c.l.b16 %v242
  %v932 = vunpack.c.h.b16 %v242
  %v933 = vunpack.c.l.b16 %v243
  %v934 = vunpack.c.h.b16 %v243
  %v935 = vunpack.c.l.b16 %v244
  %v936 = vunpack.c.h.b16 %v244
  %v937 = vunpack.c.l.b16 %v245
  %v938 = vunpack.c.h.b16 %v245
  %v939 = vunpack.c.l.b16 %v246
  %v940 = vunpack.c.h.b16 %v246
  %v941 = vunpack.c.l.b16 %v247
  %v942 = vunpack.c.h.b16 %v247
  %v943 = vunpack.c.l.b16 %v248
  %v944 = vunpack.c.h.b16 %v248
  %v945 = vunpack.c.l.b16 %v249
  %v946 = vunpack.c.h.b16 %v249
  %v947 = vunpack.c.l.b16 %v250
  %v948 = vunpack.c.h.b16 %v250
  %v949 = vunpack.c.l.b16 %v251
  %v950 = vunpack.c.h.b16 %v251
  %v951 = vunpack.c.l.b16 %v252
  %v952 = vunpack.c.h.b16 %v252
  %v953 = vunpack.c.l.b16 %v253
  %v954 = vunpack.c.h.b16 %v253
  %v955 = vunpack.c.l.b16 %v254
  %v956 = vunpack.c.h.b16 %v254
  %v957 = vunpack.c.l.b16 %v255
  %v958 = vunpack.c.h.b16 %v255
  %v959 = vunpack.c.l.b16 %v256
  %v960 = vunpack.c.h.b16 %v256
  %v961 = vunpack.c.l.b16 %v257
  %v962 = vunpack.c.h.b16 %v257
  %v963 = vunpack.c.l.b16 %v258
  %v964 = vunpack.c.h.b16 %v258
  %v965 = vunpack.c.l.b16 %v259
  %v966 = vunpack.c.h.b16 %v259
  %v967 = vunpack.c.l.b16 %v260
  %v968 = vunpack.c.h.b16 %v260
  %v969 = vunpack.c.l.b16 %v261
  %v970 = vunpack.c.h.b16 %v261
  %v971 = vunpack.c.l.b16 %v262
  %v972 = vunpack.c.h.b16 %v262
  %v973 = vunpack.c.l.b16 %v263
  %v974 = vunpack.c.h.b16 %v263
  %v975 = vunpack.c.l.b16 %v264
  %v976 = vunpack.c.h.b16 %v264
  %v977 = vunpack.c.l.b16 %v265
  %v978 = vunpack.c.h.b16 %v265
  %v979 = vunpack.c.l.b16 %v266
  %v980 = vunpack.c.h.b16 %v266
  %v981 = vunpack.c.l.b16 %v267
  %v982 = vunpack.c.h.b16 %v267
  %v983 = vunpack.c.l.b16 %v268
  %v984 = vunpack.c.h.b16 %v268
  %v985 = vunpack.c.l.b16 %v269
  %v986 = vunpack.c.h.b16 %v269
  %v987 = vunpack.c.l.b16 %v270
  %v988 = vunpack.c.h.b16 %v270
  %v989 = vunpack.c.l.b16 %v271
  %v990 = vunpack.c.h.b16 %v271
  %v991 = vunpack.c.l.b16 %v272
  %v992 = vunpack.c.h.b16 %v272
  %v993 = vunpack.c.l.b16 %v273
  %v994 = vunpack.c.h.b16 %v273
  %v995 = vunpack.c.l.b16 %v274
  %v996 = vunpack.c.h.b16 %v274
  %v997 = vunpack.c.l.b16 %v275
  %v998 = vunpack.c.h.b16 %v275
  %v999 = vunpack.c.l.b16 %v276
  %v1000 = vunpack.c.h.b16 %v276
  %v1001 = vunpack.c.l.b16 %v277
  %v1002 = vunpack.c.h.b16 %v277
  %v1003 = vunpack.c.l.b16 %v278
  %v1004 = vunpack.c.h.b16 %v278
  %v1005 = vunpack.c.l.b16 %v279
  %v1006 = vunpack.c.h.b16 %v279
  %v1007 = vunpack.c.l.b16 %v280
  %v1008 = vunpack.c.h.b16 %v280
  %v1009 = vunpack.c.l.b16 %v281
  %v1010 = vunpack.c.h.b16 %v281
  %v1011 = vunpack.c.l.b16 %v282
  %v1012 = vunpack.c.h.b16 %v282
  %v1013 = vunpack.c.l.b16 %v283
  %v1014 = vunpack.c.h.b16 %v283
  %v1015 = vunpack.c.l.b16 %v284
  %v1016 = vunpack.c.h.b16 %v284
  %v1017 = vunpack.c.l.b16 %v285
  %v1018 = vunpack.c.h.b16 %v285
  %v1019 = vunpack.c.l.b16 %v286
  %v1020 = vunpack.c.h.b16 %v286
  %v1021 = vunpack.c.l.b16 %v287
  %v1022 = vunpack.c.h.b16 %v287
  %v1023 = vunpack.c.l.b16 %v288
  %v1024 = vunpack.c.h.b16 %v288
  %v1025 = vunpack.c.l.b16 %v289
  %v1026 = vunpack.c.h.b16 %v289
  %v1027 = vunpack.c.l.b16 %v290
  %v1028 = vunpack.c.h.b16 %v290
  %v1029 = vunpack.c.l.b16 %v291
  %v1030 = vunpack.c.h.b16 %v291
  %v1031 = vunpack.c.l.b16 %v292
  %v1032 = vunpack.c.h.b16 %v292
  %v1033 = vunpack.c.l.b16 %v293
  %v1034 = vunpack.c.h.b16 %v293
  %v1035 = vunpack.c.l.b16 %v294
  %v1036 = vunpack.c.h.b16 %v294
  %v1037 = vunpack.c.l.b16 %v295
  %v1038 = vunpack.c.h.b16 %v295
  %v1039 = vunpack.c.l.b16 %v296
  %v1040 = vunpack.c.h.b16 %v296
  %v1041 = vunpack.c.l.b16 %v297
  %v1042 = vunpack.c.h.b16 %v297
  %v1043 = vunpack.c.l.b16 %v298
  %v1044 = vunpack.c.h.b16 %v298
  %v1045 = vunpack.c.l.b16 %v299
  %v1046 = vunpack.c.h.b16 %v299
  %v1047 = vunpack.c.l.b16 %v300
  %v1048 = vunpack.c.h.b16 %v300
  %v1049 = vunpack.c.l.b16 %v301
  %v1050 = vunpack.c.h.b16 %v301
  %v1051 = vunpack.c.l.b16 %v302
  %v1052 = vunpack.c.h.b16 %v302
  %v1053 = vunpack.c.l.b16 %v303
  %v1054 = vunpack.c.h.b16 %v303
  %v1055 = vunpack.c.l.b16 %v304
  %v1056 = vunpack.c.h.b16 %v304
  %v1057 = vunpack.c.l.b16 %v305
  %v1058 = vunpack.c.h.b16 %v305
  %v1059 = vunpack.c.l.b16 %v306
  %v1060 = vunpack.c.h.b16 %v306
  %v1061 = vunpack.c.l.b16 %v307
  %v1062 = vunpack.c.h.b16 %v307
  %v1063 = vunpack.c.l.b16 %v308
  %v1064 = vunpack.c.h.b16 %v308
  %v1065 = vunpack.c.l.b16 %v309
  %v1066 = vunpack.c.h.b16 %v309
  %v1067 = vunpack.c.l.b16 %v310
  %v1068 = vunpack.c.h.b16 %v310
  %v1069 = vunpack.c.l.b16 %v311
  %v1070 = vunpack.c.h.b16 %v311
  %v1071 = vunpack.c.l.b16 %v312
  %v1072 = vunpack.c.h.b16 %v312
  %v1073 = vunpack.c.l.b16 %v313
  %v1074 = vunpack.c.h.b16 %v313
  %v1075 = vunpack.c.l.b16 %v314
  %v1076 = vunpack.c.h.b16 %v314
  %v1077 = vunpack.c.l.b16 %v315
  %v1078 = vunpack.c.h.b16 %v315
  %v1079 = vunpack.c.l.b16 %v316
  %v1080 = vunpack.c.h.b16 %v316
  %v1081 = vunpack.c.l.b16 %v317
  %v1082 = vunpack.c.h.b16 %v317
  %v1083 = vunpack.c.l.b16 %v318
  %v1084 = vunpack.c.h.b16 %v318
  %v1085 = vunpack.c.l.b16 %v319
  %v1086 = vunpack.c.h.b16 %v319
  %v1087 = vunpack.c.l.b16 %v320
  %v1088 = vunpack.c.h.b16 %v320
  %v1089 = vpack.c.b16 %v585, %v577
  %v1090 = vpack.c.b16 %v586, %v578
  %v1091 = vpack.c.b16 %v587, %v579
  %v1092 = vpack.c.b16 %v588, %v580
  %v1093 = vpack.c.b16 %v589, %v581
  %v1094 = vpack.c.b16 %v590, %v582
  %v1095 = vpack.c.b16 %v591, %v583
  %v1096 = vpack.c.b16 %v592, %v584
  %v1097 = vpack.c.b16 %v601, %v593
  %v1098 = vpack.c.b16 %v602, %v594
  %v1099 = vpack.c.b16 %v603, %v595
  %v1100 = vpack.c.b16 %v604, %v596
  %v1101 = vpack.c.b16 %v605, %v597
  %v1102 = vpack.c.b16 %v606, %v598
  %v1103 = vpack.c.b16 %v607, %v599
  %v1104 = vpack.c.b16 %v608, %v600
  %v1105 = vpack.c.b16 %v617, %v609
  %v1106 = vpack.c.b16 %v618, %v610
  %v1107 = vpack.c.b16 %v619, %v611
  %v1108 = vpack.c.b16 %v620, %v612
  %v1109 = vpack.c.b16 %v621, %v613
  %v1110 = vpack.c.b16 %v622, %v614
  %v1111 = vpack.c.b16 %v623, %v615
  %v1112 = vpack.c.b16 %v624, %v616
  %v1113 = vpack.c.b16 %v633, %v625
  %v1114 = vpack.c.b16 %v634, %v626
  %v1115 = vpack.c.b16 %v635, %v627
  %v1116 = vpack.c.b16 %v636, %v628
  %v1117 = vpack.c.b16 %v637, %v629
  %v1118 = vpack.c.b16 %v638, %v630
  %v1119 = vpack.c.b16 %v639, %v631
  %v1120 = vpack.c.b16 %v640, %v632
  %v1121 = vpack.c.b16 %v649, %v641
  %v1122 = vpack.c.b16 %v650, %v642
  %v1123 = vpack.c.b16 %v651, %v643
  %v1124 = vpack.c.b16 %v652, %v644
  %v1125 = vpack.c.b16 %v653, %v645
  %v1126 = vpack.c.b16 %v654, %v646
  %v1127 = vpack.c.b16 %v655, %v647
  %v1128 = vpack.c.b16 %v656, %v648
  %v1129 = vpack.c.b16 %v665, %v657
  %v1130 = vpack.c.b16 %v666, %v658
  %v1131 = vpack.c.b16 %v667, %v659
  %v1132 = vpack.c.b16 %v668, %v660
  %v1133 = vpack.c.b16 %v669, %v661
  %v1134 = vpack.c.b16 %v670, %v662
  %v1135 = vpack.c.b16 %v671, %v663
  %v1136 = vpack.c.b16 %v672, %v664
  %v1137 = vpack.c.b16 %v681, %v673
  %v1138 = vpack.c.b16 %v682, %v674
  %v1139 = vpack.c.b16 %v683, %v675
  %v1140 = vpack.c.b16 %v684, %v676
  %v1141 = vpack.c.b16 %v685, %v677
  %v1142 = vpack.c.b16 %v686, %v678
  %v1143 = vpack.c.b16 %v687, %v679
  %v1144 = vpack.c.b16 %v688, %v680
  %v1145 = vpack.c.b16 %v697, %v689
  %v1146 = vpack.c.b16 %v698, %v690
  %v1147 = vpack.c.b16 %v699, %v691
  %v1148 = vpack.c.b16 %v700, %v692
  %v1149 = vpack.c.b16 %v701, %v693
  %v1150 = vpack.c.b16 %v702, %v694
  %v1151 = vpack.c.b16 %v703, %v695
  %v1152 = vpack.c.b16 %v704, %v696
  %v1153 = vpack.c.b16 %v713, %v705
  %v1154 = vpack.c.b16 %v714, %v706
  %v1155 = vpack.c.b16 %v715, %v707
  %v1156 = vpack.c.b16 %v716, %v708
  %v1157 = vpack.c.b16 %v717, %v709
  %v1158 = vpack.c.b16 %v718, %v710
  %v1159 = vpack.c.b16 %v719, %v711
  %v1160 = vpack.c.b16 %v720, %v712
  %v1161 = vpack.c.b16 %v729, %v721
  %v1162 = vpack.c.b16 %v730, %v722
  %v1163 = vpack.c.b16 %v731, %v723
  %v1164 = vpack.c.b16 %v732, %v724
  %v1165 = vpack.c.b16 %v733, %v725
  %v1166 = vpack.c.b16 %v734, %v726
  %v1167 = vpack.c.b16 %v735, %v727
  %v1168 = vpack.c.b16 %v736, %v728
  %v1169 = vpack.c.b16 %v745, %v737
  %v1170 = vpack.c.b16 %v746, %v738
  %v1171 = vpack.c.b16 %v747, %v739
  %v1172 = vpack.c.b16 %v748, %v740
  %v1173 = vpack.c.b16 %v749, %v741
  %v1174 = vpack.c.b16 %v750, %v742
  %v1175 = vpack.c.b16 %v751, %v743
  %v1176 = vpack.c.b16 %v752, %v744
  %v1177 = vpack.c.b16 %v761, %v753
  %v1178 = vpack.c.b16 %v762, %v754
  %v1179 = vpack.c.b16 %v763, %v755
  %v1180 = vpack.c.b16 %v764, %v756
  %v1181 = vpack.c.b16 %v765, %v757
  %v1182 = vpack.c.b16 %v766, %v758
  %v1183 = vpack.c.b16 %v767, %v759
  %v1184 = vpack.c.b16 %v768, %v760
  %v1185 = vpack.c.b16 %v777, %v769
  %v1186 = vpack.c.b16 %v778, %v770
  %v1187 = vpack.c.b16 %v779, %v771
  %v1188 = vpack.c.b16 %v780, %v772
  %v1189 = vpack.c.b16 %v781, %v773
  %v1190 = vpack.c.b16 %v782, %v774
  %v1191 = vpack.c.b16 %v783, %v775
  %v1192 = vpack.c.b16 %v784, %v776
  %v1193 = vpack.c.b16 %v793, %v785
  %v1194 = vpack.c.b16 %v794, %v786
  %v1195 = vpack.c.b16 %v795, %v787
  %v1196 = vpack.c.b16 %v796, %v788
  %v1197 = vpack.c.b16 %v797, %v789
  %v1198 = vpack.c.b16 %v798, %v790
  %v1199 = vpack.c.b16 %v799, %v791
  %v1200 = vpack.c.b16 %v800, %v792
  %v1201 = vpack.c.b16 %v809, %v801
  %v1202 = vpack.c.b16 %v810, %v802
  %v1203 = vpack.c.b16 %v811, %v803
  %v1204 = vpack.c.b16 %v812, %v804
  %v1205 = vpack.c.b16 %v813, %v805
  %v1206 = vpack.c.b16 %v814, %v806
  %v1207 = vpack.c.b16 %v815, %v807
  %v1208 = vpack.c.b16 %v816, %v808
  %v1209 = vpack.c.b16 %v825, %v817
  %v1210 = vpack.c.b16 %v826, %v818
  %v1211 = vpack.c.b16 %v827, %v819
  %v1212 = vpack.c.b16 %v828, %v820
  %v1213 = vpack.c.b16 %v829, %v821
  %v1214 = vpack.c.b16 %v830, %v822
  %v1215 = vpack.c.b16 %v831, %v823
  %v1216 = vpack.c.b16 %v832, %v824
  %v1217 = vpack.c.b16 %v841, %v833
  %v1218 = vpack.c.b16 %v842, %v834
  %v1219 = vpack.c.b16 %v843, %v835
  %v1220 = vpack.c.b16 %v844, %v836
  %v1221 = vpack.c.b16 %v845, %v837
  %v1222 = vpack.c.b16 %v846, %v838
  %v1223 = vpack.c.b16 %v847, %v839
  %v1224 = vpack.c.b16 %v848, %v840
  %v1225 = vpack.c.b16 %v857, %v849
  %v1226 = vpack.c.b16 %v858, %v850
  %v1227 = vpack.c.b16 %v859, %v851
  %v1228 = vpack.c.b16 %v860, %v852
  %v1229 = vpack.c.b16 %v861, %v853
  %v1230 = vpack.c.b16 %v862, %v854
  %v1231 = vpack.c.b16 %v863, %v855
  %v1232 = vpack.c.b16 %v864, %v856
  %v1233 = vpack.c.b16 %v873, %v865
  %v1234 = vpack.c.b16 %v874, %v866
  %v1235 = vpack.c.b16 %v875, %v867
  %v1236 = vpack.c.b16 %v876, %v868
  %v1237 = vpack.c.b16 %v877, %v869
  %v1238 = vpack.c.b16 %v878, %v870
  %v1239 = vpack.c.b16 %v879, %v871
  %v1240 = vpack.c.b16 %v880, %v872
  %v1241 = vpack.c.b16 %v889, %v881
  %v1242 = vpack.c.b16 %v890, %v882
  %v1243 = vpack.c.b16 %v891, %v883
  %v1244 = vpack.c.b16 %v892, %v884
  %v1245 = vpack.c.b16 %v893, %v885
  %v1246 = vpack.c.b16 %v894, %v886
  %v1247 = vpack.c.b16 %v895, %v887
  %v1248 = vpack.c.b16 %v896, %v888
  %v1249 = vpack.c.b16 %v905, %v897
  %v1250 = vpack.c.b16 %v906, %v898
  %v1251 = vpack.c.b16 %v907, %v899
  %v1252 = vpack.c.b16 %v908, %v900
  %v1253 = vpack.c.b16 %v909, %v901
  %v1254 = vpack.c.b16 %v910, %v902
  %v1255 = vpack.c.b16 %v911, %v903
  %v1256 = vpack.c.b16 %v912, %v904
  %v1257 = vpack.c.b16 %v921, %v913
  %v1258 = vpack.c.b16 %v922, %v914
  %v1259 = vpack.c.b16 %v923, %v915
  %v1260 = vpack.c.b16 %v924, %v916
  %v1261 = vpack.c.b16 %v925, %v917
  %v1262 = vpack.c.b16 %v926, %v918
  %v1263 = vpack.c.b16 %v927, %v919
  %v1264 = vpack.c.b16 %v928, %v920
  %v1265 = vpack.c.b16 %v937, %v929
  %v1266 = vpack.c.b16 %v938, %v930
  %v1267 = vpack.c.b16 %v939, %v931
  %v1268 = vpack.c.b16 %v940, %v932
  %v1269 = vpack.c.b16 %v941, %v933
  %v1270 = vpack.c.b16 %v942, %v934
  %v1271 = vpack.c.b16 %v943, %v935
  %v1272 = vpack.c.b16 %v944, %v936
  %v1273 = vpack.c.b16 %v953, %v945
  %v1274 = vpack.c.b16 %v954, %v946
  %v1275 = vpack.c.b16 %v955, %v947
  %v1276 = vpack.c.b16 %v956, %v948
  %v1277 = vpack.c.b16 %v957, %v949
  %v1278 = vpack.c.b16 %v958, %v950
  %v1279 = vpack.c.b16 %v959, %v951
  %v1280 = vpack.c.b16 %v960, %v952
  %v1281 = vpack.c.b16 %v969, %v961
  %v1282 = vpack.c.b16 %v970, %v962
  %v1283 = vpack.c.b16 %v971, %v963
  %v1284 = vpack.c.b16 %v972, %v964
  %v1285 = vpack.c.b16 %v973, %v965
  %v1286 = vpack.c.b16 %v974, %v966
  %v1287 = vpack.c.b16 %v975, %v967
  %v1288 = vpack.c.b16 %v976, %v968
  %v1289 = vpack.c.b16 %v985, %v977
  %v1290 = vpack.c.b16 %v986, %v978
  %v1291 = vpack.c.b16 %v987, %v979
  %v1292 = vpack.c.b16 %v988, %v980
  %v1293 = vpack.c.b16 %v989, %v981
  %v1294 = vpack.c.b16 %v990, %v982
  %v1295 = vpack.c.b16 %v991, %v983
  %v1296 = vpack.c.b16 %v992, %v984
  %v1297 = vpack.c.b16 %v1001, %v993
  %v1298 = vpack.c.b16 %v1002, %v994
  %v1299 = vpack.c.b16 %v1003, %v995
  %v1300 = vpack.c.b16 %v1004, %v996
  %v1301 = vpack.c.b16 %v1005, %v997
  %v1302 = vpack.c.b16 %v1006, %v998
  %v1303 = vpack.c.b16 %v1007, %v999
  %v1304 = vpack.c.b16 %v1008, %v1000
  %v1305 = vpack.c.b16 %v1017, %v1009
  %v1306 = vpack.c.b16 %v1018, %v1010
  %v1307 = vpack.c.b16 %v1019, %v1011
  %v1308 = vpack.c.b16 %v1020, %v1012
  %v1309 = vpack.c.b16 %v1021, %v1013
  %v1310 = vpack.c.b16 %v1022, %v1014
  %v1311 = vpack.c.b16 %v1023, %v1015
  %v1312 = vpack.c.b16 %v1024, %v1016
  %v1313 = vpack.c.b16 %v1033, %v1025
  %v1314 = vpack.c.b16 %v1034, %v1026
  %v1315 = vpack.c.b16 %v1035, %v1027
  %v1316 = vpack.c.b16 %v1036, %v1028
  %v1317 = vpack.c.b16 %v1037, %v1029
  %v1318 = vpack.c.b16 %v1038, %v1030
  %v1319 = vpack.c.b16 %v1039, %v1031
  %v1320 = vpack.c.b16 %v1040, %v1032
  %v1321 = vpack.c.b16 %v1049, %v1041
  %v1322 = vpack.c.b16 %v1050, %v1042
  %v1323 = vpack.c.b16 %v1051, %v1043
  %v1324 = vpack.c.b16 %v1052, %v1044
  %v1325 = vpack.c.b16 %v1053, %v1045
  %v1326 = vpack.c.b16 %v1054, %v1046
  %v1327 = vpack.c.b16 %v1055, %v1047
  %v1328 = vpack.c.b16 %v1056, %v1048
  %v1329 = vpack.c.b16 %v1065, %v1057
  %v1330 = vpack.c.b16 %v1066, %v1058
  %v1331 = vpack.c.b16 %v1067, %v1059
  %v1332 = vpack.c.b16 %v1068, %v1060
  %v1333 = vpack.c.b16 %v1069, %v1061
  %v1334 = vpack.c.b16 %v1070, %v1062
  %v1335 = vpack.c.b16 %v1071, %v1063
  %v1336 = vpack.c.b16 %v1072, %v1064
  %v1337 = vpack.c.b16 %v1081, %v1073
  %v1338 = vpack.c.b16 %v1082, %v1074
  %v1339 = vpack.c.b16 %v1083, %v1075
  %v1340 = vpack.c.b16 %v1084, %v1076
  %v1341 = vpack.c.b16 %v1085, %v1077
  %v1342 = vpack.c.b16 %v1086, %v1078
  %v1343 = vpack.c.b16 %v1087, %v1079
  %v1344 = vpack.c.b16 %v1088, %v1080
  %1601 = vmatpush.bf16.msra.mxu0 %v1145
  %1602 = vmatpush.bf16.msra.mxu0 %v1137
  %1603 = vmatpush.bf16.msra.mxu0 %v1129
  %1604 = vmatpush.bf16.msra.mxu0 %v1121
  %1605 = vmatpush.bf16.msra.mxu0 %v1113
  %1606 = vmatpush.bf16.msra.mxu0 %v1105
  %1607 = vmatpush.bf16.msra.mxu0 %v1097
  %1608 = vmatpush.bf16.msra.mxu0 %v1089
  %1609 = vmatmul.bf16.gmra.mxu0 %v49
  %v1610 = vpop.f32.mrf.mxu0
  %v1611 = vadd.f32 0.0, %v1610
  %v1612 = vpop.f32.mrf.mxu0
  %v1613 = vadd.f32 0.0, %v1612
  %1614 = vmatmul.bf16.gmra.mxu0 %v53
  %v1615 = vpop.f32.mrf.mxu0
  %v1616 = vadd.f32 0.0, %v1615
  %v1617 = vpop.f32.mrf.mxu0
  %v1618 = vadd.f32 0.0, %v1617
  %1619 = vmatmul.bf16.gmra.mxu0 %v57
  %v1620 = vpop.f32.mrf.mxu0
  %v1621 = vadd.f32 0.0, %v1620
  %v1622 = vpop.f32.mrf.mxu0
  %v1623 = vadd.f32 0.0, %v1622
  %1624 = vmatmul.bf16.gmra.mxu0 %v61
  %v1625 = vpop.f32.mrf.mxu0
  %v1626 = vadd.f32 0.0, %v1625
  %v1627 = vpop.f32.mrf.mxu0
  %v1628 = vadd.f32 0.0, %v1627
  %1629 = vdwg.mxu0
  %1630 = vmatpush.bf16.msra.mxu0 %v1209
  %1631 = vmatpush.bf16.msra.mxu0 %v1201
  %1632 = vmatpush.bf16.msra.mxu0 %v1193
  %1633 = vmatpush.bf16.msra.mxu0 %v1185
  %1634 = vmatpush.bf16.msra.mxu0 %v1177
  %1635 = vmatpush.bf16.msra.mxu0 %v1169
  %1636 = vmatpush.bf16.msra.mxu0 %v1161
  %1637 = vmatpush.bf16.msra.mxu0 %v1153
  %1638 = vmatmul.bf16.gmra.mxu0 %v50
  %v1639 = vpop.f32.mrf.mxu0
  %v1640 = vadd.f32 %v1611, %v1639
  %v1641 = vpop.f32.mrf.mxu0
  %v1642 = vadd.f32 %v1613, %v1641
  %1643 = vmatmul.bf16.gmra.mxu0 %v54
  %v1644 = vpop.f32.mrf.mxu0
  %v1645 = vadd.f32 %v1616, %v1644
  %v1646 = vpop.f32.mrf.mxu0
  %v1647 = vadd.f32 %v1618, %v1646
  %1648 = vmatmul.bf16.gmra.mxu0 %v58
  %v1649 = vpop.f32.mrf.mxu0
  %v1650 = vadd.f32 %v1621, %v1649
  %v1651 = vpop.f32.mrf.mxu0
  %v1652 = vadd.f32 %v1623, %v1651
  %1653 = vmatmul.bf16.gmra.mxu0 %v62
  %v1654 = vpop.f32.mrf.mxu0
  %v1655 = vadd.f32 %v1626, %v1654
  %v1656 = vpop.f32.mrf.mxu0
  %v1657 = vadd.f32 %v1628, %v1656
  %1658 = vdwg.mxu0
  %1659 = vmatpush.bf16.msra.mxu0 %v1273
  %1660 = vmatpush.bf16.msra.mxu0 %v1265
  %1661 = vmatpush.bf16.msra.mxu0 %v1257
  %1662 = vmatpush.bf16.msra.mxu0 %v1249
  %1663 = vmatpush.bf16.msra.mxu0 %v1241
  %1664 = vmatpush.bf16.msra.mxu0 %v1233
  %1665 = vmatpush.bf16.msra.mxu0 %v1225
  %1666 = vmatpush.bf16.msra.mxu0 %v1217
  %1667 = vmatmul.bf16.gmra.mxu0 %v51
  %v1668 = vpop.f32.mrf.mxu0
  %v1669 = vadd.f32 %v1640, %v1668
  %v1670 = vpop.f32.mrf.mxu0
  %v1671 = vadd.f32 %v1642, %v1670
  %1672 = vmatmul.bf16.gmra.mxu0 %v55
  %v1673 = vpop.f32.mrf.mxu0
  %v1674 = vadd.f32 %v1645, %v1673
  %v1675 = vpop.f32.mrf.mxu0
  %v1676 = vadd.f32 %v1647, %v1675
  %1677 = vmatmul.bf16.gmra.mxu0 %v59
  %v1678 = vpop.f32.mrf.mxu0
  %v1679 = vadd.f32 %v1650, %v1678
  %v1680 = vpop.f32.mrf.mxu0
  %v1681 = vadd.f32 %v1652, %v1680
  %1682 = vmatmul.bf16.gmra.mxu0 %v63
  %v1683 = vpop.f32.mrf.mxu0
  %v1684 = vadd.f32 %v1655, %v1683
  %v1685 = vpop.f32.mrf.mxu0
  %v1686 = vadd.f32 %v1657, %v1685
  %1687 = vdwg.mxu0
  %1688 = vmatpush.bf16.msra.mxu0 %v1337
  %1689 = vmatpush.bf16.msra.mxu0 %v1329
  %1690 = vmatpush.bf16.msra.mxu0 %v1321
  %1691 = vmatpush.bf16.msra.mxu0 %v1313
  %1692 = vmatpush.bf16.msra.mxu0 %v1305
  %1693 = vmatpush.bf16.msra.mxu0 %v1297
  %1694 = vmatpush.bf16.msra.mxu0 %v1289
  %1695 = vmatpush.bf16.msra.mxu0 %v1281
  %1696 = vmatmul.bf16.gmra.mxu0 %v52
  %v1697 = vpop.f32.mrf.mxu0
  %v1698 = vadd.f32 %v1669, %v1697
  %v1699 = vpop.f32.mrf.mxu0
  %v1700 = vadd.f32 %v1671, %v1699
  %1701 = vmatmul.bf16.gmra.mxu0 %v56
  %v1702 = vpop.f32.mrf.mxu0
  %v1703 = vadd.f32 %v1674, %v1702
  %v1704 = vpop.f32.mrf.mxu0
  %v1705 = vadd.f32 %v1676, %v1704
  %1706 = vmatmul.bf16.gmra.mxu0 %v60
  %v1707 = vpop.f32.mrf.mxu0
  %v1708 = vadd.f32 %v1679, %v1707
  %v1709 = vpop.f32.mrf.mxu0
  %v1710 = vadd.f32 %v1681, %v1709
  %1711 = vmatmul.bf16.gmra.mxu0 %v64
  %v1712 = vpop.f32.mrf.mxu0
  %v1713 = vadd.f32 %v1684, %v1712
  %v1714 = vpop.f32.mrf.mxu0
  %v1715 = vadd.f32 %v1686, %v1714
  %1716 = vdwg.mxu0
  %1717 = vmatpush.bf16.msra.mxu0 %v1146
  %1718 = vmatpush.bf16.msra.mxu0 %v1138
  %1719 = vmatpush.bf16.msra.mxu0 %v1130
  %1720 = vmatpush.bf16.msra.mxu0 %v1122
  %1721 = vmatpush.bf16.msra.mxu0 %v1114
  %1722 = vmatpush.bf16.msra.mxu0 %v1106
  %1723 = vmatpush.bf16.msra.mxu0 %v1098
  %1724 = vmatpush.bf16.msra.mxu0 %v1090
  %1725 = vmatmul.bf16.gmra.mxu0 %v49
  %v1726 = vpop.f32.mrf.mxu0
  %v1727 = vadd.f32 0.0, %v1726
  %v1728 = vpop.f32.mrf.mxu0
  %v1729 = vadd.f32 0.0, %v1728
  %1730 = vmatmul.bf16.gmra.mxu0 %v53
  %v1731 = vpop.f32.mrf.mxu0
  %v1732 = vadd.f32 0.0, %v1731
  %v1733 = vpop.f32.mrf.mxu0
  %v1734 = vadd.f32 0.0, %v1733
  %1735 = vmatmul.bf16.gmra.mxu0 %v57
  %v1736 = vpop.f32.mrf.mxu0
  %v1737 = vadd.f32 0.0, %v1736
  %v1738 = vpop.f32.mrf.mxu0
  %v1739 = vadd.f32 0.0, %v1738
  %1740 = vmatmul.bf16.gmra.mxu0 %v61
  %v1741 = vpop.f32.mrf.mxu0
  %v1742 = vadd.f32 0.0, %v1741
  %v1743 = vpop.f32.mrf.mxu0
  %v1744 = vadd.f32 0.0, %v1743
  %1745 = vdwg.mxu0
  %1746 = vmatpush.bf16.msra.mxu0 %v1210
  %1747 = vmatpush.bf16.msra.mxu0 %v1202
  %1748 = vmatpush.bf16.msra.mxu0 %v1194
  %1749 = vmatpush.bf16.msra.mxu0 %v1186
  %1750 = vmatpush.bf16.msra.mxu0 %v1178
  %1751 = vmatpush.bf16.msra.mxu0 %v1170
  %1752 = vmatpush.bf16.msra.mxu0 %v1162
  %1753 = vmatpush.bf16.msra.mxu0 %v1154
  %1754 = vmatmul.bf16.gmra.mxu0 %v50
  %v1755 = vpop.f32.mrf.mxu0
  %v1756 = vadd.f32 %v1727, %v1755
  %v1757 = vpop.f32.mrf.mxu0
  %v1758 = vadd.f32 %v1729, %v1757
  %1759 = vmatmul.bf16.gmra.mxu0 %v54
  %v1760 = vpop.f32.mrf.mxu0
  %v1761 = vadd.f32 %v1732, %v1760
  %v1762 = vpop.f32.mrf.mxu0
  %v1763 = vadd.f32 %v1734, %v1762
  %1764 = vmatmul.bf16.gmra.mxu0 %v58
  %v1765 = vpop.f32.mrf.mxu0
  %v1766 = vadd.f32 %v1737, %v1765
  %v1767 = vpop.f32.mrf.mxu0
  %v1768 = vadd.f32 %v1739, %v1767
  %1769 = vmatmul.bf16.gmra.mxu0 %v62
  %v1770 = vpop.f32.mrf.mxu0
  %v1771 = vadd.f32 %v1742, %v1770
  %v1772 = vpop.f32.mrf.mxu0
  %v1773 = vadd.f32 %v1744, %v1772
  %1774 = vdwg.mxu0
  %1775 = vmatpush.bf16.msra.mxu0 %v1274
  %1776 = vmatpush.bf16.msra.mxu0 %v1266
  %1777 = vmatpush.bf16.msra.mxu0 %v1258
  %1778 = vmatpush.bf16.msra.mxu0 %v1250
  %1779 = vmatpush.bf16.msra.mxu0 %v1242
  %1780 = vmatpush.bf16.msra.mxu0 %v1234
  %1781 = vmatpush.bf16.msra.mxu0 %v1226
  %1782 = vmatpush.bf16.msra.mxu0 %v1218
  %1783 = vmatmul.bf16.gmra.mxu0 %v51
  %v1784 = vpop.f32.mrf.mxu0
  %v1785 = vadd.f32 %v1756, %v1784
  %v1786 = vpop.f32.mrf.mxu0
  %v1787 = vadd.f32 %v1758, %v1786
  %1788 = vmatmul.bf16.gmra.mxu0 %v55
  %v1789 = vpop.f32.mrf.mxu0
  %v1790 = vadd.f32 %v1761, %v1789
  %v1791 = vpop.f32.mrf.mxu0
  %v1792 = vadd.f32 %v1763, %v1791
  %1793 = vmatmul.bf16.gmra.mxu0 %v59
  %v1794 = vpop.f32.mrf.mxu0
  %v1795 = vadd.f32 %v1766, %v1794
  %v1796 = vpop.f32.mrf.mxu0
  %v1797 = vadd.f32 %v1768, %v1796
  %1798 = vmatmul.bf16.gmra.mxu0 %v63
  %v1799 = vpop.f32.mrf.mxu0
  %v1800 = vadd.f32 %v1771, %v1799
  %v1801 = vpop.f32.mrf.mxu0
  %v1802 = vadd.f32 %v1773, %v1801
  %1803 = vdwg.mxu0
  %1804 = vmatpush.bf16.msra.mxu0 %v1338
  %1805 = vmatpush.bf16.msra.mxu0 %v1330
  %1806 = vmatpush.bf16.msra.mxu0 %v1322
  %1807 = vmatpush.bf16.msra.mxu0 %v1314
  %1808 = vmatpush.bf16.msra.mxu0 %v1306
  %1809 = vmatpush.bf16.msra.mxu0 %v1298
  %1810 = vmatpush.bf16.msra.mxu0 %v1290
  %1811 = vmatpush.bf16.msra.mxu0 %v1282
  %1812 = vmatmul.bf16.gmra.mxu0 %v52
  %v1813 = vpop.f32.mrf.mxu0
  %v1814 = vadd.f32 %v1785, %v1813
  %v1815 = vpop.f32.mrf.mxu0
  %v1816 = vadd.f32 %v1787, %v1815
  %1817 = vmatmul.bf16.gmra.mxu0 %v56
  %v1818 = vpop.f32.mrf.mxu0
  %v1819 = vadd.f32 %v1790, %v1818
  %v1820 = vpop.f32.mrf.mxu0
  %v1821 = vadd.f32 %v1792, %v1820
  %1822 = vmatmul.bf16.gmra.mxu0 %v60
  %v1823 = vpop.f32.mrf.mxu0
  %v1824 = vadd.f32 %v1795, %v1823
  %v1825 = vpop.f32.mrf.mxu0
  %v1826 = vadd.f32 %v1797, %v1825
  %1827 = vmatmul.bf16.gmra.mxu0 %v64
  %v1828 = vpop.f32.mrf.mxu0
  %v1829 = vadd.f32 %v1800, %v1828
  %v1830 = vpop.f32.mrf.mxu0
  %v1831 = vadd.f32 %v1802, %v1830
  %1832 = vdwg.mxu0
  %1833 = vmatpush.bf16.msra.mxu0 %v1147
  %1834 = vmatpush.bf16.msra.mxu0 %v1139
  %1835 = vmatpush.bf16.msra.mxu0 %v1131
  %1836 = vmatpush.bf16.msra.mxu0 %v1123
  %1837 = vmatpush.bf16.msra.mxu0 %v1115
  %1838 = vmatpush.bf16.msra.mxu0 %v1107
  %1839 = vmatpush.bf16.msra.mxu0 %v1099
  %1840 = vmatpush.bf16.msra.mxu0 %v1091
  %1841 = vmatmul.bf16.gmra.mxu0 %v49
  %v1842 = vpop.f32.mrf.mxu0
  %v1843 = vadd.f32 0.0, %v1842
  %v1844 = vpop.f32.mrf.mxu0
  %v1845 = vadd.f32 0.0, %v1844
  %1846 = vmatmul.bf16.gmra.mxu0 %v53
  %v1847 = vpop.f32.mrf.mxu0
  %v1848 = vadd.f32 0.0, %v1847
  %v1849 = vpop.f32.mrf.mxu0
  %v1850 = vadd.f32 0.0, %v1849
  %1851 = vmatmul.bf16.gmra.mxu0 %v57
  %v1852 = vpop.f32.mrf.mxu0
  %v1853 = vadd.f32 0.0, %v1852
  %v1854 = vpop.f32.mrf.mxu0
  %v1855 = vadd.f32 0.0, %v1854
  %1856 = vmatmul.bf16.gmra.mxu0 %v61
  %v1857 = vpop.f32.mrf.mxu0
  %v1858 = vadd.f32 0.0, %v1857
  %v1859 = vpop.f32.mrf.mxu0
  %v1860 = vadd.f32 0.0, %v1859
  %1861 = vdwg.mxu0
  %1862 = vmatpush.bf16.msra.mxu0 %v1211
  %1863 = vmatpush.bf16.msra.mxu0 %v1203
  %1864 = vmatpush.bf16.msra.mxu0 %v1195
  %1865 = vmatpush.bf16.msra.mxu0 %v1187
  %1866 = vmatpush.bf16.msra.mxu0 %v1179
  %1867 = vmatpush.bf16.msra.mxu0 %v1171
  %1868 = vmatpush.bf16.msra.mxu0 %v1163
  %1869 = vmatpush.bf16.msra.mxu0 %v1155
  %1870 = vmatmul.bf16.gmra.mxu0 %v50
  %v1871 = vpop.f32.mrf.mxu0
  %v1872 = vadd.f32 %v1843, %v1871
  %v1873 = vpop.f32.mrf.mxu0
  %v1874 = vadd.f32 %v1845, %v1873
  %1875 = vmatmul.bf16.gmra.mxu0 %v54
  %v1876 = vpop.f32.mrf.mxu0
  %v1877 = vadd.f32 %v1848, %v1876
  %v1878 = vpop.f32.mrf.mxu0
  %v1879 = vadd.f32 %v1850, %v1878
  %1880 = vmatmul.bf16.gmra.mxu0 %v58
  %v1881 = vpop.f32.mrf.mxu0
  %v1882 = vadd.f32 %v1853, %v1881
  %v1883 = vpop.f32.mrf.mxu0
  %v1884 = vadd.f32 %v1855, %v1883
  %1885 = vmatmul.bf16.gmra.mxu0 %v62
  %v1886 = vpop.f32.mrf.mxu0
  %v1887 = vadd.f32 %v1858, %v1886
  %v1888 = vpop.f32.mrf.mxu0
  %v1889 = vadd.f32 %v1860, %v1888
  %1890 = vdwg.mxu0
  %1891 = vmatpush.bf16.msra.mxu0 %v1275
  %1892 = vmatpush.bf16.msra.mxu0 %v1267
  %1893 = vmatpush.bf16.msra.mxu0 %v1259
  %1894 = vmatpush.bf16.msra.mxu0 %v1251
  %1895 = vmatpush.bf16.msra.mxu0 %v1243
  %1896 = vmatpush.bf16.msra.mxu0 %v1235
  %1897 = vmatpush.bf16.msra.mxu0 %v1227
  %1898 = vmatpush.bf16.msra.mxu0 %v1219
  %1899 = vmatmul.bf16.gmra.mxu0 %v51
  %v1900 = vpop.f32.mrf.mxu0
  %v1901 = vadd.f32 %v1872, %v1900
  %v1902 = vpop.f32.mrf.mxu0
  %v1903 = vadd.f32 %v1874, %v1902
  %1904 = vmatmul.bf16.gmra.mxu0 %v55
  %v1905 = vpop.f32.mrf.mxu0
  %v1906 = vadd.f32 %v1877, %v1905
  %v1907 = vpop.f32.mrf.mxu0
  %v1908 = vadd.f32 %v1879, %v1907
  %1909 = vmatmul.bf16.gmra.mxu0 %v59
  %v1910 = vpop.f32.mrf.mxu0
  %v1911 = vadd.f32 %v1882, %v1910
  %v1912 = vpop.f32.mrf.mxu0
  %v1913 = vadd.f32 %v1884, %v1912
  %1914 = vmatmul.bf16.gmra.mxu0 %v63
  %v1915 = vpop.f32.mrf.mxu0
  %v1916 = vadd.f32 %v1887, %v1915
  %v1917 = vpop.f32.mrf.mxu0
  %v1918 = vadd.f32 %v1889, %v1917
  %1919 = vdwg.mxu0
  %1920 = vmatpush.bf16.msra.mxu0 %v1339
  %1921 = vmatpush.bf16.msra.mxu0 %v1331
  %1922 = vmatpush.bf16.msra.mxu0 %v1323
  %1923 = vmatpush.bf16.msra.mxu0 %v1315
  %1924 = vmatpush.bf16.msra.mxu0 %v1307
  %1925 = vmatpush.bf16.msra.mxu0 %v1299
  %1926 = vmatpush.bf16.msra.mxu0 %v1291
  %1927 = vmatpush.bf16.msra.mxu0 %v1283
  %1928 = vmatmul.bf16.gmra.mxu0 %v52
  %v1929 = vpop.f32.mrf.mxu0
  %v1930 = vadd.f32 %v1901, %v1929
  %v1931 = vpop.f32.mrf.mxu0
  %v1932 = vadd.f32 %v1903, %v1931
  %1933 = vmatmul.bf16.gmra.mxu0 %v56
  %v1934 = vpop.f32.mrf.mxu0
  %v1935 = vadd.f32 %v1906, %v1934
  %v1936 = vpop.f32.mrf.mxu0
  %v1937 = vadd.f32 %v1908, %v1936
  %1938 = vmatmul.bf16.gmra.mxu0 %v60
  %v1939 = vpop.f32.mrf.mxu0
  %v1940 = vadd.f32 %v1911, %v1939
  %v1941 = vpop.f32.mrf.mxu0
  %v1942 = vadd.f32 %v1913, %v1941
  %1943 = vmatmul.bf16.gmra.mxu0 %v64
  %v1944 = vpop.f32.mrf.mxu0
  %v1945 = vadd.f32 %v1916, %v1944
  %v1946 = vpop.f32.mrf.mxu0
  %v1947 = vadd.f32 %v1918, %v1946
  %1948 = vdwg.mxu0
  %1949 = vmatpush.bf16.msra.mxu0 %v1148
  %1950 = vmatpush.bf16.msra.mxu0 %v1140
  %1951 = vmatpush.bf16.msra.mxu0 %v1132
  %1952 = vmatpush.bf16.msra.mxu0 %v1124
  %1953 = vmatpush.bf16.msra.mxu0 %v1116
  %1954 = vmatpush.bf16.msra.mxu0 %v1108
  %1955 = vmatpush.bf16.msra.mxu0 %v1100
  %1956 = vmatpush.bf16.msra.mxu0 %v1092
  %1957 = vmatmul.bf16.gmra.mxu0 %v49
  %v1958 = vpop.f32.mrf.mxu0
  %v1959 = vadd.f32 0.0, %v1958
  %v1960 = vpop.f32.mrf.mxu0
  %v1961 = vadd.f32 0.0, %v1960
  %1962 = vmatmul.bf16.gmra.mxu0 %v53
  %v1963 = vpop.f32.mrf.mxu0
  %v1964 = vadd.f32 0.0, %v1963
  %v1965 = vpop.f32.mrf.mxu0
  %v1966 = vadd.f32 0.0, %v1965
  %1967 = vmatmul.bf16.gmra.mxu0 %v57
  %v1968 = vpop.f32.mrf.mxu0
  %v1969 = vadd.f32 0.0, %v1968
  %v1970 = vpop.f32.mrf.mxu0
  %v1971 = vadd.f32 0.0, %v1970
  %1972 = vmatmul.bf16.gmra.mxu0 %v61
  %v1973 = vpop.f32.mrf.mxu0
  %v1974 = vadd.f32 0.0, %v1973
  %v1975 = vpop.f32.mrf.mxu0
  %v1976 = vadd.f32 0.0, %v1975
  %1977 = vdwg.mxu0
  %1978 = vmatpush.bf16.msra.mxu0 %v1212
  %1979 = vmatpush.bf16.msra.mxu0 %v1204
  %1980 = vmatpush.bf16.msra.mxu0 %v1196
  %1981 = vmatpush.bf16.msra.mxu0 %v1188
  %1982 = vmatpush.bf16.msra.mxu0 %v1180
  %1983 = vmatpush.bf16.msra.mxu0 %v1172
  %1984 = vmatpush.bf16.msra.mxu0 %v1164
  %1985 = vmatpush.bf16.msra.mxu0 %v1156
  %1986 = vmatmul.bf16.gmra.mxu0 %v50
  %v1987 = vpop.f32.mrf.mxu0
  %v1988 = vadd.f32 %v1959, %v1987
  %v1989 = vpop.f32.mrf.mxu0
  %v1990 = vadd.f32 %v1961, %v1989
  %1991 = vmatmul.bf16.gmra.mxu0 %v54
  %v1992 = vpop.f32.mrf.mxu0
  %v1993 = vadd.f32 %v1964, %v1992
  %v1994 = vpop.f32.mrf.mxu0
  %v1995 = vadd.f32 %v1966, %v1994
  %1996 = vmatmul.bf16.gmra.mxu0 %v58
  %v1997 = vpop.f32.mrf.mxu0
  %v1998 = vadd.f32 %v1969, %v1997
  %v1999 = vpop.f32.mrf.mxu0
  %v2000 = vadd.f32 %v1971, %v1999
  %2001 = vmatmul.bf16.gmra.mxu0 %v62
  %v2002 = vpop.f32.mrf.mxu0
  %v2003 = vadd.f32 %v1974, %v2002
  %v2004 = vpop.f32.mrf.mxu0
  %v2005 = vadd.f32 %v1976, %v2004
  %2006 = vdwg.mxu0
  %2007 = vmatpush.bf16.msra.mxu0 %v1276
  %2008 = vmatpush.bf16.msra.mxu0 %v1268
  %2009 = vmatpush.bf16.msra.mxu0 %v1260
  %2010 = vmatpush.bf16.msra.mxu0 %v1252
  %2011 = vmatpush.bf16.msra.mxu0 %v1244
  %2012 = vmatpush.bf16.msra.mxu0 %v1236
  %2013 = vmatpush.bf16.msra.mxu0 %v1228
  %2014 = vmatpush.bf16.msra.mxu0 %v1220
  %2015 = vmatmul.bf16.gmra.mxu0 %v51
  %v2016 = vpop.f32.mrf.mxu0
  %v2017 = vadd.f32 %v1988, %v2016
  %v2018 = vpop.f32.mrf.mxu0
  %v2019 = vadd.f32 %v1990, %v2018
  %2020 = vmatmul.bf16.gmra.mxu0 %v55
  %v2021 = vpop.f32.mrf.mxu0
  %v2022 = vadd.f32 %v1993, %v2021
  %v2023 = vpop.f32.mrf.mxu0
  %v2024 = vadd.f32 %v1995, %v2023
  %2025 = vmatmul.bf16.gmra.mxu0 %v59
  %v2026 = vpop.f32.mrf.mxu0
  %v2027 = vadd.f32 %v1998, %v2026
  %v2028 = vpop.f32.mrf.mxu0
  %v2029 = vadd.f32 %v2000, %v2028
  %2030 = vmatmul.bf16.gmra.mxu0 %v63
  %v2031 = vpop.f32.mrf.mxu0
  %v2032 = vadd.f32 %v2003, %v2031
  %v2033 = vpop.f32.mrf.mxu0
  %v2034 = vadd.f32 %v2005, %v2033
  %2035 = vdwg.mxu0
  %2036 = vmatpush.bf16.msra.mxu0 %v1340
  %2037 = vmatpush.bf16.msra.mxu0 %v1332
  %2038 = vmatpush.bf16.msra.mxu0 %v1324
  %2039 = vmatpush.bf16.msra.mxu0 %v1316
  %2040 = vmatpush.bf16.msra.mxu0 %v1308
  %2041 = vmatpush.bf16.msra.mxu0 %v1300
  %2042 = vmatpush.bf16.msra.mxu0 %v1292
  %2043 = vmatpush.bf16.msra.mxu0 %v1284
  %2044 = vmatmul.bf16.gmra.mxu0 %v52
  %v2045 = vpop.f32.mrf.mxu0
  %v2046 = vadd.f32 %v2017, %v2045
  %v2047 = vpop.f32.mrf.mxu0
  %v2048 = vadd.f32 %v2019, %v2047
  %2049 = vmatmul.bf16.gmra.mxu0 %v56
  %v2050 = vpop.f32.mrf.mxu0
  %v2051 = vadd.f32 %v2022, %v2050
  %v2052 = vpop.f32.mrf.mxu0
  %v2053 = vadd.f32 %v2024, %v2052
  %2054 = vmatmul.bf16.gmra.mxu0 %v60
  %v2055 = vpop.f32.mrf.mxu0
  %v2056 = vadd.f32 %v2027, %v2055
  %v2057 = vpop.f32.mrf.mxu0
  %v2058 = vadd.f32 %v2029, %v2057
  %2059 = vmatmul.bf16.gmra.mxu0 %v64
  %v2060 = vpop.f32.mrf.mxu0
  %v2061 = vadd.f32 %v2032, %v2060
  %v2062 = vpop.f32.mrf.mxu0
  %v2063 = vadd.f32 %v2034, %v2062
  %2064 = vdwg.mxu0
  %2065 = vmatpush.bf16.msra.mxu0 %v1149
  %2066 = vmatpush.bf16.msra.mxu0 %v1141
  %2067 = vmatpush.bf16.msra.mxu0 %v1133
  %2068 = vmatpush.bf16.msra.mxu0 %v1125
  %2069 = vmatpush.bf16.msra.mxu0 %v1117
  %2070 = vmatpush.bf16.msra.mxu0 %v1109
  %2071 = vmatpush.bf16.msra.mxu0 %v1101
  %2072 = vmatpush.bf16.msra.mxu0 %v1093
  %2073 = vmatmul.bf16.gmra.mxu0 %v49
  %v2074 = vpop.f32.mrf.mxu0
  %v2075 = vadd.f32 0.0, %v2074
  %v2076 = vpop.f32.mrf.mxu0
  %v2077 = vadd.f32 0.0, %v2076
  %2078 = vmatmul.bf16.gmra.mxu0 %v53
  %v2079 = vpop.f32.mrf.mxu0
  %v2080 = vadd.f32 0.0, %v2079
  %v2081 = vpop.f32.mrf.mxu0
  %v2082 = vadd.f32 0.0, %v2081
  %2083 = vmatmul.bf16.gmra.mxu0 %v57
  %v2084 = vpop.f32.mrf.mxu0
  %v2085 = vadd.f32 0.0, %v2084
  %v2086 = vpop.f32.mrf.mxu0
  %v2087 = vadd.f32 0.0, %v2086
  %2088 = vmatmul.bf16.gmra.mxu0 %v61
  %v2089 = vpop.f32.mrf.mxu0
  %v2090 = vadd.f32 0.0, %v2089
  %v2091 = vpop.f32.mrf.mxu0
  %v2092 = vadd.f32 0.0, %v2091
  %2093 = vdwg.mxu0
  %2094 = vmatpush.bf16.msra.mxu0 %v1213
  %2095 = vmatpush.bf16.msra.mxu0 %v1205
  %2096 = vmatpush.bf16.msra.mxu0 %v1197
  %2097 = vmatpush.bf16.msra.mxu0 %v1189
  %2098 = vmatpush.bf16.msra.mxu0 %v1181
  %2099 = vmatpush.bf16.msra.mxu0 %v1173
  %2100 = vmatpush.bf16.msra.mxu0 %v1165
  %2101 = vmatpush.bf16.msra.mxu0 %v1157
  %2102 = vmatmul.bf16.gmra.mxu0 %v50
  %v2103 = vpop.f32.mrf.mxu0
  %v2104 = vadd.f32 %v2075, %v2103
  %v2105 = vpop.f32.mrf.mxu0
  %v2106 = vadd.f32 %v2077, %v2105
  %2107 = vmatmul.bf16.gmra.mxu0 %v54
  %v2108 = vpop.f32.mrf.mxu0
  %v2109 = vadd.f32 %v2080, %v2108
  %v2110 = vpop.f32.mrf.mxu0
  %v2111 = vadd.f32 %v2082, %v2110
  %2112 = vmatmul.bf16.gmra.mxu0 %v58
  %v2113 = vpop.f32.mrf.mxu0
  %v2114 = vadd.f32 %v2085, %v2113
  %v2115 = vpop.f32.mrf.mxu0
  %v2116 = vadd.f32 %v2087, %v2115
  %2117 = vmatmul.bf16.gmra.mxu0 %v62
  %v2118 = vpop.f32.mrf.mxu0
  %v2119 = vadd.f32 %v2090, %v2118
  %v2120 = vpop.f32.mrf.mxu0
  %v2121 = vadd.f32 %v2092, %v2120
  %2122 = vdwg.mxu0
  %2123 = vmatpush.bf16.msra.mxu0 %v1277
  %2124 = vmatpush.bf16.msra.mxu0 %v1269
  %2125 = vmatpush.bf16.msra.mxu0 %v1261
  %2126 = vmatpush.bf16.msra.mxu0 %v1253
  %2127 = vmatpush.bf16.msra.mxu0 %v1245
  %2128 = vmatpush.bf16.msra.mxu0 %v1237
  %2129 = vmatpush.bf16.msra.mxu0 %v1229
  %2130 = vmatpush.bf16.msra.mxu0 %v1221
  %2131 = vmatmul.bf16.gmra.mxu0 %v51
  %v2132 = vpop.f32.mrf.mxu0
  %v2133 = vadd.f32 %v2104, %v2132
  %v2134 = vpop.f32.mrf.mxu0
  %v2135 = vadd.f32 %v2106, %v2134
  %2136 = vmatmul.bf16.gmra.mxu0 %v55
  %v2137 = vpop.f32.mrf.mxu0
  %v2138 = vadd.f32 %v2109, %v2137
  %v2139 = vpop.f32.mrf.mxu0
  %v2140 = vadd.f32 %v2111, %v2139
  %2141 = vmatmul.bf16.gmra.mxu0 %v59
  %v2142 = vpop.f32.mrf.mxu0
  %v2143 = vadd.f32 %v2114, %v2142
  %v2144 = vpop.f32.mrf.mxu0
  %v2145 = vadd.f32 %v2116, %v2144
  %2146 = vmatmul.bf16.gmra.mxu0 %v63
  %v2147 = vpop.f32.mrf.mxu0
  %v2148 = vadd.f32 %v2119, %v2147
  %v2149 = vpop.f32.mrf.mxu0
  %v2150 = vadd.f32 %v2121, %v2149
  %2151 = vdwg.mxu0
  %2152 = vmatpush.bf16.msra.mxu0 %v1341
  %2153 = vmatpush.bf16.msra.mxu0 %v1333
  %2154 = vmatpush.bf16.msra.mxu0 %v1325
  %2155 = vmatpush.bf16.msra.mxu0 %v1317
  %2156 = vmatpush.bf16.msra.mxu0 %v1309
  %2157 = vmatpush.bf16.msra.mxu0 %v1301
  %2158 = vmatpush.bf16.msra.mxu0 %v1293
  %2159 = vmatpush.bf16.msra.mxu0 %v1285
  %2160 = vmatmul.bf16.gmra.mxu0 %v52
  %v2161 = vpop.f32.mrf.mxu0
  %v2162 = vadd.f32 %v2133, %v2161
  %v2163 = vpop.f32.mrf.mxu0
  %v2164 = vadd.f32 %v2135, %v2163
  %2165 = vmatmul.bf16.gmra.mxu0 %v56
  %v2166 = vpop.f32.mrf.mxu0
  %v2167 = vadd.f32 %v2138, %v2166
  %v2168 = vpop.f32.mrf.mxu0
  %v2169 = vadd.f32 %v2140, %v2168
  %2170 = vmatmul.bf16.gmra.mxu0 %v60
  %v2171 = vpop.f32.mrf.mxu0
  %v2172 = vadd.f32 %v2143, %v2171
  %v2173 = vpop.f32.mrf.mxu0
  %v2174 = vadd.f32 %v2145, %v2173
  %2175 = vmatmul.bf16.gmra.mxu0 %v64
  %v2176 = vpop.f32.mrf.mxu0
  %v2177 = vadd.f32 %v2148, %v2176
  %v2178 = vpop.f32.mrf.mxu0
  %v2179 = vadd.f32 %v2150, %v2178
  %2180 = vdwg.mxu0
  %2181 = vmatpush.bf16.msra.mxu0 %v1150
  %2182 = vmatpush.bf16.msra.mxu0 %v1142
  %2183 = vmatpush.bf16.msra.mxu0 %v1134
  %2184 = vmatpush.bf16.msra.mxu0 %v1126
  %2185 = vmatpush.bf16.msra.mxu0 %v1118
  %2186 = vmatpush.bf16.msra.mxu0 %v1110
  %2187 = vmatpush.bf16.msra.mxu0 %v1102
  %2188 = vmatpush.bf16.msra.mxu0 %v1094
  %2189 = vmatmul.bf16.gmra.mxu0 %v49
  %v2190 = vpop.f32.mrf.mxu0
  %v2191 = vadd.f32 0.0, %v2190
  %v2192 = vpop.f32.mrf.mxu0
  %v2193 = vadd.f32 0.0, %v2192
  %2194 = vmatmul.bf16.gmra.mxu0 %v53
  %v2195 = vpop.f32.mrf.mxu0
  %v2196 = vadd.f32 0.0, %v2195
  %v2197 = vpop.f32.mrf.mxu0
  %v2198 = vadd.f32 0.0, %v2197
  %2199 = vmatmul.bf16.gmra.mxu0 %v57
  %v2200 = vpop.f32.mrf.mxu0
  %v2201 = vadd.f32 0.0, %v2200
  %v2202 = vpop.f32.mrf.mxu0
  %v2203 = vadd.f32 0.0, %v2202
  %2204 = vmatmul.bf16.gmra.mxu0 %v61
  %v2205 = vpop.f32.mrf.mxu0
  %v2206 = vadd.f32 0.0, %v2205
  %v2207 = vpop.f32.mrf.mxu0
  %v2208 = vadd.f32 0.0, %v2207
  %2209 = vdwg.mxu0
  %2210 = vmatpush.bf16.msra.mxu0 %v1214
  %2211 = vmatpush.bf16.msra.mxu0 %v1206
  %2212 = vmatpush.bf16.msra.mxu0 %v1198
  %2213 = vmatpush.bf16.msra.mxu0 %v1190
  %2214 = vmatpush.bf16.msra.mxu0 %v1182
  %2215 = vmatpush.bf16.msra.mxu0 %v1174
  %2216 = vmatpush.bf16.msra.mxu0 %v1166
  %2217 = vmatpush.bf16.msra.mxu0 %v1158
  %2218 = vmatmul.bf16.gmra.mxu0 %v50
  %v2219 = vpop.f32.mrf.mxu0
  %v2220 = vadd.f32 %v2191, %v2219
  %v2221 = vpop.f32.mrf.mxu0
  %v2222 = vadd.f32 %v2193, %v2221
  %2223 = vmatmul.bf16.gmra.mxu0 %v54
  %v2224 = vpop.f32.mrf.mxu0
  %v2225 = vadd.f32 %v2196, %v2224
  %v2226 = vpop.f32.mrf.mxu0
  %v2227 = vadd.f32 %v2198, %v2226
  %2228 = vmatmul.bf16.gmra.mxu0 %v58
  %v2229 = vpop.f32.mrf.mxu0
  %v2230 = vadd.f32 %v2201, %v2229
  %v2231 = vpop.f32.mrf.mxu0
  %v2232 = vadd.f32 %v2203, %v2231
  %2233 = vmatmul.bf16.gmra.mxu0 %v62
  %v2234 = vpop.f32.mrf.mxu0
  %v2235 = vadd.f32 %v2206, %v2234
  %v2236 = vpop.f32.mrf.mxu0
  %v2237 = vadd.f32 %v2208, %v2236
  %2238 = vdwg.mxu0
  %2239 = vmatpush.bf16.msra.mxu0 %v1278
  %2240 = vmatpush.bf16.msra.mxu0 %v1270
  %2241 = vmatpush.bf16.msra.mxu0 %v1262
  %2242 = vmatpush.bf16.msra.mxu0 %v1254
  %2243 = vmatpush.bf16.msra.mxu0 %v1246
  %2244 = vmatpush.bf16.msra.mxu0 %v1238
  %2245 = vmatpush.bf16.msra.mxu0 %v1230
  %2246 = vmatpush.bf16.msra.mxu0 %v1222
  %2247 = vmatmul.bf16.gmra.mxu0 %v51
  %v2248 = vpop.f32.mrf.mxu0
  %v2249 = vadd.f32 %v2220, %v2248
  %v2250 = vpop.f32.mrf.mxu0
  %v2251 = vadd.f32 %v2222, %v2250
  %2252 = vmatmul.bf16.gmra.mxu0 %v55
  %v2253 = vpop.f32.mrf.mxu0
  %v2254 = vadd.f32 %v2225, %v2253
  %v2255 = vpop.f32.mrf.mxu0
  %v2256 = vadd.f32 %v2227, %v2255
  %2257 = vmatmul.bf16.gmra.mxu0 %v59
  %v2258 = vpop.f32.mrf.mxu0
  %v2259 = vadd.f32 %v2230, %v2258
  %v2260 = vpop.f32.mrf.mxu0
  %v2261 = vadd.f32 %v2232, %v2260
  %2262 = vmatmul.bf16.gmra.mxu0 %v63
  %v2263 = vpop.f32.mrf.mxu0
  %v2264 = vadd.f32 %v2235, %v2263
  %v2265 = vpop.f32.mrf.mxu0
  %v2266 = vadd.f32 %v2237, %v2265
  %2267 = vdwg.mxu0
  %2268 = vmatpush.bf16.msra.mxu0 %v1342
  %2269 = vmatpush.bf16.msra.mxu0 %v1334
  %2270 = vmatpush.bf16.msra.mxu0 %v1326
  %2271 = vmatpush.bf16.msra.mxu0 %v1318
  %2272 = vmatpush.bf16.msra.mxu0 %v1310
  %2273 = vmatpush.bf16.msra.mxu0 %v1302
  %2274 = vmatpush.bf16.msra.mxu0 %v1294
  %2275 = vmatpush.bf16.msra.mxu0 %v1286
  %2276 = vmatmul.bf16.gmra.mxu0 %v52
  %v2277 = vpop.f32.mrf.mxu0
  %v2278 = vadd.f32 %v2249, %v2277
  %v2279 = vpop.f32.mrf.mxu0
  %v2280 = vadd.f32 %v2251, %v2279
  %2281 = vmatmul.bf16.gmra.mxu0 %v56
  %v2282 = vpop.f32.mrf.mxu0
  %v2283 = vadd.f32 %v2254, %v2282
  %v2284 = vpop.f32.mrf.mxu0
  %v2285 = vadd.f32 %v2256, %v2284
  %2286 = vmatmul.bf16.gmra.mxu0 %v60
  %v2287 = vpop.f32.mrf.mxu0
  %v2288 = vadd.f32 %v2259, %v2287
  %v2289 = vpop.f32.mrf.mxu0
  %v2290 = vadd.f32 %v2261, %v2289
  %2291 = vmatmul.bf16.gmra.mxu0 %v64
  %v2292 = vpop.f32.mrf.mxu0
  %v2293 = vadd.f32 %v2264, %v2292
  %v2294 = vpop.f32.mrf.mxu0
  %v2295 = vadd.f32 %v2266, %v2294
  %2296 = vdwg.mxu0
  %2297 = vmatpush.bf16.msra.mxu0 %v1151
  %2298 = vmatpush.bf16.msra.mxu0 %v1143
  %2299 = vmatpush.bf16.msra.mxu0 %v1135
  %2300 = vmatpush.bf16.msra.mxu0 %v1127
  %2301 = vmatpush.bf16.msra.mxu0 %v1119
  %2302 = vmatpush.bf16.msra.mxu0 %v1111
  %2303 = vmatpush.bf16.msra.mxu0 %v1103
  %2304 = vmatpush.bf16.msra.mxu0 %v1095
  %2305 = vmatmul.bf16.gmra.mxu0 %v49
  %v2306 = vpop.f32.mrf.mxu0
  %v2307 = vadd.f32 0.0, %v2306
  %v2308 = vpop.f32.mrf.mxu0
  %v2309 = vadd.f32 0.0, %v2308
  %2310 = vmatmul.bf16.gmra.mxu0 %v53
  %v2311 = vpop.f32.mrf.mxu0
  %v2312 = vadd.f32 0.0, %v2311
  %v2313 = vpop.f32.mrf.mxu0
  %v2314 = vadd.f32 0.0, %v2313
  %2315 = vmatmul.bf16.gmra.mxu0 %v57
  %v2316 = vpop.f32.mrf.mxu0
  %v2317 = vadd.f32 0.0, %v2316
  %v2318 = vpop.f32.mrf.mxu0
  %v2319 = vadd.f32 0.0, %v2318
  %2320 = vmatmul.bf16.gmra.mxu0 %v61
  %v2321 = vpop.f32.mrf.mxu0
  %v2322 = vadd.f32 0.0, %v2321
  %v2323 = vpop.f32.mrf.mxu0
  %v2324 = vadd.f32 0.0, %v2323
  %2325 = vdwg.mxu0
  %2326 = vmatpush.bf16.msra.mxu0 %v1215
  %2327 = vmatpush.bf16.msra.mxu0 %v1207
  %2328 = vmatpush.bf16.msra.mxu0 %v1199
  %2329 = vmatpush.bf16.msra.mxu0 %v1191
  %2330 = vmatpush.bf16.msra.mxu0 %v1183
  %2331 = vmatpush.bf16.msra.mxu0 %v1175
  %2332 = vmatpush.bf16.msra.mxu0 %v1167
  %2333 = vmatpush.bf16.msra.mxu0 %v1159
  %2334 = vmatmul.bf16.gmra.mxu0 %v50
  %v2335 = vpop.f32.mrf.mxu0
  %v2336 = vadd.f32 %v2307, %v2335
  %v2337 = vpop.f32.mrf.mxu0
  %v2338 = vadd.f32 %v2309, %v2337
  %2339 = vmatmul.bf16.gmra.mxu0 %v54
  %v2340 = vpop.f32.mrf.mxu0
  %v2341 = vadd.f32 %v2312, %v2340
  %v2342 = vpop.f32.mrf.mxu0
  %v2343 = vadd.f32 %v2314, %v2342
  %2344 = vmatmul.bf16.gmra.mxu0 %v58
  %v2345 = vpop.f32.mrf.mxu0
  %v2346 = vadd.f32 %v2317, %v2345
  %v2347 = vpop.f32.mrf.mxu0
  %v2348 = vadd.f32 %v2319, %v2347
  %2349 = vmatmul.bf16.gmra.mxu0 %v62
  %v2350 = vpop.f32.mrf.mxu0
  %v2351 = vadd.f32 %v2322, %v2350
  %v2352 = vpop.f32.mrf.mxu0
  %v2353 = vadd.f32 %v2324, %v2352
  %2354 = vdwg.mxu0
  %2355 = vmatpush.bf16.msra.mxu0 %v1279
  %2356 = vmatpush.bf16.msra.mxu0 %v1271
  %2357 = vmatpush.bf16.msra.mxu0 %v1263
  %2358 = vmatpush.bf16.msra.mxu0 %v1255
  %2359 = vmatpush.bf16.msra.mxu0 %v1247
  %2360 = vmatpush.bf16.msra.mxu0 %v1239
  %2361 = vmatpush.bf16.msra.mxu0 %v1231
  %2362 = vmatpush.bf16.msra.mxu0 %v1223
  %2363 = vmatmul.bf16.gmra.mxu0 %v51
  %v2364 = vpop.f32.mrf.mxu0
  %v2365 = vadd.f32 %v2336, %v2364
  %v2366 = vpop.f32.mrf.mxu0
  %v2367 = vadd.f32 %v2338, %v2366
  %2368 = vmatmul.bf16.gmra.mxu0 %v55
  %v2369 = vpop.f32.mrf.mxu0
  %v2370 = vadd.f32 %v2341, %v2369
  %v2371 = vpop.f32.mrf.mxu0
  %v2372 = vadd.f32 %v2343, %v2371
  %2373 = vmatmul.bf16.gmra.mxu0 %v59
  %v2374 = vpop.f32.mrf.mxu0
  %v2375 = vadd.f32 %v2346, %v2374
  %v2376 = vpop.f32.mrf.mxu0
  %v2377 = vadd.f32 %v2348, %v2376
  %2378 = vmatmul.bf16.gmra.mxu0 %v63
  %v2379 = vpop.f32.mrf.mxu0
  %v2380 = vadd.f32 %v2351, %v2379
  %v2381 = vpop.f32.mrf.mxu0
  %v2382 = vadd.f32 %v2353, %v2381
  %2383 = vdwg.mxu0
  %2384 = vmatpush.bf16.msra.mxu0 %v1343
  %2385 = vmatpush.bf16.msra.mxu0 %v1335
  %2386 = vmatpush.bf16.msra.mxu0 %v1327
  %2387 = vmatpush.bf16.msra.mxu0 %v1319
  %2388 = vmatpush.bf16.msra.mxu0 %v1311
  %2389 = vmatpush.bf16.msra.mxu0 %v1303
  %2390 = vmatpush.bf16.msra.mxu0 %v1295
  %2391 = vmatpush.bf16.msra.mxu0 %v1287
  %2392 = vmatmul.bf16.gmra.mxu0 %v52
  %v2393 = vpop.f32.mrf.mxu0
  %v2394 = vadd.f32 %v2365, %v2393
  %v2395 = vpop.f32.mrf.mxu0
  %v2396 = vadd.f32 %v2367, %v2395
  %2397 = vmatmul.bf16.gmra.mxu0 %v56
  %v2398 = vpop.f32.mrf.mxu0
  %v2399 = vadd.f32 %v2370, %v2398
  %v2400 = vpop.f32.mrf.mxu0
  %v2401 = vadd.f32 %v2372, %v2400
  %2402 = vmatmul.bf16.gmra.mxu0 %v60
  %v2403 = vpop.f32.mrf.mxu0
  %v2404 = vadd.f32 %v2375, %v2403
  %v2405 = vpop.f32.mrf.mxu0
  %v2406 = vadd.f32 %v2377, %v2405
  %2407 = vmatmul.bf16.gmra.mxu0 %v64
  %v2408 = vpop.f32.mrf.mxu0
  %v2409 = vadd.f32 %v2380, %v2408
  %v2410 = vpop.f32.mrf.mxu0
  %v2411 = vadd.f32 %v2382, %v2410
  %2412 = vdwg.mxu0
  %2413 = vmatpush.bf16.msra.mxu0 %v1152
  %2414 = vmatpush.bf16.msra.mxu0 %v1144
  %2415 = vmatpush.bf16.msra.mxu0 %v1136
  %2416 = vmatpush.bf16.msra.mxu0 %v1128
  %2417 = vmatpush.bf16.msra.mxu0 %v1120
  %2418 = vmatpush.bf16.msra.mxu0 %v1112
  %2419 = vmatpush.bf16.msra.mxu0 %v1104
  %2420 = vmatpush.bf16.msra.mxu0 %v1096
  %2421 = vmatmul.bf16.gmra.mxu0 %v49
  %v2422 = vpop.f32.mrf.mxu0
  %v2423 = vadd.f32 0.0, %v2422
  %v2424 = vpop.f32.mrf.mxu0
  %v2425 = vadd.f32 0.0, %v2424
  %2426 = vmatmul.bf16.gmra.mxu0 %v53
  %v2427 = vpop.f32.mrf.mxu0
  %v2428 = vadd.f32 0.0, %v2427
  %v2429 = vpop.f32.mrf.mxu0
  %v2430 = vadd.f32 0.0, %v2429
  %2431 = vmatmul.bf16.gmra.mxu0 %v57
  %v2432 = vpop.f32.mrf.mxu0
  %v2433 = vadd.f32 0.0, %v2432
  %v2434 = vpop.f32.mrf.mxu0
  %v2435 = vadd.f32 0.0, %v2434
  %2436 = vmatmul.bf16.gmra.mxu0 %v61
  %v2437 = vpop.f32.mrf.mxu0
  %v2438 = vadd.f32 0.0, %v2437
  %v2439 = vpop.f32.mrf.mxu0
  %v2440 = vadd.f32 0.0, %v2439
  %2441 = vdwg.mxu0
  %2442 = vmatpush.bf16.msra.mxu0 %v1216
  %2443 = vmatpush.bf16.msra.mxu0 %v1208
  %2444 = vmatpush.bf16.msra.mxu0 %v1200
  %2445 = vmatpush.bf16.msra.mxu0 %v1192
  %2446 = vmatpush.bf16.msra.mxu0 %v1184
  %2447 = vmatpush.bf16.msra.mxu0 %v1176
  %2448 = vmatpush.bf16.msra.mxu0 %v1168
  %2449 = vmatpush.bf16.msra.mxu0 %v1160
  %2450 = vmatmul.bf16.gmra.mxu0 %v50
  %v2451 = vpop.f32.mrf.mxu0
  %v2452 = vadd.f32 %v2423, %v2451
  %v2453 = vpop.f32.mrf.mxu0
  %v2454 = vadd.f32 %v2425, %v2453
  %2455 = vmatmul.bf16.gmra.mxu0 %v54
  %v2456 = vpop.f32.mrf.mxu0
  %v2457 = vadd.f32 %v2428, %v2456
  %v2458 = vpop.f32.mrf.mxu0
  %v2459 = vadd.f32 %v2430, %v2458
  %2460 = vmatmul.bf16.gmra.mxu0 %v58
  %v2461 = vpop.f32.mrf.mxu0
  %v2462 = vadd.f32 %v2433, %v2461
  %v2463 = vpop.f32.mrf.mxu0
  %v2464 = vadd.f32 %v2435, %v2463
  %2465 = vmatmul.bf16.gmra.mxu0 %v62
  %v2466 = vpop.f32.mrf.mxu0
  %v2467 = vadd.f32 %v2438, %v2466
  %v2468 = vpop.f32.mrf.mxu0
  %v2469 = vadd.f32 %v2440, %v2468
  %2470 = vdwg.mxu0
  %2471 = vmatpush.bf16.msra.mxu0 %v1280
  %2472 = vmatpush.bf16.msra.mxu0 %v1272
  %2473 = vmatpush.bf16.msra.mxu0 %v1264
  %2474 = vmatpush.bf16.msra.mxu0 %v1256
  %2475 = vmatpush.bf16.msra.mxu0 %v1248
  %2476 = vmatpush.bf16.msra.mxu0 %v1240
  %2477 = vmatpush.bf16.msra.mxu0 %v1232
  %2478 = vmatpush.bf16.msra.mxu0 %v1224
  %2479 = vmatmul.bf16.gmra.mxu0 %v51
  %v2480 = vpop.f32.mrf.mxu0
  %v2481 = vadd.f32 %v2452, %v2480
  %v2482 = vpop.f32.mrf.mxu0
  %v2483 = vadd.f32 %v2454, %v2482
  %2484 = vmatmul.bf16.gmra.mxu0 %v55
  %v2485 = vpop.f32.mrf.mxu0
  %v2486 = vadd.f32 %v2457, %v2485
  %v2487 = vpop.f32.mrf.mxu0
  %v2488 = vadd.f32 %v2459, %v2487
  %2489 = vmatmul.bf16.gmra.mxu0 %v59
  %v2490 = vpop.f32.mrf.mxu0
  %v2491 = vadd.f32 %v2462, %v2490
  %v2492 = vpop.f32.mrf.mxu0
  %v2493 = vadd.f32 %v2464, %v2492
  %2494 = vmatmul.bf16.gmra.mxu0 %v63
  %v2495 = vpop.f32.mrf.mxu0
  %v2496 = vadd.f32 %v2467, %v2495
  %v2497 = vpop.f32.mrf.mxu0
  %v2498 = vadd.f32 %v2469, %v2497
  %2499 = vdwg.mxu0
  %2500 = vmatpush.bf16.msra.mxu0 %v1344
  %2501 = vmatpush.bf16.msra.mxu0 %v1336
  %2502 = vmatpush.bf16.msra.mxu0 %v1328
  %2503 = vmatpush.bf16.msra.mxu0 %v1320
  %2504 = vmatpush.bf16.msra.mxu0 %v1312
  %2505 = vmatpush.bf16.msra.mxu0 %v1304
  %2506 = vmatpush.bf16.msra.mxu0 %v1296
  %2507 = vmatpush.bf16.msra.mxu0 %v1288
  %2508 = vmatmul.bf16.gmra.mxu0 %v52
  %v2509 = vpop.f32.mrf.mxu0
  %v2510 = vadd.f32 %v2481, %v2509
  %v2511 = vpop.f32.mrf.mxu0
  %v2512 = vadd.f32 %v2483, %v2511
  %2513 = vmatmul.bf16.gmra.mxu0 %v56
  %v2514 = vpop.f32.mrf.mxu0
  %v2515 = vadd.f32 %v2486, %v2514
  %v2516 = vpop.f32.mrf.mxu0
  %v2517 = vadd.f32 %v2488, %v2516
  %2518 = vmatmul.bf16.gmra.mxu0 %v60
  %v2519 = vpop.f32.mrf.mxu0
  %v2520 = vadd.f32 %v2491, %v2519
  %v2521 = vpop.f32.mrf.mxu0
  %v2522 = vadd.f32 %v2493, %v2521
  %2523 = vmatmul.bf16.gmra.mxu0 %v64
  %v2524 = vpop.f32.mrf.mxu0
  %v2525 = vadd.f32 %v2496, %v2524
  %v2526 = vpop.f32.mrf.mxu0
  %v2527 = vadd.f32 %v2498, %v2526
  %2528 = vdwg.mxu0
  %v2529 = vld [vmem:[%s2] sm:$0xff]
  %v2531 = vperm.slane %v2529, 0
  %v2532 = vperm.slane %v2529, 1
  %v2533 = vperm.slane %v2529, 2
  %v2534 = vperm.slane %v2529, 3
  %v2535 = vperm.slane %v2529, 4
  %v2536 = vperm.slane %v2529, 5
  %v2537 = vperm.slane %v2529, 6
  %v2538 = vperm.slane %v2529, 7
  %v2547 = vmul.f32 %v1698, %v2531
  %v2548 = vmul.f32 %v1814, %v2532
  %v2549 = vmul.f32 %v1930, %v2533
  %v2550 = vmul.f32 %v2046, %v2534
  %v2551 = vmul.f32 %v2162, %v2535
  %v2552 = vmul.f32 %v2278, %v2536
  %v2553 = vmul.f32 %v2394, %v2537
  %v2554 = vmul.f32 %v2510, %v2538
  %v2555 = vmul.f32 %v1700, %v2531
  %v2556 = vmul.f32 %v1816, %v2532
  %v2557 = vmul.f32 %v1932, %v2533
  %v2558 = vmul.f32 %v2048, %v2534
  %v2559 = vmul.f32 %v2164, %v2535
  %v2560 = vmul.f32 %v2280, %v2536
  %v2561 = vmul.f32 %v2396, %v2537
  %v2562 = vmul.f32 %v2512, %v2538
  %v2563 = vmul.f32 %v1703, %v2531
  %v2564 = vmul.f32 %v1819, %v2532
  %v2565 = vmul.f32 %v1935, %v2533
  %v2566 = vmul.f32 %v2051, %v2534
  %v2567 = vmul.f32 %v2167, %v2535
  %v2568 = vmul.f32 %v2283, %v2536
  %v2569 = vmul.f32 %v2399, %v2537
  %v2570 = vmul.f32 %v2515, %v2538
  %v2571 = vmul.f32 %v1705, %v2531
  %v2572 = vmul.f32 %v1821, %v2532
  %v2573 = vmul.f32 %v1937, %v2533
  %v2574 = vmul.f32 %v2053, %v2534
  %v2575 = vmul.f32 %v2169, %v2535
  %v2576 = vmul.f32 %v2285, %v2536
  %v2577 = vmul.f32 %v2401, %v2537
  %v2578 = vmul.f32 %v2517, %v2538
  %v2579 = vmul.f32 %v1708, %v2531
  %v2580 = vmul.f32 %v1824, %v2532
  %v2581 = vmul.f32 %v1940, %v2533
  %v2582 = vmul.f32 %v2056, %v2534
  %v2583 = vmul.f32 %v2172, %v2535
  %v2584 = vmul.f32 %v2288, %v2536
  %v2585 = vmul.f32 %v2404, %v2537
  %v2586 = vmul.f32 %v2520, %v2538
  %v2587 = vmul.f32 %v1710, %v2531
  %v2588 = vmul.f32 %v1826, %v2532
  %v2589 = vmul.f32 %v1942, %v2533
  %v2590 = vmul.f32 %v2058, %v2534
  %v2591 = vmul.f32 %v2174, %v2535
  %v2592 = vmul.f32 %v2290, %v2536
  %v2593 = vmul.f32 %v2406, %v2537
  %v2594 = vmul.f32 %v2522, %v2538
  %v2595 = vmul.f32 %v1713, %v2531
  %v2596 = vmul.f32 %v1829, %v2532
  %v2597 = vmul.f32 %v1945, %v2533
  %v2598 = vmul.f32 %v2061, %v2534
  %v2599 = vmul.f32 %v2177, %v2535
  %v2600 = vmul.f32 %v2293, %v2536
  %v2601 = vmul.f32 %v2409, %v2537
  %v2602 = vmul.f32 %v2525, %v2538
  %v2603 = vmul.f32 %v1715, %v2531
  %v2604 = vmul.f32 %v1831, %v2532
  %v2605 = vmul.f32 %v1947, %v2533
  %v2606 = vmul.f32 %v2063, %v2534
  %v2607 = vmul.f32 %v2179, %v2535
  %v2608 = vmul.f32 %v2295, %v2536
  %v2609 = vmul.f32 %v2411, %v2537
  %v2610 = vmul.f32 %v2527, %v2538
  %v2611 = vld [vmem:[%s3] sm:$0xff]
  %v2613 = vperm.slane %v2611, 0
  %v2614 = vperm.slane %v2611, 1
  %v2615 = vperm.slane %v2611, 2
  %v2616 = vperm.slane %v2611, 3
  %v2617 = vperm.slane %v2611, 4
  %v2618 = vperm.slane %v2611, 5
  %v2619 = vperm.slane %v2611, 6
  %v2620 = vperm.slane %v2611, 7
  %v2629 = vadd.f32 %v2547, %v2613
  %v2630 = vadd.f32 %v2548, %v2614
  %v2631 = vadd.f32 %v2549, %v2615
  %v2632 = vadd.f32 %v2550, %v2616
  %v2633 = vadd.f32 %v2551, %v2617
  %v2634 = vadd.f32 %v2552, %v2618
  %v2635 = vadd.f32 %v2553, %v2619
  %v2636 = vadd.f32 %v2554, %v2620
  %v2637 = vadd.f32 %v2555, %v2613
  %v2638 = vadd.f32 %v2556, %v2614
  %v2639 = vadd.f32 %v2557, %v2615
  %v2640 = vadd.f32 %v2558, %v2616
  %v2641 = vadd.f32 %v2559, %v2617
  %v2642 = vadd.f32 %v2560, %v2618
  %v2643 = vadd.f32 %v2561, %v2619
  %v2644 = vadd.f32 %v2562, %v2620
  %v2645 = vadd.f32 %v2563, %v2613
  %v2646 = vadd.f32 %v2564, %v2614
  %v2647 = vadd.f32 %v2565, %v2615
  %v2648 = vadd.f32 %v2566, %v2616
  %v2649 = vadd.f32 %v2567, %v2617
  %v2650 = vadd.f32 %v2568, %v2618
  %v2651 = vadd.f32 %v2569, %v2619
  %v2652 = vadd.f32 %v2570, %v2620
  %v2653 = vadd.f32 %v2571, %v2613
  %v2654 = vadd.f32 %v2572, %v2614
  %v2655 = vadd.f32 %v2573, %v2615
  %v2656 = vadd.f32 %v2574, %v2616
  %v2657 = vadd.f32 %v2575, %v2617
  %v2658 = vadd.f32 %v2576, %v2618
  %v2659 = vadd.f32 %v2577, %v2619
  %v2660 = vadd.f32 %v2578, %v2620
  %v2661 = vadd.f32 %v2579, %v2613
  %v2662 = vadd.f32 %v2580, %v2614
  %v2663 = vadd.f32 %v2581, %v2615
  %v2664 = vadd.f32 %v2582, %v2616
  %v2665 = vadd.f32 %v2583, %v2617
  %v2666 = vadd.f32 %v2584, %v2618
  %v2667 = vadd.f32 %v2585, %v2619
  %v2668 = vadd.f32 %v2586, %v2620
  %v2669 = vadd.f32 %v2587, %v2613
  %v2670 = vadd.f32 %v2588, %v2614
  %v2671 = vadd.f32 %v2589, %v2615
  %v2672 = vadd.f32 %v2590, %v2616
  %v2673 = vadd.f32 %v2591, %v2617
  %v2674 = vadd.f32 %v2592, %v2618
  %v2675 = vadd.f32 %v2593, %v2619
  %v2676 = vadd.f32 %v2594, %v2620
  %v2677 = vadd.f32 %v2595, %v2613
  %v2678 = vadd.f32 %v2596, %v2614
  %v2679 = vadd.f32 %v2597, %v2615
  %v2680 = vadd.f32 %v2598, %v2616
  %v2681 = vadd.f32 %v2599, %v2617
  %v2682 = vadd.f32 %v2600, %v2618
  %v2683 = vadd.f32 %v2601, %v2619
  %v2684 = vadd.f32 %v2602, %v2620
  %v2685 = vadd.f32 %v2603, %v2613
  %v2686 = vadd.f32 %v2604, %v2614
  %v2687 = vadd.f32 %v2605, %v2615
  %v2688 = vadd.f32 %v2606, %v2616
  %v2689 = vadd.f32 %v2607, %v2617
  %v2690 = vadd.f32 %v2608, %v2618
  %v2691 = vadd.f32 %v2609, %v2619
  %v2692 = vadd.f32 %v2610, %v2620
  %vm2693 = vcmp.ge.f32.partialorder %v2629, 0.0
  %vm2694 = vcmp.ge.f32.partialorder %v2630, 0.0
  %vm2695 = vcmp.ge.f32.partialorder %v2631, 0.0
  %vm2696 = vcmp.ge.f32.partialorder %v2632, 0.0
  %vm2697 = vcmp.ge.f32.partialorder %v2633, 0.0
  %vm2698 = vcmp.ge.f32.partialorder %v2634, 0.0
  %vm2699 = vcmp.ge.f32.partialorder %v2635, 0.0
  %vm2700 = vcmp.ge.f32.partialorder %v2636, 0.0
  %vm2701 = vcmp.ge.f32.partialorder %v2637, 0.0
  %vm2702 = vcmp.ge.f32.partialorder %v2638, 0.0
  %vm2703 = vcmp.ge.f32.partialorder %v2639, 0.0
  %vm2704 = vcmp.ge.f32.partialorder %v2640, 0.0
  %vm2705 = vcmp.ge.f32.partialorder %v2641, 0.0
  %vm2706 = vcmp.ge.f32.partialorder %v2642, 0.0
  %vm2707 = vcmp.ge.f32.partialorder %v2643, 0.0
  %vm2708 = vcmp.ge.f32.partialorder %v2644, 0.0
  %vm2709 = vcmp.ge.f32.partialorder %v2645, 0.0
  %vm2710 = vcmp.ge.f32.partialorder %v2646, 0.0
  %vm2711 = vcmp.ge.f32.partialorder %v2647, 0.0
  %vm2712 = vcmp.ge.f32.partialorder %v2648, 0.0
  %vm2713 = vcmp.ge.f32.partialorder %v2649, 0.0
  %vm2714 = vcmp.ge.f32.partialorder %v2650, 0.0
  %vm2715 = vcmp.ge.f32.partialorder %v2651, 0.0
  %vm2716 = vcmp.ge.f32.partialorder %v2652, 0.0
  %vm2717 = vcmp.ge.f32.partialorder %v2653, 0.0
  %vm2718 = vcmp.ge.f32.partialorder %v2654, 0.0
  %vm2719 = vcmp.ge.f32.partialorder %v2655, 0.0
  %vm2720 = vcmp.ge.f32.partialorder %v2656, 0.0
  %vm2721 = vcmp.ge.f32.partialorder %v2657, 0.0
  %vm2722 = vcmp.ge.f32.partialorder %v2658, 0.0
  %vm2723 = vcmp.ge.f32.partialorder %v2659, 0.0
  %vm2724 = vcmp.ge.f32.partialorder %v2660, 0.0
  %vm2725 = vcmp.ge.f32.partialorder %v2661, 0.0
  %vm2726 = vcmp.ge.f32.partialorder %v2662, 0.0
  %vm2727 = vcmp.ge.f32.partialorder %v2663, 0.0
  %vm2728 = vcmp.ge.f32.partialorder %v2664, 0.0
  %vm2729 = vcmp.ge.f32.partialorder %v2665, 0.0
  %vm2730 = vcmp.ge.f32.partialorder %v2666, 0.0
  %vm2731 = vcmp.ge.f32.partialorder %v2667, 0.0
  %vm2732 = vcmp.ge.f32.partialorder %v2668, 0.0
  %vm2733 = vcmp.ge.f32.partialorder %v2669, 0.0
  %vm2734 = vcmp.ge.f32.partialorder %v2670, 0.0
  %vm2735 = vcmp.ge.f32.partialorder %v2671, 0.0
  %vm2736 = vcmp.ge.f32.partialorder %v2672, 0.0
  %vm2737 = vcmp.ge.f32.partialorder %v2673, 0.0
  %vm2738 = vcmp.ge.f32.partialorder %v2674, 0.0
  %vm2739 = vcmp.ge.f32.partialorder %v2675, 0.0
  %vm2740 = vcmp.ge.f32.partialorder %v2676, 0.0
  %vm2741 = vcmp.ge.f32.partialorder %v2677, 0.0
  %vm2742 = vcmp.ge.f32.partialorder %v2678, 0.0
  %vm2743 = vcmp.ge.f32.partialorder %v2679, 0.0
  %vm2744 = vcmp.ge.f32.partialorder %v2680, 0.0
  %vm2745 = vcmp.ge.f32.partialorder %v2681, 0.0
  %vm2746 = vcmp.ge.f32.partialorder %v2682, 0.0
  %vm2747 = vcmp.ge.f32.partialorder %v2683, 0.0
  %vm2748 = vcmp.ge.f32.partialorder %v2684, 0.0
  %vm2749 = vcmp.ge.f32.partialorder %v2685, 0.0
  %vm2750 = vcmp.ge.f32.partialorder %v2686, 0.0
  %vm2751 = vcmp.ge.f32.partialorder %v2687, 0.0
  %vm2752 = vcmp.ge.f32.partialorder %v2688, 0.0
  %vm2753 = vcmp.ge.f32.partialorder %v2689, 0.0
  %vm2754 = vcmp.ge.f32.partialorder %v2690, 0.0
  %vm2755 = vcmp.ge.f32.partialorder %v2691, 0.0
  %vm2756 = vcmp.ge.f32.partialorder %v2692, 0.0
  %v2757 = vmul.f32 %v2629, 0.2
  %v2758 = vmul.f32 %v2630, 0.2
  %v2759 = vmul.f32 %v2631, 0.2
  %v2760 = vmul.f32 %v2632, 0.2
  %v2761 = vmul.f32 %v2633, 0.2
  %v2762 = vmul.f32 %v2634, 0.2
  %v2763 = vmul.f32 %v2635, 0.2
  %v2764 = vmul.f32 %v2636, 0.2
  %v2765 = vmul.f32 %v2637, 0.2
  %v2766 = vmul.f32 %v2638, 0.2
  %v2767 = vmul.f32 %v2639, 0.2
  %v2768 = vmul.f32 %v2640, 0.2
  %v2769 = vmul.f32 %v2641, 0.2
  %v2770 = vmul.f32 %v2642, 0.2
  %v2771 = vmul.f32 %v2643, 0.2
  %v2772 = vmul.f32 %v2644, 0.2
  %v2773 = vmul.f32 %v2645, 0.2
  %v2774 = vmul.f32 %v2646, 0.2
  %v2775 = vmul.f32 %v2647, 0.2
  %v2776 = vmul.f32 %v2648, 0.2
  %v2777 = vmul.f32 %v2649, 0.2
  %v2778 = vmul.f32 %v2650, 0.2
  %v2779 = vmul.f32 %v2651, 0.2
  %v2780 = vmul.f32 %v2652, 0.2
  %v2781 = vmul.f32 %v2653, 0.2
  %v2782 = vmul.f32 %v2654, 0.2
  %v2783 = vmul.f32 %v2655, 0.2
  %v2784 = vmul.f32 %v2656, 0.2
  %v2785 = vmul.f32 %v2657, 0.2
  %v2786 = vmul.f32 %v2658, 0.2
  %v2787 = vmul.f32 %v2659, 0.2
  %v2788 = vmul.f32 %v2660, 0.2
  %v2789 = vmul.f32 %v2661, 0.2
  %v2790 = vmul.f32 %v2662, 0.2
  %v2791 = vmul.f32 %v2663, 0.2
  %v2792 = vmul.f32 %v2664, 0.2
  %v2793 = vmul.f32 %v2665, 0.2
  %v2794 = vmul.f32 %v2666, 0.2
  %v2795 = vmul.f32 %v2667, 0.2
  %v2796 = vmul.f32 %v2668, 0.2
  %v2797 = vmul.f32 %v2669, 0.2
  %v2798 = vmul.f32 %v2670, 0.2
  %v2799 = vmul.f32 %v2671, 0.2
  %v2800 = vmul.f32 %v2672, 0.2
  %v2801 = vmul.f32 %v2673, 0.2
  %v2802 = vmul.f32 %v2674, 0.2
  %v2803 = vmul.f32 %v2675, 0.2
  %v2804 = vmul.f32 %v2676, 0.2
  %v2805 = vmul.f32 %v2677, 0.2
  %v2806 = vmul.f32 %v2678, 0.2
  %v2807 = vmul.f32 %v2679, 0.2
  %v2808 = vmul.f32 %v2680, 0.2
  %v2809 = vmul.f32 %v2681, 0.2
  %v2810 = vmul.f32 %v2682, 0.2
  %v2811 = vmul.f32 %v2683, 0.2
  %v2812 = vmul.f32 %v2684, 0.2
  %v2813 = vmul.f32 %v2685, 0.2
  %v2814 = vmul.f32 %v2686, 0.2
  %v2815 = vmul.f32 %v2687, 0.2
  %v2816 = vmul.f32 %v2688, 0.2
  %v2817 = vmul.f32 %v2689, 0.2
  %v2818 = vmul.f32 %v2690, 0.2
  %v2819 = vmul.f32 %v2691, 0.2
  %v2820 = vmul.f32 %v2692, 0.2
  %v2821 = vsel %vm2693, %v2629, %v2757
  %v2822 = vsel %vm2694, %v2630, %v2758
  %v2823 = vsel %vm2695, %v2631, %v2759
  %v2824 = vsel %vm2696, %v2632, %v2760
  %v2825 = vsel %vm2697, %v2633, %v2761
  %v2826 = vsel %vm2698, %v2634, %v2762
  %v2827 = vsel %vm2699, %v2635, %v2763
  %v2828 = vsel %vm2700, %v2636, %v2764
  %v2829 = vsel %vm2701, %v2637, %v2765
  %v2830 = vsel %vm2702, %v2638, %v2766
  %v2831 = vsel %vm2703, %v2639, %v2767
  %v2832 = vsel %vm2704, %v2640, %v2768
  %v2833 = vsel %vm2705, %v2641, %v2769
  %v2834 = vsel %vm2706, %v2642, %v2770
  %v2835 = vsel %vm2707, %v2643, %v2771
  %v2836 = vsel %vm2708, %v2644, %v2772
  %v2837 = vsel %vm2709, %v2645, %v2773
  %v2838 = vsel %vm2710, %v2646, %v2774
  %v2839 = vsel %vm2711, %v2647, %v2775
  %v2840 = vsel %vm2712, %v2648, %v2776
  %v2841 = vsel %vm2713, %v2649, %v2777
  %v2842 = vsel %vm2714, %v2650, %v2778
  %v2843 = vsel %vm2715, %v2651, %v2779
  %v2844 = vsel %vm2716, %v2652, %v2780
  %v2845 = vsel %vm2717, %v2653, %v2781
  %v2846 = vsel %vm2718, %v2654, %v2782
  %v2847 = vsel %vm2719, %v2655, %v2783
  %v2848 = vsel %vm2720, %v2656, %v2784
  %v2849 = vsel %vm2721, %v2657, %v2785
  %v2850 = vsel %vm2722, %v2658, %v2786
  %v2851 = vsel %vm2723, %v2659, %v2787
  %v2852 = vsel %vm2724, %v2660, %v2788
  %v2853 = vsel %vm2725, %v2661, %v2789
  %v2854 = vsel %vm2726, %v2662, %v2790
  %v2855 = vsel %vm2727, %v2663, %v2791
  %v2856 = vsel %vm2728, %v2664, %v2792
  %v2857 = vsel %vm2729, %v2665, %v2793
  %v2858 = vsel %vm2730, %v2666, %v2794
  %v2859 = vsel %vm2731, %v2667, %v2795
  %v2860 = vsel %vm2732, %v2668, %v2796
  %v2861 = vsel %vm2733, %v2669, %v2797
  %v2862 = vsel %vm2734, %v2670, %v2798
  %v2863 = vsel %vm2735, %v2671, %v2799
  %v2864 = vsel %vm2736, %v2672, %v2800
  %v2865 = vsel %vm2737, %v2673, %v2801
  %v2866 = vsel %vm2738, %v2674, %v2802
  %v2867 = vsel %vm2739, %v2675, %v2803
  %v2868 = vsel %vm2740, %v2676, %v2804
  %v2869 = vsel %vm2741, %v2677, %v2805
  %v2870 = vsel %vm2742, %v2678, %v2806
  %v2871 = vsel %vm2743, %v2679, %v2807
  %v2872 = vsel %vm2744, %v2680, %v2808
  %v2873 = vsel %vm2745, %v2681, %v2809
  %v2874 = vsel %vm2746, %v2682, %v2810
  %v2875 = vsel %vm2747, %v2683, %v2811
  %v2876 = vsel %vm2748, %v2684, %v2812
  %v2877 = vsel %vm2749, %v2685, %v2813
  %v2878 = vsel %vm2750, %v2686, %v2814
  %v2879 = vsel %vm2751, %v2687, %v2815
  %v2880 = vsel %vm2752, %v2688, %v2816
  %v2881 = vsel %vm2753, %v2689, %v2817
  %v2882 = vsel %vm2754, %v2690, %v2818
  %v2883 = vsel %vm2755, %v2691, %v2819
  %v2884 = vsel %vm2756, %v2692, %v2820
  %2885 = vst [vmem:[%s4] sm:$0xff] %v2821
  %2886 = vst [vmem:[%s4 + $0x8] sm:$0xff] %v2822
  %2887 = vst [vmem:[%s4 + $0x10] sm:$0xff] %v2823
  %2888 = vst [vmem:[%s4 + $0x18] sm:$0xff] %v2824
  %2889 = vst [vmem:[%s4 + $0x20] sm:$0xff] %v2825
  %2890 = vst [vmem:[%s4 + $0x28] sm:$0xff] %v2826
  %2891 = vst [vmem:[%s4 + $0x30] sm:$0xff] %v2827
  %2892 = vst [vmem:[%s4 + $0x38] sm:$0xff] %v2828
  %2893 = vst [vmem:[%s4 + $0x40] sm:$0xff] %v2829
  %2894 = vst [vmem:[%s4 + $0x48] sm:$0xff] %v2830
  %2895 = vst [vmem:[%s4 + $0x50] sm:$0xff] %v2831
  %2896 = vst [vmem:[%s4 + $0x58] sm:$0xff] %v2832
  %2897 = vst [vmem:[%s4 + $0x60] sm:$0xff] %v2833
  %2898 = vst [vmem:[%s4 + $0x68] sm:$0xff] %v2834
  %2899 = vst [vmem:[%s4 + $0x70] sm:$0xff] %v2835
  %2900 = vst [vmem:[%s4 + $0x78] sm:$0xff] %v2836
  %2901 = vst [vmem:[%s4 + $0x80] sm:$0xff] %v2837
  %2902 = vst [vmem:[%s4 + $0x88] sm:$0xff] %v2838
  %2903 = vst [vmem:[%s4 + $0x90] sm:$0xff] %v2839
  %2904 = vst [vmem:[%s4 + $0x98] sm:$0xff] %v2840
  %2905 = vst [vmem:[%s4 + $0xa0] sm:$0xff] %v2841
  %2906 = vst [vmem:[%s4 + $0xa8] sm:$0xff] %v2842
  %2907 = vst [vmem:[%s4 + $0xb0] sm:$0xff] %v2843
  %2908 = vst [vmem:[%s4 + $0xb8] sm:$0xff] %v2844
  %2909 = vst [vmem:[%s4 + $0xc0] sm:$0xff] %v2845
  %2910 = vst [vmem:[%s4 + $0xc8] sm:$0xff] %v2846
  %2911 = vst [vmem:[%s4 + $0xd0] sm:$0xff] %v2847
  %2912 = vst [vmem:[%s4 + $0xd8] sm:$0xff] %v2848
  %2913 = vst [vmem:[%s4 + $0xe0] sm:$0xff] %v2849
  %2914 = vst [vmem:[%s4 + $0xe8] sm:$0xff] %v2850
  %2915 = vst [vmem:[%s4 + $0xf0] sm:$0xff] %v2851
  %2916 = vst [vmem:[%s4 + $0xf8] sm:$0xff] %v2852
  %2917 = vst [vmem:[%s4 + $0x100] sm:$0xff] %v2853
  %2918 = vst [vmem:[%s4 + $0x108] sm:$0xff] %v2854
  %2919 = vst [vmem:[%s4 + $0x110] sm:$0xff] %v2855
  %2920 = vst [vmem:[%s4 + $0x118] sm:$0xff] %v2856
  %2921 = vst [vmem:[%s4 + $0x120] sm:$0xff] %v2857
  %2922 = vst [vmem:[%s4 + $0x128] sm:$0xff] %v2858
  %2923 = vst [vmem:[%s4 + $0x130] sm:$0xff] %v2859
  %2924 = vst [vmem:[%s4 + $0x138] sm:$0xff] %v2860
  %2925 = vst [vmem:[%s4 + $0x140] sm:$0xff] %v2861
  %2926 = vst [vmem:[%s4 + $0x148] sm:$0xff] %v2862
  %2927 = vst [vmem:[%s4 + $0x150] sm:$0xff] %v2863
  %2928 = vst [vmem:[%s4 + $0x158] sm:$0xff] %v2864
  %2929 = vst [vmem:[%s4 + $0x160] sm:$0xff] %v2865
  %2930 = vst [vmem:[%s4 + $0x168] sm:$0xff] %v2866
  %2931 = vst [vmem:[%s4 + $0x170] sm:$0xff] %v2867
  %2932 = vst [vmem:[%s4 + $0x178] sm:$0xff] %v2868
  %2933 = vst [vmem:[%s4 + $0x180] sm:$0xff] %v2869
  %2934 = vst [vmem:[%s4 + $0x188] sm:$0xff] %v2870
  %2935 = vst [vmem:[%s4 + $0x190] sm:$0xff] %v2871
  %2936 = vst [vmem:[%s4 + $0x198] sm:$0xff] %v2872
  %2937 = vst [vmem:[%s4 + $0x1a0] sm:$0xff] %v2873
  %2938 = vst [vmem:[%s4 + $0x1a8] sm:$0xff] %v2874
  %2939 = vst [vmem:[%s4 + $0x1b0] sm:$0xff] %v2875
  %2940 = vst [vmem:[%s4 + $0x1b8] sm:$0xff] %v2876
  %2941 = vst [vmem:[%s4 + $0x1c0] sm:$0xff] %v2877
  %2942 = vst [vmem:[%s4 + $0x1c8] sm:$0xff] %v2878
  %2943 = vst [vmem:[%s4 + $0x1d0] sm:$0xff] %v2879
  %2944 = vst [vmem:[%s4 + $0x1d8] sm:$0xff] %v2880
  %2945 = vst [vmem:[%s4 + $0x1e0] sm:$0xff] %v2881
  %2946 = vst [vmem:[%s4 + $0x1e8] sm:$0xff] %v2882
  %2947 = vst [vmem:[%s4 + $0x1f0] sm:$0xff] %v2883
  %2948 = vst [vmem:[%s4 + $0x1f8] sm:$0xff] %v2884
  // Predicated region
  $region18: #{dgcnn_forward.26} parent=0 // pred_check
    _
  $region19: #{dgcnn_forward.26} parent=0 // pred_check_branch
    %2950 = sbr.rel (0) target = $region21
  $region20: #{dgcnn_forward.26} parent=0 // pred_region
    _
  $region21: #{dgcnn_forward.26} parent=0 // pred_fallthru
    _
  // Predicated region
  $region22: #{dgcnn_forward.26} parent=0 // pred_check
    _
  $region23: #{dgcnn_forward.26} parent=0 // pred_check_branch
    %2952 = sbr.rel (0) target = $region25
  $region24: #{dgcnn_forward.26} parent=0 // pred_region
    _
  $region25: #{dgcnn_forward.26} parent=0 // pred_fallthru
    _

</llo_original>
